<compile_context>
chip_gen: v7x
topology: tpu7x:2x2x1
jax: 0.10.0
libtpu: 0.0.40
codegen_flags: <defaults>
</compile_context>

<pallas_src>
import jax
import jax.numpy as jnp
from jax import lax
from jax.experimental import pallas as pl
from jax.experimental.pallas import tpu as pltpu


# ----------------------------- helpers (traced inside the kernel) -----------

def _erf(x):
    # Abramowitz & Stegun 7.1.26 rational approximation, |err| < 1.5e-7.
    a1, a2, a3, a4, a5 = 0.254829592, -0.284496736, 1.421413741, -1.453152027, 1.061405429
    p = 0.3275911
    s = jnp.where(x >= 0.0, 1.0, -1.0)
    ax = jnp.abs(x)
    t = 1.0 / (1.0 + p * ax)
    poly = ((((a5 * t + a4) * t + a3) * t + a2) * t + a1) * t
    return s * (1.0 - poly * jnp.exp(-ax * ax))


def _gelu_exact(x):
    # matches torch.nn.GELU() (erf formulation)
    return 0.5 * x * (1.0 + _erf(x * 0.7071067811865476))


def _shift_p(g, axis):
    # out[i] = in[i-1] for i >= 1, out[0] = in[0]
    n = g.shape[axis]
    head = lax.slice_in_dim(g, 0, 1, axis=axis)
    body = lax.slice_in_dim(g, 0, n - 1, axis=axis)
    return jnp.concatenate([head, body], axis=axis)


def _shift_m(g, axis):
    # out[i] = in[i+1] for i < n-1, out[n-1] = in[n-1]
    n = g.shape[axis]
    body = lax.slice_in_dim(g, 1, n, axis=axis)
    tail = lax.slice_in_dim(g, n - 1, n, axis=axis)
    return jnp.concatenate([body, tail], axis=axis)


def _spatial_shift1(y):
    # y: (B, W, H, C); channel groups of C//4; shifts along W, W, H, H
    C = y.shape[-1]
    cg = C // 4
    return jnp.concatenate(
        [
            _shift_p(y[..., 0 * cg:1 * cg], 1),
            _shift_m(y[..., 1 * cg:2 * cg], 1),
            _shift_p(y[..., 2 * cg:3 * cg], 2),
            _shift_m(y[..., 3 * cg:4 * cg], 2),
        ],
        axis=-1,
    )


def _spatial_shift2(y):
    # y: (B, W, H, C); channel groups of C//4; shifts along H, H, W, W
    C = y.shape[-1]
    cg = C // 4
    return jnp.concatenate(
        [
            _shift_p(y[..., 0 * cg:1 * cg], 2),
            _shift_m(y[..., 1 * cg:2 * cg], 2),
            _shift_p(y[..., 2 * cg:3 * cg], 1),
            _shift_m(y[..., 3 * cg:4 * cg], 1),
        ],
        axis=-1,
    )


# ----------------------------- Pallas kernel --------------------------------

def s2attn_kernel(x_ref, w1_ref, b1_ref, wa1_ref, wa2_ref, w2_ref, b2_ref, o_ref):
    B, W, H, C = x_ref.shape
    N = B * W * H                                 # batch fused into matmul M

    xf = x_ref[...].reshape(N, C)

    # mlp1: (N, C) @ (C, 3C) + bias  (bf16 inputs, f32 accumulation)
    y = jnp.dot(xf.astype(jnp.bfloat16), w1_ref[...],
                preferred_element_type=jnp.float32) + b1_ref[...]

    y1 = _spatial_shift1(y[:, :C].reshape(B, W, H, C))
    y2 = _spatial_shift2(y[:, C:2 * C].reshape(B, W, H, C))
    y3 = y[:, 2 * C:].reshape(B, W, H, C)

    y1f = y1.reshape(B, W * H, C)
    y2f = y2.reshape(B, W * H, C)
    y3f = y3.reshape(B, W * H, C)

    # SplitAttention: a = sum over branches and spatial -> (B, C)
    a = jnp.sum(y1f + y2f + y3f, axis=1)

    h = _gelu_exact(jnp.dot(a.astype(jnp.bfloat16), wa1_ref[...],
                            preferred_element_type=jnp.float32))
    hat = jnp.dot(h.astype(jnp.bfloat16), wa2_ref[...],
                  preferred_element_type=jnp.float32)          # (B, 3C)

    # softmax over the 3 branches, per channel
    h0 = hat[:, :C]
    h1 = hat[:, C:2 * C]
    h2 = hat[:, 2 * C:]
    m = jnp.maximum(jnp.maximum(h0, h1), h2)
    e0 = jnp.exp(h0 - m)
    e1 = jnp.exp(h1 - m)
    e2 = jnp.exp(h2 - m)
    inv = 1.0 / (e0 + e1 + e2)
    a0 = (e0 * inv).reshape(B, 1, C)
    a1 = (e1 * inv).reshape(B, 1, C)
    a2 = (e2 * inv).reshape(B, 1, C)

    out = a0 * y1f + a1 * y2f + a2 * y3f                       # (B, WH, C)

    # mlp2: (N, C) @ (C, C) + bias
    z = jnp.dot(out.reshape(N, C).astype(jnp.bfloat16), w2_ref[...],
                preferred_element_type=jnp.float32) + b2_ref[...]
    o_ref[...] = z.reshape(B, W, H, C)


# ----------------------------- wrapper ---------------------------------------

@jax.jit
def s2_attention(x_nchw, w1, b1, wa1, wa2, w2, b2):
    B, C, W, H = x_nchw.shape
    # TODO(synk): the NCHW<->NWHC permutes stay in XLA (in-kernel CWH->WHC
    # transpose would be an expensive Mosaic relayout at this layout).
    x = jnp.transpose(x_nchw, (0, 2, 3, 1))       # (B, W, H, C) channels-last

    # bf16 weights: halves the dominant HBM->VMEM weight traffic.
    w1b = w1.astype(jnp.bfloat16)
    wa1b = wa1.astype(jnp.bfloat16)
    wa2b = wa2.astype(jnp.bfloat16)
    w2b = w2.astype(jnp.bfloat16)

    N = B * W * H
    flops = (2 * N * C * 3 * C            # mlp1
             + 2 * B * C * C              # split-attn mlp1
             + 2 * B * C * 3 * C          # split-attn mlp2
             + 2 * N * C * C)             # mlp2
    transcendentals = 4 * B * C           # erf exp + 3 softmax exps
    bytes_accessed = ((w1b.size + wa1b.size + wa2b.size + w2b.size) * 2
                      + (b1.size + b2.size) * 4
                      + 2 * x.size * 4)   # read x + write out

    vmem_spec = pl.BlockSpec(memory_space=pltpu.MemorySpace.VMEM)

    out = pl.pallas_call(
        s2attn_kernel,
        out_shape=jax.ShapeDtypeStruct((B, W, H, C), jnp.float32),
        # No grid: one invocation, whole arrays resident in VMEM, weights
        # loaded once (single-buffered) and never duplicated across cores.
        in_specs=[vmem_spec] * 7,
        out_specs=vmem_spec,
        compiler_params=pltpu.CompilerParams(
            vmem_limit_bytes=32 * 1024 * 1024,    # fits v7x's 64 MiB VMEM
        ),
        cost_estimate=pl.CostEstimate(
            flops=int(flops),
            transcendentals=int(transcendentals),
            bytes_accessed=int(bytes_accessed),
        ),
    )(x, w1b, b1.reshape(1, -1), wa1b, wa2b, w2b, b2.reshape(1, -1))

    return jnp.transpose(out, (0, 3, 1, 2))       # back to NCHW


# ----------------------------- pure-JAX reference (same bf16 numerics) -------

def s2_attention_ref(x_nchw, w1, b1, wa1, wa2, w2, b2):
    bf = jnp.bfloat16
    B, C, W, H = x_nchw.shape
    x = jnp.transpose(x_nchw, (0, 2, 3, 1)).reshape(B * W * H, C)
    y = jnp.dot(x.astype(bf), w1.astype(bf),
                preferred_element_type=jnp.float32) + b1                  # (N, 3C)
    y1 = _spatial_shift1(y[:, :C].reshape(B, W, H, C))
    y2 = _spatial_shift2(y[:, C:2 * C].reshape(B, W, H, C))
    y3 = y[:, 2 * C:].reshape(B, W, H, C)
    a = jnp.sum(y1 + y2 + y3, axis=(1, 2))                                # (B, C)
    h = _gelu_exact(jnp.dot(a.astype(bf), wa1.astype(bf),
                            preferred_element_type=jnp.float32))
    hat = jnp.dot(h.astype(bf), wa2.astype(bf),
                  preferred_element_type=jnp.float32)                     # (B, 3C)
    bar = jax.nn.softmax(hat.reshape(B, 3, C), axis=1)                    # over k
    x_all = jnp.stack([y1, y2, y3], axis=1)                               # (B,3,W,H,C)
    out = jnp.sum(bar[:, :, None, None, :] * x_all, axis=1)               # (B,W,H,C)
    z = jnp.dot(out.reshape(B * W * H, C).astype(bf), w2.astype(bf),
                preferred_element_type=jnp.float32) + b2
    return jnp.transpose(z.reshape(B, W, H, C), (0, 3, 1, 2))


# ----------------------------- main -------------------------------------------

if __name__ == "__main__":
    B, C, W, H = 2, 512, 8, 8   # SplitAttention hard-codes channel=512 -> C must be 512
    key = jax.random.PRNGKey(0)
    kx, k1, kb1, ka1, ka2, k2, kb2 = jax.random.split(key, 7)

    x = jax.random.normal(kx, (B, C, W, H), dtype=jnp.float32)

    # Deterministic parameter init (torch Linear stores (out,in); we store (in,out)).
    w1 = jax.random.normal(k1, (C, 3 * C), dtype=jnp.float32) / jnp.sqrt(C)   # mlp1 weight^T
    b1 = jax.random.normal(kb1, (3 * C,), dtype=jnp.float32) * 0.01           # mlp1 bias
    wa1 = jax.random.normal(ka1, (C, C), dtype=jnp.float32) / jnp.sqrt(C)     # SplitAttention.mlp1^T (no bias)
    wa2 = jax.random.normal(ka2, (C, 3 * C), dtype=jnp.float32) / jnp.sqrt(C) # SplitAttention.mlp2^T (no bias)
    w2 = jax.random.normal(k2, (C, C), dtype=jnp.float32) / jnp.sqrt(C)       # mlp2 weight^T
    b2 = jax.random.normal(kb2, (C,), dtype=jnp.float32) * 0.01               # mlp2 bias

    out = s2_attention(x, w1, b1, wa1, wa2, w2, b2)
    out = jax.block_until_ready(out)

    ref = jax.block_until_ready(s2_attention_ref(x, w1, b1, wa1, wa2, w2, b2))
    assert out.shape == (B, C, W, H)
    # bf16 matmul inputs (f32 accumulation) in both kernel and reference.
    assert jnp.allclose(out, ref, rtol=2e-2, atol=2e-2), "mismatch vs reference"

    print("KERNEL_OK")
</pallas_src>

<mosaic_0001>
module attributes {stable_mosaic.version = 11 : i64} {
  func.func @s2attn_kernel(%arg0: memref<2x8x8x512xf32, #tpu.memory_space<vmem>>, %arg1: memref<512x1536xbf16, #tpu.memory_space<vmem>>, %arg2: memref<1x1536xf32, #tpu.memory_space<vmem>>, %arg3: memref<512x512xbf16, #tpu.memory_space<vmem>>, %arg4: memref<512x1536xbf16, #tpu.memory_space<vmem>>, %arg5: memref<512x512xbf16, #tpu.memory_space<vmem>>, %arg6: memref<1x512xf32, #tpu.memory_space<vmem>>, %arg7: memref<2x8x8x512xf32, #tpu.memory_space<vmem>>) attributes {dimension_semantics = [], scalar_prefetch = 0 : i64, scratch_operands = 0 : i64, tpu.core_type = #tpu.core_type<tc>} {
    %c0 = arith.constant 0 : index
    %c0_0 = arith.constant 0 : index
    %c0_1 = arith.constant 0 : index
    %c0_2 = arith.constant 0 : index
    %0 = vector.load %arg0[%c0, %c0_0, %c0_1, %c0_2] : memref<2x8x8x512xf32, #tpu.memory_space<vmem>>, vector<2x8x8x512xf32>
    %1 = vector.shape_cast %0 : vector<2x8x8x512xf32> to vector<128x512xf32>
    %2 = arith.truncf %1 : vector<128x512xf32> to vector<128x512xbf16>
    %c0_3 = arith.constant 0 : index
    %c0_4 = arith.constant 0 : index
    %3 = vector.load %arg1[%c0_3, %c0_4] : memref<512x1536xbf16, #tpu.memory_space<vmem>>, vector<512x1536xbf16>
    %cst = arith.constant dense<0.000000e+00> : vector<128x1536xf32>
    %4 = tpu.matmul %2, %3, %cst {dimension_numbers = #tpu.dot_dimension_numbers<[1], [0], [0], [1], [0, 0, 1, 1], [], []>} : vector<128x512xbf16>, vector<512x1536xbf16>, vector<128x1536xf32> -> vector<128x1536xf32>
    %c0_5 = arith.constant 0 : index
    %c0_6 = arith.constant 0 : index
    %5 = vector.load %arg2[%c0_5, %c0_6] : memref<1x1536xf32, #tpu.memory_space<vmem>>, vector<1x1536xf32>
    %6 = vector.broadcast %5 : vector<1x1536xf32> to vector<128x1536xf32>
    %7 = arith.addf %4, %6 : vector<128x1536xf32>
    %8 = vector.extract_strided_slice %7 {offsets = [0, 0], sizes = [128, 512], strides = [1, 1]} : vector<128x1536xf32> to vector<128x512xf32>
    %9 = vector.shape_cast %8 : vector<128x512xf32> to vector<2x8x8x512xf32>
    %10 = vector.extract_strided_slice %9 {offsets = [0, 0, 0, 0], sizes = [2, 8, 8, 128], strides = [1, 1, 1, 1]} : vector<2x8x8x512xf32> to vector<2x8x8x128xf32>
    %11 = vector.extract_strided_slice %10 {offsets = [0, 0, 0, 0], sizes = [2, 1, 8, 128], strides = [1, 1, 1, 1]} : vector<2x8x8x128xf32> to vector<2x1x8x128xf32>
    %12 = vector.extract_strided_slice %10 {offsets = [0, 0, 0, 0], sizes = [2, 7, 8, 128], strides = [1, 1, 1, 1]} : vector<2x8x8x128xf32> to vector<2x7x8x128xf32>
    %13 = tpu.concatenate %11, %12 in 1 : vector<2x1x8x128xf32>, vector<2x7x8x128xf32> -> vector<2x8x8x128xf32>
    %14 = vector.extract_strided_slice %9 {offsets = [0, 0, 0, 128], sizes = [2, 8, 8, 128], strides = [1, 1, 1, 1]} : vector<2x8x8x512xf32> to vector<2x8x8x128xf32>
    %15 = vector.extract_strided_slice %14 {offsets = [0, 1, 0, 0], sizes = [2, 7, 8, 128], strides = [1, 1, 1, 1]} : vector<2x8x8x128xf32> to vector<2x7x8x128xf32>
    %16 = vector.extract_strided_slice %14 {offsets = [0, 7, 0, 0], sizes = [2, 1, 8, 128], strides = [1, 1, 1, 1]} : vector<2x8x8x128xf32> to vector<2x1x8x128xf32>
    %17 = tpu.concatenate %15, %16 in 1 : vector<2x7x8x128xf32>, vector<2x1x8x128xf32> -> vector<2x8x8x128xf32>
    %18 = vector.extract_strided_slice %9 {offsets = [0, 0, 0, 256], sizes = [2, 8, 8, 128], strides = [1, 1, 1, 1]} : vector<2x8x8x512xf32> to vector<2x8x8x128xf32>
    %19 = vector.extract_strided_slice %18 {offsets = [0, 0, 0, 0], sizes = [2, 8, 1, 128], strides = [1, 1, 1, 1]} : vector<2x8x8x128xf32> to vector<2x8x1x128xf32>
    %20 = vector.extract_strided_slice %18 {offsets = [0, 0, 0, 0], sizes = [2, 8, 7, 128], strides = [1, 1, 1, 1]} : vector<2x8x8x128xf32> to vector<2x8x7x128xf32>
    %21 = tpu.concatenate %19, %20 in 2 : vector<2x8x1x128xf32>, vector<2x8x7x128xf32> -> vector<2x8x8x128xf32>
    %22 = vector.extract_strided_slice %9 {offsets = [0, 0, 0, 384], sizes = [2, 8, 8, 128], strides = [1, 1, 1, 1]} : vector<2x8x8x512xf32> to vector<2x8x8x128xf32>
    %23 = vector.extract_strided_slice %22 {offsets = [0, 0, 1, 0], sizes = [2, 8, 7, 128], strides = [1, 1, 1, 1]} : vector<2x8x8x128xf32> to vector<2x8x7x128xf32>
    %24 = vector.extract_strided_slice %22 {offsets = [0, 0, 7, 0], sizes = [2, 8, 1, 128], strides = [1, 1, 1, 1]} : vector<2x8x8x128xf32> to vector<2x8x1x128xf32>
    %25 = tpu.concatenate %23, %24 in 2 : vector<2x8x7x128xf32>, vector<2x8x1x128xf32> -> vector<2x8x8x128xf32>
    %26 = tpu.concatenate %13, %17, %21, %25 in 3 : vector<2x8x8x128xf32>, vector<2x8x8x128xf32>, vector<2x8x8x128xf32>, vector<2x8x8x128xf32> -> vector<2x8x8x512xf32>
    %27 = vector.extract_strided_slice %7 {offsets = [0, 512], sizes = [128, 512], strides = [1, 1]} : vector<128x1536xf32> to vector<128x512xf32>
    %28 = vector.shape_cast %27 : vector<128x512xf32> to vector<2x8x8x512xf32>
    %29 = vector.extract_strided_slice %28 {offsets = [0, 0, 0, 0], sizes = [2, 8, 8, 128], strides = [1, 1, 1, 1]} : vector<2x8x8x512xf32> to vector<2x8x8x128xf32>
    %30 = vector.extract_strided_slice %29 {offsets = [0, 0, 0, 0], sizes = [2, 8, 1, 128], strides = [1, 1, 1, 1]} : vector<2x8x8x128xf32> to vector<2x8x1x128xf32>
    %31 = vector.extract_strided_slice %29 {offsets = [0, 0, 0, 0], sizes = [2, 8, 7, 128], strides = [1, 1, 1, 1]} : vector<2x8x8x128xf32> to vector<2x8x7x128xf32>
    %32 = tpu.concatenate %30, %31 in 2 : vector<2x8x1x128xf32>, vector<2x8x7x128xf32> -> vector<2x8x8x128xf32>
    %33 = vector.extract_strided_slice %28 {offsets = [0, 0, 0, 128], sizes = [2, 8, 8, 128], strides = [1, 1, 1, 1]} : vector<2x8x8x512xf32> to vector<2x8x8x128xf32>
    %34 = vector.extract_strided_slice %33 {offsets = [0, 0, 1, 0], sizes = [2, 8, 7, 128], strides = [1, 1, 1, 1]} : vector<2x8x8x128xf32> to vector<2x8x7x128xf32>
    %35 = vector.extract_strided_slice %33 {offsets = [0, 0, 7, 0], sizes = [2, 8, 1, 128], strides = [1, 1, 1, 1]} : vector<2x8x8x128xf32> to vector<2x8x1x128xf32>
    %36 = tpu.concatenate %34, %35 in 2 : vector<2x8x7x128xf32>, vector<2x8x1x128xf32> -> vector<2x8x8x128xf32>
    %37 = vector.extract_strided_slice %28 {offsets = [0, 0, 0, 256], sizes = [2, 8, 8, 128], strides = [1, 1, 1, 1]} : vector<2x8x8x512xf32> to vector<2x8x8x128xf32>
    %38 = vector.extract_strided_slice %37 {offsets = [0, 0, 0, 0], sizes = [2, 1, 8, 128], strides = [1, 1, 1, 1]} : vector<2x8x8x128xf32> to vector<2x1x8x128xf32>
    %39 = vector.extract_strided_slice %37 {offsets = [0, 0, 0, 0], sizes = [2, 7, 8, 128], strides = [1, 1, 1, 1]} : vector<2x8x8x128xf32> to vector<2x7x8x128xf32>
    %40 = tpu.concatenate %38, %39 in 1 : vector<2x1x8x128xf32>, vector<2x7x8x128xf32> -> vector<2x8x8x128xf32>
    %41 = vector.extract_strided_slice %28 {offsets = [0, 0, 0, 384], sizes = [2, 8, 8, 128], strides = [1, 1, 1, 1]} : vector<2x8x8x512xf32> to vector<2x8x8x128xf32>
    %42 = vector.extract_strided_slice %41 {offsets = [0, 1, 0, 0], sizes = [2, 7, 8, 128], strides = [1, 1, 1, 1]} : vector<2x8x8x128xf32> to vector<2x7x8x128xf32>
    %43 = vector.extract_strided_slice %41 {offsets = [0, 7, 0, 0], sizes = [2, 1, 8, 128], strides = [1, 1, 1, 1]} : vector<2x8x8x128xf32> to vector<2x1x8x128xf32>
    %44 = tpu.concatenate %42, %43 in 1 : vector<2x7x8x128xf32>, vector<2x1x8x128xf32> -> vector<2x8x8x128xf32>
    %45 = tpu.concatenate %32, %36, %40, %44 in 3 : vector<2x8x8x128xf32>, vector<2x8x8x128xf32>, vector<2x8x8x128xf32>, vector<2x8x8x128xf32> -> vector<2x8x8x512xf32>
    %46 = vector.extract_strided_slice %7 {offsets = [0, 1024], sizes = [128, 512], strides = [1, 1]} : vector<128x1536xf32> to vector<128x512xf32>
    %47 = vector.shape_cast %46 : vector<128x512xf32> to vector<2x8x8x512xf32>
    %48 = vector.shape_cast %26 : vector<2x8x8x512xf32> to vector<2x64x512xf32>
    %49 = vector.shape_cast %45 : vector<2x8x8x512xf32> to vector<2x64x512xf32>
    %50 = vector.shape_cast %47 : vector<2x8x8x512xf32> to vector<2x64x512xf32>
    %51 = arith.addf %48, %49 : vector<2x64x512xf32>
    %52 = arith.addf %51, %50 : vector<2x64x512xf32>
    %cst_7 = arith.constant dense<0.000000e+00> : vector<2x512xf32>
    %53 = vector.multi_reduction <add>, %52, %cst_7 [1] : vector<2x64x512xf32> to vector<2x512xf32>
    %54 = arith.truncf %53 : vector<2x512xf32> to vector<2x512xbf16>
    %c0_8 = arith.constant 0 : index
    %c0_9 = arith.constant 0 : index
    %55 = vector.load %arg3[%c0_8, %c0_9] : memref<512x512xbf16, #tpu.memory_space<vmem>>, vector<512x512xbf16>
    %cst_10 = arith.constant dense<0.000000e+00> : vector<2x512xf32>
    %56 = tpu.matmul %54, %55, %cst_10 {dimension_numbers = #tpu.dot_dimension_numbers<[1], [0], [0], [1], [0, 0, 1, 1], [], []>} : vector<2x512xbf16>, vector<512x512xbf16>, vector<2x512xf32> -> vector<2x512xf32>
    %cst_11 = arith.constant 5.000000e-01 : f32
    %57 = vector.broadcast %cst_11 : f32 to vector<2x512xf32>
    %58 = arith.mulf %57, %56 : vector<2x512xf32>
    %cst_12 = arith.constant 0.707106769 : f32
    %59 = vector.broadcast %cst_12 : f32 to vector<2x512xf32>
    %60 = arith.mulf %56, %59 : vector<2x512xf32>
    %cst_13 = arith.constant 0.000000e+00 : f32
    %61 = vector.broadcast %cst_13 : f32 to vector<2x512xf32>
    %62 = arith.cmpf oge, %60, %61 : vector<2x512xf32>
    %cst_14 = arith.constant 1.000000e+00 : f32
    %cst_15 = arith.constant -1.000000e+00 : f32
    %63 = vector.broadcast %cst_14 : f32 to vector<2x512xf32>
    %64 = vector.broadcast %cst_15 : f32 to vector<2x512xf32>
    %65 = arith.select %62, %63, %64 : vector<2x512xi1>, vector<2x512xf32>
    %66 = math.absf %60 : vector<2x512xf32>
    %cst_16 = arith.constant 0.327591091 : f32
    %67 = vector.broadcast %cst_16 : f32 to vector<2x512xf32>
    %68 = arith.mulf %67, %66 : vector<2x512xf32>
    %cst_17 = arith.constant 1.000000e+00 : f32
    %69 = vector.broadcast %cst_17 : f32 to vector<2x512xf32>
    %70 = arith.addf %69, %68 : vector<2x512xf32>
    %cst_18 = arith.constant 1.000000e+00 : f32
    %71 = vector.broadcast %cst_18 : f32 to vector<2x512xf32>
    %72 = arith.divf %71, %70 : vector<2x512xf32>
    %cst_19 = arith.constant 1.06140542 : f32
    %73 = vector.broadcast %cst_19 : f32 to vector<2x512xf32>
    %74 = arith.mulf %73, %72 : vector<2x512xf32>
    %cst_20 = arith.constant -1.45315206 : f32
    %75 = vector.broadcast %cst_20 : f32 to vector<2x512xf32>
    %76 = arith.addf %74, %75 : vector<2x512xf32>
    %77 = arith.mulf %76, %72 : vector<2x512xf32>
    %cst_21 = arith.constant 1.42141378 : f32
    %78 = vector.broadcast %cst_21 : f32 to vector<2x512xf32>
    %79 = arith.addf %77, %78 : vector<2x512xf32>
    %80 = arith.mulf %79, %72 : vector<2x512xf32>
    %cst_22 = arith.constant -0.284496725 : f32
    %81 = vector.broadcast %cst_22 : f32 to vector<2x512xf32>
    %82 = arith.addf %80, %81 : vector<2x512xf32>
    %83 = arith.mulf %82, %72 : vector<2x512xf32>
    %cst_23 = arith.constant 0.254829586 : f32
    %84 = vector.broadcast %cst_23 : f32 to vector<2x512xf32>
    %85 = arith.addf %83, %84 : vector<2x512xf32>
    %86 = arith.mulf %85, %72 : vector<2x512xf32>
    %cst_24 = arith.constant 0.000000e+00 : f32
    %87 = vector.broadcast %cst_24 : f32 to vector<2x512xf32>
    %88 = arith.subf %87, %66 : vector<2x512xf32>
    %89 = arith.mulf %88, %66 : vector<2x512xf32>
    %90 = math.exp %89 : vector<2x512xf32>
    %91 = arith.mulf %86, %90 : vector<2x512xf32>
    %cst_25 = arith.constant 1.000000e+00 : f32
    %92 = vector.broadcast %cst_25 : f32 to vector<2x512xf32>
    %93 = arith.subf %92, %91 : vector<2x512xf32>
    %94 = arith.mulf %65, %93 : vector<2x512xf32>
    %cst_26 = arith.constant 1.000000e+00 : f32
    %95 = vector.broadcast %cst_26 : f32 to vector<2x512xf32>
    %96 = arith.addf %95, %94 : vector<2x512xf32>
    %97 = arith.mulf %58, %96 : vector<2x512xf32>
    %98 = arith.truncf %97 : vector<2x512xf32> to vector<2x512xbf16>
    %c0_27 = arith.constant 0 : index
    %c0_28 = arith.constant 0 : index
    %99 = vector.load %arg4[%c0_27, %c0_28] : memref<512x1536xbf16, #tpu.memory_space<vmem>>, vector<512x1536xbf16>
    %cst_29 = arith.constant dense<0.000000e+00> : vector<2x1536xf32>
    %100 = tpu.matmul %98, %99, %cst_29 {dimension_numbers = #tpu.dot_dimension_numbers<[1], [0], [0], [1], [0, 0, 1, 1], [], []>} : vector<2x512xbf16>, vector<512x1536xbf16>, vector<2x1536xf32> -> vector<2x1536xf32>
    %101 = vector.extract_strided_slice %100 {offsets = [0, 0], sizes = [2, 512], strides = [1, 1]} : vector<2x1536xf32> to vector<2x512xf32>
    %102 = vector.extract_strided_slice %100 {offsets = [0, 512], sizes = [2, 512], strides = [1, 1]} : vector<2x1536xf32> to vector<2x512xf32>
    %103 = vector.extract_strided_slice %100 {offsets = [0, 1024], sizes = [2, 512], strides = [1, 1]} : vector<2x1536xf32> to vector<2x512xf32>
    %104 = arith.maximumf %101, %102 : vector<2x512xf32>
    %105 = arith.maximumf %104, %103 : vector<2x512xf32>
    %106 = arith.subf %101, %105 : vector<2x512xf32>
    %107 = math.exp %106 : vector<2x512xf32>
    %108 = arith.subf %102, %105 : vector<2x512xf32>
    %109 = math.exp %108 : vector<2x512xf32>
    %110 = arith.subf %103, %105 : vector<2x512xf32>
    %111 = math.exp %110 : vector<2x512xf32>
    %112 = arith.addf %107, %109 : vector<2x512xf32>
    %113 = arith.addf %112, %111 : vector<2x512xf32>
    %cst_30 = arith.constant 1.000000e+00 : f32
    %114 = vector.broadcast %cst_30 : f32 to vector<2x512xf32>
    %115 = arith.divf %114, %113 : vector<2x512xf32>
    %116 = arith.mulf %107, %115 : vector<2x512xf32>
    %117 = vector.shape_cast %116 : vector<2x512xf32> to vector<2x1x512xf32>
    %118 = arith.mulf %109, %115 : vector<2x512xf32>
    %119 = vector.shape_cast %118 : vector<2x512xf32> to vector<2x1x512xf32>
    %120 = arith.mulf %111, %115 : vector<2x512xf32>
    %121 = vector.shape_cast %120 : vector<2x512xf32> to vector<2x1x512xf32>
    %122 = vector.broadcast %117 : vector<2x1x512xf32> to vector<2x64x512xf32>
    %123 = arith.mulf %122, %48 : vector<2x64x512xf32>
    %124 = vector.broadcast %119 : vector<2x1x512xf32> to vector<2x64x512xf32>
    %125 = arith.mulf %124, %49 : vector<2x64x512xf32>
    %126 = arith.addf %123, %125 : vector<2x64x512xf32>
    %127 = vector.broadcast %121 : vector<2x1x512xf32> to vector<2x64x512xf32>
    %128 = arith.mulf %127, %50 : vector<2x64x512xf32>
    %129 = arith.addf %126, %128 : vector<2x64x512xf32>
    %130 = vector.shape_cast %129 : vector<2x64x512xf32> to vector<128x512xf32>
    %131 = arith.truncf %130 : vector<128x512xf32> to vector<128x512xbf16>
    %c0_31 = arith.constant 0 : index
    %c0_32 = arith.constant 0 : index
    %132 = vector.load %arg5[%c0_31, %c0_32] : memref<512x512xbf16, #tpu.memory_space<vmem>>, vector<512x512xbf16>
    %cst_33 = arith.constant dense<0.000000e+00> : vector<128x512xf32>
    %133 = tpu.matmul %131, %132, %cst_33 {dimension_numbers = #tpu.dot_dimension_numbers<[1], [0], [0], [1], [0, 0, 1, 1], [], []>} : vector<128x512xbf16>, vector<512x512xbf16>, vector<128x512xf32> -> vector<128x512xf32>
    %c0_34 = arith.constant 0 : index
    %c0_35 = arith.constant 0 : index
    %134 = vector.load %arg6[%c0_34, %c0_35] : memref<1x512xf32, #tpu.memory_space<vmem>>, vector<1x512xf32>
    %135 = vector.broadcast %134 : vector<1x512xf32> to vector<128x512xf32>
    %136 = arith.addf %133, %135 : vector<128x512xf32>
    %137 = vector.shape_cast %136 : vector<128x512xf32> to vector<2x8x8x512xf32>
    %c0_36 = arith.constant 0 : index
    %c0_37 = arith.constant 0 : index
    %c0_38 = arith.constant 0 : index
    %c0_39 = arith.constant 0 : index
    %138 = vector.load %arg7[%c0_36, %c0_37, %c0_38, %c0_39] : memref<2x8x8x512xf32, #tpu.memory_space<vmem>>, vector<2x8x8x512xf32>
    tpu.vector_store %arg7[%c0_36, %c0_37, %c0_38, %c0_39], %137 {strides = array<i32>} : memref<2x8x8x512xf32, #tpu.memory_space<vmem>>, vector<2x8x8x512xf32>,
    return
  }
}

</mosaic_0001>

<llo_original>
// kernel: s2_attention.1
$region0: #{s2_attention.1}
  #allocation0 [shape = 'u32[]', space=smem, size = 0x4, offset = 0x4, fixed_abs, tag = 'smem constant byte address 0x4 - core index']
  #allocation1 [shape = 'u32[144,128]{1,0:T(1,128)}', space=vmem, size = 0x12000, scoped, tag = 'internal scratch']
  %s0 = inlined_call_operand.vmem [shape: f32[2,8,8,512], index: 0, kind: input, shape index: {}]
  %s1 = inlined_call_operand.vmem [shape: bf16[512,1536], index: 1, kind: input, shape index: {}]
  %s2 = inlined_call_operand.vmem [shape: f32[1,1536], index: 2, kind: input, shape index: {}]
  %s3 = inlined_call_operand.vmem [shape: bf16[512,512], index: 3, kind: input, shape index: {}]
  %s4 = inlined_call_operand.vmem [shape: bf16[512,1536], index: 4, kind: input, shape index: {}]
  %s5 = inlined_call_operand.vmem [shape: bf16[512,512], index: 5, kind: input, shape index: {}]
  %s6 = inlined_call_operand.vmem [shape: f32[1,512], index: 6, kind: input, shape index: {}]
  %s7 = inlined_call_operand.hbm [shape: f32[2,8,8,512], index: 7, kind: output, shape index: {}]
  %s8 = sld [smem:[#allocation0]]
  $region38: #{s2_attention.1} parent=0
    _
  %s10 = ssub.s32 1, %s8
  %s11 = scalar_select 0, %s10, %s8
  $region1: #{s2_attention.1} parent=0
    #allocation2 [shape = 'u8[262144]{0}', space=vmem, size = 0x40000, scoped, tag = 'output window, operand 0, single buffered']
    #allocation3 [shape = 's32[1]{0}', space=sflag, size = 0x4, scoped, tag = 'scoped memory for s2_attention.1']
    %12 = vsyncpa [#allocation3], 0
    // Predicated region
    $region2: #{s2_attention.1} parent=1 // pred_check
      _
    $region3: #{s2_attention.1} parent=1 // pred_check_branch
      %14 = sbr.rel (0) target = $region5
    $region4: #{s2_attention.1} parent=1 // pred_region
      _
    $region5: #{s2_attention.1} parent=1 // pred_fallthru
      _
    // Predicated region
    $region6: #{s2_attention.1} parent=1 // pred_check
      _
    $region7: #{s2_attention.1} parent=1 // pred_check_branch
      %16 = sbr.rel (0) target = $region9
    $region8: #{s2_attention.1} parent=1 // pred_region
      _
    $region9: #{s2_attention.1} parent=1 // pred_fallthru
      _
    // Predicated region
    $region10: #{s2_attention.1} parent=1 // pred_check
      _
    $region11: #{s2_attention.1} parent=1 // pred_check_branch
      %18 = sbr.rel (0) target = $region13
    $region12: #{s2_attention.1} parent=1 // pred_region
      _
    $region13: #{s2_attention.1} parent=1 // pred_fallthru
      _
    // Predicated region
    $region14: #{s2_attention.1} parent=1 // pred_check
      _
    $region15: #{s2_attention.1} parent=1 // pred_check_branch
      %20 = sbr.rel (0) target = $region17
    $region16: #{s2_attention.1} parent=1 // pred_region
      _
    $region17: #{s2_attention.1} parent=1 // pred_fallthru
      _
    // Predicated region
    $region18: #{s2_attention.1} parent=1 // pred_check
      _
    $region19: #{s2_attention.1} parent=1 // pred_check_branch
      %22 = sbr.rel (0) target = $region21
    $region20: #{s2_attention.1} parent=1 // pred_region
      _
    $region21: #{s2_attention.1} parent=1 // pred_fallthru
      _
    // Predicated region
    $region22: #{s2_attention.1} parent=1 // pred_check
      _
    $region23: #{s2_attention.1} parent=1 // pred_check_branch
      %24 = sbr.rel (0) target = $region25
    $region24: #{s2_attention.1} parent=1 // pred_region
      _
    $region25: #{s2_attention.1} parent=1 // pred_fallthru
      _
    // Predicated region
    $region26: #{s2_attention.1} parent=1 // pred_check
      _
    $region27: #{s2_attention.1} parent=1 // pred_check_branch
      %26 = sbr.rel (0) target = $region29
    $region28: #{s2_attention.1} parent=1 // pred_region
      _
    $region29: #{s2_attention.1} parent=1 // pred_fallthru
      _
    %v27 = vld [vmem:[%s0] sm:$0xff]
    %v28 = vld [vmem:[%s0 + $0x8] sm:$0xff]
    %v29 = vld [vmem:[%s0 + $0x10] sm:$0xff]
    %v30 = vld [vmem:[%s0 + $0x18] sm:$0xff]
    %v31 = vld [vmem:[%s0 + $0x20] sm:$0xff]
    %v32 = vld [vmem:[%s0 + $0x28] sm:$0xff]
    %v33 = vld [vmem:[%s0 + $0x30] sm:$0xff]
    %v34 = vld [vmem:[%s0 + $0x38] sm:$0xff]
    %v35 = vld [vmem:[%s0 + $0x40] sm:$0xff]
    %v36 = vld [vmem:[%s0 + $0x48] sm:$0xff]
    %v37 = vld [vmem:[%s0 + $0x50] sm:$0xff]
    %v38 = vld [vmem:[%s0 + $0x58] sm:$0xff]
    %v39 = vld [vmem:[%s0 + $0x60] sm:$0xff]
    %v40 = vld [vmem:[%s0 + $0x68] sm:$0xff]
    %v41 = vld [vmem:[%s0 + $0x70] sm:$0xff]
    %v42 = vld [vmem:[%s0 + $0x78] sm:$0xff]
    %v43 = vld [vmem:[%s0 + $0x80] sm:$0xff]
    %v44 = vld [vmem:[%s0 + $0x88] sm:$0xff]
    %v45 = vld [vmem:[%s0 + $0x90] sm:$0xff]
    %v46 = vld [vmem:[%s0 + $0x98] sm:$0xff]
    %v47 = vld [vmem:[%s0 + $0xa0] sm:$0xff]
    %v48 = vld [vmem:[%s0 + $0xa8] sm:$0xff]
    %v49 = vld [vmem:[%s0 + $0xb0] sm:$0xff]
    %v50 = vld [vmem:[%s0 + $0xb8] sm:$0xff]
    %v51 = vld [vmem:[%s0 + $0xc0] sm:$0xff]
    %v52 = vld [vmem:[%s0 + $0xc8] sm:$0xff]
    %v53 = vld [vmem:[%s0 + $0xd0] sm:$0xff]
    %v54 = vld [vmem:[%s0 + $0xd8] sm:$0xff]
    %v55 = vld [vmem:[%s0 + $0xe0] sm:$0xff]
    %v56 = vld [vmem:[%s0 + $0xe8] sm:$0xff]
    %v57 = vld [vmem:[%s0 + $0xf0] sm:$0xff]
    %v58 = vld [vmem:[%s0 + $0xf8] sm:$0xff]
    %v59 = vld [vmem:[%s0 + $0x100] sm:$0xff]
    %v60 = vld [vmem:[%s0 + $0x108] sm:$0xff]
    %v61 = vld [vmem:[%s0 + $0x110] sm:$0xff]
    %v62 = vld [vmem:[%s0 + $0x118] sm:$0xff]
    %v63 = vld [vmem:[%s0 + $0x120] sm:$0xff]
    %v64 = vld [vmem:[%s0 + $0x128] sm:$0xff]
    %v65 = vld [vmem:[%s0 + $0x130] sm:$0xff]
    %v66 = vld [vmem:[%s0 + $0x138] sm:$0xff]
    %v67 = vld [vmem:[%s0 + $0x140] sm:$0xff]
    %v68 = vld [vmem:[%s0 + $0x148] sm:$0xff]
    %v69 = vld [vmem:[%s0 + $0x150] sm:$0xff]
    %v70 = vld [vmem:[%s0 + $0x158] sm:$0xff]
    %v71 = vld [vmem:[%s0 + $0x160] sm:$0xff]
    %v72 = vld [vmem:[%s0 + $0x168] sm:$0xff]
    %v73 = vld [vmem:[%s0 + $0x170] sm:$0xff]
    %v74 = vld [vmem:[%s0 + $0x178] sm:$0xff]
    %v75 = vld [vmem:[%s0 + $0x180] sm:$0xff]
    %v76 = vld [vmem:[%s0 + $0x188] sm:$0xff]
    %v77 = vld [vmem:[%s0 + $0x190] sm:$0xff]
    %v78 = vld [vmem:[%s0 + $0x198] sm:$0xff]
    %v79 = vld [vmem:[%s0 + $0x1a0] sm:$0xff]
    %v80 = vld [vmem:[%s0 + $0x1a8] sm:$0xff]
    %v81 = vld [vmem:[%s0 + $0x1b0] sm:$0xff]
    %v82 = vld [vmem:[%s0 + $0x1b8] sm:$0xff]
    %v83 = vld [vmem:[%s0 + $0x1c0] sm:$0xff]
    %v84 = vld [vmem:[%s0 + $0x1c8] sm:$0xff]
    %v85 = vld [vmem:[%s0 + $0x1d0] sm:$0xff]
    %v86 = vld [vmem:[%s0 + $0x1d8] sm:$0xff]
    %v87 = vld [vmem:[%s0 + $0x1e0] sm:$0xff]
    %v88 = vld [vmem:[%s0 + $0x1e8] sm:$0xff]
    %v89 = vld [vmem:[%s0 + $0x1f0] sm:$0xff]
    %v90 = vld [vmem:[%s0 + $0x1f8] sm:$0xff]
    %v91 = vpack.c.bf16 %v31, %v27
    %v92 = vpack.c.bf16 %v32, %v28
    %v93 = vpack.c.bf16 %v33, %v29
    %v94 = vpack.c.bf16 %v34, %v30
    %v95 = vpack.c.bf16 %v39, %v35
    %v96 = vpack.c.bf16 %v40, %v36
    %v97 = vpack.c.bf16 %v41, %v37
    %v98 = vpack.c.bf16 %v42, %v38
    %v99 = vpack.c.bf16 %v47, %v43
    %v100 = vpack.c.bf16 %v48, %v44
    %v101 = vpack.c.bf16 %v49, %v45
    %v102 = vpack.c.bf16 %v50, %v46
    %v103 = vpack.c.bf16 %v55, %v51
    %v104 = vpack.c.bf16 %v56, %v52
    %v105 = vpack.c.bf16 %v57, %v53
    %v106 = vpack.c.bf16 %v58, %v54
    %v107 = vpack.c.bf16 %v63, %v59
    %v108 = vpack.c.bf16 %v64, %v60
    %v109 = vpack.c.bf16 %v65, %v61
    %v110 = vpack.c.bf16 %v66, %v62
    %v111 = vpack.c.bf16 %v71, %v67
    %v112 = vpack.c.bf16 %v72, %v68
    %v113 = vpack.c.bf16 %v73, %v69
    %v114 = vpack.c.bf16 %v74, %v70
    %v115 = vpack.c.bf16 %v79, %v75
    %v116 = vpack.c.bf16 %v80, %v76
    %v117 = vpack.c.bf16 %v81, %v77
    %v118 = vpack.c.bf16 %v82, %v78
    %v119 = vpack.c.bf16 %v87, %v83
    %v120 = vpack.c.bf16 %v88, %v84
    %v121 = vpack.c.bf16 %v89, %v85
    %v122 = vpack.c.bf16 %v90, %v86
    %v123 = vld [vmem:[%s1] sm:$0xff]
    %v124 = vld [vmem:[%s1 + $0x8] sm:$0xff]
    %v125 = vld [vmem:[%s1 + $0x10] sm:$0xff]
    %v126 = vld [vmem:[%s1 + $0x18] sm:$0xff]
    %v127 = vld [vmem:[%s1 + $0x20] sm:$0xff]
    %v128 = vld [vmem:[%s1 + $0x28] sm:$0xff]
    %v129 = vld [vmem:[%s1 + $0x30] sm:$0xff]
    %v130 = vld [vmem:[%s1 + $0x38] sm:$0xff]
    %v131 = vld [vmem:[%s1 + $0x40] sm:$0xff]
    %v132 = vld [vmem:[%s1 + $0x48] sm:$0xff]
    %v133 = vld [vmem:[%s1 + $0x50] sm:$0xff]
    %v134 = vld [vmem:[%s1 + $0x58] sm:$0xff]
    %v135 = vld [vmem:[%s1 + $0x60] sm:$0xff]
    %v136 = vld [vmem:[%s1 + $0x68] sm:$0xff]
    %v137 = vld [vmem:[%s1 + $0x70] sm:$0xff]
    %v138 = vld [vmem:[%s1 + $0x78] sm:$0xff]
    %v139 = vld [vmem:[%s1 + $0x80] sm:$0xff]
    %v140 = vld [vmem:[%s1 + $0x88] sm:$0xff]
    %v141 = vld [vmem:[%s1 + $0x90] sm:$0xff]
    %v142 = vld [vmem:[%s1 + $0x98] sm:$0xff]
    %v143 = vld [vmem:[%s1 + $0xa0] sm:$0xff]
    %v144 = vld [vmem:[%s1 + $0xa8] sm:$0xff]
    %v145 = vld [vmem:[%s1 + $0xb0] sm:$0xff]
    %v146 = vld [vmem:[%s1 + $0xb8] sm:$0xff]
    %v147 = vld [vmem:[%s1 + $0xc0] sm:$0xff]
    %v148 = vld [vmem:[%s1 + $0xc8] sm:$0xff]
    %v149 = vld [vmem:[%s1 + $0xd0] sm:$0xff]
    %v150 = vld [vmem:[%s1 + $0xd8] sm:$0xff]
    %v151 = vld [vmem:[%s1 + $0xe0] sm:$0xff]
    %v152 = vld [vmem:[%s1 + $0xe8] sm:$0xff]
    %v153 = vld [vmem:[%s1 + $0xf0] sm:$0xff]
    %v154 = vld [vmem:[%s1 + $0xf8] sm:$0xff]
    %v155 = vld [vmem:[%s1 + $0x100] sm:$0xff]
    %v156 = vld [vmem:[%s1 + $0x108] sm:$0xff]
    %v157 = vld [vmem:[%s1 + $0x110] sm:$0xff]
    %v158 = vld [vmem:[%s1 + $0x118] sm:$0xff]
    %v159 = vld [vmem:[%s1 + $0x120] sm:$0xff]
    %v160 = vld [vmem:[%s1 + $0x128] sm:$0xff]
    %v161 = vld [vmem:[%s1 + $0x130] sm:$0xff]
    %v162 = vld [vmem:[%s1 + $0x138] sm:$0xff]
    %v163 = vld [vmem:[%s1 + $0x140] sm:$0xff]
    %v164 = vld [vmem:[%s1 + $0x148] sm:$0xff]
    %v165 = vld [vmem:[%s1 + $0x150] sm:$0xff]
    %v166 = vld [vmem:[%s1 + $0x158] sm:$0xff]
    %v167 = vld [vmem:[%s1 + $0x160] sm:$0xff]
    %v168 = vld [vmem:[%s1 + $0x168] sm:$0xff]
    %v169 = vld [vmem:[%s1 + $0x170] sm:$0xff]
    %v170 = vld [vmem:[%s1 + $0x178] sm:$0xff]
    %v171 = vld [vmem:[%s1 + $0x180] sm:$0xff]
    %v172 = vld [vmem:[%s1 + $0x188] sm:$0xff]
    %v173 = vld [vmem:[%s1 + $0x190] sm:$0xff]
    %v174 = vld [vmem:[%s1 + $0x198] sm:$0xff]
    %v175 = vld [vmem:[%s1 + $0x1a0] sm:$0xff]
    %v176 = vld [vmem:[%s1 + $0x1a8] sm:$0xff]
    %v177 = vld [vmem:[%s1 + $0x1b0] sm:$0xff]
    %v178 = vld [vmem:[%s1 + $0x1b8] sm:$0xff]
    %v179 = vld [vmem:[%s1 + $0x1c0] sm:$0xff]
    %v180 = vld [vmem:[%s1 + $0x1c8] sm:$0xff]
    %v181 = vld [vmem:[%s1 + $0x1d0] sm:$0xff]
    %v182 = vld [vmem:[%s1 + $0x1d8] sm:$0xff]
    %v183 = vld [vmem:[%s1 + $0x1e0] sm:$0xff]
    %v184 = vld [vmem:[%s1 + $0x1e8] sm:$0xff]
    %v185 = vld [vmem:[%s1 + $0x1f0] sm:$0xff]
    %v186 = vld [vmem:[%s1 + $0x1f8] sm:$0xff]
    %v187 = vld [vmem:[%s1 + $0x200] sm:$0xff]
    %v188 = vld [vmem:[%s1 + $0x208] sm:$0xff]
    %v189 = vld [vmem:[%s1 + $0x210] sm:$0xff]
    %v190 = vld [vmem:[%s1 + $0x218] sm:$0xff]
    %v191 = vld [vmem:[%s1 + $0x220] sm:$0xff]
    %v192 = vld [vmem:[%s1 + $0x228] sm:$0xff]
    %v193 = vld [vmem:[%s1 + $0x230] sm:$0xff]
    %v194 = vld [vmem:[%s1 + $0x238] sm:$0xff]
    %v195 = vld [vmem:[%s1 + $0x240] sm:$0xff]
    %v196 = vld [vmem:[%s1 + $0x248] sm:$0xff]
    %v197 = vld [vmem:[%s1 + $0x250] sm:$0xff]
    %v198 = vld [vmem:[%s1 + $0x258] sm:$0xff]
    %v199 = vld [vmem:[%s1 + $0x260] sm:$0xff]
    %v200 = vld [vmem:[%s1 + $0x268] sm:$0xff]
    %v201 = vld [vmem:[%s1 + $0x270] sm:$0xff]
    %v202 = vld [vmem:[%s1 + $0x278] sm:$0xff]
    %v203 = vld [vmem:[%s1 + $0x280] sm:$0xff]
    %v204 = vld [vmem:[%s1 + $0x288] sm:$0xff]
    %v205 = vld [vmem:[%s1 + $0x290] sm:$0xff]
    %v206 = vld [vmem:[%s1 + $0x298] sm:$0xff]
    %v207 = vld [vmem:[%s1 + $0x2a0] sm:$0xff]
    %v208 = vld [vmem:[%s1 + $0x2a8] sm:$0xff]
    %v209 = vld [vmem:[%s1 + $0x2b0] sm:$0xff]
    %v210 = vld [vmem:[%s1 + $0x2b8] sm:$0xff]
    %v211 = vld [vmem:[%s1 + $0x2c0] sm:$0xff]
    %v212 = vld [vmem:[%s1 + $0x2c8] sm:$0xff]
    %v213 = vld [vmem:[%s1 + $0x2d0] sm:$0xff]
    %v214 = vld [vmem:[%s1 + $0x2d8] sm:$0xff]
    %v215 = vld [vmem:[%s1 + $0x2e0] sm:$0xff]
    %v216 = vld [vmem:[%s1 + $0x2e8] sm:$0xff]
    %v217 = vld [vmem:[%s1 + $0x2f0] sm:$0xff]
    %v218 = vld [vmem:[%s1 + $0x2f8] sm:$0xff]
    %v219 = vld [vmem:[%s1 + $0x300] sm:$0xff]
    %v220 = vld [vmem:[%s1 + $0x308] sm:$0xff]
    %v221 = vld [vmem:[%s1 + $0x310] sm:$0xff]
    %v222 = vld [vmem:[%s1 + $0x318] sm:$0xff]
    %v223 = vld [vmem:[%s1 + $0x320] sm:$0xff]
    %v224 = vld [vmem:[%s1 + $0x328] sm:$0xff]
    %v225 = vld [vmem:[%s1 + $0x330] sm:$0xff]
    %v226 = vld [vmem:[%s1 + $0x338] sm:$0xff]
    %v227 = vld [vmem:[%s1 + $0x340] sm:$0xff]
    %v228 = vld [vmem:[%s1 + $0x348] sm:$0xff]
    %v229 = vld [vmem:[%s1 + $0x350] sm:$0xff]
    %v230 = vld [vmem:[%s1 + $0x358] sm:$0xff]
    %v231 = vld [vmem:[%s1 + $0x360] sm:$0xff]
    %v232 = vld [vmem:[%s1 + $0x368] sm:$0xff]
    %v233 = vld [vmem:[%s1 + $0x370] sm:$0xff]
    %v234 = vld [vmem:[%s1 + $0x378] sm:$0xff]
    %v235 = vld [vmem:[%s1 + $0x380] sm:$0xff]
    %v236 = vld [vmem:[%s1 + $0x388] sm:$0xff]
    %v237 = vld [vmem:[%s1 + $0x390] sm:$0xff]
    %v238 = vld [vmem:[%s1 + $0x398] sm:$0xff]
    %v239 = vld [vmem:[%s1 + $0x3a0] sm:$0xff]
    %v240 = vld [vmem:[%s1 + $0x3a8] sm:$0xff]
    %v241 = vld [vmem:[%s1 + $0x3b0] sm:$0xff]
    %v242 = vld [vmem:[%s1 + $0x3b8] sm:$0xff]
    %v243 = vld [vmem:[%s1 + $0x3c0] sm:$0xff]
    %v244 = vld [vmem:[%s1 + $0x3c8] sm:$0xff]
    %v245 = vld [vmem:[%s1 + $0x3d0] sm:$0xff]
    %v246 = vld [vmem:[%s1 + $0x3d8] sm:$0xff]
    %v247 = vld [vmem:[%s1 + $0x3e0] sm:$0xff]
    %v248 = vld [vmem:[%s1 + $0x3e8] sm:$0xff]
    %v249 = vld [vmem:[%s1 + $0x3f0] sm:$0xff]
    %v250 = vld [vmem:[%s1 + $0x3f8] sm:$0xff]
    %v251 = vld [vmem:[%s1 + $0x400] sm:$0xff]
    %v252 = vld [vmem:[%s1 + $0x408] sm:$0xff]
    %v253 = vld [vmem:[%s1 + $0x410] sm:$0xff]
    %v254 = vld [vmem:[%s1 + $0x418] sm:$0xff]
    %v255 = vld [vmem:[%s1 + $0x420] sm:$0xff]
    %v256 = vld [vmem:[%s1 + $0x428] sm:$0xff]
    %v257 = vld [vmem:[%s1 + $0x430] sm:$0xff]
    %v258 = vld [vmem:[%s1 + $0x438] sm:$0xff]
    %v259 = vld [vmem:[%s1 + $0x440] sm:$0xff]
    %v260 = vld [vmem:[%s1 + $0x448] sm:$0xff]
    %v261 = vld [vmem:[%s1 + $0x450] sm:$0xff]
    %v262 = vld [vmem:[%s1 + $0x458] sm:$0xff]
    %v263 = vld [vmem:[%s1 + $0x460] sm:$0xff]
    %v264 = vld [vmem:[%s1 + $0x468] sm:$0xff]
    %v265 = vld [vmem:[%s1 + $0x470] sm:$0xff]
    %v266 = vld [vmem:[%s1 + $0x478] sm:$0xff]
    %v267 = vld [vmem:[%s1 + $0x480] sm:$0xff]
    %v268 = vld [vmem:[%s1 + $0x488] sm:$0xff]
    %v269 = vld [vmem:[%s1 + $0x490] sm:$0xff]
    %v270 = vld [vmem:[%s1 + $0x498] sm:$0xff]
    %v271 = vld [vmem:[%s1 + $0x4a0] sm:$0xff]
    %v272 = vld [vmem:[%s1 + $0x4a8] sm:$0xff]
    %v273 = vld [vmem:[%s1 + $0x4b0] sm:$0xff]
    %v274 = vld [vmem:[%s1 + $0x4b8] sm:$0xff]
    %v275 = vld [vmem:[%s1 + $0x4c0] sm:$0xff]
    %v276 = vld [vmem:[%s1 + $0x4c8] sm:$0xff]
    %v277 = vld [vmem:[%s1 + $0x4d0] sm:$0xff]
    %v278 = vld [vmem:[%s1 + $0x4d8] sm:$0xff]
    %v279 = vld [vmem:[%s1 + $0x4e0] sm:$0xff]
    %v280 = vld [vmem:[%s1 + $0x4e8] sm:$0xff]
    %v281 = vld [vmem:[%s1 + $0x4f0] sm:$0xff]
    %v282 = vld [vmem:[%s1 + $0x4f8] sm:$0xff]
    %v283 = vld [vmem:[%s1 + $0x500] sm:$0xff]
    %v284 = vld [vmem:[%s1 + $0x508] sm:$0xff]
    %v285 = vld [vmem:[%s1 + $0x510] sm:$0xff]
    %v286 = vld [vmem:[%s1 + $0x518] sm:$0xff]
    %v287 = vld [vmem:[%s1 + $0x520] sm:$0xff]
    %v288 = vld [vmem:[%s1 + $0x528] sm:$0xff]
    %v289 = vld [vmem:[%s1 + $0x530] sm:$0xff]
    %v290 = vld [vmem:[%s1 + $0x538] sm:$0xff]
    %v291 = vld [vmem:[%s1 + $0x540] sm:$0xff]
    %v292 = vld [vmem:[%s1 + $0x548] sm:$0xff]
    %v293 = vld [vmem:[%s1 + $0x550] sm:$0xff]
    %v294 = vld [vmem:[%s1 + $0x558] sm:$0xff]
    %v295 = vld [vmem:[%s1 + $0x560] sm:$0xff]
    %v296 = vld [vmem:[%s1 + $0x568] sm:$0xff]
    %v297 = vld [vmem:[%s1 + $0x570] sm:$0xff]
    %v298 = vld [vmem:[%s1 + $0x578] sm:$0xff]
    %v299 = vld [vmem:[%s1 + $0x580] sm:$0xff]
    %v300 = vld [vmem:[%s1 + $0x588] sm:$0xff]
    %v301 = vld [vmem:[%s1 + $0x590] sm:$0xff]
    %v302 = vld [vmem:[%s1 + $0x598] sm:$0xff]
    %v303 = vld [vmem:[%s1 + $0x5a0] sm:$0xff]
    %v304 = vld [vmem:[%s1 + $0x5a8] sm:$0xff]
    %v305 = vld [vmem:[%s1 + $0x5b0] sm:$0xff]
    %v306 = vld [vmem:[%s1 + $0x5b8] sm:$0xff]
    %v307 = vld [vmem:[%s1 + $0x5c0] sm:$0xff]
    %v308 = vld [vmem:[%s1 + $0x5c8] sm:$0xff]
    %v309 = vld [vmem:[%s1 + $0x5d0] sm:$0xff]
    %v310 = vld [vmem:[%s1 + $0x5d8] sm:$0xff]
    %v311 = vld [vmem:[%s1 + $0x5e0] sm:$0xff]
    %v312 = vld [vmem:[%s1 + $0x5e8] sm:$0xff]
    %v313 = vld [vmem:[%s1 + $0x5f0] sm:$0xff]
    %v314 = vld [vmem:[%s1 + $0x5f8] sm:$0xff]
    %v315 = vld [vmem:[%s1 + $0x600] sm:$0xff]
    %v316 = vld [vmem:[%s1 + $0x608] sm:$0xff]
    %v317 = vld [vmem:[%s1 + $0x610] sm:$0xff]
    %v318 = vld [vmem:[%s1 + $0x618] sm:$0xff]
    %v319 = vld [vmem:[%s1 + $0x620] sm:$0xff]
    %v320 = vld [vmem:[%s1 + $0x628] sm:$0xff]
    %v321 = vld [vmem:[%s1 + $0x630] sm:$0xff]
    %v322 = vld [vmem:[%s1 + $0x638] sm:$0xff]
    %v323 = vld [vmem:[%s1 + $0x640] sm:$0xff]
    %v324 = vld [vmem:[%s1 + $0x648] sm:$0xff]
    %v325 = vld [vmem:[%s1 + $0x650] sm:$0xff]
    %v326 = vld [vmem:[%s1 + $0x658] sm:$0xff]
    %v327 = vld [vmem:[%s1 + $0x660] sm:$0xff]
    %v328 = vld [vmem:[%s1 + $0x668] sm:$0xff]
    %v329 = vld [vmem:[%s1 + $0x670] sm:$0xff]
    %v330 = vld [vmem:[%s1 + $0x678] sm:$0xff]
    %v331 = vld [vmem:[%s1 + $0x680] sm:$0xff]
    %v332 = vld [vmem:[%s1 + $0x688] sm:$0xff]
    %v333 = vld [vmem:[%s1 + $0x690] sm:$0xff]
    %v334 = vld [vmem:[%s1 + $0x698] sm:$0xff]
    %v335 = vld [vmem:[%s1 + $0x6a0] sm:$0xff]
    %v336 = vld [vmem:[%s1 + $0x6a8] sm:$0xff]
    %v337 = vld [vmem:[%s1 + $0x6b0] sm:$0xff]
    %v338 = vld [vmem:[%s1 + $0x6b8] sm:$0xff]
    %v339 = vld [vmem:[%s1 + $0x6c0] sm:$0xff]
    %v340 = vld [vmem:[%s1 + $0x6c8] sm:$0xff]
    %v341 = vld [vmem:[%s1 + $0x6d0] sm:$0xff]
    %v342 = vld [vmem:[%s1 + $0x6d8] sm:$0xff]
    %v343 = vld [vmem:[%s1 + $0x6e0] sm:$0xff]
    %v344 = vld [vmem:[%s1 + $0x6e8] sm:$0xff]
    %v345 = vld [vmem:[%s1 + $0x6f0] sm:$0xff]
    %v346 = vld [vmem:[%s1 + $0x6f8] sm:$0xff]
    %v347 = vld [vmem:[%s1 + $0x700] sm:$0xff]
    %v348 = vld [vmem:[%s1 + $0x708] sm:$0xff]
    %v349 = vld [vmem:[%s1 + $0x710] sm:$0xff]
    %v350 = vld [vmem:[%s1 + $0x718] sm:$0xff]
    %v351 = vld [vmem:[%s1 + $0x720] sm:$0xff]
    %v352 = vld [vmem:[%s1 + $0x728] sm:$0xff]
    %v353 = vld [vmem:[%s1 + $0x730] sm:$0xff]
    %v354 = vld [vmem:[%s1 + $0x738] sm:$0xff]
    %v355 = vld [vmem:[%s1 + $0x740] sm:$0xff]
    %v356 = vld [vmem:[%s1 + $0x748] sm:$0xff]
    %v357 = vld [vmem:[%s1 + $0x750] sm:$0xff]
    %v358 = vld [vmem:[%s1 + $0x758] sm:$0xff]
    %v359 = vld [vmem:[%s1 + $0x760] sm:$0xff]
    %v360 = vld [vmem:[%s1 + $0x768] sm:$0xff]
    %v361 = vld [vmem:[%s1 + $0x770] sm:$0xff]
    %v362 = vld [vmem:[%s1 + $0x778] sm:$0xff]
    %v363 = vld [vmem:[%s1 + $0x780] sm:$0xff]
    %v364 = vld [vmem:[%s1 + $0x788] sm:$0xff]
    %v365 = vld [vmem:[%s1 + $0x790] sm:$0xff]
    %v366 = vld [vmem:[%s1 + $0x798] sm:$0xff]
    %v367 = vld [vmem:[%s1 + $0x7a0] sm:$0xff]
    %v368 = vld [vmem:[%s1 + $0x7a8] sm:$0xff]
    %v369 = vld [vmem:[%s1 + $0x7b0] sm:$0xff]
    %v370 = vld [vmem:[%s1 + $0x7b8] sm:$0xff]
    %v371 = vld [vmem:[%s1 + $0x7c0] sm:$0xff]
    %v372 = vld [vmem:[%s1 + $0x7c8] sm:$0xff]
    %v373 = vld [vmem:[%s1 + $0x7d0] sm:$0xff]
    %v374 = vld [vmem:[%s1 + $0x7d8] sm:$0xff]
    %v375 = vld [vmem:[%s1 + $0x7e0] sm:$0xff]
    %v376 = vld [vmem:[%s1 + $0x7e8] sm:$0xff]
    %v377 = vld [vmem:[%s1 + $0x7f0] sm:$0xff]
    %v378 = vld [vmem:[%s1 + $0x7f8] sm:$0xff]
    %v379 = vld [vmem:[%s1 + $0x800] sm:$0xff]
    %v380 = vld [vmem:[%s1 + $0x808] sm:$0xff]
    %v381 = vld [vmem:[%s1 + $0x810] sm:$0xff]
    %v382 = vld [vmem:[%s1 + $0x818] sm:$0xff]
    %v383 = vld [vmem:[%s1 + $0x820] sm:$0xff]
    %v384 = vld [vmem:[%s1 + $0x828] sm:$0xff]
    %v385 = vld [vmem:[%s1 + $0x830] sm:$0xff]
    %v386 = vld [vmem:[%s1 + $0x838] sm:$0xff]
    %v387 = vld [vmem:[%s1 + $0x840] sm:$0xff]
    %v388 = vld [vmem:[%s1 + $0x848] sm:$0xff]
    %v389 = vld [vmem:[%s1 + $0x850] sm:$0xff]
    %v390 = vld [vmem:[%s1 + $0x858] sm:$0xff]
    %v391 = vld [vmem:[%s1 + $0x860] sm:$0xff]
    %v392 = vld [vmem:[%s1 + $0x868] sm:$0xff]
    %v393 = vld [vmem:[%s1 + $0x870] sm:$0xff]
    %v394 = vld [vmem:[%s1 + $0x878] sm:$0xff]
    %v395 = vld [vmem:[%s1 + $0x880] sm:$0xff]
    %v396 = vld [vmem:[%s1 + $0x888] sm:$0xff]
    %v397 = vld [vmem:[%s1 + $0x890] sm:$0xff]
    %v398 = vld [vmem:[%s1 + $0x898] sm:$0xff]
    %v399 = vld [vmem:[%s1 + $0x8a0] sm:$0xff]
    %v400 = vld [vmem:[%s1 + $0x8a8] sm:$0xff]
    %v401 = vld [vmem:[%s1 + $0x8b0] sm:$0xff]
    %v402 = vld [vmem:[%s1 + $0x8b8] sm:$0xff]
    %v403 = vld [vmem:[%s1 + $0x8c0] sm:$0xff]
    %v404 = vld [vmem:[%s1 + $0x8c8] sm:$0xff]
    %v405 = vld [vmem:[%s1 + $0x8d0] sm:$0xff]
    %v406 = vld [vmem:[%s1 + $0x8d8] sm:$0xff]
    %v407 = vld [vmem:[%s1 + $0x8e0] sm:$0xff]
    %v408 = vld [vmem:[%s1 + $0x8e8] sm:$0xff]
    %v409 = vld [vmem:[%s1 + $0x8f0] sm:$0xff]
    %v410 = vld [vmem:[%s1 + $0x8f8] sm:$0xff]
    %v411 = vld [vmem:[%s1 + $0x900] sm:$0xff]
    %v412 = vld [vmem:[%s1 + $0x908] sm:$0xff]
    %v413 = vld [vmem:[%s1 + $0x910] sm:$0xff]
    %v414 = vld [vmem:[%s1 + $0x918] sm:$0xff]
    %v415 = vld [vmem:[%s1 + $0x920] sm:$0xff]
    %v416 = vld [vmem:[%s1 + $0x928] sm:$0xff]
    %v417 = vld [vmem:[%s1 + $0x930] sm:$0xff]
    %v418 = vld [vmem:[%s1 + $0x938] sm:$0xff]
    %v419 = vld [vmem:[%s1 + $0x940] sm:$0xff]
    %v420 = vld [vmem:[%s1 + $0x948] sm:$0xff]
    %v421 = vld [vmem:[%s1 + $0x950] sm:$0xff]
    %v422 = vld [vmem:[%s1 + $0x958] sm:$0xff]
    %v423 = vld [vmem:[%s1 + $0x960] sm:$0xff]
    %v424 = vld [vmem:[%s1 + $0x968] sm:$0xff]
    %v425 = vld [vmem:[%s1 + $0x970] sm:$0xff]
    %v426 = vld [vmem:[%s1 + $0x978] sm:$0xff]
    %v427 = vld [vmem:[%s1 + $0x980] sm:$0xff]
    %v428 = vld [vmem:[%s1 + $0x988] sm:$0xff]
    %v429 = vld [vmem:[%s1 + $0x990] sm:$0xff]
    %v430 = vld [vmem:[%s1 + $0x998] sm:$0xff]
    %v431 = vld [vmem:[%s1 + $0x9a0] sm:$0xff]
    %v432 = vld [vmem:[%s1 + $0x9a8] sm:$0xff]
    %v433 = vld [vmem:[%s1 + $0x9b0] sm:$0xff]
    %v434 = vld [vmem:[%s1 + $0x9b8] sm:$0xff]
    %v435 = vld [vmem:[%s1 + $0x9c0] sm:$0xff]
    %v436 = vld [vmem:[%s1 + $0x9c8] sm:$0xff]
    %v437 = vld [vmem:[%s1 + $0x9d0] sm:$0xff]
    %v438 = vld [vmem:[%s1 + $0x9d8] sm:$0xff]
    %v439 = vld [vmem:[%s1 + $0x9e0] sm:$0xff]
    %v440 = vld [vmem:[%s1 + $0x9e8] sm:$0xff]
    %v441 = vld [vmem:[%s1 + $0x9f0] sm:$0xff]
    %v442 = vld [vmem:[%s1 + $0x9f8] sm:$0xff]
    %v443 = vld [vmem:[%s1 + $0xa00] sm:$0xff]
    %v444 = vld [vmem:[%s1 + $0xa08] sm:$0xff]
    %v445 = vld [vmem:[%s1 + $0xa10] sm:$0xff]
    %v446 = vld [vmem:[%s1 + $0xa18] sm:$0xff]
    %v447 = vld [vmem:[%s1 + $0xa20] sm:$0xff]
    %v448 = vld [vmem:[%s1 + $0xa28] sm:$0xff]
    %v449 = vld [vmem:[%s1 + $0xa30] sm:$0xff]
    %v450 = vld [vmem:[%s1 + $0xa38] sm:$0xff]
    %v451 = vld [vmem:[%s1 + $0xa40] sm:$0xff]
    %v452 = vld [vmem:[%s1 + $0xa48] sm:$0xff]
    %v453 = vld [vmem:[%s1 + $0xa50] sm:$0xff]
    %v454 = vld [vmem:[%s1 + $0xa58] sm:$0xff]
    %v455 = vld [vmem:[%s1 + $0xa60] sm:$0xff]
    %v456 = vld [vmem:[%s1 + $0xa68] sm:$0xff]
    %v457 = vld [vmem:[%s1 + $0xa70] sm:$0xff]
    %v458 = vld [vmem:[%s1 + $0xa78] sm:$0xff]
    %v459 = vld [vmem:[%s1 + $0xa80] sm:$0xff]
    %v460 = vld [vmem:[%s1 + $0xa88] sm:$0xff]
    %v461 = vld [vmem:[%s1 + $0xa90] sm:$0xff]
    %v462 = vld [vmem:[%s1 + $0xa98] sm:$0xff]
    %v463 = vld [vmem:[%s1 + $0xaa0] sm:$0xff]
    %v464 = vld [vmem:[%s1 + $0xaa8] sm:$0xff]
    %v465 = vld [vmem:[%s1 + $0xab0] sm:$0xff]
    %v466 = vld [vmem:[%s1 + $0xab8] sm:$0xff]
    %v467 = vld [vmem:[%s1 + $0xac0] sm:$0xff]
    %v468 = vld [vmem:[%s1 + $0xac8] sm:$0xff]
    %v469 = vld [vmem:[%s1 + $0xad0] sm:$0xff]
    %v470 = vld [vmem:[%s1 + $0xad8] sm:$0xff]
    %v471 = vld [vmem:[%s1 + $0xae0] sm:$0xff]
    %v472 = vld [vmem:[%s1 + $0xae8] sm:$0xff]
    %v473 = vld [vmem:[%s1 + $0xaf0] sm:$0xff]
    %v474 = vld [vmem:[%s1 + $0xaf8] sm:$0xff]
    %v475 = vld [vmem:[%s1 + $0xb00] sm:$0xff]
    %v476 = vld [vmem:[%s1 + $0xb08] sm:$0xff]
    %v477 = vld [vmem:[%s1 + $0xb10] sm:$0xff]
    %v478 = vld [vmem:[%s1 + $0xb18] sm:$0xff]
    %v479 = vld [vmem:[%s1 + $0xb20] sm:$0xff]
    %v480 = vld [vmem:[%s1 + $0xb28] sm:$0xff]
    %v481 = vld [vmem:[%s1 + $0xb30] sm:$0xff]
    %v482 = vld [vmem:[%s1 + $0xb38] sm:$0xff]
    %v483 = vld [vmem:[%s1 + $0xb40] sm:$0xff]
    %v484 = vld [vmem:[%s1 + $0xb48] sm:$0xff]
    %v485 = vld [vmem:[%s1 + $0xb50] sm:$0xff]
    %v486 = vld [vmem:[%s1 + $0xb58] sm:$0xff]
    %v487 = vld [vmem:[%s1 + $0xb60] sm:$0xff]
    %v488 = vld [vmem:[%s1 + $0xb68] sm:$0xff]
    %v489 = vld [vmem:[%s1 + $0xb70] sm:$0xff]
    %v490 = vld [vmem:[%s1 + $0xb78] sm:$0xff]
    %v491 = vld [vmem:[%s1 + $0xb80] sm:$0xff]
    %v492 = vld [vmem:[%s1 + $0xb88] sm:$0xff]
    %v493 = vld [vmem:[%s1 + $0xb90] sm:$0xff]
    %v494 = vld [vmem:[%s1 + $0xb98] sm:$0xff]
    %v495 = vld [vmem:[%s1 + $0xba0] sm:$0xff]
    %v496 = vld [vmem:[%s1 + $0xba8] sm:$0xff]
    %v497 = vld [vmem:[%s1 + $0xbb0] sm:$0xff]
    %v498 = vld [vmem:[%s1 + $0xbb8] sm:$0xff]
    %v499 = vld [vmem:[%s1 + $0xbc0] sm:$0xff]
    %v500 = vld [vmem:[%s1 + $0xbc8] sm:$0xff]
    %v501 = vld [vmem:[%s1 + $0xbd0] sm:$0xff]
    %v502 = vld [vmem:[%s1 + $0xbd8] sm:$0xff]
    %v503 = vld [vmem:[%s1 + $0xbe0] sm:$0xff]
    %v504 = vld [vmem:[%s1 + $0xbe8] sm:$0xff]
    %v505 = vld [vmem:[%s1 + $0xbf0] sm:$0xff]
    %v506 = vld [vmem:[%s1 + $0xbf8] sm:$0xff]
    %v507 = vld [vmem:[%s2] sm:$0xff]
    %v508 = vld [vmem:[%s2 + $0x8] sm:$0xf]
    %v511 = vlaneseq
    %v512 = vshrl.u32 %v511, 7
    %v513 = vsub.s32 0, %v512
    %v514 = vrot.slane %v507, %v513
    %v515 = vlaneseq
    %v516 = vshrl.u32 %v515, 7
    %v517 = vsub.s32 1, %v516
    %v518 = vrot.slane %v507, %v517
    %v519 = vlaneseq
    %v520 = vshrl.u32 %v519, 7
    %v521 = vsub.s32 2, %v520
    %v522 = vrot.slane %v507, %v521
    %v523 = vlaneseq
    %v524 = vshrl.u32 %v523, 7
    %v525 = vsub.s32 3, %v524
    %v526 = vrot.slane %v507, %v525
    %v527 = vlaneseq
    %v528 = vshrl.u32 %v527, 7
    %v529 = vsub.s32 4, %v528
    %v530 = vrot.slane %v507, %v529
    %v531 = vlaneseq
    %v532 = vshrl.u32 %v531, 7
    %v533 = vsub.s32 5, %v532
    %v534 = vrot.slane %v507, %v533
    %v535 = vlaneseq
    %v536 = vshrl.u32 %v535, 7
    %v537 = vsub.s32 6, %v536
    %v538 = vrot.slane %v507, %v537
    %v539 = vlaneseq
    %v540 = vshrl.u32 %v539, 7
    %v541 = vsub.s32 7, %v540
    %v542 = vrot.slane %v507, %v541
    %v543 = vlaneseq
    %v544 = vshrl.u32 %v543, 7
    %v545 = vsub.s32 0, %v544
    %v546 = vrot.slane %v508, %v545
    %v547 = vlaneseq
    %v548 = vshrl.u32 %v547, 7
    %v549 = vsub.s32 1, %v548
    %v550 = vrot.slane %v508, %v549
    %v551 = vlaneseq
    %v552 = vshrl.u32 %v551, 7
    %v553 = vsub.s32 2, %v552
    %v554 = vrot.slane %v508, %v553
    %v555 = vlaneseq
    %v556 = vshrl.u32 %v555, 7
    %v557 = vsub.s32 3, %v556
    %v558 = vrot.slane %v508, %v557
    %v955 = vunpack.c.l.b16 %v123
    %v956 = vunpack.c.h.b16 %v123
    %v957 = vunpack.c.l.b16 %v124
    %v958 = vunpack.c.h.b16 %v124
    %v959 = vunpack.c.l.b16 %v125
    %v960 = vunpack.c.h.b16 %v125
    %v961 = vunpack.c.l.b16 %v126
    %v962 = vunpack.c.h.b16 %v126
    %v963 = vunpack.c.l.b16 %v127
    %v964 = vunpack.c.h.b16 %v127
    %v965 = vunpack.c.l.b16 %v128
    %v966 = vunpack.c.h.b16 %v128
    %v967 = vunpack.c.l.b16 %v129
    %v968 = vunpack.c.h.b16 %v129
    %v969 = vunpack.c.l.b16 %v130
    %v970 = vunpack.c.h.b16 %v130
    %v971 = vunpack.c.l.b16 %v131
    %v972 = vunpack.c.h.b16 %v131
    %v973 = vunpack.c.l.b16 %v132
    %v974 = vunpack.c.h.b16 %v132
    %v975 = vunpack.c.l.b16 %v133
    %v976 = vunpack.c.h.b16 %v133
    %v977 = vunpack.c.l.b16 %v134
    %v978 = vunpack.c.h.b16 %v134
    %v979 = vunpack.c.l.b16 %v135
    %v980 = vunpack.c.h.b16 %v135
    %v981 = vunpack.c.l.b16 %v136
    %v982 = vunpack.c.h.b16 %v136
    %v983 = vunpack.c.l.b16 %v137
    %v984 = vunpack.c.h.b16 %v137
    %v985 = vunpack.c.l.b16 %v138
    %v986 = vunpack.c.h.b16 %v138
    %v987 = vunpack.c.l.b16 %v139
    %v988 = vunpack.c.h.b16 %v139
    %v989 = vunpack.c.l.b16 %v140
    %v990 = vunpack.c.h.b16 %v140
    %v991 = vunpack.c.l.b16 %v141
    %v992 = vunpack.c.h.b16 %v141
    %v993 = vunpack.c.l.b16 %v142
    %v994 = vunpack.c.h.b16 %v142
    %v995 = vunpack.c.l.b16 %v143
    %v996 = vunpack.c.h.b16 %v143
    %v997 = vunpack.c.l.b16 %v144
    %v998 = vunpack.c.h.b16 %v144
    %v999 = vunpack.c.l.b16 %v145
    %v1000 = vunpack.c.h.b16 %v145
    %v1001 = vunpack.c.l.b16 %v146
    %v1002 = vunpack.c.h.b16 %v146
    %v1003 = vunpack.c.l.b16 %v147
    %v1004 = vunpack.c.h.b16 %v147
    %v1005 = vunpack.c.l.b16 %v148
    %v1006 = vunpack.c.h.b16 %v148
    %v1007 = vunpack.c.l.b16 %v149
    %v1008 = vunpack.c.h.b16 %v149
    %v1009 = vunpack.c.l.b16 %v150
    %v1010 = vunpack.c.h.b16 %v150
    %v1011 = vunpack.c.l.b16 %v151
    %v1012 = vunpack.c.h.b16 %v151
    %v1013 = vunpack.c.l.b16 %v152
    %v1014 = vunpack.c.h.b16 %v152
    %v1015 = vunpack.c.l.b16 %v153
    %v1016 = vunpack.c.h.b16 %v153
    %v1017 = vunpack.c.l.b16 %v154
    %v1018 = vunpack.c.h.b16 %v154
    %v1019 = vunpack.c.l.b16 %v155
    %v1020 = vunpack.c.h.b16 %v155
    %v1021 = vunpack.c.l.b16 %v156
    %v1022 = vunpack.c.h.b16 %v156
    %v1023 = vunpack.c.l.b16 %v157
    %v1024 = vunpack.c.h.b16 %v157
    %v1025 = vunpack.c.l.b16 %v158
    %v1026 = vunpack.c.h.b16 %v158
    %v1027 = vunpack.c.l.b16 %v159
    %v1028 = vunpack.c.h.b16 %v159
    %v1029 = vunpack.c.l.b16 %v160
    %v1030 = vunpack.c.h.b16 %v160
    %v1031 = vunpack.c.l.b16 %v161
    %v1032 = vunpack.c.h.b16 %v161
    %v1033 = vunpack.c.l.b16 %v162
    %v1034 = vunpack.c.h.b16 %v162
    %v1035 = vunpack.c.l.b16 %v163
    %v1036 = vunpack.c.h.b16 %v163
    %v1037 = vunpack.c.l.b16 %v164
    %v1038 = vunpack.c.h.b16 %v164
    %v1039 = vunpack.c.l.b16 %v165
    %v1040 = vunpack.c.h.b16 %v165
    %v1041 = vunpack.c.l.b16 %v166
    %v1042 = vunpack.c.h.b16 %v166
    %v1043 = vunpack.c.l.b16 %v167
    %v1044 = vunpack.c.h.b16 %v167
    %v1045 = vunpack.c.l.b16 %v168
    %v1046 = vunpack.c.h.b16 %v168
    %v1047 = vunpack.c.l.b16 %v169
    %v1048 = vunpack.c.h.b16 %v169
    %v1049 = vunpack.c.l.b16 %v170
    %v1050 = vunpack.c.h.b16 %v170
    %v1051 = vunpack.c.l.b16 %v171
    %v1052 = vunpack.c.h.b16 %v171
    %v1053 = vunpack.c.l.b16 %v172
    %v1054 = vunpack.c.h.b16 %v172
    %v1055 = vunpack.c.l.b16 %v173
    %v1056 = vunpack.c.h.b16 %v173
    %v1057 = vunpack.c.l.b16 %v174
    %v1058 = vunpack.c.h.b16 %v174
    %v1059 = vunpack.c.l.b16 %v175
    %v1060 = vunpack.c.h.b16 %v175
    %v1061 = vunpack.c.l.b16 %v176
    %v1062 = vunpack.c.h.b16 %v176
    %v1063 = vunpack.c.l.b16 %v177
    %v1064 = vunpack.c.h.b16 %v177
    %v1065 = vunpack.c.l.b16 %v178
    %v1066 = vunpack.c.h.b16 %v178
    %v1067 = vunpack.c.l.b16 %v179
    %v1068 = vunpack.c.h.b16 %v179
    %v1069 = vunpack.c.l.b16 %v180
    %v1070 = vunpack.c.h.b16 %v180
    %v1071 = vunpack.c.l.b16 %v181
    %v1072 = vunpack.c.h.b16 %v181
    %v1073 = vunpack.c.l.b16 %v182
    %v1074 = vunpack.c.h.b16 %v182
    %v1075 = vunpack.c.l.b16 %v183
    %v1076 = vunpack.c.h.b16 %v183
    %v1077 = vunpack.c.l.b16 %v184
    %v1078 = vunpack.c.h.b16 %v184
    %v1079 = vunpack.c.l.b16 %v185
    %v1080 = vunpack.c.h.b16 %v185
    %v1081 = vunpack.c.l.b16 %v186
    %v1082 = vunpack.c.h.b16 %v186
    %v1083 = vunpack.c.l.b16 %v187
    %v1084 = vunpack.c.h.b16 %v187
    %v1085 = vunpack.c.l.b16 %v188
    %v1086 = vunpack.c.h.b16 %v188
    %v1087 = vunpack.c.l.b16 %v189
    %v1088 = vunpack.c.h.b16 %v189
    %v1089 = vunpack.c.l.b16 %v190
    %v1090 = vunpack.c.h.b16 %v190
    %v1091 = vunpack.c.l.b16 %v191
    %v1092 = vunpack.c.h.b16 %v191
    %v1093 = vunpack.c.l.b16 %v192
    %v1094 = vunpack.c.h.b16 %v192
    %v1095 = vunpack.c.l.b16 %v193
    %v1096 = vunpack.c.h.b16 %v193
    %v1097 = vunpack.c.l.b16 %v194
    %v1098 = vunpack.c.h.b16 %v194
    %v1099 = vunpack.c.l.b16 %v195
    %v1100 = vunpack.c.h.b16 %v195
    %v1101 = vunpack.c.l.b16 %v196
    %v1102 = vunpack.c.h.b16 %v196
    %v1103 = vunpack.c.l.b16 %v197
    %v1104 = vunpack.c.h.b16 %v197
    %v1105 = vunpack.c.l.b16 %v198
    %v1106 = vunpack.c.h.b16 %v198
    %v1107 = vunpack.c.l.b16 %v199
    %v1108 = vunpack.c.h.b16 %v199
    %v1109 = vunpack.c.l.b16 %v200
    %v1110 = vunpack.c.h.b16 %v200
    %v1111 = vunpack.c.l.b16 %v201
    %v1112 = vunpack.c.h.b16 %v201
    %v1113 = vunpack.c.l.b16 %v202
    %v1114 = vunpack.c.h.b16 %v202
    %v1115 = vunpack.c.l.b16 %v203
    %v1116 = vunpack.c.h.b16 %v203
    %v1117 = vunpack.c.l.b16 %v204
    %v1118 = vunpack.c.h.b16 %v204
    %v1119 = vunpack.c.l.b16 %v205
    %v1120 = vunpack.c.h.b16 %v205
    %v1121 = vunpack.c.l.b16 %v206
    %v1122 = vunpack.c.h.b16 %v206
    %v1123 = vunpack.c.l.b16 %v207
    %v1124 = vunpack.c.h.b16 %v207
    %v1125 = vunpack.c.l.b16 %v208
    %v1126 = vunpack.c.h.b16 %v208
    %v1127 = vunpack.c.l.b16 %v209
    %v1128 = vunpack.c.h.b16 %v209
    %v1129 = vunpack.c.l.b16 %v210
    %v1130 = vunpack.c.h.b16 %v210
    %v1131 = vunpack.c.l.b16 %v211
    %v1132 = vunpack.c.h.b16 %v211
    %v1133 = vunpack.c.l.b16 %v212
    %v1134 = vunpack.c.h.b16 %v212
    %v1135 = vunpack.c.l.b16 %v213
    %v1136 = vunpack.c.h.b16 %v213
    %v1137 = vunpack.c.l.b16 %v214
    %v1138 = vunpack.c.h.b16 %v214
    %v1139 = vunpack.c.l.b16 %v215
    %v1140 = vunpack.c.h.b16 %v215
    %v1141 = vunpack.c.l.b16 %v216
    %v1142 = vunpack.c.h.b16 %v216
    %v1143 = vunpack.c.l.b16 %v217
    %v1144 = vunpack.c.h.b16 %v217
    %v1145 = vunpack.c.l.b16 %v218
    %v1146 = vunpack.c.h.b16 %v218
    %v1147 = vunpack.c.l.b16 %v219
    %v1148 = vunpack.c.h.b16 %v219
    %v1149 = vunpack.c.l.b16 %v220
    %v1150 = vunpack.c.h.b16 %v220
    %v1151 = vunpack.c.l.b16 %v221
    %v1152 = vunpack.c.h.b16 %v221
    %v1153 = vunpack.c.l.b16 %v222
    %v1154 = vunpack.c.h.b16 %v222
    %v1155 = vunpack.c.l.b16 %v223
    %v1156 = vunpack.c.h.b16 %v223
    %v1157 = vunpack.c.l.b16 %v224
    %v1158 = vunpack.c.h.b16 %v224
    %v1159 = vunpack.c.l.b16 %v225
    %v1160 = vunpack.c.h.b16 %v225
    %v1161 = vunpack.c.l.b16 %v226
    %v1162 = vunpack.c.h.b16 %v226
    %v1163 = vunpack.c.l.b16 %v227
    %v1164 = vunpack.c.h.b16 %v227
    %v1165 = vunpack.c.l.b16 %v228
    %v1166 = vunpack.c.h.b16 %v228
    %v1167 = vunpack.c.l.b16 %v229
    %v1168 = vunpack.c.h.b16 %v229
    %v1169 = vunpack.c.l.b16 %v230
    %v1170 = vunpack.c.h.b16 %v230
    %v1171 = vunpack.c.l.b16 %v231
    %v1172 = vunpack.c.h.b16 %v231
    %v1173 = vunpack.c.l.b16 %v232
    %v1174 = vunpack.c.h.b16 %v232
    %v1175 = vunpack.c.l.b16 %v233
    %v1176 = vunpack.c.h.b16 %v233
    %v1177 = vunpack.c.l.b16 %v234
    %v1178 = vunpack.c.h.b16 %v234
    %v1179 = vunpack.c.l.b16 %v235
    %v1180 = vunpack.c.h.b16 %v235
    %v1181 = vunpack.c.l.b16 %v236
    %v1182 = vunpack.c.h.b16 %v236
    %v1183 = vunpack.c.l.b16 %v237
    %v1184 = vunpack.c.h.b16 %v237
    %v1185 = vunpack.c.l.b16 %v238
    %v1186 = vunpack.c.h.b16 %v238
    %v1187 = vunpack.c.l.b16 %v239
    %v1188 = vunpack.c.h.b16 %v239
    %v1189 = vunpack.c.l.b16 %v240
    %v1190 = vunpack.c.h.b16 %v240
    %v1191 = vunpack.c.l.b16 %v241
    %v1192 = vunpack.c.h.b16 %v241
    %v1193 = vunpack.c.l.b16 %v242
    %v1194 = vunpack.c.h.b16 %v242
    %v1195 = vunpack.c.l.b16 %v243
    %v1196 = vunpack.c.h.b16 %v243
    %v1197 = vunpack.c.l.b16 %v244
    %v1198 = vunpack.c.h.b16 %v244
    %v1199 = vunpack.c.l.b16 %v245
    %v1200 = vunpack.c.h.b16 %v245
    %v1201 = vunpack.c.l.b16 %v246
    %v1202 = vunpack.c.h.b16 %v246
    %v1203 = vunpack.c.l.b16 %v247
    %v1204 = vunpack.c.h.b16 %v247
    %v1205 = vunpack.c.l.b16 %v248
    %v1206 = vunpack.c.h.b16 %v248
    %v1207 = vunpack.c.l.b16 %v249
    %v1208 = vunpack.c.h.b16 %v249
    %v1209 = vunpack.c.l.b16 %v250
    %v1210 = vunpack.c.h.b16 %v250
    %v1211 = vunpack.c.l.b16 %v251
    %v1212 = vunpack.c.h.b16 %v251
    %v1213 = vunpack.c.l.b16 %v252
    %v1214 = vunpack.c.h.b16 %v252
    %v1215 = vunpack.c.l.b16 %v253
    %v1216 = vunpack.c.h.b16 %v253
    %v1217 = vunpack.c.l.b16 %v254
    %v1218 = vunpack.c.h.b16 %v254
    %v1219 = vunpack.c.l.b16 %v255
    %v1220 = vunpack.c.h.b16 %v255
    %v1221 = vunpack.c.l.b16 %v256
    %v1222 = vunpack.c.h.b16 %v256
    %v1223 = vunpack.c.l.b16 %v257
    %v1224 = vunpack.c.h.b16 %v257
    %v1225 = vunpack.c.l.b16 %v258
    %v1226 = vunpack.c.h.b16 %v258
    %v1227 = vunpack.c.l.b16 %v259
    %v1228 = vunpack.c.h.b16 %v259
    %v1229 = vunpack.c.l.b16 %v260
    %v1230 = vunpack.c.h.b16 %v260
    %v1231 = vunpack.c.l.b16 %v261
    %v1232 = vunpack.c.h.b16 %v261
    %v1233 = vunpack.c.l.b16 %v262
    %v1234 = vunpack.c.h.b16 %v262
    %v1235 = vunpack.c.l.b16 %v263
    %v1236 = vunpack.c.h.b16 %v263
    %v1237 = vunpack.c.l.b16 %v264
    %v1238 = vunpack.c.h.b16 %v264
    %v1239 = vunpack.c.l.b16 %v265
    %v1240 = vunpack.c.h.b16 %v265
    %v1241 = vunpack.c.l.b16 %v266
    %v1242 = vunpack.c.h.b16 %v266
    %v1243 = vunpack.c.l.b16 %v267
    %v1244 = vunpack.c.h.b16 %v267
    %v1245 = vunpack.c.l.b16 %v268
    %v1246 = vunpack.c.h.b16 %v268
    %v1247 = vunpack.c.l.b16 %v269
    %v1248 = vunpack.c.h.b16 %v269
    %v1249 = vunpack.c.l.b16 %v270
    %v1250 = vunpack.c.h.b16 %v270
    %v1251 = vunpack.c.l.b16 %v271
    %v1252 = vunpack.c.h.b16 %v271
    %v1253 = vunpack.c.l.b16 %v272
    %v1254 = vunpack.c.h.b16 %v272
    %v1255 = vunpack.c.l.b16 %v273
    %v1256 = vunpack.c.h.b16 %v273
    %v1257 = vunpack.c.l.b16 %v274
    %v1258 = vunpack.c.h.b16 %v274
    %v1259 = vunpack.c.l.b16 %v275
    %v1260 = vunpack.c.h.b16 %v275
    %v1261 = vunpack.c.l.b16 %v276
    %v1262 = vunpack.c.h.b16 %v276
    %v1263 = vunpack.c.l.b16 %v277
    %v1264 = vunpack.c.h.b16 %v277
    %v1265 = vunpack.c.l.b16 %v278
    %v1266 = vunpack.c.h.b16 %v278
    %v1267 = vunpack.c.l.b16 %v279
    %v1268 = vunpack.c.h.b16 %v279
    %v1269 = vunpack.c.l.b16 %v280
    %v1270 = vunpack.c.h.b16 %v280
    %v1271 = vunpack.c.l.b16 %v281
    %v1272 = vunpack.c.h.b16 %v281
    %v1273 = vunpack.c.l.b16 %v282
    %v1274 = vunpack.c.h.b16 %v282
    %v1275 = vunpack.c.l.b16 %v283
    %v1276 = vunpack.c.h.b16 %v283
    %v1277 = vunpack.c.l.b16 %v284
    %v1278 = vunpack.c.h.b16 %v284
    %v1279 = vunpack.c.l.b16 %v285
    %v1280 = vunpack.c.h.b16 %v285
    %v1281 = vunpack.c.l.b16 %v286
    %v1282 = vunpack.c.h.b16 %v286
    %v1283 = vunpack.c.l.b16 %v287
    %v1284 = vunpack.c.h.b16 %v287
    %v1285 = vunpack.c.l.b16 %v288
    %v1286 = vunpack.c.h.b16 %v288
    %v1287 = vunpack.c.l.b16 %v289
    %v1288 = vunpack.c.h.b16 %v289
    %v1289 = vunpack.c.l.b16 %v290
    %v1290 = vunpack.c.h.b16 %v290
    %v1291 = vunpack.c.l.b16 %v291
    %v1292 = vunpack.c.h.b16 %v291
    %v1293 = vunpack.c.l.b16 %v292
    %v1294 = vunpack.c.h.b16 %v292
    %v1295 = vunpack.c.l.b16 %v293
    %v1296 = vunpack.c.h.b16 %v293
    %v1297 = vunpack.c.l.b16 %v294
    %v1298 = vunpack.c.h.b16 %v294
    %v1299 = vunpack.c.l.b16 %v295
    %v1300 = vunpack.c.h.b16 %v295
    %v1301 = vunpack.c.l.b16 %v296
    %v1302 = vunpack.c.h.b16 %v296
    %v1303 = vunpack.c.l.b16 %v297
    %v1304 = vunpack.c.h.b16 %v297
    %v1305 = vunpack.c.l.b16 %v298
    %v1306 = vunpack.c.h.b16 %v298
    %v1307 = vunpack.c.l.b16 %v299
    %v1308 = vunpack.c.h.b16 %v299
    %v1309 = vunpack.c.l.b16 %v300
    %v1310 = vunpack.c.h.b16 %v300
    %v1311 = vunpack.c.l.b16 %v301
    %v1312 = vunpack.c.h.b16 %v301
    %v1313 = vunpack.c.l.b16 %v302
    %v1314 = vunpack.c.h.b16 %v302
    %v1315 = vunpack.c.l.b16 %v303
    %v1316 = vunpack.c.h.b16 %v303
    %v1317 = vunpack.c.l.b16 %v304
    %v1318 = vunpack.c.h.b16 %v304
    %v1319 = vunpack.c.l.b16 %v305
    %v1320 = vunpack.c.h.b16 %v305
    %v1321 = vunpack.c.l.b16 %v306
    %v1322 = vunpack.c.h.b16 %v306
    %v1323 = vunpack.c.l.b16 %v307
    %v1324 = vunpack.c.h.b16 %v307
    %v1325 = vunpack.c.l.b16 %v308
    %v1326 = vunpack.c.h.b16 %v308
    %v1327 = vunpack.c.l.b16 %v309
    %v1328 = vunpack.c.h.b16 %v309
    %v1329 = vunpack.c.l.b16 %v310
    %v1330 = vunpack.c.h.b16 %v310
    %v1331 = vunpack.c.l.b16 %v311
    %v1332 = vunpack.c.h.b16 %v311
    %v1333 = vunpack.c.l.b16 %v312
    %v1334 = vunpack.c.h.b16 %v312
    %v1335 = vunpack.c.l.b16 %v313
    %v1336 = vunpack.c.h.b16 %v313
    %v1337 = vunpack.c.l.b16 %v314
    %v1338 = vunpack.c.h.b16 %v314
    %v1339 = vunpack.c.l.b16 %v315
    %v1340 = vunpack.c.h.b16 %v315
    %v1341 = vunpack.c.l.b16 %v316
    %v1342 = vunpack.c.h.b16 %v316
    %v1343 = vunpack.c.l.b16 %v317
    %v1344 = vunpack.c.h.b16 %v317
    %v1345 = vunpack.c.l.b16 %v318
    %v1346 = vunpack.c.h.b16 %v318
    %v1347 = vunpack.c.l.b16 %v319
    %v1348 = vunpack.c.h.b16 %v319
    %v1349 = vunpack.c.l.b16 %v320
    %v1350 = vunpack.c.h.b16 %v320
    %v1351 = vunpack.c.l.b16 %v321
    %v1352 = vunpack.c.h.b16 %v321
    %v1353 = vunpack.c.l.b16 %v322
    %v1354 = vunpack.c.h.b16 %v322
    %v1355 = vunpack.c.l.b16 %v323
    %v1356 = vunpack.c.h.b16 %v323
    %v1357 = vunpack.c.l.b16 %v324
    %v1358 = vunpack.c.h.b16 %v324
    %v1359 = vunpack.c.l.b16 %v325
    %v1360 = vunpack.c.h.b16 %v325
    %v1361 = vunpack.c.l.b16 %v326
    %v1362 = vunpack.c.h.b16 %v326
    %v1363 = vunpack.c.l.b16 %v327
    %v1364 = vunpack.c.h.b16 %v327
    %v1365 = vunpack.c.l.b16 %v328
    %v1366 = vunpack.c.h.b16 %v328
    %v1367 = vunpack.c.l.b16 %v329
    %v1368 = vunpack.c.h.b16 %v329
    %v1369 = vunpack.c.l.b16 %v330
    %v1370 = vunpack.c.h.b16 %v330
    %v1371 = vunpack.c.l.b16 %v331
    %v1372 = vunpack.c.h.b16 %v331
    %v1373 = vunpack.c.l.b16 %v332
    %v1374 = vunpack.c.h.b16 %v332
    %v1375 = vunpack.c.l.b16 %v333
    %v1376 = vunpack.c.h.b16 %v333
    %v1377 = vunpack.c.l.b16 %v334
    %v1378 = vunpack.c.h.b16 %v334
    %v1379 = vunpack.c.l.b16 %v335
    %v1380 = vunpack.c.h.b16 %v335
    %v1381 = vunpack.c.l.b16 %v336
    %v1382 = vunpack.c.h.b16 %v336
    %v1383 = vunpack.c.l.b16 %v337
    %v1384 = vunpack.c.h.b16 %v337
    %v1385 = vunpack.c.l.b16 %v338
    %v1386 = vunpack.c.h.b16 %v338
    %v1387 = vunpack.c.l.b16 %v339
    %v1388 = vunpack.c.h.b16 %v339
    %v1389 = vunpack.c.l.b16 %v340
    %v1390 = vunpack.c.h.b16 %v340
    %v1391 = vunpack.c.l.b16 %v341
    %v1392 = vunpack.c.h.b16 %v341
    %v1393 = vunpack.c.l.b16 %v342
    %v1394 = vunpack.c.h.b16 %v342
    %v1395 = vunpack.c.l.b16 %v343
    %v1396 = vunpack.c.h.b16 %v343
    %v1397 = vunpack.c.l.b16 %v344
    %v1398 = vunpack.c.h.b16 %v344
    %v1399 = vunpack.c.l.b16 %v345
    %v1400 = vunpack.c.h.b16 %v345
    %v1401 = vunpack.c.l.b16 %v346
    %v1402 = vunpack.c.h.b16 %v346
    %v1403 = vunpack.c.l.b16 %v347
    %v1404 = vunpack.c.h.b16 %v347
    %v1405 = vunpack.c.l.b16 %v348
    %v1406 = vunpack.c.h.b16 %v348
    %v1407 = vunpack.c.l.b16 %v349
    %v1408 = vunpack.c.h.b16 %v349
    %v1409 = vunpack.c.l.b16 %v350
    %v1410 = vunpack.c.h.b16 %v350
    %v1411 = vunpack.c.l.b16 %v351
    %v1412 = vunpack.c.h.b16 %v351
    %v1413 = vunpack.c.l.b16 %v352
    %v1414 = vunpack.c.h.b16 %v352
    %v1415 = vunpack.c.l.b16 %v353
    %v1416 = vunpack.c.h.b16 %v353
    %v1417 = vunpack.c.l.b16 %v354
    %v1418 = vunpack.c.h.b16 %v354
    %v1419 = vunpack.c.l.b16 %v355
    %v1420 = vunpack.c.h.b16 %v355
    %v1421 = vunpack.c.l.b16 %v356
    %v1422 = vunpack.c.h.b16 %v356
    %v1423 = vunpack.c.l.b16 %v357
    %v1424 = vunpack.c.h.b16 %v357
    %v1425 = vunpack.c.l.b16 %v358
    %v1426 = vunpack.c.h.b16 %v358
    %v1427 = vunpack.c.l.b16 %v359
    %v1428 = vunpack.c.h.b16 %v359
    %v1429 = vunpack.c.l.b16 %v360
    %v1430 = vunpack.c.h.b16 %v360
    %v1431 = vunpack.c.l.b16 %v361
    %v1432 = vunpack.c.h.b16 %v361
    %v1433 = vunpack.c.l.b16 %v362
    %v1434 = vunpack.c.h.b16 %v362
    %v1435 = vunpack.c.l.b16 %v363
    %v1436 = vunpack.c.h.b16 %v363
    %v1437 = vunpack.c.l.b16 %v364
    %v1438 = vunpack.c.h.b16 %v364
    %v1439 = vunpack.c.l.b16 %v365
    %v1440 = vunpack.c.h.b16 %v365
    %v1441 = vunpack.c.l.b16 %v366
    %v1442 = vunpack.c.h.b16 %v366
    %v1443 = vunpack.c.l.b16 %v367
    %v1444 = vunpack.c.h.b16 %v367
    %v1445 = vunpack.c.l.b16 %v368
    %v1446 = vunpack.c.h.b16 %v368
    %v1447 = vunpack.c.l.b16 %v369
    %v1448 = vunpack.c.h.b16 %v369
    %v1449 = vunpack.c.l.b16 %v370
    %v1450 = vunpack.c.h.b16 %v370
    %v1451 = vunpack.c.l.b16 %v371
    %v1452 = vunpack.c.h.b16 %v371
    %v1453 = vunpack.c.l.b16 %v372
    %v1454 = vunpack.c.h.b16 %v372
    %v1455 = vunpack.c.l.b16 %v373
    %v1456 = vunpack.c.h.b16 %v373
    %v1457 = vunpack.c.l.b16 %v374
    %v1458 = vunpack.c.h.b16 %v374
    %v1459 = vunpack.c.l.b16 %v375
    %v1460 = vunpack.c.h.b16 %v375
    %v1461 = vunpack.c.l.b16 %v376
    %v1462 = vunpack.c.h.b16 %v376
    %v1463 = vunpack.c.l.b16 %v377
    %v1464 = vunpack.c.h.b16 %v377
    %v1465 = vunpack.c.l.b16 %v378
    %v1466 = vunpack.c.h.b16 %v378
    %v1467 = vunpack.c.l.b16 %v379
    %v1468 = vunpack.c.h.b16 %v379
    %v1469 = vunpack.c.l.b16 %v380
    %v1470 = vunpack.c.h.b16 %v380
    %v1471 = vunpack.c.l.b16 %v381
    %v1472 = vunpack.c.h.b16 %v381
    %v1473 = vunpack.c.l.b16 %v382
    %v1474 = vunpack.c.h.b16 %v382
    %v1475 = vunpack.c.l.b16 %v383
    %v1476 = vunpack.c.h.b16 %v383
    %v1477 = vunpack.c.l.b16 %v384
    %v1478 = vunpack.c.h.b16 %v384
    %v1479 = vunpack.c.l.b16 %v385
    %v1480 = vunpack.c.h.b16 %v385
    %v1481 = vunpack.c.l.b16 %v386
    %v1482 = vunpack.c.h.b16 %v386
    %v1483 = vunpack.c.l.b16 %v387
    %v1484 = vunpack.c.h.b16 %v387
    %v1485 = vunpack.c.l.b16 %v388
    %v1486 = vunpack.c.h.b16 %v388
    %v1487 = vunpack.c.l.b16 %v389
    %v1488 = vunpack.c.h.b16 %v389
    %v1489 = vunpack.c.l.b16 %v390
    %v1490 = vunpack.c.h.b16 %v390
    %v1491 = vunpack.c.l.b16 %v391
    %v1492 = vunpack.c.h.b16 %v391
    %v1493 = vunpack.c.l.b16 %v392
    %v1494 = vunpack.c.h.b16 %v392
    %v1495 = vunpack.c.l.b16 %v393
    %v1496 = vunpack.c.h.b16 %v393
    %v1497 = vunpack.c.l.b16 %v394
    %v1498 = vunpack.c.h.b16 %v394
    %v1499 = vunpack.c.l.b16 %v395
    %v1500 = vunpack.c.h.b16 %v395
    %v1501 = vunpack.c.l.b16 %v396
    %v1502 = vunpack.c.h.b16 %v396
    %v1503 = vunpack.c.l.b16 %v397
    %v1504 = vunpack.c.h.b16 %v397
    %v1505 = vunpack.c.l.b16 %v398
    %v1506 = vunpack.c.h.b16 %v398
    %v1507 = vunpack.c.l.b16 %v399
    %v1508 = vunpack.c.h.b16 %v399
    %v1509 = vunpack.c.l.b16 %v400
    %v1510 = vunpack.c.h.b16 %v400
    %v1511 = vunpack.c.l.b16 %v401
    %v1512 = vunpack.c.h.b16 %v401
    %v1513 = vunpack.c.l.b16 %v402
    %v1514 = vunpack.c.h.b16 %v402
    %v1515 = vunpack.c.l.b16 %v403
    %v1516 = vunpack.c.h.b16 %v403
    %v1517 = vunpack.c.l.b16 %v404
    %v1518 = vunpack.c.h.b16 %v404
    %v1519 = vunpack.c.l.b16 %v405
    %v1520 = vunpack.c.h.b16 %v405
    %v1521 = vunpack.c.l.b16 %v406
    %v1522 = vunpack.c.h.b16 %v406
    %v1523 = vunpack.c.l.b16 %v407
    %v1524 = vunpack.c.h.b16 %v407
    %v1525 = vunpack.c.l.b16 %v408
    %v1526 = vunpack.c.h.b16 %v408
    %v1527 = vunpack.c.l.b16 %v409
    %v1528 = vunpack.c.h.b16 %v409
    %v1529 = vunpack.c.l.b16 %v410
    %v1530 = vunpack.c.h.b16 %v410
    %v1531 = vunpack.c.l.b16 %v411
    %v1532 = vunpack.c.h.b16 %v411
    %v1533 = vunpack.c.l.b16 %v412
    %v1534 = vunpack.c.h.b16 %v412
    %v1535 = vunpack.c.l.b16 %v413
    %v1536 = vunpack.c.h.b16 %v413
    %v1537 = vunpack.c.l.b16 %v414
    %v1538 = vunpack.c.h.b16 %v414
    %v1539 = vunpack.c.l.b16 %v415
    %v1540 = vunpack.c.h.b16 %v415
    %v1541 = vunpack.c.l.b16 %v416
    %v1542 = vunpack.c.h.b16 %v416
    %v1543 = vunpack.c.l.b16 %v417
    %v1544 = vunpack.c.h.b16 %v417
    %v1545 = vunpack.c.l.b16 %v418
    %v1546 = vunpack.c.h.b16 %v418
    %v1547 = vunpack.c.l.b16 %v419
    %v1548 = vunpack.c.h.b16 %v419
    %v1549 = vunpack.c.l.b16 %v420
    %v1550 = vunpack.c.h.b16 %v420
    %v1551 = vunpack.c.l.b16 %v421
    %v1552 = vunpack.c.h.b16 %v421
    %v1553 = vunpack.c.l.b16 %v422
    %v1554 = vunpack.c.h.b16 %v422
    %v1555 = vunpack.c.l.b16 %v423
    %v1556 = vunpack.c.h.b16 %v423
    %v1557 = vunpack.c.l.b16 %v424
    %v1558 = vunpack.c.h.b16 %v424
    %v1559 = vunpack.c.l.b16 %v425
    %v1560 = vunpack.c.h.b16 %v425
    %v1561 = vunpack.c.l.b16 %v426
    %v1562 = vunpack.c.h.b16 %v426
    %v1563 = vunpack.c.l.b16 %v427
    %v1564 = vunpack.c.h.b16 %v427
    %v1565 = vunpack.c.l.b16 %v428
    %v1566 = vunpack.c.h.b16 %v428
    %v1567 = vunpack.c.l.b16 %v429
    %v1568 = vunpack.c.h.b16 %v429
    %v1569 = vunpack.c.l.b16 %v430
    %v1570 = vunpack.c.h.b16 %v430
    %v1571 = vunpack.c.l.b16 %v431
    %v1572 = vunpack.c.h.b16 %v431
    %v1573 = vunpack.c.l.b16 %v432
    %v1574 = vunpack.c.h.b16 %v432
    %v1575 = vunpack.c.l.b16 %v433
    %v1576 = vunpack.c.h.b16 %v433
    %v1577 = vunpack.c.l.b16 %v434
    %v1578 = vunpack.c.h.b16 %v434
    %v1579 = vunpack.c.l.b16 %v435
    %v1580 = vunpack.c.h.b16 %v435
    %v1581 = vunpack.c.l.b16 %v436
    %v1582 = vunpack.c.h.b16 %v436
    %v1583 = vunpack.c.l.b16 %v437
    %v1584 = vunpack.c.h.b16 %v437
    %v1585 = vunpack.c.l.b16 %v438
    %v1586 = vunpack.c.h.b16 %v438
    %v1587 = vunpack.c.l.b16 %v439
    %v1588 = vunpack.c.h.b16 %v439
    %v1589 = vunpack.c.l.b16 %v440
    %v1590 = vunpack.c.h.b16 %v440
    %v1591 = vunpack.c.l.b16 %v441
    %v1592 = vunpack.c.h.b16 %v441
    %v1593 = vunpack.c.l.b16 %v442
    %v1594 = vunpack.c.h.b16 %v442
    %v1595 = vunpack.c.l.b16 %v443
    %v1596 = vunpack.c.h.b16 %v443
    %v1597 = vunpack.c.l.b16 %v444
    %v1598 = vunpack.c.h.b16 %v444
    %v1599 = vunpack.c.l.b16 %v445
    %v1600 = vunpack.c.h.b16 %v445
    %v1601 = vunpack.c.l.b16 %v446
    %v1602 = vunpack.c.h.b16 %v446
    %v1603 = vunpack.c.l.b16 %v447
    %v1604 = vunpack.c.h.b16 %v447
    %v1605 = vunpack.c.l.b16 %v448
    %v1606 = vunpack.c.h.b16 %v448
    %v1607 = vunpack.c.l.b16 %v449
    %v1608 = vunpack.c.h.b16 %v449
    %v1609 = vunpack.c.l.b16 %v450
    %v1610 = vunpack.c.h.b16 %v450
    %v1611 = vunpack.c.l.b16 %v451
    %v1612 = vunpack.c.h.b16 %v451
    %v1613 = vunpack.c.l.b16 %v452
    %v1614 = vunpack.c.h.b16 %v452
    %v1615 = vunpack.c.l.b16 %v453
    %v1616 = vunpack.c.h.b16 %v453
    %v1617 = vunpack.c.l.b16 %v454
    %v1618 = vunpack.c.h.b16 %v454
    %v1619 = vunpack.c.l.b16 %v455
    %v1620 = vunpack.c.h.b16 %v455
    %v1621 = vunpack.c.l.b16 %v456
    %v1622 = vunpack.c.h.b16 %v456
    %v1623 = vunpack.c.l.b16 %v457
    %v1624 = vunpack.c.h.b16 %v457
    %v1625 = vunpack.c.l.b16 %v458
    %v1626 = vunpack.c.h.b16 %v458
    %v1627 = vunpack.c.l.b16 %v459
    %v1628 = vunpack.c.h.b16 %v459
    %v1629 = vunpack.c.l.b16 %v460
    %v1630 = vunpack.c.h.b16 %v460
    %v1631 = vunpack.c.l.b16 %v461
    %v1632 = vunpack.c.h.b16 %v461
    %v1633 = vunpack.c.l.b16 %v462
    %v1634 = vunpack.c.h.b16 %v462
    %v1635 = vunpack.c.l.b16 %v463
    %v1636 = vunpack.c.h.b16 %v463
    %v1637 = vunpack.c.l.b16 %v464
    %v1638 = vunpack.c.h.b16 %v464
    %v1639 = vunpack.c.l.b16 %v465
    %v1640 = vunpack.c.h.b16 %v465
    %v1641 = vunpack.c.l.b16 %v466
    %v1642 = vunpack.c.h.b16 %v466
    %v1643 = vunpack.c.l.b16 %v467
    %v1644 = vunpack.c.h.b16 %v467
    %v1645 = vunpack.c.l.b16 %v468
    %v1646 = vunpack.c.h.b16 %v468
    %v1647 = vunpack.c.l.b16 %v469
    %v1648 = vunpack.c.h.b16 %v469
    %v1649 = vunpack.c.l.b16 %v470
    %v1650 = vunpack.c.h.b16 %v470
    %v1651 = vunpack.c.l.b16 %v471
    %v1652 = vunpack.c.h.b16 %v471
    %v1653 = vunpack.c.l.b16 %v472
    %v1654 = vunpack.c.h.b16 %v472
    %v1655 = vunpack.c.l.b16 %v473
    %v1656 = vunpack.c.h.b16 %v473
    %v1657 = vunpack.c.l.b16 %v474
    %v1658 = vunpack.c.h.b16 %v474
    %v1659 = vunpack.c.l.b16 %v475
    %v1660 = vunpack.c.h.b16 %v475
    %v1661 = vunpack.c.l.b16 %v476
    %v1662 = vunpack.c.h.b16 %v476
    %v1663 = vunpack.c.l.b16 %v477
    %v1664 = vunpack.c.h.b16 %v477
    %v1665 = vunpack.c.l.b16 %v478
    %v1666 = vunpack.c.h.b16 %v478
    %v1667 = vunpack.c.l.b16 %v479
    %v1668 = vunpack.c.h.b16 %v479
    %v1669 = vunpack.c.l.b16 %v480
    %v1670 = vunpack.c.h.b16 %v480
    %v1671 = vunpack.c.l.b16 %v481
    %v1672 = vunpack.c.h.b16 %v481
    %v1673 = vunpack.c.l.b16 %v482
    %v1674 = vunpack.c.h.b16 %v482
    %v1675 = vunpack.c.l.b16 %v483
    %v1676 = vunpack.c.h.b16 %v483
    %v1677 = vunpack.c.l.b16 %v484
    %v1678 = vunpack.c.h.b16 %v484
    %v1679 = vunpack.c.l.b16 %v485
    %v1680 = vunpack.c.h.b16 %v485
    %v1681 = vunpack.c.l.b16 %v486
    %v1682 = vunpack.c.h.b16 %v486
    %v1683 = vunpack.c.l.b16 %v487
    %v1684 = vunpack.c.h.b16 %v487
    %v1685 = vunpack.c.l.b16 %v488
    %v1686 = vunpack.c.h.b16 %v488
    %v1687 = vunpack.c.l.b16 %v489
    %v1688 = vunpack.c.h.b16 %v489
    %v1689 = vunpack.c.l.b16 %v490
    %v1690 = vunpack.c.h.b16 %v490
    %v1691 = vunpack.c.l.b16 %v491
    %v1692 = vunpack.c.h.b16 %v491
    %v1693 = vunpack.c.l.b16 %v492
    %v1694 = vunpack.c.h.b16 %v492
    %v1695 = vunpack.c.l.b16 %v493
    %v1696 = vunpack.c.h.b16 %v493
    %v1697 = vunpack.c.l.b16 %v494
    %v1698 = vunpack.c.h.b16 %v494
    %v1699 = vunpack.c.l.b16 %v495
    %v1700 = vunpack.c.h.b16 %v495
    %v1701 = vunpack.c.l.b16 %v496
    %v1702 = vunpack.c.h.b16 %v496
    %v1703 = vunpack.c.l.b16 %v497
    %v1704 = vunpack.c.h.b16 %v497
    %v1705 = vunpack.c.l.b16 %v498
    %v1706 = vunpack.c.h.b16 %v498
    %v1707 = vunpack.c.l.b16 %v499
    %v1708 = vunpack.c.h.b16 %v499
    %v1709 = vunpack.c.l.b16 %v500
    %v1710 = vunpack.c.h.b16 %v500
    %v1711 = vunpack.c.l.b16 %v501
    %v1712 = vunpack.c.h.b16 %v501
    %v1713 = vunpack.c.l.b16 %v502
    %v1714 = vunpack.c.h.b16 %v502
    %v1715 = vunpack.c.l.b16 %v503
    %v1716 = vunpack.c.h.b16 %v503
    %v1717 = vunpack.c.l.b16 %v504
    %v1718 = vunpack.c.h.b16 %v504
    %v1719 = vunpack.c.l.b16 %v505
    %v1720 = vunpack.c.h.b16 %v505
    %v1721 = vunpack.c.l.b16 %v506
    %v1722 = vunpack.c.h.b16 %v506
    %v1723 = vpack.c.b16 %v967, %v955
    %v1724 = vpack.c.b16 %v968, %v956
    %v1725 = vpack.c.b16 %v969, %v957
    %v1726 = vpack.c.b16 %v970, %v958
    %v1727 = vpack.c.b16 %v971, %v959
    %v1728 = vpack.c.b16 %v972, %v960
    %v1729 = vpack.c.b16 %v973, %v961
    %v1730 = vpack.c.b16 %v974, %v962
    %v1731 = vpack.c.b16 %v975, %v963
    %v1732 = vpack.c.b16 %v976, %v964
    %v1733 = vpack.c.b16 %v977, %v965
    %v1734 = vpack.c.b16 %v978, %v966
    %v1735 = vpack.c.b16 %v991, %v979
    %v1736 = vpack.c.b16 %v992, %v980
    %v1737 = vpack.c.b16 %v993, %v981
    %v1738 = vpack.c.b16 %v994, %v982
    %v1739 = vpack.c.b16 %v995, %v983
    %v1740 = vpack.c.b16 %v996, %v984
    %v1741 = vpack.c.b16 %v997, %v985
    %v1742 = vpack.c.b16 %v998, %v986
    %v1743 = vpack.c.b16 %v999, %v987
    %v1744 = vpack.c.b16 %v1000, %v988
    %v1745 = vpack.c.b16 %v1001, %v989
    %v1746 = vpack.c.b16 %v1002, %v990
    %v1747 = vpack.c.b16 %v1015, %v1003
    %v1748 = vpack.c.b16 %v1016, %v1004
    %v1749 = vpack.c.b16 %v1017, %v1005
    %v1750 = vpack.c.b16 %v1018, %v1006
    %v1751 = vpack.c.b16 %v1019, %v1007
    %v1752 = vpack.c.b16 %v1020, %v1008
    %v1753 = vpack.c.b16 %v1021, %v1009
    %v1754 = vpack.c.b16 %v1022, %v1010
    %v1755 = vpack.c.b16 %v1023, %v1011
    %v1756 = vpack.c.b16 %v1024, %v1012
    %v1757 = vpack.c.b16 %v1025, %v1013
    %v1758 = vpack.c.b16 %v1026, %v1014
    %v1759 = vpack.c.b16 %v1039, %v1027
    %v1760 = vpack.c.b16 %v1040, %v1028
    %v1761 = vpack.c.b16 %v1041, %v1029
    %v1762 = vpack.c.b16 %v1042, %v1030
    %v1763 = vpack.c.b16 %v1043, %v1031
    %v1764 = vpack.c.b16 %v1044, %v1032
    %v1765 = vpack.c.b16 %v1045, %v1033
    %v1766 = vpack.c.b16 %v1046, %v1034
    %v1767 = vpack.c.b16 %v1047, %v1035
    %v1768 = vpack.c.b16 %v1048, %v1036
    %v1769 = vpack.c.b16 %v1049, %v1037
    %v1770 = vpack.c.b16 %v1050, %v1038
    %v1771 = vpack.c.b16 %v1063, %v1051
    %v1772 = vpack.c.b16 %v1064, %v1052
    %v1773 = vpack.c.b16 %v1065, %v1053
    %v1774 = vpack.c.b16 %v1066, %v1054
    %v1775 = vpack.c.b16 %v1067, %v1055
    %v1776 = vpack.c.b16 %v1068, %v1056
    %v1777 = vpack.c.b16 %v1069, %v1057
    %v1778 = vpack.c.b16 %v1070, %v1058
    %v1779 = vpack.c.b16 %v1071, %v1059
    %v1780 = vpack.c.b16 %v1072, %v1060
    %v1781 = vpack.c.b16 %v1073, %v1061
    %v1782 = vpack.c.b16 %v1074, %v1062
    %v1783 = vpack.c.b16 %v1087, %v1075
    %v1784 = vpack.c.b16 %v1088, %v1076
    %v1785 = vpack.c.b16 %v1089, %v1077
    %v1786 = vpack.c.b16 %v1090, %v1078
    %v1787 = vpack.c.b16 %v1091, %v1079
    %v1788 = vpack.c.b16 %v1092, %v1080
    %v1789 = vpack.c.b16 %v1093, %v1081
    %v1790 = vpack.c.b16 %v1094, %v1082
    %v1791 = vpack.c.b16 %v1095, %v1083
    %v1792 = vpack.c.b16 %v1096, %v1084
    %v1793 = vpack.c.b16 %v1097, %v1085
    %v1794 = vpack.c.b16 %v1098, %v1086
    %v1795 = vpack.c.b16 %v1111, %v1099
    %v1796 = vpack.c.b16 %v1112, %v1100
    %v1797 = vpack.c.b16 %v1113, %v1101
    %v1798 = vpack.c.b16 %v1114, %v1102
    %v1799 = vpack.c.b16 %v1115, %v1103
    %v1800 = vpack.c.b16 %v1116, %v1104
    %v1801 = vpack.c.b16 %v1117, %v1105
    %v1802 = vpack.c.b16 %v1118, %v1106
    %v1803 = vpack.c.b16 %v1119, %v1107
    %v1804 = vpack.c.b16 %v1120, %v1108
    %v1805 = vpack.c.b16 %v1121, %v1109
    %v1806 = vpack.c.b16 %v1122, %v1110
    %v1807 = vpack.c.b16 %v1135, %v1123
    %v1808 = vpack.c.b16 %v1136, %v1124
    %v1809 = vpack.c.b16 %v1137, %v1125
    %v1810 = vpack.c.b16 %v1138, %v1126
    %v1811 = vpack.c.b16 %v1139, %v1127
    %v1812 = vpack.c.b16 %v1140, %v1128
    %v1813 = vpack.c.b16 %v1141, %v1129
    %v1814 = vpack.c.b16 %v1142, %v1130
    %v1815 = vpack.c.b16 %v1143, %v1131
    %v1816 = vpack.c.b16 %v1144, %v1132
    %v1817 = vpack.c.b16 %v1145, %v1133
    %v1818 = vpack.c.b16 %v1146, %v1134
    %v1819 = vpack.c.b16 %v1159, %v1147
    %v1820 = vpack.c.b16 %v1160, %v1148
    %v1821 = vpack.c.b16 %v1161, %v1149
    %v1822 = vpack.c.b16 %v1162, %v1150
    %v1823 = vpack.c.b16 %v1163, %v1151
    %v1824 = vpack.c.b16 %v1164, %v1152
    %v1825 = vpack.c.b16 %v1165, %v1153
    %v1826 = vpack.c.b16 %v1166, %v1154
    %v1827 = vpack.c.b16 %v1167, %v1155
    %v1828 = vpack.c.b16 %v1168, %v1156
    %v1829 = vpack.c.b16 %v1169, %v1157
    %v1830 = vpack.c.b16 %v1170, %v1158
    %v1831 = vpack.c.b16 %v1183, %v1171
    %v1832 = vpack.c.b16 %v1184, %v1172
    %v1833 = vpack.c.b16 %v1185, %v1173
    %v1834 = vpack.c.b16 %v1186, %v1174
    %v1835 = vpack.c.b16 %v1187, %v1175
    %v1836 = vpack.c.b16 %v1188, %v1176
    %v1837 = vpack.c.b16 %v1189, %v1177
    %v1838 = vpack.c.b16 %v1190, %v1178
    %v1839 = vpack.c.b16 %v1191, %v1179
    %v1840 = vpack.c.b16 %v1192, %v1180
    %v1841 = vpack.c.b16 %v1193, %v1181
    %v1842 = vpack.c.b16 %v1194, %v1182
    %v1843 = vpack.c.b16 %v1207, %v1195
    %v1844 = vpack.c.b16 %v1208, %v1196
    %v1845 = vpack.c.b16 %v1209, %v1197
    %v1846 = vpack.c.b16 %v1210, %v1198
    %v1847 = vpack.c.b16 %v1211, %v1199
    %v1848 = vpack.c.b16 %v1212, %v1200
    %v1849 = vpack.c.b16 %v1213, %v1201
    %v1850 = vpack.c.b16 %v1214, %v1202
    %v1851 = vpack.c.b16 %v1215, %v1203
    %v1852 = vpack.c.b16 %v1216, %v1204
    %v1853 = vpack.c.b16 %v1217, %v1205
    %v1854 = vpack.c.b16 %v1218, %v1206
    %v1855 = vpack.c.b16 %v1231, %v1219
    %v1856 = vpack.c.b16 %v1232, %v1220
    %v1857 = vpack.c.b16 %v1233, %v1221
    %v1858 = vpack.c.b16 %v1234, %v1222
    %v1859 = vpack.c.b16 %v1235, %v1223
    %v1860 = vpack.c.b16 %v1236, %v1224
    %v1861 = vpack.c.b16 %v1237, %v1225
    %v1862 = vpack.c.b16 %v1238, %v1226
    %v1863 = vpack.c.b16 %v1239, %v1227
    %v1864 = vpack.c.b16 %v1240, %v1228
    %v1865 = vpack.c.b16 %v1241, %v1229
    %v1866 = vpack.c.b16 %v1242, %v1230
    %v1867 = vpack.c.b16 %v1255, %v1243
    %v1868 = vpack.c.b16 %v1256, %v1244
    %v1869 = vpack.c.b16 %v1257, %v1245
    %v1870 = vpack.c.b16 %v1258, %v1246
    %v1871 = vpack.c.b16 %v1259, %v1247
    %v1872 = vpack.c.b16 %v1260, %v1248
    %v1873 = vpack.c.b16 %v1261, %v1249
    %v1874 = vpack.c.b16 %v1262, %v1250
    %v1875 = vpack.c.b16 %v1263, %v1251
    %v1876 = vpack.c.b16 %v1264, %v1252
    %v1877 = vpack.c.b16 %v1265, %v1253
    %v1878 = vpack.c.b16 %v1266, %v1254
    %v1879 = vpack.c.b16 %v1279, %v1267
    %v1880 = vpack.c.b16 %v1280, %v1268
    %v1881 = vpack.c.b16 %v1281, %v1269
    %v1882 = vpack.c.b16 %v1282, %v1270
    %v1883 = vpack.c.b16 %v1283, %v1271
    %v1884 = vpack.c.b16 %v1284, %v1272
    %v1885 = vpack.c.b16 %v1285, %v1273
    %v1886 = vpack.c.b16 %v1286, %v1274
    %v1887 = vpack.c.b16 %v1287, %v1275
    %v1888 = vpack.c.b16 %v1288, %v1276
    %v1889 = vpack.c.b16 %v1289, %v1277
    %v1890 = vpack.c.b16 %v1290, %v1278
    %v1891 = vpack.c.b16 %v1303, %v1291
    %v1892 = vpack.c.b16 %v1304, %v1292
    %v1893 = vpack.c.b16 %v1305, %v1293
    %v1894 = vpack.c.b16 %v1306, %v1294
    %v1895 = vpack.c.b16 %v1307, %v1295
    %v1896 = vpack.c.b16 %v1308, %v1296
    %v1897 = vpack.c.b16 %v1309, %v1297
    %v1898 = vpack.c.b16 %v1310, %v1298
    %v1899 = vpack.c.b16 %v1311, %v1299
    %v1900 = vpack.c.b16 %v1312, %v1300
    %v1901 = vpack.c.b16 %v1313, %v1301
    %v1902 = vpack.c.b16 %v1314, %v1302
    %v1903 = vpack.c.b16 %v1327, %v1315
    %v1904 = vpack.c.b16 %v1328, %v1316
    %v1905 = vpack.c.b16 %v1329, %v1317
    %v1906 = vpack.c.b16 %v1330, %v1318
    %v1907 = vpack.c.b16 %v1331, %v1319
    %v1908 = vpack.c.b16 %v1332, %v1320
    %v1909 = vpack.c.b16 %v1333, %v1321
    %v1910 = vpack.c.b16 %v1334, %v1322
    %v1911 = vpack.c.b16 %v1335, %v1323
    %v1912 = vpack.c.b16 %v1336, %v1324
    %v1913 = vpack.c.b16 %v1337, %v1325
    %v1914 = vpack.c.b16 %v1338, %v1326
    %v1915 = vpack.c.b16 %v1351, %v1339
    %v1916 = vpack.c.b16 %v1352, %v1340
    %v1917 = vpack.c.b16 %v1353, %v1341
    %v1918 = vpack.c.b16 %v1354, %v1342
    %v1919 = vpack.c.b16 %v1355, %v1343
    %v1920 = vpack.c.b16 %v1356, %v1344
    %v1921 = vpack.c.b16 %v1357, %v1345
    %v1922 = vpack.c.b16 %v1358, %v1346
    %v1923 = vpack.c.b16 %v1359, %v1347
    %v1924 = vpack.c.b16 %v1360, %v1348
    %v1925 = vpack.c.b16 %v1361, %v1349
    %v1926 = vpack.c.b16 %v1362, %v1350
    %v1927 = vpack.c.b16 %v1375, %v1363
    %v1928 = vpack.c.b16 %v1376, %v1364
    %v1929 = vpack.c.b16 %v1377, %v1365
    %v1930 = vpack.c.b16 %v1378, %v1366
    %v1931 = vpack.c.b16 %v1379, %v1367
    %v1932 = vpack.c.b16 %v1380, %v1368
    %v1933 = vpack.c.b16 %v1381, %v1369
    %v1934 = vpack.c.b16 %v1382, %v1370
    %v1935 = vpack.c.b16 %v1383, %v1371
    %v1936 = vpack.c.b16 %v1384, %v1372
    %v1937 = vpack.c.b16 %v1385, %v1373
    %v1938 = vpack.c.b16 %v1386, %v1374
    %v1939 = vpack.c.b16 %v1399, %v1387
    %v1940 = vpack.c.b16 %v1400, %v1388
    %v1941 = vpack.c.b16 %v1401, %v1389
    %v1942 = vpack.c.b16 %v1402, %v1390
    %v1943 = vpack.c.b16 %v1403, %v1391
    %v1944 = vpack.c.b16 %v1404, %v1392
    %v1945 = vpack.c.b16 %v1405, %v1393
    %v1946 = vpack.c.b16 %v1406, %v1394
    %v1947 = vpack.c.b16 %v1407, %v1395
    %v1948 = vpack.c.b16 %v1408, %v1396
    %v1949 = vpack.c.b16 %v1409, %v1397
    %v1950 = vpack.c.b16 %v1410, %v1398
    %v1951 = vpack.c.b16 %v1423, %v1411
    %v1952 = vpack.c.b16 %v1424, %v1412
    %v1953 = vpack.c.b16 %v1425, %v1413
    %v1954 = vpack.c.b16 %v1426, %v1414
    %v1955 = vpack.c.b16 %v1427, %v1415
    %v1956 = vpack.c.b16 %v1428, %v1416
    %v1957 = vpack.c.b16 %v1429, %v1417
    %v1958 = vpack.c.b16 %v1430, %v1418
    %v1959 = vpack.c.b16 %v1431, %v1419
    %v1960 = vpack.c.b16 %v1432, %v1420
    %v1961 = vpack.c.b16 %v1433, %v1421
    %v1962 = vpack.c.b16 %v1434, %v1422
    %v1963 = vpack.c.b16 %v1447, %v1435
    %v1964 = vpack.c.b16 %v1448, %v1436
    %v1965 = vpack.c.b16 %v1449, %v1437
    %v1966 = vpack.c.b16 %v1450, %v1438
    %v1967 = vpack.c.b16 %v1451, %v1439
    %v1968 = vpack.c.b16 %v1452, %v1440
    %v1969 = vpack.c.b16 %v1453, %v1441
    %v1970 = vpack.c.b16 %v1454, %v1442
    %v1971 = vpack.c.b16 %v1455, %v1443
    %v1972 = vpack.c.b16 %v1456, %v1444
    %v1973 = vpack.c.b16 %v1457, %v1445
    %v1974 = vpack.c.b16 %v1458, %v1446
    %v1975 = vpack.c.b16 %v1471, %v1459
    %v1976 = vpack.c.b16 %v1472, %v1460
    %v1977 = vpack.c.b16 %v1473, %v1461
    %v1978 = vpack.c.b16 %v1474, %v1462
    %v1979 = vpack.c.b16 %v1475, %v1463
    %v1980 = vpack.c.b16 %v1476, %v1464
    %v1981 = vpack.c.b16 %v1477, %v1465
    %v1982 = vpack.c.b16 %v1478, %v1466
    %v1983 = vpack.c.b16 %v1479, %v1467
    %v1984 = vpack.c.b16 %v1480, %v1468
    %v1985 = vpack.c.b16 %v1481, %v1469
    %v1986 = vpack.c.b16 %v1482, %v1470
    %v1987 = vpack.c.b16 %v1495, %v1483
    %v1988 = vpack.c.b16 %v1496, %v1484
    %v1989 = vpack.c.b16 %v1497, %v1485
    %v1990 = vpack.c.b16 %v1498, %v1486
    %v1991 = vpack.c.b16 %v1499, %v1487
    %v1992 = vpack.c.b16 %v1500, %v1488
    %v1993 = vpack.c.b16 %v1501, %v1489
    %v1994 = vpack.c.b16 %v1502, %v1490
    %v1995 = vpack.c.b16 %v1503, %v1491
    %v1996 = vpack.c.b16 %v1504, %v1492
    %v1997 = vpack.c.b16 %v1505, %v1493
    %v1998 = vpack.c.b16 %v1506, %v1494
    %v1999 = vpack.c.b16 %v1519, %v1507
    %v2000 = vpack.c.b16 %v1520, %v1508
    %v2001 = vpack.c.b16 %v1521, %v1509
    %v2002 = vpack.c.b16 %v1522, %v1510
    %v2003 = vpack.c.b16 %v1523, %v1511
    %v2004 = vpack.c.b16 %v1524, %v1512
    %v2005 = vpack.c.b16 %v1525, %v1513
    %v2006 = vpack.c.b16 %v1526, %v1514
    %v2007 = vpack.c.b16 %v1527, %v1515
    %v2008 = vpack.c.b16 %v1528, %v1516
    %v2009 = vpack.c.b16 %v1529, %v1517
    %v2010 = vpack.c.b16 %v1530, %v1518
    %v2011 = vpack.c.b16 %v1543, %v1531
    %v2012 = vpack.c.b16 %v1544, %v1532
    %v2013 = vpack.c.b16 %v1545, %v1533
    %v2014 = vpack.c.b16 %v1546, %v1534
    %v2015 = vpack.c.b16 %v1547, %v1535
    %v2016 = vpack.c.b16 %v1548, %v1536
    %v2017 = vpack.c.b16 %v1549, %v1537
    %v2018 = vpack.c.b16 %v1550, %v1538
    %v2019 = vpack.c.b16 %v1551, %v1539
    %v2020 = vpack.c.b16 %v1552, %v1540
    %v2021 = vpack.c.b16 %v1553, %v1541
    %v2022 = vpack.c.b16 %v1554, %v1542
    %v2023 = vpack.c.b16 %v1567, %v1555
    %v2024 = vpack.c.b16 %v1568, %v1556
    %v2025 = vpack.c.b16 %v1569, %v1557
    %v2026 = vpack.c.b16 %v1570, %v1558
    %v2027 = vpack.c.b16 %v1571, %v1559
    %v2028 = vpack.c.b16 %v1572, %v1560
    %v2029 = vpack.c.b16 %v1573, %v1561
    %v2030 = vpack.c.b16 %v1574, %v1562
    %v2031 = vpack.c.b16 %v1575, %v1563
    %v2032 = vpack.c.b16 %v1576, %v1564
    %v2033 = vpack.c.b16 %v1577, %v1565
    %v2034 = vpack.c.b16 %v1578, %v1566
    %v2035 = vpack.c.b16 %v1591, %v1579
    %v2036 = vpack.c.b16 %v1592, %v1580
    %v2037 = vpack.c.b16 %v1593, %v1581
    %v2038 = vpack.c.b16 %v1594, %v1582
    %v2039 = vpack.c.b16 %v1595, %v1583
    %v2040 = vpack.c.b16 %v1596, %v1584
    %v2041 = vpack.c.b16 %v1597, %v1585
    %v2042 = vpack.c.b16 %v1598, %v1586
    %v2043 = vpack.c.b16 %v1599, %v1587
    %v2044 = vpack.c.b16 %v1600, %v1588
    %v2045 = vpack.c.b16 %v1601, %v1589
    %v2046 = vpack.c.b16 %v1602, %v1590
    %v2047 = vpack.c.b16 %v1615, %v1603
    %v2048 = vpack.c.b16 %v1616, %v1604
    %v2049 = vpack.c.b16 %v1617, %v1605
    %v2050 = vpack.c.b16 %v1618, %v1606
    %v2051 = vpack.c.b16 %v1619, %v1607
    %v2052 = vpack.c.b16 %v1620, %v1608
    %v2053 = vpack.c.b16 %v1621, %v1609
    %v2054 = vpack.c.b16 %v1622, %v1610
    %v2055 = vpack.c.b16 %v1623, %v1611
    %v2056 = vpack.c.b16 %v1624, %v1612
    %v2057 = vpack.c.b16 %v1625, %v1613
    %v2058 = vpack.c.b16 %v1626, %v1614
    %v2059 = vpack.c.b16 %v1639, %v1627
    %v2060 = vpack.c.b16 %v1640, %v1628
    %v2061 = vpack.c.b16 %v1641, %v1629
    %v2062 = vpack.c.b16 %v1642, %v1630
    %v2063 = vpack.c.b16 %v1643, %v1631
    %v2064 = vpack.c.b16 %v1644, %v1632
    %v2065 = vpack.c.b16 %v1645, %v1633
    %v2066 = vpack.c.b16 %v1646, %v1634
    %v2067 = vpack.c.b16 %v1647, %v1635
    %v2068 = vpack.c.b16 %v1648, %v1636
    %v2069 = vpack.c.b16 %v1649, %v1637
    %v2070 = vpack.c.b16 %v1650, %v1638
    %v2071 = vpack.c.b16 %v1663, %v1651
    %v2072 = vpack.c.b16 %v1664, %v1652
    %v2073 = vpack.c.b16 %v1665, %v1653
    %v2074 = vpack.c.b16 %v1666, %v1654
    %v2075 = vpack.c.b16 %v1667, %v1655
    %v2076 = vpack.c.b16 %v1668, %v1656
    %v2077 = vpack.c.b16 %v1669, %v1657
    %v2078 = vpack.c.b16 %v1670, %v1658
    %v2079 = vpack.c.b16 %v1671, %v1659
    %v2080 = vpack.c.b16 %v1672, %v1660
    %v2081 = vpack.c.b16 %v1673, %v1661
    %v2082 = vpack.c.b16 %v1674, %v1662
    %v2083 = vpack.c.b16 %v1687, %v1675
    %v2084 = vpack.c.b16 %v1688, %v1676
    %v2085 = vpack.c.b16 %v1689, %v1677
    %v2086 = vpack.c.b16 %v1690, %v1678
    %v2087 = vpack.c.b16 %v1691, %v1679
    %v2088 = vpack.c.b16 %v1692, %v1680
    %v2089 = vpack.c.b16 %v1693, %v1681
    %v2090 = vpack.c.b16 %v1694, %v1682
    %v2091 = vpack.c.b16 %v1695, %v1683
    %v2092 = vpack.c.b16 %v1696, %v1684
    %v2093 = vpack.c.b16 %v1697, %v1685
    %v2094 = vpack.c.b16 %v1698, %v1686
    %v2095 = vpack.c.b16 %v1711, %v1699
    %v2096 = vpack.c.b16 %v1712, %v1700
    %v2097 = vpack.c.b16 %v1713, %v1701
    %v2098 = vpack.c.b16 %v1714, %v1702
    %v2099 = vpack.c.b16 %v1715, %v1703
    %v2100 = vpack.c.b16 %v1716, %v1704
    %v2101 = vpack.c.b16 %v1717, %v1705
    %v2102 = vpack.c.b16 %v1718, %v1706
    %v2103 = vpack.c.b16 %v1719, %v1707
    %v2104 = vpack.c.b16 %v1720, %v1708
    %v2105 = vpack.c.b16 %v1721, %v1709
    %v2106 = vpack.c.b16 %v1722, %v1710
    %2491 = vmatprep.subr.bf16.mxu0 %v1724
    %2492 = vmatpush1.bf16.msra.mxu0 %v1723
    %2493 = vmatprep.subr.bf16.mxu0 %v1736
    %2494 = vmatpush1.bf16.msra.mxu0 %v1735
    %2495 = vmatprep.subr.bf16.mxu0 %v1748
    %2496 = vmatpush1.bf16.msra.mxu0 %v1747
    %2497 = vmatprep.subr.bf16.mxu0 %v1760
    %2498 = vmatpush1.bf16.msra.mxu0 %v1759
    %2499 = vmatprep.subr.bf16.mxu0 %v1772
    %2500 = vmatpush1.bf16.msra.mxu0 %v1771
    %2501 = vmatprep.subr.bf16.mxu0 %v1784
    %2502 = vmatpush1.bf16.msra.mxu0 %v1783
    %2503 = vmatprep.subr.bf16.mxu0 %v1796
    %2504 = vmatpush1.bf16.msra.mxu0 %v1795
    %2505 = vmatprep.subr.bf16.mxu0 %v1808
    %2506 = vmatpush1.bf16.msra.mxu0 %v1807
    %2507 = vmatprep.subr.bf16.mxu0 %v1820
    %2508 = vmatpush1.bf16.msra.mxu0 %v1819
    %2509 = vmatprep.subr.bf16.mxu0 %v1832
    %2510 = vmatpush1.bf16.msra.mxu0 %v1831
    %2511 = vmatprep.subr.bf16.mxu0 %v1844
    %2512 = vmatpush1.bf16.msra.mxu0 %v1843
    %2513 = vmatprep.subr.bf16.mxu0 %v1856
    %2514 = vmatpush1.bf16.msra.mxu0 %v1855
    %2515 = vmatprep.subr.bf16.mxu0 %v1868
    %2516 = vmatpush1.bf16.msra.mxu0 %v1867
    %2517 = vmatprep.subr.bf16.mxu0 %v1880
    %2518 = vmatpush1.bf16.msra.mxu0 %v1879
    %2519 = vmatprep.subr.bf16.mxu0 %v1892
    %2520 = vmatpush1.bf16.msra.mxu0 %v1891
    %2521 = vmatprep.subr.bf16.mxu0 %v1904
    %2522 = vmatpush1.bf16.msra.mxu0 %v1903
    %2523 = vmatprep.mubr.bf16.mxu0 %v92
    %2524 = vmatmul.mubr.bf16.gmra.mrb[0].mxu0 %v91
    %v2525 = vpop.f32.mrb[0].mxu0
    %v2526 = vadd.f32 %v514, %v2525
    %v2527 = vpop.f32.mrb[0].mxu0
    %v2528 = vpop.f32.mrb[0].mxu0
    %v2529 = vadd.f32 %v514, %v2528
    %v2530 = vpop.f32.mrb[0].mxu0
    %v2531 = vadd.f32 %v518, %v2530
    %2532 = vmatprep.mubr.bf16.mxu0 %v96
    %2533 = vmatmul.mubr.bf16.gmra.mrb[0].mxu0 %v95
    %v2534 = vpop.f32.mrb[0].mxu0
    %v2535 = vadd.f32 %v514, %v2534
    %v2536 = vpop.f32.mrb[0].mxu0
    %v2537 = vadd.f32 %v518, %v2536
    %v2538 = vpop.f32.mrb[0].mxu0
    %v2539 = vadd.f32 %v514, %v2538
    %v2540 = vpop.f32.mrb[0].mxu0
    %v2541 = vadd.f32 %v518, %v2540
    %2542 = vmatprep.mubr.bf16.mxu0 %v100
    %2543 = vmatmul.mubr.bf16.gmra.mrb[0].mxu0 %v99
    %v2544 = vpop.f32.mrb[0].mxu0
    %v2545 = vadd.f32 %v514, %v2544
    %v2546 = vpop.f32.mrb[0].mxu0
    %v2547 = vadd.f32 %v518, %v2546
    %v2548 = vpop.f32.mrb[0].mxu0
    %v2549 = vadd.f32 %v514, %v2548
    %v2550 = vpop.f32.mrb[0].mxu0
    %v2551 = vadd.f32 %v518, %v2550
    %2552 = vmatprep.mubr.bf16.mxu0 %v104
    %2553 = vmatmul.mubr.bf16.gmra.mrb[0].mxu0 %v103
    %v2554 = vpop.f32.mrb[0].mxu0
    %v2555 = vadd.f32 %v514, %v2554
    %v2556 = vpop.f32.mrb[0].mxu0
    %v2557 = vadd.f32 %v518, %v2556
    %v2558 = vpop.f32.mrb[0].mxu0
    %v2559 = vpop.f32.mrb[0].mxu0
    %v2560 = vadd.f32 %v518, %v2559
    %2561 = vmatprep.mubr.bf16.mxu0 %v108
    %2562 = vmatmul.mubr.bf16.gmra.mrb[0].mxu0 %v107
    %v2563 = vpop.f32.mrb[0].mxu0
    %v2564 = vadd.f32 %v514, %v2563
    %v2565 = vpop.f32.mrb[0].mxu0
    %v2566 = vpop.f32.mrb[0].mxu0
    %v2567 = vadd.f32 %v514, %v2566
    %v2568 = vpop.f32.mrb[0].mxu0
    %v2569 = vadd.f32 %v518, %v2568
    %2570 = vmatprep.mubr.bf16.mxu0 %v112
    %2571 = vmatmul.mubr.bf16.gmra.mrb[0].mxu0 %v111
    %v2572 = vpop.f32.mrb[0].mxu0
    %v2573 = vadd.f32 %v514, %v2572
    %v2574 = vpop.f32.mrb[0].mxu0
    %v2575 = vadd.f32 %v518, %v2574
    %v2576 = vpop.f32.mrb[0].mxu0
    %v2577 = vadd.f32 %v514, %v2576
    %v2578 = vpop.f32.mrb[0].mxu0
    %v2579 = vadd.f32 %v518, %v2578
    %2580 = vmatprep.mubr.bf16.mxu0 %v116
    %2581 = vmatmul.mubr.bf16.gmra.mrb[0].mxu0 %v115
    %v2582 = vpop.f32.mrb[0].mxu0
    %v2583 = vadd.f32 %v514, %v2582
    %v2584 = vpop.f32.mrb[0].mxu0
    %v2585 = vadd.f32 %v518, %v2584
    %v2586 = vpop.f32.mrb[0].mxu0
    %v2587 = vadd.f32 %v514, %v2586
    %v2588 = vpop.f32.mrb[0].mxu0
    %v2589 = vadd.f32 %v518, %v2588
    %2590 = vmatprep.mubr.bf16.mxu0 %v120
    %2591 = vmatmul.mubr.bf16.gmra.mrb[0].mxu0 %v119
    %v2592 = vpop.f32.mrb[0].mxu0
    %v2593 = vadd.f32 %v514, %v2592
    %v2594 = vpop.f32.mrb[0].mxu0
    %v2595 = vadd.f32 %v518, %v2594
    %v2596 = vpop.f32.mrb[0].mxu0
    %v2597 = vpop.f32.mrb[0].mxu0
    %v2598 = vadd.f32 %v518, %v2597
    %2599 = vdwg.mxu0
    %2600 = vmatprep.subr.bf16.mxu0 %v1916
    %2601 = vmatpush1.bf16.msra.mxu0 %v1915
    %2602 = vmatprep.subr.bf16.mxu0 %v1928
    %2603 = vmatpush1.bf16.msra.mxu0 %v1927
    %2604 = vmatprep.subr.bf16.mxu0 %v1940
    %2605 = vmatpush1.bf16.msra.mxu0 %v1939
    %2606 = vmatprep.subr.bf16.mxu0 %v1952
    %2607 = vmatpush1.bf16.msra.mxu0 %v1951
    %2608 = vmatprep.subr.bf16.mxu0 %v1964
    %2609 = vmatpush1.bf16.msra.mxu0 %v1963
    %2610 = vmatprep.subr.bf16.mxu0 %v1976
    %2611 = vmatpush1.bf16.msra.mxu0 %v1975
    %2612 = vmatprep.subr.bf16.mxu0 %v1988
    %2613 = vmatpush1.bf16.msra.mxu0 %v1987
    %2614 = vmatprep.subr.bf16.mxu0 %v2000
    %2615 = vmatpush1.bf16.msra.mxu0 %v1999
    %2616 = vmatprep.subr.bf16.mxu0 %v2012
    %2617 = vmatpush1.bf16.msra.mxu0 %v2011
    %2618 = vmatprep.subr.bf16.mxu0 %v2024
    %2619 = vmatpush1.bf16.msra.mxu0 %v2023
    %2620 = vmatprep.subr.bf16.mxu0 %v2036
    %2621 = vmatpush1.bf16.msra.mxu0 %v2035
    %2622 = vmatprep.subr.bf16.mxu0 %v2048
    %2623 = vmatpush1.bf16.msra.mxu0 %v2047
    %2624 = vmatprep.subr.bf16.mxu0 %v2060
    %2625 = vmatpush1.bf16.msra.mxu0 %v2059
    %2626 = vmatprep.subr.bf16.mxu0 %v2072
    %2627 = vmatpush1.bf16.msra.mxu0 %v2071
    %2628 = vmatprep.subr.bf16.mxu0 %v2084
    %2629 = vmatpush1.bf16.msra.mxu0 %v2083
    %2630 = vmatprep.subr.bf16.mxu0 %v2096
    %2631 = vmatpush1.bf16.msra.mxu0 %v2095
    %2632 = vmatprep.mubr.bf16.mxu0 %v94
    %2633 = vmatmul.mubr.bf16.gmra.mrb[0].mxu0 %v93
    %v2634 = vpop.f32.mrb[0].mxu0
    %v2635 = vadd.f32 %v2526, %v2634
    %v2636 = vpop.f32.mrb[0].mxu0
    %v2637 = vpop.f32.mrb[0].mxu0
    %v2638 = vadd.f32 %v2529, %v2637
    %v2639 = vpop.f32.mrb[0].mxu0
    %v2640 = vadd.f32 %v2531, %v2639
    %2641 = vmatprep.mubr.bf16.mxu0 %v98
    %2642 = vmatmul.mubr.bf16.gmra.mrb[0].mxu0 %v97
    %v2643 = vpop.f32.mrb[0].mxu0
    %v2644 = vadd.f32 %v2535, %v2643
    %v2645 = vpop.f32.mrb[0].mxu0
    %v2646 = vadd.f32 %v2537, %v2645
    %v2647 = vpop.f32.mrb[0].mxu0
    %v2648 = vadd.f32 %v2539, %v2647
    %v2649 = vpop.f32.mrb[0].mxu0
    %v2650 = vadd.f32 %v2541, %v2649
    %2651 = vmatprep.mubr.bf16.mxu0 %v102
    %2652 = vmatmul.mubr.bf16.gmra.mrb[0].mxu0 %v101
    %v2653 = vpop.f32.mrb[0].mxu0
    %v2654 = vadd.f32 %v2545, %v2653
    %v2655 = vpop.f32.mrb[0].mxu0
    %v2656 = vadd.f32 %v2547, %v2655
    %v2657 = vpop.f32.mrb[0].mxu0
    %v2658 = vadd.f32 %v2549, %v2657
    %v2659 = vpop.f32.mrb[0].mxu0
    %v2660 = vadd.f32 %v2551, %v2659
    %2661 = vmatprep.mubr.bf16.mxu0 %v106
    %2662 = vmatmul.mubr.bf16.gmra.mrb[0].mxu0 %v105
    %v2663 = vpop.f32.mrb[0].mxu0
    %v2664 = vadd.f32 %v2555, %v2663
    %v2665 = vpop.f32.mrb[0].mxu0
    %v2666 = vadd.f32 %v2557, %v2665
    %v2667 = vpop.f32.mrb[0].mxu0
    %v2668 = vpop.f32.mrb[0].mxu0
    %v2669 = vadd.f32 %v2560, %v2668
    %2670 = vmatprep.mubr.bf16.mxu0 %v110
    %2671 = vmatmul.mubr.bf16.gmra.mrb[0].mxu0 %v109
    %v2672 = vpop.f32.mrb[0].mxu0
    %v2673 = vadd.f32 %v2564, %v2672
    %v2674 = vpop.f32.mrb[0].mxu0
    %v2675 = vpop.f32.mrb[0].mxu0
    %v2676 = vadd.f32 %v2567, %v2675
    %v2677 = vpop.f32.mrb[0].mxu0
    %v2678 = vadd.f32 %v2569, %v2677
    %2679 = vmatprep.mubr.bf16.mxu0 %v114
    %2680 = vmatmul.mubr.bf16.gmra.mrb[0].mxu0 %v113
    %v2681 = vpop.f32.mrb[0].mxu0
    %v2682 = vadd.f32 %v2573, %v2681
    %v2683 = vpop.f32.mrb[0].mxu0
    %v2684 = vadd.f32 %v2575, %v2683
    %v2685 = vpop.f32.mrb[0].mxu0
    %v2686 = vadd.f32 %v2577, %v2685
    %v2687 = vpop.f32.mrb[0].mxu0
    %v2688 = vadd.f32 %v2579, %v2687
    %2689 = vmatprep.mubr.bf16.mxu0 %v118
    %2690 = vmatmul.mubr.bf16.gmra.mrb[0].mxu0 %v117
    %v2691 = vpop.f32.mrb[0].mxu0
    %v2692 = vadd.f32 %v2583, %v2691
    %v2693 = vpop.f32.mrb[0].mxu0
    %v2694 = vadd.f32 %v2585, %v2693
    %v2695 = vpop.f32.mrb[0].mxu0
    %v2696 = vadd.f32 %v2587, %v2695
    %v2697 = vpop.f32.mrb[0].mxu0
    %v2698 = vadd.f32 %v2589, %v2697
    %2699 = vmatprep.mubr.bf16.mxu0 %v122
    %2700 = vmatmul.mubr.bf16.gmra.mrb[0].mxu0 %v121
    %v2701 = vpop.f32.mrb[0].mxu0
    %v2702 = vadd.f32 %v2593, %v2701
    %v2703 = vpop.f32.mrb[0].mxu0
    %v2704 = vadd.f32 %v2595, %v2703
    %v2705 = vpop.f32.mrb[0].mxu0
    %v2706 = vpop.f32.mrb[0].mxu0
    %v2707 = vadd.f32 %v2598, %v2706
    %2708 = vdwg.mxu0
    %2709 = vmatprep.subr.bf16.mxu0 %v1726
    %2710 = vmatpush1.bf16.msra.mxu0 %v1725
    %2711 = vmatprep.subr.bf16.mxu0 %v1738
    %2712 = vmatpush1.bf16.msra.mxu0 %v1737
    %2713 = vmatprep.subr.bf16.mxu0 %v1750
    %2714 = vmatpush1.bf16.msra.mxu0 %v1749
    %2715 = vmatprep.subr.bf16.mxu0 %v1762
    %2716 = vmatpush1.bf16.msra.mxu0 %v1761
    %2717 = vmatprep.subr.bf16.mxu0 %v1774
    %2718 = vmatpush1.bf16.msra.mxu0 %v1773
    %2719 = vmatprep.subr.bf16.mxu0 %v1786
    %2720 = vmatpush1.bf16.msra.mxu0 %v1785
    %2721 = vmatprep.subr.bf16.mxu0 %v1798
    %2722 = vmatpush1.bf16.msra.mxu0 %v1797
    %2723 = vmatprep.subr.bf16.mxu0 %v1810
    %2724 = vmatpush1.bf16.msra.mxu0 %v1809
    %2725 = vmatprep.subr.bf16.mxu0 %v1822
    %2726 = vmatpush1.bf16.msra.mxu0 %v1821
    %2727 = vmatprep.subr.bf16.mxu0 %v1834
    %2728 = vmatpush1.bf16.msra.mxu0 %v1833
    %2729 = vmatprep.subr.bf16.mxu0 %v1846
    %2730 = vmatpush1.bf16.msra.mxu0 %v1845
    %2731 = vmatprep.subr.bf16.mxu0 %v1858
    %2732 = vmatpush1.bf16.msra.mxu0 %v1857
    %2733 = vmatprep.subr.bf16.mxu0 %v1870
    %2734 = vmatpush1.bf16.msra.mxu0 %v1869
    %2735 = vmatprep.subr.bf16.mxu0 %v1882
    %2736 = vmatpush1.bf16.msra.mxu0 %v1881
    %2737 = vmatprep.subr.bf16.mxu0 %v1894
    %2738 = vmatpush1.bf16.msra.mxu0 %v1893
    %2739 = vmatprep.subr.bf16.mxu0 %v1906
    %2740 = vmatpush1.bf16.msra.mxu0 %v1905
    %2741 = vmatprep.mubr.bf16.mxu0 %v92
    %2742 = vmatmul.mubr.bf16.gmra.mrb[0].mxu0 %v91
    %v2743 = vpop.f32.mrb[0].mxu0
    %v2744 = vadd.f32 %v522, %v2743
    %v2745 = vpop.f32.mrb[0].mxu0
    %v2746 = vadd.f32 %v526, %v2745
    %v2747 = vpop.f32.mrb[0].mxu0
    %v2748 = vadd.f32 %v522, %v2747
    %v2749 = vpop.f32.mrb[0].mxu0
    %v2750 = vadd.f32 %v526, %v2749
    %2751 = vmatprep.mubr.bf16.mxu0 %v96
    %2752 = vmatmul.mubr.bf16.gmra.mrb[0].mxu0 %v95
    %v2753 = vpop.f32.mrb[0].mxu0
    %v2754 = vadd.f32 %v522, %v2753
    %v2755 = vpop.f32.mrb[0].mxu0
    %v2756 = vadd.f32 %v526, %v2755
    %v2757 = vpop.f32.mrb[0].mxu0
    %v2758 = vadd.f32 %v522, %v2757
    %v2759 = vpop.f32.mrb[0].mxu0
    %v2760 = vadd.f32 %v526, %v2759
    %2761 = vmatprep.mubr.bf16.mxu0 %v100
    %2762 = vmatmul.mubr.bf16.gmra.mrb[0].mxu0 %v99
    %v2763 = vpop.f32.mrb[0].mxu0
    %v2764 = vadd.f32 %v522, %v2763
    %v2765 = vpop.f32.mrb[0].mxu0
    %v2766 = vadd.f32 %v526, %v2765
    %v2767 = vpop.f32.mrb[0].mxu0
    %v2768 = vadd.f32 %v522, %v2767
    %v2769 = vpop.f32.mrb[0].mxu0
    %v2770 = vadd.f32 %v526, %v2769
    %2771 = vmatprep.mubr.bf16.mxu0 %v104
    %2772 = vmatmul.mubr.bf16.gmra.mrb[0].mxu0 %v103
    %v2773 = vpop.f32.mrb[0].mxu0
    %v2774 = vadd.f32 %v522, %v2773
    %v2775 = vpop.f32.mrb[0].mxu0
    %v2776 = vadd.f32 %v526, %v2775
    %v2777 = vpop.f32.mrb[0].mxu0
    %v2778 = vadd.f32 %v522, %v2777
    %v2779 = vpop.f32.mrb[0].mxu0
    %v2780 = vadd.f32 %v526, %v2779
    %2781 = vmatprep.mubr.bf16.mxu0 %v108
    %2782 = vmatmul.mubr.bf16.gmra.mrb[0].mxu0 %v107
    %v2783 = vpop.f32.mrb[0].mxu0
    %v2784 = vadd.f32 %v522, %v2783
    %v2785 = vpop.f32.mrb[0].mxu0
    %v2786 = vadd.f32 %v526, %v2785
    %v2787 = vpop.f32.mrb[0].mxu0
    %v2788 = vadd.f32 %v522, %v2787
    %v2789 = vpop.f32.mrb[0].mxu0
    %v2790 = vadd.f32 %v526, %v2789
    %2791 = vmatprep.mubr.bf16.mxu0 %v112
    %2792 = vmatmul.mubr.bf16.gmra.mrb[0].mxu0 %v111
    %v2793 = vpop.f32.mrb[0].mxu0
    %v2794 = vadd.f32 %v522, %v2793
    %v2795 = vpop.f32.mrb[0].mxu0
    %v2796 = vadd.f32 %v526, %v2795
    %v2797 = vpop.f32.mrb[0].mxu0
    %v2798 = vadd.f32 %v522, %v2797
    %v2799 = vpop.f32.mrb[0].mxu0
    %v2800 = vadd.f32 %v526, %v2799
    %2801 = vmatprep.mubr.bf16.mxu0 %v116
    %2802 = vmatmul.mubr.bf16.gmra.mrb[0].mxu0 %v115
    %v2803 = vpop.f32.mrb[0].mxu0
    %v2804 = vadd.f32 %v522, %v2803
    %v2805 = vpop.f32.mrb[0].mxu0
    %v2806 = vadd.f32 %v526, %v2805
    %v2807 = vpop.f32.mrb[0].mxu0
    %v2808 = vadd.f32 %v522, %v2807
    %v2809 = vpop.f32.mrb[0].mxu0
    %v2810 = vadd.f32 %v526, %v2809
    %2811 = vmatprep.mubr.bf16.mxu0 %v120
    %2812 = vmatmul.mubr.bf16.gmra.mrb[0].mxu0 %v119
    %v2813 = vpop.f32.mrb[0].mxu0
    %v2814 = vadd.f32 %v522, %v2813
    %v2815 = vpop.f32.mrb[0].mxu0
    %v2816 = vadd.f32 %v526, %v2815
    %v2817 = vpop.f32.mrb[0].mxu0
    %v2818 = vadd.f32 %v522, %v2817
    %v2819 = vpop.f32.mrb[0].mxu0
    %v2820 = vadd.f32 %v526, %v2819
    %2821 = vdwg.mxu0
    %2822 = vmatprep.subr.bf16.mxu0 %v1918
    %2823 = vmatpush1.bf16.msra.mxu0 %v1917
    %2824 = vmatprep.subr.bf16.mxu0 %v1930
    %2825 = vmatpush1.bf16.msra.mxu0 %v1929
    %2826 = vmatprep.subr.bf16.mxu0 %v1942
    %2827 = vmatpush1.bf16.msra.mxu0 %v1941
    %2828 = vmatprep.subr.bf16.mxu0 %v1954
    %2829 = vmatpush1.bf16.msra.mxu0 %v1953
    %2830 = vmatprep.subr.bf16.mxu0 %v1966
    %2831 = vmatpush1.bf16.msra.mxu0 %v1965
    %2832 = vmatprep.subr.bf16.mxu0 %v1978
    %2833 = vmatpush1.bf16.msra.mxu0 %v1977
    %2834 = vmatprep.subr.bf16.mxu0 %v1990
    %2835 = vmatpush1.bf16.msra.mxu0 %v1989
    %2836 = vmatprep.subr.bf16.mxu0 %v2002
    %2837 = vmatpush1.bf16.msra.mxu0 %v2001
    %2838 = vmatprep.subr.bf16.mxu0 %v2014
    %2839 = vmatpush1.bf16.msra.mxu0 %v2013
    %2840 = vmatprep.subr.bf16.mxu0 %v2026
    %2841 = vmatpush1.bf16.msra.mxu0 %v2025
    %2842 = vmatprep.subr.bf16.mxu0 %v2038
    %2843 = vmatpush1.bf16.msra.mxu0 %v2037
    %2844 = vmatprep.subr.bf16.mxu0 %v2050
    %2845 = vmatpush1.bf16.msra.mxu0 %v2049
    %2846 = vmatprep.subr.bf16.mxu0 %v2062
    %2847 = vmatpush1.bf16.msra.mxu0 %v2061
    %2848 = vmatprep.subr.bf16.mxu0 %v2074
    %2849 = vmatpush1.bf16.msra.mxu0 %v2073
    %2850 = vmatprep.subr.bf16.mxu0 %v2086
    %2851 = vmatpush1.bf16.msra.mxu0 %v2085
    %2852 = vmatprep.subr.bf16.mxu0 %v2098
    %2853 = vmatpush1.bf16.msra.mxu0 %v2097
    %2854 = vmatprep.mubr.bf16.mxu0 %v94
    %2855 = vmatmul.mubr.bf16.gmra.mrb[0].mxu0 %v93
    %v2856 = vpop.f32.mrb[0].mxu0
    %v2857 = vadd.f32 %v2744, %v2856
    %v2858 = vpop.f32.mrb[0].mxu0
    %v2859 = vadd.f32 %v2746, %v2858
    %v2860 = vpop.f32.mrb[0].mxu0
    %v2861 = vadd.f32 %v2748, %v2860
    %v2862 = vpop.f32.mrb[0].mxu0
    %v2863 = vadd.f32 %v2750, %v2862
    %2864 = vmatprep.mubr.bf16.mxu0 %v98
    %2865 = vmatmul.mubr.bf16.gmra.mrb[0].mxu0 %v97
    %v2866 = vpop.f32.mrb[0].mxu0
    %v2867 = vadd.f32 %v2754, %v2866
    %v2868 = vpop.f32.mrb[0].mxu0
    %v2869 = vadd.f32 %v2756, %v2868
    %v2870 = vpop.f32.mrb[0].mxu0
    %v2871 = vadd.f32 %v2758, %v2870
    %v2872 = vpop.f32.mrb[0].mxu0
    %v2873 = vadd.f32 %v2760, %v2872
    %2874 = vmatprep.mubr.bf16.mxu0 %v102
    %2875 = vmatmul.mubr.bf16.gmra.mrb[0].mxu0 %v101
    %v2876 = vpop.f32.mrb[0].mxu0
    %v2877 = vadd.f32 %v2764, %v2876
    %v2878 = vpop.f32.mrb[0].mxu0
    %v2879 = vadd.f32 %v2766, %v2878
    %v2880 = vpop.f32.mrb[0].mxu0
    %v2881 = vadd.f32 %v2768, %v2880
    %v2882 = vpop.f32.mrb[0].mxu0
    %v2883 = vadd.f32 %v2770, %v2882
    %2884 = vmatprep.mubr.bf16.mxu0 %v106
    %2885 = vmatmul.mubr.bf16.gmra.mrb[0].mxu0 %v105
    %v2886 = vpop.f32.mrb[0].mxu0
    %v2887 = vadd.f32 %v2774, %v2886
    %v2888 = vpop.f32.mrb[0].mxu0
    %v2889 = vadd.f32 %v2776, %v2888
    %v2890 = vpop.f32.mrb[0].mxu0
    %v2891 = vadd.f32 %v2778, %v2890
    %v2892 = vpop.f32.mrb[0].mxu0
    %v2893 = vadd.f32 %v2780, %v2892
    %2894 = vmatprep.mubr.bf16.mxu0 %v110
    %2895 = vmatmul.mubr.bf16.gmra.mrb[0].mxu0 %v109
    %v2896 = vpop.f32.mrb[0].mxu0
    %v2897 = vadd.f32 %v2784, %v2896
    %v2898 = vpop.f32.mrb[0].mxu0
    %v2899 = vadd.f32 %v2786, %v2898
    %v2900 = vpop.f32.mrb[0].mxu0
    %v2901 = vadd.f32 %v2788, %v2900
    %v2902 = vpop.f32.mrb[0].mxu0
    %v2903 = vadd.f32 %v2790, %v2902
    %2904 = vmatprep.mubr.bf16.mxu0 %v114
    %2905 = vmatmul.mubr.bf16.gmra.mrb[0].mxu0 %v113
    %v2906 = vpop.f32.mrb[0].mxu0
    %v2907 = vadd.f32 %v2794, %v2906
    %v2908 = vpop.f32.mrb[0].mxu0
    %v2909 = vadd.f32 %v2796, %v2908
    %v2910 = vpop.f32.mrb[0].mxu0
    %v2911 = vadd.f32 %v2798, %v2910
    %v2912 = vpop.f32.mrb[0].mxu0
    %v2913 = vadd.f32 %v2800, %v2912
    %2914 = vmatprep.mubr.bf16.mxu0 %v118
    %2915 = vmatmul.mubr.bf16.gmra.mrb[0].mxu0 %v117
    %v2916 = vpop.f32.mrb[0].mxu0
    %v2917 = vadd.f32 %v2804, %v2916
    %v2918 = vpop.f32.mrb[0].mxu0
    %v2919 = vadd.f32 %v2806, %v2918
    %v2920 = vpop.f32.mrb[0].mxu0
    %v2921 = vadd.f32 %v2808, %v2920
    %v2922 = vpop.f32.mrb[0].mxu0
    %v2923 = vadd.f32 %v2810, %v2922
    %2924 = vmatprep.mubr.bf16.mxu0 %v122
    %2925 = vmatmul.mubr.bf16.gmra.mrb[0].mxu0 %v121
    %v2926 = vpop.f32.mrb[0].mxu0
    %v2927 = vadd.f32 %v2814, %v2926
    %v2928 = vpop.f32.mrb[0].mxu0
    %v2929 = vadd.f32 %v2816, %v2928
    %v2930 = vpop.f32.mrb[0].mxu0
    %v2931 = vadd.f32 %v2818, %v2930
    %v2932 = vpop.f32.mrb[0].mxu0
    %v2933 = vadd.f32 %v2820, %v2932
    %2934 = vdwg.mxu0
    %2935 = vmatprep.subr.bf16.mxu0 %v1728
    %2936 = vmatpush1.bf16.msra.mxu0 %v1727
    %2937 = vmatprep.subr.bf16.mxu0 %v1740
    %2938 = vmatpush1.bf16.msra.mxu0 %v1739
    %2939 = vmatprep.subr.bf16.mxu0 %v1752
    %2940 = vmatpush1.bf16.msra.mxu0 %v1751
    %2941 = vmatprep.subr.bf16.mxu0 %v1764
    %2942 = vmatpush1.bf16.msra.mxu0 %v1763
    %2943 = vmatprep.subr.bf16.mxu0 %v1776
    %2944 = vmatpush1.bf16.msra.mxu0 %v1775
    %2945 = vmatprep.subr.bf16.mxu0 %v1788
    %2946 = vmatpush1.bf16.msra.mxu0 %v1787
    %2947 = vmatprep.subr.bf16.mxu0 %v1800
    %2948 = vmatpush1.bf16.msra.mxu0 %v1799
    %2949 = vmatprep.subr.bf16.mxu0 %v1812
    %2950 = vmatpush1.bf16.msra.mxu0 %v1811
    %2951 = vmatprep.subr.bf16.mxu0 %v1824
    %2952 = vmatpush1.bf16.msra.mxu0 %v1823
    %2953 = vmatprep.subr.bf16.mxu0 %v1836
    %2954 = vmatpush1.bf16.msra.mxu0 %v1835
    %2955 = vmatprep.subr.bf16.mxu0 %v1848
    %2956 = vmatpush1.bf16.msra.mxu0 %v1847
    %2957 = vmatprep.subr.bf16.mxu0 %v1860
    %2958 = vmatpush1.bf16.msra.mxu0 %v1859
    %2959 = vmatprep.subr.bf16.mxu0 %v1872
    %2960 = vmatpush1.bf16.msra.mxu0 %v1871
    %2961 = vmatprep.subr.bf16.mxu0 %v1884
    %2962 = vmatpush1.bf16.msra.mxu0 %v1883
    %2963 = vmatprep.subr.bf16.mxu0 %v1896
    %2964 = vmatpush1.bf16.msra.mxu0 %v1895
    %2965 = vmatprep.subr.bf16.mxu0 %v1908
    %2966 = vmatpush1.bf16.msra.mxu0 %v1907
    %2967 = vmatprep.mubr.bf16.mxu0 %v92
    %2968 = vmatmul.mubr.bf16.gmra.mrb[0].mxu0 %v91
    %v2969 = vpop.f32.mrb[0].mxu0
    %v2970 = vadd.f32 %v530, %v2969
    %v2971 = vpop.f32.mrb[0].mxu0
    %v2972 = vadd.f32 %v534, %v2971
    %v2973 = vpop.f32.mrb[0].mxu0
    %v2974 = vadd.f32 %v530, %v2973
    %v2975 = vpop.f32.mrb[0].mxu0
    %v2976 = vadd.f32 %v534, %v2975
    %2977 = vmatprep.mubr.bf16.mxu0 %v96
    %2978 = vmatmul.mubr.bf16.gmra.mrb[0].mxu0 %v95
    %v2979 = vpop.f32.mrb[0].mxu0
    %v2980 = vadd.f32 %v530, %v2979
    %v2981 = vpop.f32.mrb[0].mxu0
    %v2982 = vadd.f32 %v534, %v2981
    %v2983 = vpop.f32.mrb[0].mxu0
    %v2984 = vadd.f32 %v530, %v2983
    %v2985 = vpop.f32.mrb[0].mxu0
    %v2986 = vadd.f32 %v534, %v2985
    %2987 = vmatprep.mubr.bf16.mxu0 %v100
    %2988 = vmatmul.mubr.bf16.gmra.mrb[0].mxu0 %v99
    %v2989 = vpop.f32.mrb[0].mxu0
    %v2990 = vadd.f32 %v530, %v2989
    %v2991 = vpop.f32.mrb[0].mxu0
    %v2992 = vadd.f32 %v534, %v2991
    %v2993 = vpop.f32.mrb[0].mxu0
    %v2994 = vadd.f32 %v530, %v2993
    %v2995 = vpop.f32.mrb[0].mxu0
    %v2996 = vadd.f32 %v534, %v2995
    %2997 = vmatprep.mubr.bf16.mxu0 %v104
    %2998 = vmatmul.mubr.bf16.gmra.mrb[0].mxu0 %v103
    %v2999 = vpop.f32.mrb[0].mxu0
    %v3000 = vadd.f32 %v530, %v2999
    %v3001 = vpop.f32.mrb[0].mxu0
    %v3002 = vadd.f32 %v534, %v3001
    %v3003 = vpop.f32.mrb[0].mxu0
    %v3004 = vadd.f32 %v530, %v3003
    %v3005 = vpop.f32.mrb[0].mxu0
    %v3006 = vadd.f32 %v534, %v3005
    %3007 = vmatprep.mubr.bf16.mxu0 %v108
    %3008 = vmatmul.mubr.bf16.gmra.mrb[0].mxu0 %v107
    %v3009 = vpop.f32.mrb[0].mxu0
    %v3010 = vadd.f32 %v530, %v3009
    %v3011 = vpop.f32.mrb[0].mxu0
    %v3012 = vadd.f32 %v534, %v3011
    %v3013 = vpop.f32.mrb[0].mxu0
    %v3014 = vadd.f32 %v530, %v3013
    %v3015 = vpop.f32.mrb[0].mxu0
    %v3016 = vadd.f32 %v534, %v3015
    %3017 = vmatprep.mubr.bf16.mxu0 %v112
    %3018 = vmatmul.mubr.bf16.gmra.mrb[0].mxu0 %v111
    %v3019 = vpop.f32.mrb[0].mxu0
    %v3020 = vadd.f32 %v530, %v3019
    %v3021 = vpop.f32.mrb[0].mxu0
    %v3022 = vadd.f32 %v534, %v3021
    %v3023 = vpop.f32.mrb[0].mxu0
    %v3024 = vadd.f32 %v530, %v3023
    %v3025 = vpop.f32.mrb[0].mxu0
    %v3026 = vadd.f32 %v534, %v3025
    %3027 = vmatprep.mubr.bf16.mxu0 %v116
    %3028 = vmatmul.mubr.bf16.gmra.mrb[0].mxu0 %v115
    %v3029 = vpop.f32.mrb[0].mxu0
    %v3030 = vadd.f32 %v530, %v3029
    %v3031 = vpop.f32.mrb[0].mxu0
    %v3032 = vadd.f32 %v534, %v3031
    %v3033 = vpop.f32.mrb[0].mxu0
    %v3034 = vadd.f32 %v530, %v3033
    %v3035 = vpop.f32.mrb[0].mxu0
    %v3036 = vadd.f32 %v534, %v3035
    %3037 = vmatprep.mubr.bf16.mxu0 %v120
    %3038 = vmatmul.mubr.bf16.gmra.mrb[0].mxu0 %v119
    %v3039 = vpop.f32.mrb[0].mxu0
    %v3040 = vadd.f32 %v530, %v3039
    %v3041 = vpop.f32.mrb[0].mxu0
    %v3042 = vadd.f32 %v534, %v3041
    %v3043 = vpop.f32.mrb[0].mxu0
    %v3044 = vadd.f32 %v530, %v3043
    %v3045 = vpop.f32.mrb[0].mxu0
    %v3046 = vadd.f32 %v534, %v3045
    %3047 = vdwg.mxu0
    %3048 = vmatprep.subr.bf16.mxu0 %v1920
    %3049 = vmatpush1.bf16.msra.mxu0 %v1919
    %3050 = vmatprep.subr.bf16.mxu0 %v1932
    %3051 = vmatpush1.bf16.msra.mxu0 %v1931
    %3052 = vmatprep.subr.bf16.mxu0 %v1944
    %3053 = vmatpush1.bf16.msra.mxu0 %v1943
    %3054 = vmatprep.subr.bf16.mxu0 %v1956
    %3055 = vmatpush1.bf16.msra.mxu0 %v1955
    %3056 = vmatprep.subr.bf16.mxu0 %v1968
    %3057 = vmatpush1.bf16.msra.mxu0 %v1967
    %3058 = vmatprep.subr.bf16.mxu0 %v1980
    %3059 = vmatpush1.bf16.msra.mxu0 %v1979
    %3060 = vmatprep.subr.bf16.mxu0 %v1992
    %3061 = vmatpush1.bf16.msra.mxu0 %v1991
    %3062 = vmatprep.subr.bf16.mxu0 %v2004
    %3063 = vmatpush1.bf16.msra.mxu0 %v2003
    %3064 = vmatprep.subr.bf16.mxu0 %v2016
    %3065 = vmatpush1.bf16.msra.mxu0 %v2015
    %3066 = vmatprep.subr.bf16.mxu0 %v2028
    %3067 = vmatpush1.bf16.msra.mxu0 %v2027
    %3068 = vmatprep.subr.bf16.mxu0 %v2040
    %3069 = vmatpush1.bf16.msra.mxu0 %v2039
    %3070 = vmatprep.subr.bf16.mxu0 %v2052
    %3071 = vmatpush1.bf16.msra.mxu0 %v2051
    %3072 = vmatprep.subr.bf16.mxu0 %v2064
    %3073 = vmatpush1.bf16.msra.mxu0 %v2063
    %3074 = vmatprep.subr.bf16.mxu0 %v2076
    %3075 = vmatpush1.bf16.msra.mxu0 %v2075
    %3076 = vmatprep.subr.bf16.mxu0 %v2088
    %3077 = vmatpush1.bf16.msra.mxu0 %v2087
    %3078 = vmatprep.subr.bf16.mxu0 %v2100
    %3079 = vmatpush1.bf16.msra.mxu0 %v2099
    %3080 = vmatprep.mubr.bf16.mxu0 %v94
    %3081 = vmatmul.mubr.bf16.gmra.mrb[0].mxu0 %v93
    %v3082 = vpop.f32.mrb[0].mxu0
    %v3083 = vadd.f32 %v2970, %v3082
    %v3084 = vpop.f32.mrb[0].mxu0
    %v3085 = vadd.f32 %v2972, %v3084
    %v3086 = vpop.f32.mrb[0].mxu0
    %v3087 = vadd.f32 %v2974, %v3086
    %v3088 = vpop.f32.mrb[0].mxu0
    %v3089 = vadd.f32 %v2976, %v3088
    %3090 = vmatprep.mubr.bf16.mxu0 %v98
    %3091 = vmatmul.mubr.bf16.gmra.mrb[0].mxu0 %v97
    %v3092 = vpop.f32.mrb[0].mxu0
    %v3093 = vadd.f32 %v2980, %v3092
    %v3094 = vpop.f32.mrb[0].mxu0
    %v3095 = vadd.f32 %v2982, %v3094
    %v3096 = vpop.f32.mrb[0].mxu0
    %v3097 = vadd.f32 %v2984, %v3096
    %v3098 = vpop.f32.mrb[0].mxu0
    %v3099 = vadd.f32 %v2986, %v3098
    %3100 = vmatprep.mubr.bf16.mxu0 %v102
    %3101 = vmatmul.mubr.bf16.gmra.mrb[0].mxu0 %v101
    %v3102 = vpop.f32.mrb[0].mxu0
    %v3103 = vadd.f32 %v2990, %v3102
    %v3104 = vpop.f32.mrb[0].mxu0
    %v3105 = vadd.f32 %v2992, %v3104
    %v3106 = vpop.f32.mrb[0].mxu0
    %v3107 = vadd.f32 %v2994, %v3106
    %v3108 = vpop.f32.mrb[0].mxu0
    %v3109 = vadd.f32 %v2996, %v3108
    %3110 = vmatprep.mubr.bf16.mxu0 %v106
    %3111 = vmatmul.mubr.bf16.gmra.mrb[0].mxu0 %v105
    %v3112 = vpop.f32.mrb[0].mxu0
    %v3113 = vadd.f32 %v3000, %v3112
    %v3114 = vpop.f32.mrb[0].mxu0
    %v3115 = vadd.f32 %v3002, %v3114
    %v3116 = vpop.f32.mrb[0].mxu0
    %v3117 = vadd.f32 %v3004, %v3116
    %v3118 = vpop.f32.mrb[0].mxu0
    %v3119 = vadd.f32 %v3006, %v3118
    %3120 = vmatprep.mubr.bf16.mxu0 %v110
    %3121 = vmatmul.mubr.bf16.gmra.mrb[0].mxu0 %v109
    %v3122 = vpop.f32.mrb[0].mxu0
    %v3123 = vadd.f32 %v3010, %v3122
    %v3124 = vpop.f32.mrb[0].mxu0
    %v3125 = vadd.f32 %v3012, %v3124
    %v3126 = vpop.f32.mrb[0].mxu0
    %v3127 = vadd.f32 %v3014, %v3126
    %v3128 = vpop.f32.mrb[0].mxu0
    %v3129 = vadd.f32 %v3016, %v3128
    %3130 = vmatprep.mubr.bf16.mxu0 %v114
    %3131 = vmatmul.mubr.bf16.gmra.mrb[0].mxu0 %v113
    %v3132 = vpop.f32.mrb[0].mxu0
    %v3133 = vadd.f32 %v3020, %v3132
    %v3134 = vpop.f32.mrb[0].mxu0
    %v3135 = vadd.f32 %v3022, %v3134
    %v3136 = vpop.f32.mrb[0].mxu0
    %v3137 = vadd.f32 %v3024, %v3136
    %v3138 = vpop.f32.mrb[0].mxu0
    %v3139 = vadd.f32 %v3026, %v3138
    %3140 = vmatprep.mubr.bf16.mxu0 %v118
    %3141 = vmatmul.mubr.bf16.gmra.mrb[0].mxu0 %v117
    %v3142 = vpop.f32.mrb[0].mxu0
    %v3143 = vadd.f32 %v3030, %v3142
    %v3144 = vpop.f32.mrb[0].mxu0
    %v3145 = vadd.f32 %v3032, %v3144
    %v3146 = vpop.f32.mrb[0].mxu0
    %v3147 = vadd.f32 %v3034, %v3146
    %v3148 = vpop.f32.mrb[0].mxu0
    %v3149 = vadd.f32 %v3036, %v3148
    %3150 = vmatprep.mubr.bf16.mxu0 %v122
    %3151 = vmatmul.mubr.bf16.gmra.mrb[0].mxu0 %v121
    %v3152 = vpop.f32.mrb[0].mxu0
    %v3153 = vadd.f32 %v3040, %v3152
    %v3154 = vpop.f32.mrb[0].mxu0
    %v3155 = vadd.f32 %v3042, %v3154
    %v3156 = vpop.f32.mrb[0].mxu0
    %v3157 = vadd.f32 %v3044, %v3156
    %v3158 = vpop.f32.mrb[0].mxu0
    %v3159 = vadd.f32 %v3046, %v3158
    %3160 = vdwg.mxu0
    %3161 = vmatprep.subr.bf16.mxu0 %v1730
    %3162 = vmatpush1.bf16.msra.mxu0 %v1729
    %3163 = vmatprep.subr.bf16.mxu0 %v1742
    %3164 = vmatpush1.bf16.msra.mxu0 %v1741
    %3165 = vmatprep.subr.bf16.mxu0 %v1754
    %3166 = vmatpush1.bf16.msra.mxu0 %v1753
    %3167 = vmatprep.subr.bf16.mxu0 %v1766
    %3168 = vmatpush1.bf16.msra.mxu0 %v1765
    %3169 = vmatprep.subr.bf16.mxu0 %v1778
    %3170 = vmatpush1.bf16.msra.mxu0 %v1777
    %3171 = vmatprep.subr.bf16.mxu0 %v1790
    %3172 = vmatpush1.bf16.msra.mxu0 %v1789
    %3173 = vmatprep.subr.bf16.mxu0 %v1802
    %3174 = vmatpush1.bf16.msra.mxu0 %v1801
    %3175 = vmatprep.subr.bf16.mxu0 %v1814
    %3176 = vmatpush1.bf16.msra.mxu0 %v1813
    %3177 = vmatprep.subr.bf16.mxu0 %v1826
    %3178 = vmatpush1.bf16.msra.mxu0 %v1825
    %3179 = vmatprep.subr.bf16.mxu0 %v1838
    %3180 = vmatpush1.bf16.msra.mxu0 %v1837
    %3181 = vmatprep.subr.bf16.mxu0 %v1850
    %3182 = vmatpush1.bf16.msra.mxu0 %v1849
    %3183 = vmatprep.subr.bf16.mxu0 %v1862
    %3184 = vmatpush1.bf16.msra.mxu0 %v1861
    %3185 = vmatprep.subr.bf16.mxu0 %v1874
    %3186 = vmatpush1.bf16.msra.mxu0 %v1873
    %3187 = vmatprep.subr.bf16.mxu0 %v1886
    %3188 = vmatpush1.bf16.msra.mxu0 %v1885
    %3189 = vmatprep.subr.bf16.mxu0 %v1898
    %3190 = vmatpush1.bf16.msra.mxu0 %v1897
    %3191 = vmatprep.subr.bf16.mxu0 %v1910
    %3192 = vmatpush1.bf16.msra.mxu0 %v1909
    %3193 = vmatprep.mubr.bf16.mxu0 %v92
    %3194 = vmatmul.mubr.bf16.gmra.mrb[0].mxu0 %v91
    %v3195 = vpop.f32.mrb[0].mxu0
    %v3196 = vadd.f32 %v538, %v3195
    %v3197 = vpop.f32.mrb[0].mxu0
    %v3198 = vpop.f32.mrb[0].mxu0
    %v3199 = vadd.f32 %v538, %v3198
    %v3200 = vpop.f32.mrb[0].mxu0
    %v3201 = vadd.f32 %v542, %v3200
    %3202 = vmatprep.mubr.bf16.mxu0 %v96
    %3203 = vmatmul.mubr.bf16.gmra.mrb[0].mxu0 %v95
    %v3204 = vpop.f32.mrb[0].mxu0
    %v3205 = vadd.f32 %v538, %v3204
    %v3206 = vpop.f32.mrb[0].mxu0
    %v3207 = vadd.f32 %v542, %v3206
    %v3208 = vpop.f32.mrb[0].mxu0
    %v3209 = vadd.f32 %v538, %v3208
    %v3210 = vpop.f32.mrb[0].mxu0
    %v3211 = vadd.f32 %v542, %v3210
    %3212 = vmatprep.mubr.bf16.mxu0 %v100
    %3213 = vmatmul.mubr.bf16.gmra.mrb[0].mxu0 %v99
    %v3214 = vpop.f32.mrb[0].mxu0
    %v3215 = vadd.f32 %v538, %v3214
    %v3216 = vpop.f32.mrb[0].mxu0
    %v3217 = vadd.f32 %v542, %v3216
    %v3218 = vpop.f32.mrb[0].mxu0
    %v3219 = vadd.f32 %v538, %v3218
    %v3220 = vpop.f32.mrb[0].mxu0
    %v3221 = vadd.f32 %v542, %v3220
    %3222 = vmatprep.mubr.bf16.mxu0 %v104
    %3223 = vmatmul.mubr.bf16.gmra.mrb[0].mxu0 %v103
    %v3224 = vpop.f32.mrb[0].mxu0
    %v3225 = vadd.f32 %v538, %v3224
    %v3226 = vpop.f32.mrb[0].mxu0
    %v3227 = vadd.f32 %v542, %v3226
    %v3228 = vpop.f32.mrb[0].mxu0
    %v3229 = vpop.f32.mrb[0].mxu0
    %v3230 = vadd.f32 %v542, %v3229
    %3231 = vmatprep.mubr.bf16.mxu0 %v108
    %3232 = vmatmul.mubr.bf16.gmra.mrb[0].mxu0 %v107
    %v3233 = vpop.f32.mrb[0].mxu0
    %v3234 = vadd.f32 %v538, %v3233
    %v3235 = vpop.f32.mrb[0].mxu0
    %v3236 = vpop.f32.mrb[0].mxu0
    %v3237 = vadd.f32 %v538, %v3236
    %v3238 = vpop.f32.mrb[0].mxu0
    %v3239 = vadd.f32 %v542, %v3238
    %3240 = vmatprep.mubr.bf16.mxu0 %v112
    %3241 = vmatmul.mubr.bf16.gmra.mrb[0].mxu0 %v111
    %v3242 = vpop.f32.mrb[0].mxu0
    %v3243 = vadd.f32 %v538, %v3242
    %v3244 = vpop.f32.mrb[0].mxu0
    %v3245 = vadd.f32 %v542, %v3244
    %v3246 = vpop.f32.mrb[0].mxu0
    %v3247 = vadd.f32 %v538, %v3246
    %v3248 = vpop.f32.mrb[0].mxu0
    %v3249 = vadd.f32 %v542, %v3248
    %3250 = vmatprep.mubr.bf16.mxu0 %v116
    %3251 = vmatmul.mubr.bf16.gmra.mrb[0].mxu0 %v115
    %v3252 = vpop.f32.mrb[0].mxu0
    %v3253 = vadd.f32 %v538, %v3252
    %v3254 = vpop.f32.mrb[0].mxu0
    %v3255 = vadd.f32 %v542, %v3254
    %v3256 = vpop.f32.mrb[0].mxu0
    %v3257 = vadd.f32 %v538, %v3256
    %v3258 = vpop.f32.mrb[0].mxu0
    %v3259 = vadd.f32 %v542, %v3258
    %3260 = vmatprep.mubr.bf16.mxu0 %v120
    %3261 = vmatmul.mubr.bf16.gmra.mrb[0].mxu0 %v119
    %v3262 = vpop.f32.mrb[0].mxu0
    %v3263 = vadd.f32 %v538, %v3262
    %v3264 = vpop.f32.mrb[0].mxu0
    %v3265 = vadd.f32 %v542, %v3264
    %v3266 = vpop.f32.mrb[0].mxu0
    %v3267 = vpop.f32.mrb[0].mxu0
    %v3268 = vadd.f32 %v542, %v3267
    %3269 = vdwg.mxu0
    %3270 = vmatprep.subr.bf16.mxu0 %v1922
    %3271 = vmatpush1.bf16.msra.mxu0 %v1921
    %3272 = vmatprep.subr.bf16.mxu0 %v1934
    %3273 = vmatpush1.bf16.msra.mxu0 %v1933
    %3274 = vmatprep.subr.bf16.mxu0 %v1946
    %3275 = vmatpush1.bf16.msra.mxu0 %v1945
    %3276 = vmatprep.subr.bf16.mxu0 %v1958
    %3277 = vmatpush1.bf16.msra.mxu0 %v1957
    %3278 = vmatprep.subr.bf16.mxu0 %v1970
    %3279 = vmatpush1.bf16.msra.mxu0 %v1969
    %3280 = vmatprep.subr.bf16.mxu0 %v1982
    %3281 = vmatpush1.bf16.msra.mxu0 %v1981
    %3282 = vmatprep.subr.bf16.mxu0 %v1994
    %3283 = vmatpush1.bf16.msra.mxu0 %v1993
    %3284 = vmatprep.subr.bf16.mxu0 %v2006
    %3285 = vmatpush1.bf16.msra.mxu0 %v2005
    %3286 = vmatprep.subr.bf16.mxu0 %v2018
    %3287 = vmatpush1.bf16.msra.mxu0 %v2017
    %3288 = vmatprep.subr.bf16.mxu0 %v2030
    %3289 = vmatpush1.bf16.msra.mxu0 %v2029
    %3290 = vmatprep.subr.bf16.mxu0 %v2042
    %3291 = vmatpush1.bf16.msra.mxu0 %v2041
    %3292 = vmatprep.subr.bf16.mxu0 %v2054
    %3293 = vmatpush1.bf16.msra.mxu0 %v2053
    %3294 = vmatprep.subr.bf16.mxu0 %v2066
    %3295 = vmatpush1.bf16.msra.mxu0 %v2065
    %3296 = vmatprep.subr.bf16.mxu0 %v2078
    %3297 = vmatpush1.bf16.msra.mxu0 %v2077
    %3298 = vmatprep.subr.bf16.mxu0 %v2090
    %3299 = vmatpush1.bf16.msra.mxu0 %v2089
    %3300 = vmatprep.subr.bf16.mxu0 %v2102
    %3301 = vmatpush1.bf16.msra.mxu0 %v2101
    %3302 = vmatprep.mubr.bf16.mxu0 %v94
    %3303 = vmatmul.mubr.bf16.gmra.mrb[0].mxu0 %v93
    %v3304 = vpop.f32.mrb[0].mxu0
    %v3305 = vadd.f32 %v3196, %v3304
    %v3306 = vpop.f32.mrb[0].mxu0
    %v3307 = vpop.f32.mrb[0].mxu0
    %v3308 = vadd.f32 %v3199, %v3307
    %v3309 = vpop.f32.mrb[0].mxu0
    %v3310 = vadd.f32 %v3201, %v3309
    %3311 = vmatprep.mubr.bf16.mxu0 %v98
    %3312 = vmatmul.mubr.bf16.gmra.mrb[0].mxu0 %v97
    %v3313 = vpop.f32.mrb[0].mxu0
    %v3314 = vadd.f32 %v3205, %v3313
    %v3315 = vpop.f32.mrb[0].mxu0
    %v3316 = vadd.f32 %v3207, %v3315
    %v3317 = vpop.f32.mrb[0].mxu0
    %v3318 = vadd.f32 %v3209, %v3317
    %v3319 = vpop.f32.mrb[0].mxu0
    %v3320 = vadd.f32 %v3211, %v3319
    %3321 = vmatprep.mubr.bf16.mxu0 %v102
    %3322 = vmatmul.mubr.bf16.gmra.mrb[0].mxu0 %v101
    %v3323 = vpop.f32.mrb[0].mxu0
    %v3324 = vadd.f32 %v3215, %v3323
    %v3325 = vpop.f32.mrb[0].mxu0
    %v3326 = vadd.f32 %v3217, %v3325
    %v3327 = vpop.f32.mrb[0].mxu0
    %v3328 = vadd.f32 %v3219, %v3327
    %v3329 = vpop.f32.mrb[0].mxu0
    %v3330 = vadd.f32 %v3221, %v3329
    %3331 = vmatprep.mubr.bf16.mxu0 %v106
    %3332 = vmatmul.mubr.bf16.gmra.mrb[0].mxu0 %v105
    %v3333 = vpop.f32.mrb[0].mxu0
    %v3334 = vadd.f32 %v3225, %v3333
    %v3335 = vpop.f32.mrb[0].mxu0
    %v3336 = vadd.f32 %v3227, %v3335
    %v3337 = vpop.f32.mrb[0].mxu0
    %v3338 = vpop.f32.mrb[0].mxu0
    %v3339 = vadd.f32 %v3230, %v3338
    %3340 = vmatprep.mubr.bf16.mxu0 %v110
    %3341 = vmatmul.mubr.bf16.gmra.mrb[0].mxu0 %v109
    %v3342 = vpop.f32.mrb[0].mxu0
    %v3343 = vadd.f32 %v3234, %v3342
    %v3344 = vpop.f32.mrb[0].mxu0
    %v3345 = vpop.f32.mrb[0].mxu0
    %v3346 = vadd.f32 %v3237, %v3345
    %v3347 = vpop.f32.mrb[0].mxu0
    %v3348 = vadd.f32 %v3239, %v3347
    %3349 = vmatprep.mubr.bf16.mxu0 %v114
    %3350 = vmatmul.mubr.bf16.gmra.mrb[0].mxu0 %v113
    %v3351 = vpop.f32.mrb[0].mxu0
    %v3352 = vadd.f32 %v3243, %v3351
    %v3353 = vpop.f32.mrb[0].mxu0
    %v3354 = vadd.f32 %v3245, %v3353
    %v3355 = vpop.f32.mrb[0].mxu0
    %v3356 = vadd.f32 %v3247, %v3355
    %v3357 = vpop.f32.mrb[0].mxu0
    %v3358 = vadd.f32 %v3249, %v3357
    %3359 = vmatprep.mubr.bf16.mxu0 %v118
    %3360 = vmatmul.mubr.bf16.gmra.mrb[0].mxu0 %v117
    %v3361 = vpop.f32.mrb[0].mxu0
    %v3362 = vadd.f32 %v3253, %v3361
    %v3363 = vpop.f32.mrb[0].mxu0
    %v3364 = vadd.f32 %v3255, %v3363
    %v3365 = vpop.f32.mrb[0].mxu0
    %v3366 = vadd.f32 %v3257, %v3365
    %v3367 = vpop.f32.mrb[0].mxu0
    %v3368 = vadd.f32 %v3259, %v3367
    %3369 = vmatprep.mubr.bf16.mxu0 %v122
    %3370 = vmatmul.mubr.bf16.gmra.mrb[0].mxu0 %v121
    %v3371 = vpop.f32.mrb[0].mxu0
    %v3372 = vadd.f32 %v3263, %v3371
    %v3373 = vpop.f32.mrb[0].mxu0
    %v3374 = vadd.f32 %v3265, %v3373
    %v3375 = vpop.f32.mrb[0].mxu0
    %v3376 = vpop.f32.mrb[0].mxu0
    %v3377 = vadd.f32 %v3268, %v3376
    %3378 = vdwg.mxu0
    %3379 = vmatprep.subr.bf16.mxu0 %v1732
    %3380 = vmatpush1.bf16.msra.mxu0 %v1731
    %3381 = vmatprep.subr.bf16.mxu0 %v1744
    %3382 = vmatpush1.bf16.msra.mxu0 %v1743
    %3383 = vmatprep.subr.bf16.mxu0 %v1756
    %3384 = vmatpush1.bf16.msra.mxu0 %v1755
    %3385 = vmatprep.subr.bf16.mxu0 %v1768
    %3386 = vmatpush1.bf16.msra.mxu0 %v1767
    %3387 = vmatprep.subr.bf16.mxu0 %v1780
    %3388 = vmatpush1.bf16.msra.mxu0 %v1779
    %3389 = vmatprep.subr.bf16.mxu0 %v1792
    %3390 = vmatpush1.bf16.msra.mxu0 %v1791
    %3391 = vmatprep.subr.bf16.mxu0 %v1804
    %3392 = vmatpush1.bf16.msra.mxu0 %v1803
    %3393 = vmatprep.subr.bf16.mxu0 %v1816
    %3394 = vmatpush1.bf16.msra.mxu0 %v1815
    %3395 = vmatprep.subr.bf16.mxu0 %v1828
    %3396 = vmatpush1.bf16.msra.mxu0 %v1827
    %3397 = vmatprep.subr.bf16.mxu0 %v1840
    %3398 = vmatpush1.bf16.msra.mxu0 %v1839
    %3399 = vmatprep.subr.bf16.mxu0 %v1852
    %3400 = vmatpush1.bf16.msra.mxu0 %v1851
    %3401 = vmatprep.subr.bf16.mxu0 %v1864
    %3402 = vmatpush1.bf16.msra.mxu0 %v1863
    %3403 = vmatprep.subr.bf16.mxu0 %v1876
    %3404 = vmatpush1.bf16.msra.mxu0 %v1875
    %3405 = vmatprep.subr.bf16.mxu0 %v1888
    %3406 = vmatpush1.bf16.msra.mxu0 %v1887
    %3407 = vmatprep.subr.bf16.mxu0 %v1900
    %3408 = vmatpush1.bf16.msra.mxu0 %v1899
    %3409 = vmatprep.subr.bf16.mxu0 %v1912
    %3410 = vmatpush1.bf16.msra.mxu0 %v1911
    %3411 = vmatprep.mubr.bf16.mxu0 %v92
    %3412 = vmatmul.mubr.bf16.gmra.mrb[0].mxu0 %v91
    %v3413 = vpop.f32.mrb[0].mxu0
    %v3414 = vadd.f32 %v546, %v3413
    %v3415 = vpop.f32.mrb[0].mxu0
    %v3416 = vadd.f32 %v550, %v3415
    %v3417 = vpop.f32.mrb[0].mxu0
    %v3418 = vadd.f32 %v546, %v3417
    %v3419 = vpop.f32.mrb[0].mxu0
    %v3420 = vadd.f32 %v550, %v3419
    %3421 = vmatprep.mubr.bf16.mxu0 %v96
    %3422 = vmatmul.mubr.bf16.gmra.mrb[0].mxu0 %v95
    %v3423 = vpop.f32.mrb[0].mxu0
    %v3424 = vadd.f32 %v546, %v3423
    %v3425 = vpop.f32.mrb[0].mxu0
    %v3426 = vadd.f32 %v550, %v3425
    %v3427 = vpop.f32.mrb[0].mxu0
    %v3428 = vadd.f32 %v546, %v3427
    %v3429 = vpop.f32.mrb[0].mxu0
    %v3430 = vadd.f32 %v550, %v3429
    %3431 = vmatprep.mubr.bf16.mxu0 %v100
    %3432 = vmatmul.mubr.bf16.gmra.mrb[0].mxu0 %v99
    %v3433 = vpop.f32.mrb[0].mxu0
    %v3434 = vadd.f32 %v546, %v3433
    %v3435 = vpop.f32.mrb[0].mxu0
    %v3436 = vadd.f32 %v550, %v3435
    %v3437 = vpop.f32.mrb[0].mxu0
    %v3438 = vadd.f32 %v546, %v3437
    %v3439 = vpop.f32.mrb[0].mxu0
    %v3440 = vadd.f32 %v550, %v3439
    %3441 = vmatprep.mubr.bf16.mxu0 %v104
    %3442 = vmatmul.mubr.bf16.gmra.mrb[0].mxu0 %v103
    %v3443 = vpop.f32.mrb[0].mxu0
    %v3444 = vadd.f32 %v546, %v3443
    %v3445 = vpop.f32.mrb[0].mxu0
    %v3446 = vadd.f32 %v550, %v3445
    %v3447 = vpop.f32.mrb[0].mxu0
    %v3448 = vadd.f32 %v546, %v3447
    %v3449 = vpop.f32.mrb[0].mxu0
    %v3450 = vadd.f32 %v550, %v3449
    %3451 = vmatprep.mubr.bf16.mxu0 %v108
    %3452 = vmatmul.mubr.bf16.gmra.mrb[0].mxu0 %v107
    %v3453 = vpop.f32.mrb[0].mxu0
    %v3454 = vadd.f32 %v546, %v3453
    %v3455 = vpop.f32.mrb[0].mxu0
    %v3456 = vadd.f32 %v550, %v3455
    %v3457 = vpop.f32.mrb[0].mxu0
    %v3458 = vadd.f32 %v546, %v3457
    %v3459 = vpop.f32.mrb[0].mxu0
    %v3460 = vadd.f32 %v550, %v3459
    %3461 = vmatprep.mubr.bf16.mxu0 %v112
    %3462 = vmatmul.mubr.bf16.gmra.mrb[0].mxu0 %v111
    %v3463 = vpop.f32.mrb[0].mxu0
    %v3464 = vadd.f32 %v546, %v3463
    %v3465 = vpop.f32.mrb[0].mxu0
    %v3466 = vadd.f32 %v550, %v3465
    %v3467 = vpop.f32.mrb[0].mxu0
    %v3468 = vadd.f32 %v546, %v3467
    %v3469 = vpop.f32.mrb[0].mxu0
    %v3470 = vadd.f32 %v550, %v3469
    %3471 = vmatprep.mubr.bf16.mxu0 %v116
    %3472 = vmatmul.mubr.bf16.gmra.mrb[0].mxu0 %v115
    %v3473 = vpop.f32.mrb[0].mxu0
    %v3474 = vadd.f32 %v546, %v3473
    %v3475 = vpop.f32.mrb[0].mxu0
    %v3476 = vadd.f32 %v550, %v3475
    %v3477 = vpop.f32.mrb[0].mxu0
    %v3478 = vadd.f32 %v546, %v3477
    %v3479 = vpop.f32.mrb[0].mxu0
    %v3480 = vadd.f32 %v550, %v3479
    %3481 = vmatprep.mubr.bf16.mxu0 %v120
    %3482 = vmatmul.mubr.bf16.gmra.mrb[0].mxu0 %v119
    %v3483 = vpop.f32.mrb[0].mxu0
    %v3484 = vadd.f32 %v546, %v3483
    %v3485 = vpop.f32.mrb[0].mxu0
    %v3486 = vadd.f32 %v550, %v3485
    %v3487 = vpop.f32.mrb[0].mxu0
    %v3488 = vadd.f32 %v546, %v3487
    %v3489 = vpop.f32.mrb[0].mxu0
    %v3490 = vadd.f32 %v550, %v3489
    %3491 = vdwg.mxu0
    %3492 = vmatprep.subr.bf16.mxu0 %v1924
    %3493 = vmatpush1.bf16.msra.mxu0 %v1923
    %3494 = vmatprep.subr.bf16.mxu0 %v1936
    %3495 = vmatpush1.bf16.msra.mxu0 %v1935
    %3496 = vmatprep.subr.bf16.mxu0 %v1948
    %3497 = vmatpush1.bf16.msra.mxu0 %v1947
    %3498 = vmatprep.subr.bf16.mxu0 %v1960
    %3499 = vmatpush1.bf16.msra.mxu0 %v1959
    %3500 = vmatprep.subr.bf16.mxu0 %v1972
    %3501 = vmatpush1.bf16.msra.mxu0 %v1971
    %3502 = vmatprep.subr.bf16.mxu0 %v1984
    %3503 = vmatpush1.bf16.msra.mxu0 %v1983
    %3504 = vmatprep.subr.bf16.mxu0 %v1996
    %3505 = vmatpush1.bf16.msra.mxu0 %v1995
    %3506 = vmatprep.subr.bf16.mxu0 %v2008
    %3507 = vmatpush1.bf16.msra.mxu0 %v2007
    %3508 = vmatprep.subr.bf16.mxu0 %v2020
    %3509 = vmatpush1.bf16.msra.mxu0 %v2019
    %3510 = vmatprep.subr.bf16.mxu0 %v2032
    %3511 = vmatpush1.bf16.msra.mxu0 %v2031
    %3512 = vmatprep.subr.bf16.mxu0 %v2044
    %3513 = vmatpush1.bf16.msra.mxu0 %v2043
    %3514 = vmatprep.subr.bf16.mxu0 %v2056
    %3515 = vmatpush1.bf16.msra.mxu0 %v2055
    %3516 = vmatprep.subr.bf16.mxu0 %v2068
    %3517 = vmatpush1.bf16.msra.mxu0 %v2067
    %3518 = vmatprep.subr.bf16.mxu0 %v2080
    %3519 = vmatpush1.bf16.msra.mxu0 %v2079
    %3520 = vmatprep.subr.bf16.mxu0 %v2092
    %3521 = vmatpush1.bf16.msra.mxu0 %v2091
    %3522 = vmatprep.subr.bf16.mxu0 %v2104
    %3523 = vmatpush1.bf16.msra.mxu0 %v2103
    %3524 = vmatprep.mubr.bf16.mxu0 %v94
    %3525 = vmatmul.mubr.bf16.gmra.mrb[0].mxu0 %v93
    %v3526 = vpop.f32.mrb[0].mxu0
    %v3527 = vadd.f32 %v3414, %v3526
    %v3528 = vpop.f32.mrb[0].mxu0
    %v3529 = vadd.f32 %v3416, %v3528
    %v3530 = vpop.f32.mrb[0].mxu0
    %v3531 = vadd.f32 %v3418, %v3530
    %v3532 = vpop.f32.mrb[0].mxu0
    %v3533 = vadd.f32 %v3420, %v3532
    %3534 = vmatprep.mubr.bf16.mxu0 %v98
    %3535 = vmatmul.mubr.bf16.gmra.mrb[0].mxu0 %v97
    %v3536 = vpop.f32.mrb[0].mxu0
    %v3537 = vadd.f32 %v3424, %v3536
    %v3538 = vpop.f32.mrb[0].mxu0
    %v3539 = vadd.f32 %v3426, %v3538
    %v3540 = vpop.f32.mrb[0].mxu0
    %v3541 = vadd.f32 %v3428, %v3540
    %v3542 = vpop.f32.mrb[0].mxu0
    %v3543 = vadd.f32 %v3430, %v3542
    %3544 = vmatprep.mubr.bf16.mxu0 %v102
    %3545 = vmatmul.mubr.bf16.gmra.mrb[0].mxu0 %v101
    %v3546 = vpop.f32.mrb[0].mxu0
    %v3547 = vadd.f32 %v3434, %v3546
    %v3548 = vpop.f32.mrb[0].mxu0
    %v3549 = vadd.f32 %v3436, %v3548
    %v3550 = vpop.f32.mrb[0].mxu0
    %v3551 = vadd.f32 %v3438, %v3550
    %v3552 = vpop.f32.mrb[0].mxu0
    %v3553 = vadd.f32 %v3440, %v3552
    %3554 = vmatprep.mubr.bf16.mxu0 %v106
    %3555 = vmatmul.mubr.bf16.gmra.mrb[0].mxu0 %v105
    %v3556 = vpop.f32.mrb[0].mxu0
    %v3557 = vadd.f32 %v3444, %v3556
    %v3558 = vpop.f32.mrb[0].mxu0
    %v3559 = vadd.f32 %v3446, %v3558
    %v3560 = vpop.f32.mrb[0].mxu0
    %v3561 = vadd.f32 %v3448, %v3560
    %v3562 = vpop.f32.mrb[0].mxu0
    %v3563 = vadd.f32 %v3450, %v3562
    %3564 = vmatprep.mubr.bf16.mxu0 %v110
    %3565 = vmatmul.mubr.bf16.gmra.mrb[0].mxu0 %v109
    %v3566 = vpop.f32.mrb[0].mxu0
    %v3567 = vadd.f32 %v3454, %v3566
    %v3568 = vpop.f32.mrb[0].mxu0
    %v3569 = vadd.f32 %v3456, %v3568
    %v3570 = vpop.f32.mrb[0].mxu0
    %v3571 = vadd.f32 %v3458, %v3570
    %v3572 = vpop.f32.mrb[0].mxu0
    %v3573 = vadd.f32 %v3460, %v3572
    %3574 = vmatprep.mubr.bf16.mxu0 %v114
    %3575 = vmatmul.mubr.bf16.gmra.mrb[0].mxu0 %v113
    %v3576 = vpop.f32.mrb[0].mxu0
    %v3577 = vadd.f32 %v3464, %v3576
    %v3578 = vpop.f32.mrb[0].mxu0
    %v3579 = vadd.f32 %v3466, %v3578
    %v3580 = vpop.f32.mrb[0].mxu0
    %v3581 = vadd.f32 %v3468, %v3580
    %v3582 = vpop.f32.mrb[0].mxu0
    %v3583 = vadd.f32 %v3470, %v3582
    %3584 = vmatprep.mubr.bf16.mxu0 %v118
    %3585 = vmatmul.mubr.bf16.gmra.mrb[0].mxu0 %v117
    %v3586 = vpop.f32.mrb[0].mxu0
    %v3587 = vadd.f32 %v3474, %v3586
    %v3588 = vpop.f32.mrb[0].mxu0
    %v3589 = vadd.f32 %v3476, %v3588
    %v3590 = vpop.f32.mrb[0].mxu0
    %v3591 = vadd.f32 %v3478, %v3590
    %v3592 = vpop.f32.mrb[0].mxu0
    %v3593 = vadd.f32 %v3480, %v3592
    %3594 = vmatprep.mubr.bf16.mxu0 %v122
    %3595 = vmatmul.mubr.bf16.gmra.mrb[0].mxu0 %v121
    %v3596 = vpop.f32.mrb[0].mxu0
    %v3597 = vadd.f32 %v3484, %v3596
    %v3598 = vpop.f32.mrb[0].mxu0
    %v3599 = vadd.f32 %v3486, %v3598
    %v3600 = vpop.f32.mrb[0].mxu0
    %v3601 = vadd.f32 %v3488, %v3600
    %v3602 = vpop.f32.mrb[0].mxu0
    %v3603 = vadd.f32 %v3490, %v3602
    %3604 = vdwg.mxu0
    %3605 = vmatprep.subr.bf16.mxu0 %v1734
    %3606 = vmatpush1.bf16.msra.mxu0 %v1733
    %3607 = vmatprep.subr.bf16.mxu0 %v1746
    %3608 = vmatpush1.bf16.msra.mxu0 %v1745
    %3609 = vmatprep.subr.bf16.mxu0 %v1758
    %3610 = vmatpush1.bf16.msra.mxu0 %v1757
    %3611 = vmatprep.subr.bf16.mxu0 %v1770
    %3612 = vmatpush1.bf16.msra.mxu0 %v1769
    %3613 = vmatprep.subr.bf16.mxu0 %v1782
    %3614 = vmatpush1.bf16.msra.mxu0 %v1781
    %3615 = vmatprep.subr.bf16.mxu0 %v1794
    %3616 = vmatpush1.bf16.msra.mxu0 %v1793
    %3617 = vmatprep.subr.bf16.mxu0 %v1806
    %3618 = vmatpush1.bf16.msra.mxu0 %v1805
    %3619 = vmatprep.subr.bf16.mxu0 %v1818
    %3620 = vmatpush1.bf16.msra.mxu0 %v1817
    %3621 = vmatprep.subr.bf16.mxu0 %v1830
    %3622 = vmatpush1.bf16.msra.mxu0 %v1829
    %3623 = vmatprep.subr.bf16.mxu0 %v1842
    %3624 = vmatpush1.bf16.msra.mxu0 %v1841
    %3625 = vmatprep.subr.bf16.mxu0 %v1854
    %3626 = vmatpush1.bf16.msra.mxu0 %v1853
    %3627 = vmatprep.subr.bf16.mxu0 %v1866
    %3628 = vmatpush1.bf16.msra.mxu0 %v1865
    %3629 = vmatprep.subr.bf16.mxu0 %v1878
    %3630 = vmatpush1.bf16.msra.mxu0 %v1877
    %3631 = vmatprep.subr.bf16.mxu0 %v1890
    %3632 = vmatpush1.bf16.msra.mxu0 %v1889
    %3633 = vmatprep.subr.bf16.mxu0 %v1902
    %3634 = vmatpush1.bf16.msra.mxu0 %v1901
    %3635 = vmatprep.subr.bf16.mxu0 %v1914
    %3636 = vmatpush1.bf16.msra.mxu0 %v1913
    %3637 = vmatprep.mubr.bf16.mxu0 %v92
    %3638 = vmatmul.mubr.bf16.gmra.mrb[0].mxu0 %v91
    %v3639 = vpop.f32.mrb[0].mxu0
    %v3640 = vadd.f32 %v554, %v3639
    %v3641 = vpop.f32.mrb[0].mxu0
    %v3642 = vadd.f32 %v558, %v3641
    %v3643 = vpop.f32.mrb[0].mxu0
    %v3644 = vadd.f32 %v554, %v3643
    %v3645 = vpop.f32.mrb[0].mxu0
    %v3646 = vadd.f32 %v558, %v3645
    %3647 = vmatprep.mubr.bf16.mxu0 %v96
    %3648 = vmatmul.mubr.bf16.gmra.mrb[0].mxu0 %v95
    %v3649 = vpop.f32.mrb[0].mxu0
    %v3650 = vadd.f32 %v554, %v3649
    %v3651 = vpop.f32.mrb[0].mxu0
    %v3652 = vadd.f32 %v558, %v3651
    %v3653 = vpop.f32.mrb[0].mxu0
    %v3654 = vadd.f32 %v554, %v3653
    %v3655 = vpop.f32.mrb[0].mxu0
    %v3656 = vadd.f32 %v558, %v3655
    %3657 = vmatprep.mubr.bf16.mxu0 %v100
    %3658 = vmatmul.mubr.bf16.gmra.mrb[0].mxu0 %v99
    %v3659 = vpop.f32.mrb[0].mxu0
    %v3660 = vadd.f32 %v554, %v3659
    %v3661 = vpop.f32.mrb[0].mxu0
    %v3662 = vadd.f32 %v558, %v3661
    %v3663 = vpop.f32.mrb[0].mxu0
    %v3664 = vadd.f32 %v554, %v3663
    %v3665 = vpop.f32.mrb[0].mxu0
    %v3666 = vadd.f32 %v558, %v3665
    %3667 = vmatprep.mubr.bf16.mxu0 %v104
    %3668 = vmatmul.mubr.bf16.gmra.mrb[0].mxu0 %v103
    %v3669 = vpop.f32.mrb[0].mxu0
    %v3670 = vadd.f32 %v554, %v3669
    %v3671 = vpop.f32.mrb[0].mxu0
    %v3672 = vadd.f32 %v558, %v3671
    %v3673 = vpop.f32.mrb[0].mxu0
    %v3674 = vadd.f32 %v554, %v3673
    %v3675 = vpop.f32.mrb[0].mxu0
    %v3676 = vadd.f32 %v558, %v3675
    %3677 = vmatprep.mubr.bf16.mxu0 %v108
    %3678 = vmatmul.mubr.bf16.gmra.mrb[0].mxu0 %v107
    %v3679 = vpop.f32.mrb[0].mxu0
    %v3680 = vadd.f32 %v554, %v3679
    %v3681 = vpop.f32.mrb[0].mxu0
    %v3682 = vadd.f32 %v558, %v3681
    %v3683 = vpop.f32.mrb[0].mxu0
    %v3684 = vadd.f32 %v554, %v3683
    %v3685 = vpop.f32.mrb[0].mxu0
    %v3686 = vadd.f32 %v558, %v3685
    %3687 = vmatprep.mubr.bf16.mxu0 %v112
    %3688 = vmatmul.mubr.bf16.gmra.mrb[0].mxu0 %v111
    %v3689 = vpop.f32.mrb[0].mxu0
    %v3690 = vadd.f32 %v554, %v3689
    %v3691 = vpop.f32.mrb[0].mxu0
    %v3692 = vadd.f32 %v558, %v3691
    %v3693 = vpop.f32.mrb[0].mxu0
    %v3694 = vadd.f32 %v554, %v3693
    %v3695 = vpop.f32.mrb[0].mxu0
    %v3696 = vadd.f32 %v558, %v3695
    %3697 = vmatprep.mubr.bf16.mxu0 %v116
    %3698 = vmatmul.mubr.bf16.gmra.mrb[0].mxu0 %v115
    %v3699 = vpop.f32.mrb[0].mxu0
    %v3700 = vadd.f32 %v554, %v3699
    %v3701 = vpop.f32.mrb[0].mxu0
    %v3702 = vadd.f32 %v558, %v3701
    %v3703 = vpop.f32.mrb[0].mxu0
    %v3704 = vadd.f32 %v554, %v3703
    %v3705 = vpop.f32.mrb[0].mxu0
    %v3706 = vadd.f32 %v558, %v3705
    %3707 = vmatprep.mubr.bf16.mxu0 %v120
    %3708 = vmatmul.mubr.bf16.gmra.mrb[0].mxu0 %v119
    %v3709 = vpop.f32.mrb[0].mxu0
    %v3710 = vadd.f32 %v554, %v3709
    %v3711 = vpop.f32.mrb[0].mxu0
    %v3712 = vadd.f32 %v558, %v3711
    %v3713 = vpop.f32.mrb[0].mxu0
    %v3714 = vadd.f32 %v554, %v3713
    %v3715 = vpop.f32.mrb[0].mxu0
    %v3716 = vadd.f32 %v558, %v3715
    %3717 = vdwg.mxu0
    %3718 = vmatprep.subr.bf16.mxu0 %v1926
    %3719 = vmatpush1.bf16.msra.mxu0 %v1925
    %3720 = vmatprep.subr.bf16.mxu0 %v1938
    %3721 = vmatpush1.bf16.msra.mxu0 %v1937
    %3722 = vmatprep.subr.bf16.mxu0 %v1950
    %3723 = vmatpush1.bf16.msra.mxu0 %v1949
    %3724 = vmatprep.subr.bf16.mxu0 %v1962
    %3725 = vmatpush1.bf16.msra.mxu0 %v1961
    %3726 = vmatprep.subr.bf16.mxu0 %v1974
    %3727 = vmatpush1.bf16.msra.mxu0 %v1973
    %3728 = vmatprep.subr.bf16.mxu0 %v1986
    %3729 = vmatpush1.bf16.msra.mxu0 %v1985
    %3730 = vmatprep.subr.bf16.mxu0 %v1998
    %3731 = vmatpush1.bf16.msra.mxu0 %v1997
    %3732 = vmatprep.subr.bf16.mxu0 %v2010
    %3733 = vmatpush1.bf16.msra.mxu0 %v2009
    %3734 = vmatprep.subr.bf16.mxu0 %v2022
    %3735 = vmatpush1.bf16.msra.mxu0 %v2021
    %3736 = vmatprep.subr.bf16.mxu0 %v2034
    %3737 = vmatpush1.bf16.msra.mxu0 %v2033
    %3738 = vmatprep.subr.bf16.mxu0 %v2046
    %3739 = vmatpush1.bf16.msra.mxu0 %v2045
    %3740 = vmatprep.subr.bf16.mxu0 %v2058
    %3741 = vmatpush1.bf16.msra.mxu0 %v2057
    %3742 = vmatprep.subr.bf16.mxu0 %v2070
    %3743 = vmatpush1.bf16.msra.mxu0 %v2069
    %3744 = vmatprep.subr.bf16.mxu0 %v2082
    %3745 = vmatpush1.bf16.msra.mxu0 %v2081
    %3746 = vmatprep.subr.bf16.mxu0 %v2094
    %3747 = vmatpush1.bf16.msra.mxu0 %v2093
    %3748 = vmatprep.subr.bf16.mxu0 %v2106
    %3749 = vmatpush1.bf16.msra.mxu0 %v2105
    %3750 = vmatprep.mubr.bf16.mxu0 %v94
    %3751 = vmatmul.mubr.bf16.gmra.mrb[0].mxu0 %v93
    %v3752 = vpop.f32.mrb[0].mxu0
    %v3753 = vadd.f32 %v3640, %v3752
    %v3754 = vpop.f32.mrb[0].mxu0
    %v3755 = vadd.f32 %v3642, %v3754
    %v3756 = vpop.f32.mrb[0].mxu0
    %v3757 = vadd.f32 %v3644, %v3756
    %v3758 = vpop.f32.mrb[0].mxu0
    %v3759 = vadd.f32 %v3646, %v3758
    %3760 = vmatprep.mubr.bf16.mxu0 %v98
    %3761 = vmatmul.mubr.bf16.gmra.mrb[0].mxu0 %v97
    %v3762 = vpop.f32.mrb[0].mxu0
    %v3763 = vadd.f32 %v3650, %v3762
    %v3764 = vpop.f32.mrb[0].mxu0
    %v3765 = vadd.f32 %v3652, %v3764
    %v3766 = vpop.f32.mrb[0].mxu0
    %v3767 = vadd.f32 %v3654, %v3766
    %v3768 = vpop.f32.mrb[0].mxu0
    %v3769 = vadd.f32 %v3656, %v3768
    %3770 = vmatprep.mubr.bf16.mxu0 %v102
    %3771 = vmatmul.mubr.bf16.gmra.mrb[0].mxu0 %v101
    %v3772 = vpop.f32.mrb[0].mxu0
    %v3773 = vadd.f32 %v3660, %v3772
    %v3774 = vpop.f32.mrb[0].mxu0
    %v3775 = vadd.f32 %v3662, %v3774
    %v3776 = vpop.f32.mrb[0].mxu0
    %v3777 = vadd.f32 %v3664, %v3776
    %v3778 = vpop.f32.mrb[0].mxu0
    %v3779 = vadd.f32 %v3666, %v3778
    %3780 = vmatprep.mubr.bf16.mxu0 %v106
    %3781 = vmatmul.mubr.bf16.gmra.mrb[0].mxu0 %v105
    %v3782 = vpop.f32.mrb[0].mxu0
    %v3783 = vadd.f32 %v3670, %v3782
    %v3784 = vpop.f32.mrb[0].mxu0
    %v3785 = vadd.f32 %v3672, %v3784
    %v3786 = vpop.f32.mrb[0].mxu0
    %v3787 = vadd.f32 %v3674, %v3786
    %v3788 = vpop.f32.mrb[0].mxu0
    %v3789 = vadd.f32 %v3676, %v3788
    %3790 = vmatprep.mubr.bf16.mxu0 %v110
    %3791 = vmatmul.mubr.bf16.gmra.mrb[0].mxu0 %v109
    %v3792 = vpop.f32.mrb[0].mxu0
    %v3793 = vadd.f32 %v3680, %v3792
    %v3794 = vpop.f32.mrb[0].mxu0
    %v3795 = vadd.f32 %v3682, %v3794
    %v3796 = vpop.f32.mrb[0].mxu0
    %v3797 = vadd.f32 %v3684, %v3796
    %v3798 = vpop.f32.mrb[0].mxu0
    %v3799 = vadd.f32 %v3686, %v3798
    %3800 = vmatprep.mubr.bf16.mxu0 %v114
    %3801 = vmatmul.mubr.bf16.gmra.mrb[0].mxu0 %v113
    %v3802 = vpop.f32.mrb[0].mxu0
    %v3803 = vadd.f32 %v3690, %v3802
    %v3804 = vpop.f32.mrb[0].mxu0
    %v3805 = vadd.f32 %v3692, %v3804
    %v3806 = vpop.f32.mrb[0].mxu0
    %v3807 = vadd.f32 %v3694, %v3806
    %v3808 = vpop.f32.mrb[0].mxu0
    %v3809 = vadd.f32 %v3696, %v3808
    %3810 = vmatprep.mubr.bf16.mxu0 %v118
    %3811 = vmatmul.mubr.bf16.gmra.mrb[0].mxu0 %v117
    %v3812 = vpop.f32.mrb[0].mxu0
    %v3813 = vadd.f32 %v3700, %v3812
    %v3814 = vpop.f32.mrb[0].mxu0
    %v3815 = vadd.f32 %v3702, %v3814
    %v3816 = vpop.f32.mrb[0].mxu0
    %v3817 = vadd.f32 %v3704, %v3816
    %v3818 = vpop.f32.mrb[0].mxu0
    %v3819 = vadd.f32 %v3706, %v3818
    %3820 = vmatprep.mubr.bf16.mxu0 %v122
    %3821 = vmatmul.mubr.bf16.gmra.mrb[0].mxu0 %v121
    %v3822 = vpop.f32.mrb[0].mxu0
    %v3823 = vadd.f32 %v3710, %v3822
    %v3824 = vpop.f32.mrb[0].mxu0
    %v3825 = vadd.f32 %v3712, %v3824
    %v3826 = vpop.f32.mrb[0].mxu0
    %v3827 = vadd.f32 %v3714, %v3826
    %v3828 = vpop.f32.mrb[0].mxu0
    %v3829 = vadd.f32 %v3716, %v3828
    %3830 = vdwg.mxu0
    %v3847 = vrot.slane %v2857, 7
    %v3848 = vrot.slane %v2861, 7
    %v3849 = vrot.slane %v2867, 7
    %v3850 = vrot.slane %v2871, 7
    %v3851 = vrot.slane %v2877, 7
    %v3852 = vrot.slane %v2881, 7
    %v3853 = vrot.slane %v2887, 7
    %v3854 = vrot.slane %v2891, 7
    %v3855 = vrot.slane %v2897, 7
    %v3856 = vrot.slane %v2901, 7
    %v3857 = vrot.slane %v2907, 7
    %v3858 = vrot.slane %v2911, 7
    %v3859 = vrot.slane %v2917, 7
    %v3860 = vrot.slane %v2921, 7
    %v3861 = vrot.slane %v2927, 7
    %v3862 = vrot.slane %v2931, 7
    %vm3879 = vcmask 1040384
    %v3880 = vsel %vm3879, %v2857, %v3847
    %v3881 = vsel %vm3879, %v2861, %v3848
    %v3882 = vsel %vm3879, %v2867, %v3849
    %v3883 = vsel %vm3879, %v2871, %v3850
    %v3884 = vsel %vm3879, %v2877, %v3851
    %v3885 = vsel %vm3879, %v2881, %v3852
    %v3886 = vsel %vm3879, %v2887, %v3853
    %v3887 = vsel %vm3879, %v2891, %v3854
    %v3888 = vsel %vm3879, %v2897, %v3855
    %v3889 = vsel %vm3879, %v2901, %v3856
    %v3890 = vsel %vm3879, %v2907, %v3857
    %v3891 = vsel %vm3879, %v2911, %v3858
    %v3892 = vsel %vm3879, %v2917, %v3859
    %v3893 = vsel %vm3879, %v2921, %v3860
    %v3894 = vsel %vm3879, %v2927, %v3861
    %v3895 = vsel %vm3879, %v2931, %v3862
    %v3912 = vrot.slane %v2859, 1
    %v3913 = vrot.slane %v2863, 1
    %v3914 = vrot.slane %v2869, 1
    %v3915 = vrot.slane %v2873, 1
    %v3916 = vrot.slane %v2879, 1
    %v3917 = vrot.slane %v2883, 1
    %v3918 = vrot.slane %v2889, 1
    %v3919 = vrot.slane %v2893, 1
    %v3920 = vrot.slane %v2899, 1
    %v3921 = vrot.slane %v2903, 1
    %v3922 = vrot.slane %v2909, 1
    %v3923 = vrot.slane %v2913, 1
    %v3924 = vrot.slane %v2919, 1
    %v3925 = vrot.slane %v2923, 1
    %v3926 = vrot.slane %v2929, 1
    %v3927 = vrot.slane %v2933, 1
    %vm3944 = vcmask 1046528
    %v3945 = vsel %vm3944, %v3912, %v2859
    %v3946 = vsel %vm3944, %v3913, %v2863
    %v3947 = vsel %vm3944, %v3914, %v2869
    %v3948 = vsel %vm3944, %v3915, %v2873
    %v3949 = vsel %vm3944, %v3916, %v2879
    %v3950 = vsel %vm3944, %v3917, %v2883
    %v3951 = vsel %vm3944, %v3918, %v2889
    %v3952 = vsel %vm3944, %v3919, %v2893
    %v3953 = vsel %vm3944, %v3920, %v2899
    %v3954 = vsel %vm3944, %v3921, %v2903
    %v3955 = vsel %vm3944, %v3922, %v2909
    %v3956 = vsel %vm3944, %v3923, %v2913
    %v3957 = vsel %vm3944, %v3924, %v2919
    %v3958 = vsel %vm3944, %v3925, %v2923
    %v3959 = vsel %vm3944, %v3926, %v2929
    %v3960 = vsel %vm3944, %v3927, %v2933
    %v3977 = vrot.slane %v3083, 7
    %v3978 = vrot.slane %v3087, 7
    %v3979 = vrot.slane %v3093, 7
    %v3980 = vrot.slane %v3097, 7
    %v3981 = vrot.slane %v3103, 7
    %v3982 = vrot.slane %v3107, 7
    %v3983 = vrot.slane %v3113, 7
    %v3984 = vrot.slane %v3117, 7
    %v3985 = vrot.slane %v3123, 7
    %v3986 = vrot.slane %v3127, 7
    %v3987 = vrot.slane %v3133, 7
    %v3988 = vrot.slane %v3137, 7
    %v3989 = vrot.slane %v3143, 7
    %v3990 = vrot.slane %v3147, 7
    %v3991 = vrot.slane %v3153, 7
    %v3992 = vrot.slane %v3157, 7
    %v4009 = vsel %vm3879, %v3083, %v3977
    %v4010 = vsel %vm3879, %v3087, %v3978
    %v4011 = vsel %vm3879, %v3093, %v3979
    %v4012 = vsel %vm3879, %v3097, %v3980
    %v4013 = vsel %vm3879, %v3103, %v3981
    %v4014 = vsel %vm3879, %v3107, %v3982
    %v4015 = vsel %vm3879, %v3113, %v3983
    %v4016 = vsel %vm3879, %v3117, %v3984
    %v4017 = vsel %vm3879, %v3123, %v3985
    %v4018 = vsel %vm3879, %v3127, %v3986
    %v4019 = vsel %vm3879, %v3133, %v3987
    %v4020 = vsel %vm3879, %v3137, %v3988
    %v4021 = vsel %vm3879, %v3143, %v3989
    %v4022 = vsel %vm3879, %v3147, %v3990
    %v4023 = vsel %vm3879, %v3153, %v3991
    %v4024 = vsel %vm3879, %v3157, %v3992
    %v4041 = vrot.slane %v3085, 1
    %v4042 = vrot.slane %v3089, 1
    %v4043 = vrot.slane %v3095, 1
    %v4044 = vrot.slane %v3099, 1
    %v4045 = vrot.slane %v3105, 1
    %v4046 = vrot.slane %v3109, 1
    %v4047 = vrot.slane %v3115, 1
    %v4048 = vrot.slane %v3119, 1
    %v4049 = vrot.slane %v3125, 1
    %v4050 = vrot.slane %v3129, 1
    %v4051 = vrot.slane %v3135, 1
    %v4052 = vrot.slane %v3139, 1
    %v4053 = vrot.slane %v3145, 1
    %v4054 = vrot.slane %v3149, 1
    %v4055 = vrot.slane %v3155, 1
    %v4056 = vrot.slane %v3159, 1
    %v4073 = vsel %vm3944, %v4041, %v3085
    %v4074 = vsel %vm3944, %v4042, %v3089
    %v4075 = vsel %vm3944, %v4043, %v3095
    %v4076 = vsel %vm3944, %v4044, %v3099
    %v4077 = vsel %vm3944, %v4045, %v3105
    %v4078 = vsel %vm3944, %v4046, %v3109
    %v4079 = vsel %vm3944, %v4047, %v3115
    %v4080 = vsel %vm3944, %v4048, %v3119
    %v4081 = vsel %vm3944, %v4049, %v3125
    %v4082 = vsel %vm3944, %v4050, %v3129
    %v4083 = vsel %vm3944, %v4051, %v3135
    %v4084 = vsel %vm3944, %v4052, %v3139
    %v4085 = vsel %vm3944, %v4053, %v3145
    %v4086 = vsel %vm3944, %v4054, %v3149
    %v4087 = vsel %vm3944, %v4055, %v3155
    %v4088 = vsel %vm3944, %v4056, %v3159
    %v4089 = vadd.f32 %v2635, %v4009
    %v4090 = vadd.f32 %v2640, %v4073
    %v4091 = vadd.f32 %v3880, %v3305
    %v4092 = vadd.f32 %v3945, %v3310
    %v4093 = vadd.f32 %v2635, %v4010
    %v4094 = vadd.f32 %v2646, %v4074
    %v4095 = vadd.f32 %v3881, %v3305
    %v4096 = vadd.f32 %v3946, %v3316
    %v4097 = vadd.f32 %v2638, %v4011
    %v4098 = vadd.f32 %v2650, %v4075
    %v4099 = vadd.f32 %v3882, %v3308
    %v4100 = vadd.f32 %v3947, %v3320
    %v4101 = vadd.f32 %v2644, %v4012
    %v4102 = vadd.f32 %v2656, %v4076
    %v4103 = vadd.f32 %v3883, %v3314
    %v4104 = vadd.f32 %v3948, %v3326
    %v4105 = vadd.f32 %v2648, %v4013
    %v4106 = vadd.f32 %v2660, %v4077
    %v4107 = vadd.f32 %v3884, %v3318
    %v4108 = vadd.f32 %v3949, %v3330
    %v4109 = vadd.f32 %v2654, %v4014
    %v4110 = vadd.f32 %v2666, %v4078
    %v4111 = vadd.f32 %v3885, %v3324
    %v4112 = vadd.f32 %v3950, %v3336
    %v4113 = vadd.f32 %v2658, %v4015
    %v4114 = vadd.f32 %v2669, %v4079
    %v4115 = vadd.f32 %v3886, %v3328
    %v4116 = vadd.f32 %v3951, %v3339
    %v4117 = vadd.f32 %v2664, %v4016
    %v4118 = vadd.f32 %v2669, %v4080
    %v4119 = vadd.f32 %v3887, %v3334
    %v4120 = vadd.f32 %v3952, %v3339
    %v4121 = vadd.f32 %v2673, %v4017
    %v4122 = vadd.f32 %v2678, %v4081
    %v4123 = vadd.f32 %v3888, %v3343
    %v4124 = vadd.f32 %v3953, %v3348
    %v4125 = vadd.f32 %v2673, %v4018
    %v4126 = vadd.f32 %v2684, %v4082
    %v4127 = vadd.f32 %v3889, %v3343
    %v4128 = vadd.f32 %v3954, %v3354
    %v4129 = vadd.f32 %v2676, %v4019
    %v4130 = vadd.f32 %v2688, %v4083
    %v4131 = vadd.f32 %v3890, %v3346
    %v4132 = vadd.f32 %v3955, %v3358
    %v4133 = vadd.f32 %v2682, %v4020
    %v4134 = vadd.f32 %v2694, %v4084
    %v4135 = vadd.f32 %v3891, %v3352
    %v4136 = vadd.f32 %v3956, %v3364
    %v4137 = vadd.f32 %v2686, %v4021
    %v4138 = vadd.f32 %v2698, %v4085
    %v4139 = vadd.f32 %v3892, %v3356
    %v4140 = vadd.f32 %v3957, %v3368
    %v4141 = vadd.f32 %v2692, %v4022
    %v4142 = vadd.f32 %v2704, %v4086
    %v4143 = vadd.f32 %v3893, %v3362
    %v4144 = vadd.f32 %v3958, %v3374
    %v4145 = vadd.f32 %v2696, %v4023
    %v4146 = vadd.f32 %v2707, %v4087
    %v4147 = vadd.f32 %v3894, %v3366
    %v4148 = vadd.f32 %v3959, %v3377
    %v4149 = vadd.f32 %v2702, %v4024
    %v4150 = vadd.f32 %v2707, %v4088
    %v4151 = vadd.f32 %v3895, %v3372
    %v4152 = vadd.f32 %v3960, %v3377
    %v4153 = vadd.f32 %v4089, %v3527
    %v4154 = vadd.f32 %v4090, %v3529
    %v4155 = vadd.f32 %v4091, %v3753
    %v4156 = vadd.f32 %v4092, %v3755
    %v4157 = vadd.f32 %v4093, %v3531
    %v4158 = vadd.f32 %v4094, %v3533
    %v4159 = vadd.f32 %v4095, %v3757
    %v4160 = vadd.f32 %v4096, %v3759
    %v4161 = vadd.f32 %v4097, %v3537
    %v4162 = vadd.f32 %v4098, %v3539
    %v4163 = vadd.f32 %v4099, %v3763
    %v4164 = vadd.f32 %v4100, %v3765
    %v4165 = vadd.f32 %v4101, %v3541
    %v4166 = vadd.f32 %v4102, %v3543
    %v4167 = vadd.f32 %v4103, %v3767
    %v4168 = vadd.f32 %v4104, %v3769
    %v4169 = vadd.f32 %v4105, %v3547
    %v4170 = vadd.f32 %v4106, %v3549
    %v4171 = vadd.f32 %v4107, %v3773
    %v4172 = vadd.f32 %v4108, %v3775
    %v4173 = vadd.f32 %v4109, %v3551
    %v4174 = vadd.f32 %v4110, %v3553
    %v4175 = vadd.f32 %v4111, %v3777
    %v4176 = vadd.f32 %v4112, %v3779
    %v4177 = vadd.f32 %v4113, %v3557
    %v4178 = vadd.f32 %v4114, %v3559
    %v4179 = vadd.f32 %v4115, %v3783
    %v4180 = vadd.f32 %v4116, %v3785
    %v4181 = vadd.f32 %v4117, %v3561
    %v4182 = vadd.f32 %v4118, %v3563
    %v4183 = vadd.f32 %v4119, %v3787
    %v4184 = vadd.f32 %v4120, %v3789
    %v4185 = vadd.f32 %v4121, %v3567
    %v4186 = vadd.f32 %v4122, %v3569
    %v4187 = vadd.f32 %v4123, %v3793
    %v4188 = vadd.f32 %v4124, %v3795
    %v4189 = vadd.f32 %v4125, %v3571
    %v4190 = vadd.f32 %v4126, %v3573
    %v4191 = vadd.f32 %v4127, %v3797
    %v4192 = vadd.f32 %v4128, %v3799
    %v4193 = vadd.f32 %v4129, %v3577
    %v4194 = vadd.f32 %v4130, %v3579
    %v4195 = vadd.f32 %v4131, %v3803
    %v4196 = vadd.f32 %v4132, %v3805
    %v4197 = vadd.f32 %v4133, %v3581
    %v4198 = vadd.f32 %v4134, %v3583
    %v4199 = vadd.f32 %v4135, %v3807
    %v4200 = vadd.f32 %v4136, %v3809
    %v4201 = vadd.f32 %v4137, %v3587
    %v4202 = vadd.f32 %v4138, %v3589
    %v4203 = vadd.f32 %v4139, %v3813
    %v4204 = vadd.f32 %v4140, %v3815
    %v4205 = vadd.f32 %v4141, %v3591
    %v4206 = vadd.f32 %v4142, %v3593
    %v4207 = vadd.f32 %v4143, %v3817
    %v4208 = vadd.f32 %v4144, %v3819
    %v4209 = vadd.f32 %v4145, %v3597
    %v4210 = vadd.f32 %v4146, %v3599
    %v4211 = vadd.f32 %v4147, %v3823
    %v4212 = vadd.f32 %v4148, %v3825
    %v4213 = vadd.f32 %v4149, %v3601
    %v4214 = vadd.f32 %v4150, %v3603
    %v4215 = vadd.f32 %v4151, %v3827
    %v4216 = vadd.f32 %v4152, %v3829
    %v4217 = vadd.f32 %v4153, %v4157
    %v4218 = vadd.f32 %v4217, %v4161
    %v4219 = vadd.f32 %v4218, %v4165
    %v4220 = vadd.f32 %v4219, %v4169
    %v4221 = vadd.f32 %v4220, %v4173
    %v4222 = vadd.f32 %v4221, %v4177
    %v4223 = vadd.f32 %v4222, %v4181
    %v4224 = vrot.slane %v4223, 4
    %v4225 = vadd.f32 %v4223, %v4224
    %v4226 = vrot.slane %v4225, 2
    %v4227 = vadd.f32 %v4225, %v4226
    %v4228 = vrot.slane %v4227, 1
    %v4229 = vadd.f32 %v4227, %v4228
    %v4230 = vadd.f32 %v4154, %v4158
    %v4231 = vadd.f32 %v4230, %v4162
    %v4232 = vadd.f32 %v4231, %v4166
    %v4233 = vadd.f32 %v4232, %v4170
    %v4234 = vadd.f32 %v4233, %v4174
    %v4235 = vadd.f32 %v4234, %v4178
    %v4236 = vadd.f32 %v4235, %v4182
    %v4237 = vrot.slane %v4236, 4
    %v4238 = vadd.f32 %v4236, %v4237
    %v4239 = vrot.slane %v4238, 2
    %v4240 = vadd.f32 %v4238, %v4239
    %v4241 = vrot.slane %v4240, 1
    %v4242 = vadd.f32 %v4240, %v4241
    %v4243 = vadd.f32 %v4155, %v4159
    %v4244 = vadd.f32 %v4243, %v4163
    %v4245 = vadd.f32 %v4244, %v4167
    %v4246 = vadd.f32 %v4245, %v4171
    %v4247 = vadd.f32 %v4246, %v4175
    %v4248 = vadd.f32 %v4247, %v4179
    %v4249 = vadd.f32 %v4248, %v4183
    %v4250 = vrot.slane %v4249, 4
    %v4251 = vadd.f32 %v4249, %v4250
    %v4252 = vrot.slane %v4251, 2
    %v4253 = vadd.f32 %v4251, %v4252
    %v4254 = vrot.slane %v4253, 1
    %v4255 = vadd.f32 %v4253, %v4254
    %v4256 = vadd.f32 %v4156, %v4160
    %v4257 = vadd.f32 %v4256, %v4164
    %v4258 = vadd.f32 %v4257, %v4168
    %v4259 = vadd.f32 %v4258, %v4172
    %v4260 = vadd.f32 %v4259, %v4176
    %v4261 = vadd.f32 %v4260, %v4180
    %v4262 = vadd.f32 %v4261, %v4184
    %v4263 = vrot.slane %v4262, 4
    %v4264 = vadd.f32 %v4262, %v4263
    %v4265 = vrot.slane %v4264, 2
    %v4266 = vadd.f32 %v4264, %v4265
    %v4267 = vrot.slane %v4266, 1
    %v4268 = vadd.f32 %v4266, %v4267
    %v4269 = vadd.f32 %v4185, %v4189
    %v4270 = vadd.f32 %v4269, %v4193
    %v4271 = vadd.f32 %v4270, %v4197
    %v4272 = vadd.f32 %v4271, %v4201
    %v4273 = vadd.f32 %v4272, %v4205
    %v4274 = vadd.f32 %v4273, %v4209
    %v4275 = vadd.f32 %v4274, %v4213
    %v4276 = vrot.slane %v4275, 4
    %v4277 = vadd.f32 %v4275, %v4276
    %v4278 = vrot.slane %v4277, 2
    %v4279 = vadd.f32 %v4277, %v4278
    %v4280 = vrot.slane %v4279, 1
    %v4281 = vadd.f32 %v4279, %v4280
    %v4282 = vadd.f32 %v4186, %v4190
    %v4283 = vadd.f32 %v4282, %v4194
    %v4284 = vadd.f32 %v4283, %v4198
    %v4285 = vadd.f32 %v4284, %v4202
    %v4286 = vadd.f32 %v4285, %v4206
    %v4287 = vadd.f32 %v4286, %v4210
    %v4288 = vadd.f32 %v4287, %v4214
    %v4289 = vrot.slane %v4288, 4
    %v4290 = vadd.f32 %v4288, %v4289
    %v4291 = vrot.slane %v4290, 2
    %v4292 = vadd.f32 %v4290, %v4291
    %v4293 = vrot.slane %v4292, 1
    %v4294 = vadd.f32 %v4292, %v4293
    %v4295 = vadd.f32 %v4187, %v4191
    %v4296 = vadd.f32 %v4295, %v4195
    %v4297 = vadd.f32 %v4296, %v4199
    %v4298 = vadd.f32 %v4297, %v4203
    %v4299 = vadd.f32 %v4298, %v4207
    %v4300 = vadd.f32 %v4299, %v4211
    %v4301 = vadd.f32 %v4300, %v4215
    %v4302 = vrot.slane %v4301, 4
    %v4303 = vadd.f32 %v4301, %v4302
    %v4304 = vrot.slane %v4303, 2
    %v4305 = vadd.f32 %v4303, %v4304
    %v4306 = vrot.slane %v4305, 1
    %v4307 = vadd.f32 %v4305, %v4306
    %v4308 = vadd.f32 %v4188, %v4192
    %v4309 = vadd.f32 %v4308, %v4196
    %v4310 = vadd.f32 %v4309, %v4200
    %v4311 = vadd.f32 %v4310, %v4204
    %v4312 = vadd.f32 %v4311, %v4208
    %v4313 = vadd.f32 %v4312, %v4212
    %v4314 = vadd.f32 %v4313, %v4216
    %v4315 = vrot.slane %v4314, 4
    %v4316 = vadd.f32 %v4314, %v4315
    %v4317 = vrot.slane %v4316, 2
    %v4318 = vadd.f32 %v4316, %v4317
    %v4319 = vrot.slane %v4318, 1
    %v4320 = vadd.f32 %v4318, %v4319
    %v4321 = vpack.c.bf16 %v4229, %v4229
    %v4322 = vpack.c.bf16 %v4242, %v4242
    %v4323 = vpack.c.bf16 %v4255, %v4255
    %v4324 = vpack.c.bf16 %v4268, %v4268
    %v4325 = vpack.c.bf16 %v4281, %v4281
    %v4326 = vpack.c.bf16 %v4294, %v4294
    %v4327 = vpack.c.bf16 %v4307, %v4307
    %v4328 = vpack.c.bf16 %v4320, %v4320
    %v4329 = vld [vmem:[%s3] sm:$0xff]
    %v4330 = vld [vmem:[%s3 + $0x8] sm:$0xff]
    %v4331 = vld [vmem:[%s3 + $0x10] sm:$0xff]
    %v4332 = vld [vmem:[%s3 + $0x18] sm:$0xff]
    %v4333 = vld [vmem:[%s3 + $0x20] sm:$0xff]
    %v4334 = vld [vmem:[%s3 + $0x28] sm:$0xff]
    %v4335 = vld [vmem:[%s3 + $0x30] sm:$0xff]
    %v4336 = vld [vmem:[%s3 + $0x38] sm:$0xff]
    %v4337 = vld [vmem:[%s3 + $0x40] sm:$0xff]
    %v4338 = vld [vmem:[%s3 + $0x48] sm:$0xff]
    %v4339 = vld [vmem:[%s3 + $0x50] sm:$0xff]
    %v4340 = vld [vmem:[%s3 + $0x58] sm:$0xff]
    %v4341 = vld [vmem:[%s3 + $0x60] sm:$0xff]
    %v4342 = vld [vmem:[%s3 + $0x68] sm:$0xff]
    %v4343 = vld [vmem:[%s3 + $0x70] sm:$0xff]
    %v4344 = vld [vmem:[%s3 + $0x78] sm:$0xff]
    %v4345 = vld [vmem:[%s3 + $0x80] sm:$0xff]
    %v4346 = vld [vmem:[%s3 + $0x88] sm:$0xff]
    %v4347 = vld [vmem:[%s3 + $0x90] sm:$0xff]
    %v4348 = vld [vmem:[%s3 + $0x98] sm:$0xff]
    %v4349 = vld [vmem:[%s3 + $0xa0] sm:$0xff]
    %v4350 = vld [vmem:[%s3 + $0xa8] sm:$0xff]
    %v4351 = vld [vmem:[%s3 + $0xb0] sm:$0xff]
    %v4352 = vld [vmem:[%s3 + $0xb8] sm:$0xff]
    %v4353 = vld [vmem:[%s3 + $0xc0] sm:$0xff]
    %v4354 = vld [vmem:[%s3 + $0xc8] sm:$0xff]
    %v4355 = vld [vmem:[%s3 + $0xd0] sm:$0xff]
    %v4356 = vld [vmem:[%s3 + $0xd8] sm:$0xff]
    %v4357 = vld [vmem:[%s3 + $0xe0] sm:$0xff]
    %v4358 = vld [vmem:[%s3 + $0xe8] sm:$0xff]
    %v4359 = vld [vmem:[%s3 + $0xf0] sm:$0xff]
    %v4360 = vld [vmem:[%s3 + $0xf8] sm:$0xff]
    %v4361 = vld [vmem:[%s3 + $0x100] sm:$0xff]
    %v4362 = vld [vmem:[%s3 + $0x108] sm:$0xff]
    %v4363 = vld [vmem:[%s3 + $0x110] sm:$0xff]
    %v4364 = vld [vmem:[%s3 + $0x118] sm:$0xff]
    %v4365 = vld [vmem:[%s3 + $0x120] sm:$0xff]
    %v4366 = vld [vmem:[%s3 + $0x128] sm:$0xff]
    %v4367 = vld [vmem:[%s3 + $0x130] sm:$0xff]
    %v4368 = vld [vmem:[%s3 + $0x138] sm:$0xff]
    %v4369 = vld [vmem:[%s3 + $0x140] sm:$0xff]
    %v4370 = vld [vmem:[%s3 + $0x148] sm:$0xff]
    %v4371 = vld [vmem:[%s3 + $0x150] sm:$0xff]
    %v4372 = vld [vmem:[%s3 + $0x158] sm:$0xff]
    %v4373 = vld [vmem:[%s3 + $0x160] sm:$0xff]
    %v4374 = vld [vmem:[%s3 + $0x168] sm:$0xff]
    %v4375 = vld [vmem:[%s3 + $0x170] sm:$0xff]
    %v4376 = vld [vmem:[%s3 + $0x178] sm:$0xff]
    %v4377 = vld [vmem:[%s3 + $0x180] sm:$0xff]
    %v4378 = vld [vmem:[%s3 + $0x188] sm:$0xff]
    %v4379 = vld [vmem:[%s3 + $0x190] sm:$0xff]
    %v4380 = vld [vmem:[%s3 + $0x198] sm:$0xff]
    %v4381 = vld [vmem:[%s3 + $0x1a0] sm:$0xff]
    %v4382 = vld [vmem:[%s3 + $0x1a8] sm:$0xff]
    %v4383 = vld [vmem:[%s3 + $0x1b0] sm:$0xff]
    %v4384 = vld [vmem:[%s3 + $0x1b8] sm:$0xff]
    %v4385 = vld [vmem:[%s3 + $0x1c0] sm:$0xff]
    %v4386 = vld [vmem:[%s3 + $0x1c8] sm:$0xff]
    %v4387 = vld [vmem:[%s3 + $0x1d0] sm:$0xff]
    %v4388 = vld [vmem:[%s3 + $0x1d8] sm:$0xff]
    %v4389 = vld [vmem:[%s3 + $0x1e0] sm:$0xff]
    %v4390 = vld [vmem:[%s3 + $0x1e8] sm:$0xff]
    %v4391 = vld [vmem:[%s3 + $0x1f0] sm:$0xff]
    %v4392 = vld [vmem:[%s3 + $0x1f8] sm:$0xff]
    %v4393 = vld [vmem:[%s3 + $0x200] sm:$0xff]
    %v4394 = vld [vmem:[%s3 + $0x208] sm:$0xff]
    %v4395 = vld [vmem:[%s3 + $0x210] sm:$0xff]
    %v4396 = vld [vmem:[%s3 + $0x218] sm:$0xff]
    %v4397 = vld [vmem:[%s3 + $0x220] sm:$0xff]
    %v4398 = vld [vmem:[%s3 + $0x228] sm:$0xff]
    %v4399 = vld [vmem:[%s3 + $0x230] sm:$0xff]
    %v4400 = vld [vmem:[%s3 + $0x238] sm:$0xff]
    %v4401 = vld [vmem:[%s3 + $0x240] sm:$0xff]
    %v4402 = vld [vmem:[%s3 + $0x248] sm:$0xff]
    %v4403 = vld [vmem:[%s3 + $0x250] sm:$0xff]
    %v4404 = vld [vmem:[%s3 + $0x258] sm:$0xff]
    %v4405 = vld [vmem:[%s3 + $0x260] sm:$0xff]
    %v4406 = vld [vmem:[%s3 + $0x268] sm:$0xff]
    %v4407 = vld [vmem:[%s3 + $0x270] sm:$0xff]
    %v4408 = vld [vmem:[%s3 + $0x278] sm:$0xff]
    %v4409 = vld [vmem:[%s3 + $0x280] sm:$0xff]
    %v4410 = vld [vmem:[%s3 + $0x288] sm:$0xff]
    %v4411 = vld [vmem:[%s3 + $0x290] sm:$0xff]
    %v4412 = vld [vmem:[%s3 + $0x298] sm:$0xff]
    %v4413 = vld [vmem:[%s3 + $0x2a0] sm:$0xff]
    %v4414 = vld [vmem:[%s3 + $0x2a8] sm:$0xff]
    %v4415 = vld [vmem:[%s3 + $0x2b0] sm:$0xff]
    %v4416 = vld [vmem:[%s3 + $0x2b8] sm:$0xff]
    %v4417 = vld [vmem:[%s3 + $0x2c0] sm:$0xff]
    %v4418 = vld [vmem:[%s3 + $0x2c8] sm:$0xff]
    %v4419 = vld [vmem:[%s3 + $0x2d0] sm:$0xff]
    %v4420 = vld [vmem:[%s3 + $0x2d8] sm:$0xff]
    %v4421 = vld [vmem:[%s3 + $0x2e0] sm:$0xff]
    %v4422 = vld [vmem:[%s3 + $0x2e8] sm:$0xff]
    %v4423 = vld [vmem:[%s3 + $0x2f0] sm:$0xff]
    %v4424 = vld [vmem:[%s3 + $0x2f8] sm:$0xff]
    %v4425 = vld [vmem:[%s3 + $0x300] sm:$0xff]
    %v4426 = vld [vmem:[%s3 + $0x308] sm:$0xff]
    %v4427 = vld [vmem:[%s3 + $0x310] sm:$0xff]
    %v4428 = vld [vmem:[%s3 + $0x318] sm:$0xff]
    %v4429 = vld [vmem:[%s3 + $0x320] sm:$0xff]
    %v4430 = vld [vmem:[%s3 + $0x328] sm:$0xff]
    %v4431 = vld [vmem:[%s3 + $0x330] sm:$0xff]
    %v4432 = vld [vmem:[%s3 + $0x338] sm:$0xff]
    %v4433 = vld [vmem:[%s3 + $0x340] sm:$0xff]
    %v4434 = vld [vmem:[%s3 + $0x348] sm:$0xff]
    %v4435 = vld [vmem:[%s3 + $0x350] sm:$0xff]
    %v4436 = vld [vmem:[%s3 + $0x358] sm:$0xff]
    %v4437 = vld [vmem:[%s3 + $0x360] sm:$0xff]
    %v4438 = vld [vmem:[%s3 + $0x368] sm:$0xff]
    %v4439 = vld [vmem:[%s3 + $0x370] sm:$0xff]
    %v4440 = vld [vmem:[%s3 + $0x378] sm:$0xff]
    %v4441 = vld [vmem:[%s3 + $0x380] sm:$0xff]
    %v4442 = vld [vmem:[%s3 + $0x388] sm:$0xff]
    %v4443 = vld [vmem:[%s3 + $0x390] sm:$0xff]
    %v4444 = vld [vmem:[%s3 + $0x398] sm:$0xff]
    %v4445 = vld [vmem:[%s3 + $0x3a0] sm:$0xff]
    %v4446 = vld [vmem:[%s3 + $0x3a8] sm:$0xff]
    %v4447 = vld [vmem:[%s3 + $0x3b0] sm:$0xff]
    %v4448 = vld [vmem:[%s3 + $0x3b8] sm:$0xff]
    %v4449 = vld [vmem:[%s3 + $0x3c0] sm:$0xff]
    %v4450 = vld [vmem:[%s3 + $0x3c8] sm:$0xff]
    %v4451 = vld [vmem:[%s3 + $0x3d0] sm:$0xff]
    %v4452 = vld [vmem:[%s3 + $0x3d8] sm:$0xff]
    %v4453 = vld [vmem:[%s3 + $0x3e0] sm:$0xff]
    %v4454 = vld [vmem:[%s3 + $0x3e8] sm:$0xff]
    %v4455 = vld [vmem:[%s3 + $0x3f0] sm:$0xff]
    %v4456 = vld [vmem:[%s3 + $0x3f8] sm:$0xff]
    %v4465 = vunpack.c.l.b16 %v4321
    %v4466 = vunpack.c.l.b16 %v4322
    %v4467 = vunpack.c.l.b16 %v4323
    %v4468 = vunpack.c.l.b16 %v4324
    %v4469 = vunpack.c.l.b16 %v4325
    %v4470 = vunpack.c.l.b16 %v4326
    %v4471 = vunpack.c.l.b16 %v4327
    %v4472 = vunpack.c.l.b16 %v4328
    %vm4473 = vcmask 1041409
    %v4474 = vsel %vm4473, %v4469, %v4465
    %v4475 = vsel %vm4473, %v4470, %v4466
    %v4476 = vsel %vm4473, %v4471, %v4467
    %v4477 = vsel %vm4473, %v4472, %v4468
    %v4478 = vpack.c.b16 %v4474, %v4474
    %v4479 = vpack.c.b16 %v4475, %v4475
    %v4480 = vpack.c.b16 %v4476, %v4476
    %v4481 = vpack.c.b16 %v4477, %v4477
    %v4614 = vunpack.c.l.b16 %v4329
    %v4615 = vunpack.c.h.b16 %v4329
    %v4616 = vunpack.c.l.b16 %v4330
    %v4617 = vunpack.c.h.b16 %v4330
    %v4618 = vunpack.c.l.b16 %v4331
    %v4619 = vunpack.c.h.b16 %v4331
    %v4620 = vunpack.c.l.b16 %v4332
    %v4621 = vunpack.c.h.b16 %v4332
    %v4622 = vunpack.c.l.b16 %v4333
    %v4623 = vunpack.c.h.b16 %v4333
    %v4624 = vunpack.c.l.b16 %v4334
    %v4625 = vunpack.c.h.b16 %v4334
    %v4626 = vunpack.c.l.b16 %v4335
    %v4627 = vunpack.c.h.b16 %v4335
    %v4628 = vunpack.c.l.b16 %v4336
    %v4629 = vunpack.c.h.b16 %v4336
    %v4630 = vunpack.c.l.b16 %v4337
    %v4631 = vunpack.c.h.b16 %v4337
    %v4632 = vunpack.c.l.b16 %v4338
    %v4633 = vunpack.c.h.b16 %v4338
    %v4634 = vunpack.c.l.b16 %v4339
    %v4635 = vunpack.c.h.b16 %v4339
    %v4636 = vunpack.c.l.b16 %v4340
    %v4637 = vunpack.c.h.b16 %v4340
    %v4638 = vunpack.c.l.b16 %v4341
    %v4639 = vunpack.c.h.b16 %v4341
    %v4640 = vunpack.c.l.b16 %v4342
    %v4641 = vunpack.c.h.b16 %v4342
    %v4642 = vunpack.c.l.b16 %v4343
    %v4643 = vunpack.c.h.b16 %v4343
    %v4644 = vunpack.c.l.b16 %v4344
    %v4645 = vunpack.c.h.b16 %v4344
    %v4646 = vunpack.c.l.b16 %v4345
    %v4647 = vunpack.c.h.b16 %v4345
    %v4648 = vunpack.c.l.b16 %v4346
    %v4649 = vunpack.c.h.b16 %v4346
    %v4650 = vunpack.c.l.b16 %v4347
    %v4651 = vunpack.c.h.b16 %v4347
    %v4652 = vunpack.c.l.b16 %v4348
    %v4653 = vunpack.c.h.b16 %v4348
    %v4654 = vunpack.c.l.b16 %v4349
    %v4655 = vunpack.c.h.b16 %v4349
    %v4656 = vunpack.c.l.b16 %v4350
    %v4657 = vunpack.c.h.b16 %v4350
    %v4658 = vunpack.c.l.b16 %v4351
    %v4659 = vunpack.c.h.b16 %v4351
    %v4660 = vunpack.c.l.b16 %v4352
    %v4661 = vunpack.c.h.b16 %v4352
    %v4662 = vunpack.c.l.b16 %v4353
    %v4663 = vunpack.c.h.b16 %v4353
    %v4664 = vunpack.c.l.b16 %v4354
    %v4665 = vunpack.c.h.b16 %v4354
    %v4666 = vunpack.c.l.b16 %v4355
    %v4667 = vunpack.c.h.b16 %v4355
    %v4668 = vunpack.c.l.b16 %v4356
    %v4669 = vunpack.c.h.b16 %v4356
    %v4670 = vunpack.c.l.b16 %v4357
    %v4671 = vunpack.c.h.b16 %v4357
    %v4672 = vunpack.c.l.b16 %v4358
    %v4673 = vunpack.c.h.b16 %v4358
    %v4674 = vunpack.c.l.b16 %v4359
    %v4675 = vunpack.c.h.b16 %v4359
    %v4676 = vunpack.c.l.b16 %v4360
    %v4677 = vunpack.c.h.b16 %v4360
    %v4678 = vunpack.c.l.b16 %v4361
    %v4679 = vunpack.c.h.b16 %v4361
    %v4680 = vunpack.c.l.b16 %v4362
    %v4681 = vunpack.c.h.b16 %v4362
    %v4682 = vunpack.c.l.b16 %v4363
    %v4683 = vunpack.c.h.b16 %v4363
    %v4684 = vunpack.c.l.b16 %v4364
    %v4685 = vunpack.c.h.b16 %v4364
    %v4686 = vunpack.c.l.b16 %v4365
    %v4687 = vunpack.c.h.b16 %v4365
    %v4688 = vunpack.c.l.b16 %v4366
    %v4689 = vunpack.c.h.b16 %v4366
    %v4690 = vunpack.c.l.b16 %v4367
    %v4691 = vunpack.c.h.b16 %v4367
    %v4692 = vunpack.c.l.b16 %v4368
    %v4693 = vunpack.c.h.b16 %v4368
    %v4694 = vunpack.c.l.b16 %v4369
    %v4695 = vunpack.c.h.b16 %v4369
    %v4696 = vunpack.c.l.b16 %v4370
    %v4697 = vunpack.c.h.b16 %v4370
    %v4698 = vunpack.c.l.b16 %v4371
    %v4699 = vunpack.c.h.b16 %v4371
    %v4700 = vunpack.c.l.b16 %v4372
    %v4701 = vunpack.c.h.b16 %v4372
    %v4702 = vunpack.c.l.b16 %v4373
    %v4703 = vunpack.c.h.b16 %v4373
    %v4704 = vunpack.c.l.b16 %v4374
    %v4705 = vunpack.c.h.b16 %v4374
    %v4706 = vunpack.c.l.b16 %v4375
    %v4707 = vunpack.c.h.b16 %v4375
    %v4708 = vunpack.c.l.b16 %v4376
    %v4709 = vunpack.c.h.b16 %v4376
    %v4710 = vunpack.c.l.b16 %v4377
    %v4711 = vunpack.c.h.b16 %v4377
    %v4712 = vunpack.c.l.b16 %v4378
    %v4713 = vunpack.c.h.b16 %v4378
    %v4714 = vunpack.c.l.b16 %v4379
    %v4715 = vunpack.c.h.b16 %v4379
    %v4716 = vunpack.c.l.b16 %v4380
    %v4717 = vunpack.c.h.b16 %v4380
    %v4718 = vunpack.c.l.b16 %v4381
    %v4719 = vunpack.c.h.b16 %v4381
    %v4720 = vunpack.c.l.b16 %v4382
    %v4721 = vunpack.c.h.b16 %v4382
    %v4722 = vunpack.c.l.b16 %v4383
    %v4723 = vunpack.c.h.b16 %v4383
    %v4724 = vunpack.c.l.b16 %v4384
    %v4725 = vunpack.c.h.b16 %v4384
    %v4726 = vunpack.c.l.b16 %v4385
    %v4727 = vunpack.c.h.b16 %v4385
    %v4728 = vunpack.c.l.b16 %v4386
    %v4729 = vunpack.c.h.b16 %v4386
    %v4730 = vunpack.c.l.b16 %v4387
    %v4731 = vunpack.c.h.b16 %v4387
    %v4732 = vunpack.c.l.b16 %v4388
    %v4733 = vunpack.c.h.b16 %v4388
    %v4734 = vunpack.c.l.b16 %v4389
    %v4735 = vunpack.c.h.b16 %v4389
    %v4736 = vunpack.c.l.b16 %v4390
    %v4737 = vunpack.c.h.b16 %v4390
    %v4738 = vunpack.c.l.b16 %v4391
    %v4739 = vunpack.c.h.b16 %v4391
    %v4740 = vunpack.c.l.b16 %v4392
    %v4741 = vunpack.c.h.b16 %v4392
    %v4742 = vunpack.c.l.b16 %v4393
    %v4743 = vunpack.c.h.b16 %v4393
    %v4744 = vunpack.c.l.b16 %v4394
    %v4745 = vunpack.c.h.b16 %v4394
    %v4746 = vunpack.c.l.b16 %v4395
    %v4747 = vunpack.c.h.b16 %v4395
    %v4748 = vunpack.c.l.b16 %v4396
    %v4749 = vunpack.c.h.b16 %v4396
    %v4750 = vunpack.c.l.b16 %v4397
    %v4751 = vunpack.c.h.b16 %v4397
    %v4752 = vunpack.c.l.b16 %v4398
    %v4753 = vunpack.c.h.b16 %v4398
    %v4754 = vunpack.c.l.b16 %v4399
    %v4755 = vunpack.c.h.b16 %v4399
    %v4756 = vunpack.c.l.b16 %v4400
    %v4757 = vunpack.c.h.b16 %v4400
    %v4758 = vunpack.c.l.b16 %v4401
    %v4759 = vunpack.c.h.b16 %v4401
    %v4760 = vunpack.c.l.b16 %v4402
    %v4761 = vunpack.c.h.b16 %v4402
    %v4762 = vunpack.c.l.b16 %v4403
    %v4763 = vunpack.c.h.b16 %v4403
    %v4764 = vunpack.c.l.b16 %v4404
    %v4765 = vunpack.c.h.b16 %v4404
    %v4766 = vunpack.c.l.b16 %v4405
    %v4767 = vunpack.c.h.b16 %v4405
    %v4768 = vunpack.c.l.b16 %v4406
    %v4769 = vunpack.c.h.b16 %v4406
    %v4770 = vunpack.c.l.b16 %v4407
    %v4771 = vunpack.c.h.b16 %v4407
    %v4772 = vunpack.c.l.b16 %v4408
    %v4773 = vunpack.c.h.b16 %v4408
    %v4774 = vunpack.c.l.b16 %v4409
    %v4775 = vunpack.c.h.b16 %v4409
    %v4776 = vunpack.c.l.b16 %v4410
    %v4777 = vunpack.c.h.b16 %v4410
    %v4778 = vunpack.c.l.b16 %v4411
    %v4779 = vunpack.c.h.b16 %v4411
    %v4780 = vunpack.c.l.b16 %v4412
    %v4781 = vunpack.c.h.b16 %v4412
    %v4782 = vunpack.c.l.b16 %v4413
    %v4783 = vunpack.c.h.b16 %v4413
    %v4784 = vunpack.c.l.b16 %v4414
    %v4785 = vunpack.c.h.b16 %v4414
    %v4786 = vunpack.c.l.b16 %v4415
    %v4787 = vunpack.c.h.b16 %v4415
    %v4788 = vunpack.c.l.b16 %v4416
    %v4789 = vunpack.c.h.b16 %v4416
    %v4790 = vunpack.c.l.b16 %v4417
    %v4791 = vunpack.c.h.b16 %v4417
    %v4792 = vunpack.c.l.b16 %v4418
    %v4793 = vunpack.c.h.b16 %v4418
    %v4794 = vunpack.c.l.b16 %v4419
    %v4795 = vunpack.c.h.b16 %v4419
    %v4796 = vunpack.c.l.b16 %v4420
    %v4797 = vunpack.c.h.b16 %v4420
    %v4798 = vunpack.c.l.b16 %v4421
    %v4799 = vunpack.c.h.b16 %v4421
    %v4800 = vunpack.c.l.b16 %v4422
    %v4801 = vunpack.c.h.b16 %v4422
    %v4802 = vunpack.c.l.b16 %v4423
    %v4803 = vunpack.c.h.b16 %v4423
    %v4804 = vunpack.c.l.b16 %v4424
    %v4805 = vunpack.c.h.b16 %v4424
    %v4806 = vunpack.c.l.b16 %v4425
    %v4807 = vunpack.c.h.b16 %v4425
    %v4808 = vunpack.c.l.b16 %v4426
    %v4809 = vunpack.c.h.b16 %v4426
    %v4810 = vunpack.c.l.b16 %v4427
    %v4811 = vunpack.c.h.b16 %v4427
    %v4812 = vunpack.c.l.b16 %v4428
    %v4813 = vunpack.c.h.b16 %v4428
    %v4814 = vunpack.c.l.b16 %v4429
    %v4815 = vunpack.c.h.b16 %v4429
    %v4816 = vunpack.c.l.b16 %v4430
    %v4817 = vunpack.c.h.b16 %v4430
    %v4818 = vunpack.c.l.b16 %v4431
    %v4819 = vunpack.c.h.b16 %v4431
    %v4820 = vunpack.c.l.b16 %v4432
    %v4821 = vunpack.c.h.b16 %v4432
    %v4822 = vunpack.c.l.b16 %v4433
    %v4823 = vunpack.c.h.b16 %v4433
    %v4824 = vunpack.c.l.b16 %v4434
    %v4825 = vunpack.c.h.b16 %v4434
    %v4826 = vunpack.c.l.b16 %v4435
    %v4827 = vunpack.c.h.b16 %v4435
    %v4828 = vunpack.c.l.b16 %v4436
    %v4829 = vunpack.c.h.b16 %v4436
    %v4830 = vunpack.c.l.b16 %v4437
    %v4831 = vunpack.c.h.b16 %v4437
    %v4832 = vunpack.c.l.b16 %v4438
    %v4833 = vunpack.c.h.b16 %v4438
    %v4834 = vunpack.c.l.b16 %v4439
    %v4835 = vunpack.c.h.b16 %v4439
    %v4836 = vunpack.c.l.b16 %v4440
    %v4837 = vunpack.c.h.b16 %v4440
    %v4838 = vunpack.c.l.b16 %v4441
    %v4839 = vunpack.c.h.b16 %v4441
    %v4840 = vunpack.c.l.b16 %v4442
    %v4841 = vunpack.c.h.b16 %v4442
    %v4842 = vunpack.c.l.b16 %v4443
    %v4843 = vunpack.c.h.b16 %v4443
    %v4844 = vunpack.c.l.b16 %v4444
    %v4845 = vunpack.c.h.b16 %v4444
    %v4846 = vunpack.c.l.b16 %v4445
    %v4847 = vunpack.c.h.b16 %v4445
    %v4848 = vunpack.c.l.b16 %v4446
    %v4849 = vunpack.c.h.b16 %v4446
    %v4850 = vunpack.c.l.b16 %v4447
    %v4851 = vunpack.c.h.b16 %v4447
    %v4852 = vunpack.c.l.b16 %v4448
    %v4853 = vunpack.c.h.b16 %v4448
    %v4854 = vunpack.c.l.b16 %v4449
    %v4855 = vunpack.c.h.b16 %v4449
    %v4856 = vunpack.c.l.b16 %v4450
    %v4857 = vunpack.c.h.b16 %v4450
    %v4858 = vunpack.c.l.b16 %v4451
    %v4859 = vunpack.c.h.b16 %v4451
    %v4860 = vunpack.c.l.b16 %v4452
    %v4861 = vunpack.c.h.b16 %v4452
    %v4862 = vunpack.c.l.b16 %v4453
    %v4863 = vunpack.c.h.b16 %v4453
    %v4864 = vunpack.c.l.b16 %v4454
    %v4865 = vunpack.c.h.b16 %v4454
    %v4866 = vunpack.c.l.b16 %v4455
    %v4867 = vunpack.c.h.b16 %v4455
    %v4868 = vunpack.c.l.b16 %v4456
    %v4869 = vunpack.c.h.b16 %v4456
    %v4870 = vpack.c.b16 %v4618, %v4614
    %v4871 = vpack.c.b16 %v4619, %v4615
    %v4872 = vpack.c.b16 %v4620, %v4616
    %v4873 = vpack.c.b16 %v4621, %v4617
    %v4874 = vpack.c.b16 %v4626, %v4622
    %v4875 = vpack.c.b16 %v4627, %v4623
    %v4876 = vpack.c.b16 %v4628, %v4624
    %v4877 = vpack.c.b16 %v4629, %v4625
    %v4878 = vpack.c.b16 %v4634, %v4630
    %v4879 = vpack.c.b16 %v4635, %v4631
    %v4880 = vpack.c.b16 %v4636, %v4632
    %v4881 = vpack.c.b16 %v4637, %v4633
    %v4882 = vpack.c.b16 %v4642, %v4638
    %v4883 = vpack.c.b16 %v4643, %v4639
    %v4884 = vpack.c.b16 %v4644, %v4640
    %v4885 = vpack.c.b16 %v4645, %v4641
    %v4886 = vpack.c.b16 %v4650, %v4646
    %v4887 = vpack.c.b16 %v4651, %v4647
    %v4888 = vpack.c.b16 %v4652, %v4648
    %v4889 = vpack.c.b16 %v4653, %v4649
    %v4890 = vpack.c.b16 %v4658, %v4654
    %v4891 = vpack.c.b16 %v4659, %v4655
    %v4892 = vpack.c.b16 %v4660, %v4656
    %v4893 = vpack.c.b16 %v4661, %v4657
    %v4894 = vpack.c.b16 %v4666, %v4662
    %v4895 = vpack.c.b16 %v4667, %v4663
    %v4896 = vpack.c.b16 %v4668, %v4664
    %v4897 = vpack.c.b16 %v4669, %v4665
    %v4898 = vpack.c.b16 %v4674, %v4670
    %v4899 = vpack.c.b16 %v4675, %v4671
    %v4900 = vpack.c.b16 %v4676, %v4672
    %v4901 = vpack.c.b16 %v4677, %v4673
    %v4902 = vpack.c.b16 %v4682, %v4678
    %v4903 = vpack.c.b16 %v4683, %v4679
    %v4904 = vpack.c.b16 %v4684, %v4680
    %v4905 = vpack.c.b16 %v4685, %v4681
    %v4906 = vpack.c.b16 %v4690, %v4686
    %v4907 = vpack.c.b16 %v4691, %v4687
    %v4908 = vpack.c.b16 %v4692, %v4688
    %v4909 = vpack.c.b16 %v4693, %v4689
    %v4910 = vpack.c.b16 %v4698, %v4694
    %v4911 = vpack.c.b16 %v4699, %v4695
    %v4912 = vpack.c.b16 %v4700, %v4696
    %v4913 = vpack.c.b16 %v4701, %v4697
    %v4914 = vpack.c.b16 %v4706, %v4702
    %v4915 = vpack.c.b16 %v4707, %v4703
    %v4916 = vpack.c.b16 %v4708, %v4704
    %v4917 = vpack.c.b16 %v4709, %v4705
    %v4918 = vpack.c.b16 %v4714, %v4710
    %v4919 = vpack.c.b16 %v4715, %v4711
    %v4920 = vpack.c.b16 %v4716, %v4712
    %v4921 = vpack.c.b16 %v4717, %v4713
    %v4922 = vpack.c.b16 %v4722, %v4718
    %v4923 = vpack.c.b16 %v4723, %v4719
    %v4924 = vpack.c.b16 %v4724, %v4720
    %v4925 = vpack.c.b16 %v4725, %v4721
    %v4926 = vpack.c.b16 %v4730, %v4726
    %v4927 = vpack.c.b16 %v4731, %v4727
    %v4928 = vpack.c.b16 %v4732, %v4728
    %v4929 = vpack.c.b16 %v4733, %v4729
    %v4930 = vpack.c.b16 %v4738, %v4734
    %v4931 = vpack.c.b16 %v4739, %v4735
    %v4932 = vpack.c.b16 %v4740, %v4736
    %v4933 = vpack.c.b16 %v4741, %v4737
    %v4934 = vpack.c.b16 %v4746, %v4742
    %v4935 = vpack.c.b16 %v4747, %v4743
    %v4936 = vpack.c.b16 %v4748, %v4744
    %v4937 = vpack.c.b16 %v4749, %v4745
    %v4938 = vpack.c.b16 %v4754, %v4750
    %v4939 = vpack.c.b16 %v4755, %v4751
    %v4940 = vpack.c.b16 %v4756, %v4752
    %v4941 = vpack.c.b16 %v4757, %v4753
    %v4942 = vpack.c.b16 %v4762, %v4758
    %v4943 = vpack.c.b16 %v4763, %v4759
    %v4944 = vpack.c.b16 %v4764, %v4760
    %v4945 = vpack.c.b16 %v4765, %v4761
    %v4946 = vpack.c.b16 %v4770, %v4766
    %v4947 = vpack.c.b16 %v4771, %v4767
    %v4948 = vpack.c.b16 %v4772, %v4768
    %v4949 = vpack.c.b16 %v4773, %v4769
    %v4950 = vpack.c.b16 %v4778, %v4774
    %v4951 = vpack.c.b16 %v4779, %v4775
    %v4952 = vpack.c.b16 %v4780, %v4776
    %v4953 = vpack.c.b16 %v4781, %v4777
    %v4954 = vpack.c.b16 %v4786, %v4782
    %v4955 = vpack.c.b16 %v4787, %v4783
    %v4956 = vpack.c.b16 %v4788, %v4784
    %v4957 = vpack.c.b16 %v4789, %v4785
    %v4958 = vpack.c.b16 %v4794, %v4790
    %v4959 = vpack.c.b16 %v4795, %v4791
    %v4960 = vpack.c.b16 %v4796, %v4792
    %v4961 = vpack.c.b16 %v4797, %v4793
    %v4962 = vpack.c.b16 %v4802, %v4798
    %v4963 = vpack.c.b16 %v4803, %v4799
    %v4964 = vpack.c.b16 %v4804, %v4800
    %v4965 = vpack.c.b16 %v4805, %v4801
    %v4966 = vpack.c.b16 %v4810, %v4806
    %v4967 = vpack.c.b16 %v4811, %v4807
    %v4968 = vpack.c.b16 %v4812, %v4808
    %v4969 = vpack.c.b16 %v4813, %v4809
    %v4970 = vpack.c.b16 %v4818, %v4814
    %v4971 = vpack.c.b16 %v4819, %v4815
    %v4972 = vpack.c.b16 %v4820, %v4816
    %v4973 = vpack.c.b16 %v4821, %v4817
    %v4974 = vpack.c.b16 %v4826, %v4822
    %v4975 = vpack.c.b16 %v4827, %v4823
    %v4976 = vpack.c.b16 %v4828, %v4824
    %v4977 = vpack.c.b16 %v4829, %v4825
    %v4978 = vpack.c.b16 %v4834, %v4830
    %v4979 = vpack.c.b16 %v4835, %v4831
    %v4980 = vpack.c.b16 %v4836, %v4832
    %v4981 = vpack.c.b16 %v4837, %v4833
    %v4982 = vpack.c.b16 %v4842, %v4838
    %v4983 = vpack.c.b16 %v4843, %v4839
    %v4984 = vpack.c.b16 %v4844, %v4840
    %v4985 = vpack.c.b16 %v4845, %v4841
    %v4986 = vpack.c.b16 %v4850, %v4846
    %v4987 = vpack.c.b16 %v4851, %v4847
    %v4988 = vpack.c.b16 %v4852, %v4848
    %v4989 = vpack.c.b16 %v4853, %v4849
    %v4990 = vpack.c.b16 %v4858, %v4854
    %v4991 = vpack.c.b16 %v4859, %v4855
    %v4992 = vpack.c.b16 %v4860, %v4856
    %v4993 = vpack.c.b16 %v4861, %v4857
    %v4994 = vpack.c.b16 %v4866, %v4862
    %v4995 = vpack.c.b16 %v4867, %v4863
    %v4996 = vpack.c.b16 %v4868, %v4864
    %v4997 = vpack.c.b16 %v4869, %v4865
    %5126 = vmatprep.subr.bf16.mxu0 %v4871
    %5127 = vmatpush1.bf16.msra.mxu0 %v4870
    %5128 = vmatprep.subr.bf16.mxu0 %v4875
    %5129 = vmatpush1.bf16.msra.mxu0 %v4874
    %5130 = vmatprep.subr.bf16.mxu0 %v4879
    %5131 = vmatpush1.bf16.msra.mxu0 %v4878
    %5132 = vmatprep.subr.bf16.mxu0 %v4883
    %5133 = vmatpush1.bf16.msra.mxu0 %v4882
    %5134 = vmatprep.subr.bf16.mxu0 %v4887
    %5135 = vmatpush1.bf16.msra.mxu0 %v4886
    %5136 = vmatprep.subr.bf16.mxu0 %v4891
    %5137 = vmatpush1.bf16.msra.mxu0 %v4890
    %5138 = vmatprep.subr.bf16.mxu0 %v4895
    %5139 = vmatpush1.bf16.msra.mxu0 %v4894
    %5140 = vmatprep.subr.bf16.mxu0 %v4899
    %5141 = vmatpush1.bf16.msra.mxu0 %v4898
    %5142 = vmatprep.subr.bf16.mxu0 %v4903
    %5143 = vmatpush1.bf16.msra.mxu0 %v4902
    %5144 = vmatprep.subr.bf16.mxu0 %v4907
    %5145 = vmatpush1.bf16.msra.mxu0 %v4906
    %5146 = vmatprep.subr.bf16.mxu0 %v4911
    %5147 = vmatpush1.bf16.msra.mxu0 %v4910
    %5148 = vmatprep.subr.bf16.mxu0 %v4915
    %5149 = vmatpush1.bf16.msra.mxu0 %v4914
    %5150 = vmatprep.subr.bf16.mxu0 %v4919
    %5151 = vmatpush1.bf16.msra.mxu0 %v4918
    %5152 = vmatprep.subr.bf16.mxu0 %v4923
    %5153 = vmatpush1.bf16.msra.mxu0 %v4922
    %5154 = vmatprep.subr.bf16.mxu0 %v4927
    %5155 = vmatpush1.bf16.msra.mxu0 %v4926
    %5156 = vmatprep.subr.bf16.mxu0 %v4931
    %5157 = vmatpush1.bf16.msra.mxu0 %v4930
    %5158 = vmatprep.mubr.bf16.mxu0 %v4479
    %5159 = vmatmul.mubr.bf16.gmra.mrb[0].mxu0 %v4478
    %v5160 = vpop.f32.mrb[0].mxu0
    %v5161 = vadd.f32 0.0, %v5160
    %v5162 = vpop.f32.mrb[0].mxu0
    %v5163 = vadd.f32 0.0, %v5162
    %v5164 = vpop.f32.mrb[0].mxu0
    %v5165 = vpop.f32.mrb[0].mxu0
    %5166 = vdwg.mxu0
    %5167 = vmatprep.subr.bf16.mxu0 %v4935
    %5168 = vmatpush1.bf16.msra.mxu0 %v4934
    %5169 = vmatprep.subr.bf16.mxu0 %v4939
    %5170 = vmatpush1.bf16.msra.mxu0 %v4938
    %5171 = vmatprep.subr.bf16.mxu0 %v4943
    %5172 = vmatpush1.bf16.msra.mxu0 %v4942
    %5173 = vmatprep.subr.bf16.mxu0 %v4947
    %5174 = vmatpush1.bf16.msra.mxu0 %v4946
    %5175 = vmatprep.subr.bf16.mxu0 %v4951
    %5176 = vmatpush1.bf16.msra.mxu0 %v4950
    %5177 = vmatprep.subr.bf16.mxu0 %v4955
    %5178 = vmatpush1.bf16.msra.mxu0 %v4954
    %5179 = vmatprep.subr.bf16.mxu0 %v4959
    %5180 = vmatpush1.bf16.msra.mxu0 %v4958
    %5181 = vmatprep.subr.bf16.mxu0 %v4963
    %5182 = vmatpush1.bf16.msra.mxu0 %v4962
    %5183 = vmatprep.subr.bf16.mxu0 %v4967
    %5184 = vmatpush1.bf16.msra.mxu0 %v4966
    %5185 = vmatprep.subr.bf16.mxu0 %v4971
    %5186 = vmatpush1.bf16.msra.mxu0 %v4970
    %5187 = vmatprep.subr.bf16.mxu0 %v4975
    %5188 = vmatpush1.bf16.msra.mxu0 %v4974
    %5189 = vmatprep.subr.bf16.mxu0 %v4979
    %5190 = vmatpush1.bf16.msra.mxu0 %v4978
    %5191 = vmatprep.subr.bf16.mxu0 %v4983
    %5192 = vmatpush1.bf16.msra.mxu0 %v4982
    %5193 = vmatprep.subr.bf16.mxu0 %v4987
    %5194 = vmatpush1.bf16.msra.mxu0 %v4986
    %5195 = vmatprep.subr.bf16.mxu0 %v4991
    %5196 = vmatpush1.bf16.msra.mxu0 %v4990
    %5197 = vmatprep.subr.bf16.mxu0 %v4995
    %5198 = vmatpush1.bf16.msra.mxu0 %v4994
    %5199 = vmatprep.mubr.bf16.mxu0 %v4481
    %5200 = vmatmul.mubr.bf16.gmra.mrb[0].mxu0 %v4480
    %v5201 = vpop.f32.mrb[0].mxu0
    %v5202 = vadd.f32 %v5161, %v5201
    %v5203 = vpop.f32.mrb[0].mxu0
    %v5204 = vadd.f32 %v5163, %v5203
    %v5205 = vpop.f32.mrb[0].mxu0
    %v5206 = vpop.f32.mrb[0].mxu0
    %5207 = vdwg.mxu0
    %5208 = vmatprep.subr.bf16.mxu0 %v4873
    %5209 = vmatpush1.bf16.msra.mxu0 %v4872
    %5210 = vmatprep.subr.bf16.mxu0 %v4877
    %5211 = vmatpush1.bf16.msra.mxu0 %v4876
    %5212 = vmatprep.subr.bf16.mxu0 %v4881
    %5213 = vmatpush1.bf16.msra.mxu0 %v4880
    %5214 = vmatprep.subr.bf16.mxu0 %v4885
    %5215 = vmatpush1.bf16.msra.mxu0 %v4884
    %5216 = vmatprep.subr.bf16.mxu0 %v4889
    %5217 = vmatpush1.bf16.msra.mxu0 %v4888
    %5218 = vmatprep.subr.bf16.mxu0 %v4893
    %5219 = vmatpush1.bf16.msra.mxu0 %v4892
    %5220 = vmatprep.subr.bf16.mxu0 %v4897
    %5221 = vmatpush1.bf16.msra.mxu0 %v4896
    %5222 = vmatprep.subr.bf16.mxu0 %v4901
    %5223 = vmatpush1.bf16.msra.mxu0 %v4900
    %5224 = vmatprep.subr.bf16.mxu0 %v4905
    %5225 = vmatpush1.bf16.msra.mxu0 %v4904
    %5226 = vmatprep.subr.bf16.mxu0 %v4909
    %5227 = vmatpush1.bf16.msra.mxu0 %v4908
    %5228 = vmatprep.subr.bf16.mxu0 %v4913
    %5229 = vmatpush1.bf16.msra.mxu0 %v4912
    %5230 = vmatprep.subr.bf16.mxu0 %v4917
    %5231 = vmatpush1.bf16.msra.mxu0 %v4916
    %5232 = vmatprep.subr.bf16.mxu0 %v4921
    %5233 = vmatpush1.bf16.msra.mxu0 %v4920
    %5234 = vmatprep.subr.bf16.mxu0 %v4925
    %5235 = vmatpush1.bf16.msra.mxu0 %v4924
    %5236 = vmatprep.subr.bf16.mxu0 %v4929
    %5237 = vmatpush1.bf16.msra.mxu0 %v4928
    %5238 = vmatprep.subr.bf16.mxu0 %v4933
    %5239 = vmatpush1.bf16.msra.mxu0 %v4932
    %5240 = vmatprep.mubr.bf16.mxu0 %v4479
    %5241 = vmatmul.mubr.bf16.gmra.mrb[0].mxu0 %v4478
    %v5242 = vpop.f32.mrb[0].mxu0
    %v5243 = vadd.f32 0.0, %v5242
    %v5244 = vpop.f32.mrb[0].mxu0
    %v5245 = vadd.f32 0.0, %v5244
    %v5246 = vpop.f32.mrb[0].mxu0
    %v5247 = vpop.f32.mrb[0].mxu0
    %5248 = vdwg.mxu0
    %5249 = vmatprep.subr.bf16.mxu0 %v4937
    %5250 = vmatpush1.bf16.msra.mxu0 %v4936
    %5251 = vmatprep.subr.bf16.mxu0 %v4941
    %5252 = vmatpush1.bf16.msra.mxu0 %v4940
    %5253 = vmatprep.subr.bf16.mxu0 %v4945
    %5254 = vmatpush1.bf16.msra.mxu0 %v4944
    %5255 = vmatprep.subr.bf16.mxu0 %v4949
    %5256 = vmatpush1.bf16.msra.mxu0 %v4948
    %5257 = vmatprep.subr.bf16.mxu0 %v4953
    %5258 = vmatpush1.bf16.msra.mxu0 %v4952
    %5259 = vmatprep.subr.bf16.mxu0 %v4957
    %5260 = vmatpush1.bf16.msra.mxu0 %v4956
    %5261 = vmatprep.subr.bf16.mxu0 %v4961
    %5262 = vmatpush1.bf16.msra.mxu0 %v4960
    %5263 = vmatprep.subr.bf16.mxu0 %v4965
    %5264 = vmatpush1.bf16.msra.mxu0 %v4964
    %5265 = vmatprep.subr.bf16.mxu0 %v4969
    %5266 = vmatpush1.bf16.msra.mxu0 %v4968
    %5267 = vmatprep.subr.bf16.mxu0 %v4973
    %5268 = vmatpush1.bf16.msra.mxu0 %v4972
    %5269 = vmatprep.subr.bf16.mxu0 %v4977
    %5270 = vmatpush1.bf16.msra.mxu0 %v4976
    %5271 = vmatprep.subr.bf16.mxu0 %v4981
    %5272 = vmatpush1.bf16.msra.mxu0 %v4980
    %5273 = vmatprep.subr.bf16.mxu0 %v4985
    %5274 = vmatpush1.bf16.msra.mxu0 %v4984
    %5275 = vmatprep.subr.bf16.mxu0 %v4989
    %5276 = vmatpush1.bf16.msra.mxu0 %v4988
    %5277 = vmatprep.subr.bf16.mxu0 %v4993
    %5278 = vmatpush1.bf16.msra.mxu0 %v4992
    %5279 = vmatprep.subr.bf16.mxu0 %v4997
    %5280 = vmatpush1.bf16.msra.mxu0 %v4996
    %5281 = vmatprep.mubr.bf16.mxu0 %v4481
    %5282 = vmatmul.mubr.bf16.gmra.mrb[0].mxu0 %v4480
    %v5283 = vpop.f32.mrb[0].mxu0
    %v5284 = vadd.f32 %v5243, %v5283
    %v5285 = vpop.f32.mrb[0].mxu0
    %v5286 = vadd.f32 %v5245, %v5285
    %v5287 = vpop.f32.mrb[0].mxu0
    %v5288 = vpop.f32.mrb[0].mxu0
    %5289 = vdwg.mxu0
    %v5290 = vmul.f32 %v5202, 0.5
    %v5291 = vmul.f32 %v5204, 0.5
    %v5292 = vmul.f32 %v5284, 0.5
    %v5293 = vmul.f32 %v5286, 0.5
    %v5294 = vmul.f32 %v5202, 0.70710677
    %v5295 = vmul.f32 %v5204, 0.70710677
    %v5296 = vmul.f32 %v5284, 0.70710677
    %v5297 = vmul.f32 %v5286, 0.70710677
    %vm5298 = vcmp.ge.f32.partialorder %v5294, 0.0
    %vm5299 = vcmp.ge.f32.partialorder %v5295, 0.0
    %vm5300 = vcmp.ge.f32.partialorder %v5296, 0.0
    %vm5301 = vcmp.ge.f32.partialorder %v5297, 0.0
    %v5302 = vsel %vm5298, 1.0, -1.0
    %v5303 = vsel %vm5299, 1.0, -1.0
    %v5304 = vsel %vm5300, 1.0, -1.0
    %v5305 = vsel %vm5301, 1.0, -1.0
    %v5306 = vand.u32 2147483647, %v5294
    %v5307 = vand.u32 2147483647, %v5295
    %v5308 = vand.u32 2147483647, %v5296
    %v5309 = vand.u32 2147483647, %v5297
    %v5310 = vmul.f32 %v5306, 0.3275911
    %v5311 = vmul.f32 %v5307, 0.3275911
    %v5312 = vmul.f32 %v5308, 0.3275911
    %v5313 = vmul.f32 %v5309, 0.3275911
    %v5314 = vadd.f32 %v5310, 1.0
    %v5315 = vadd.f32 %v5311, 1.0
    %v5316 = vadd.f32 %v5312, 1.0
    %v5317 = vadd.f32 %v5313, 1.0
    %v5318 = vrcp.pop %v5314
    %v5319 = vmul.f32 1.0, %v5318
    %v5320 = vrcp.pop %v5315
    %v5321 = vmul.f32 1.0, %v5320
    %v5322 = vrcp.pop %v5316
    %v5323 = vmul.f32 1.0, %v5322
    %v5324 = vrcp.pop %v5317
    %v5325 = vmul.f32 1.0, %v5324
    %v5326 = vmul.f32 %v5319, 1.0614054
    %v5327 = vmul.f32 %v5321, 1.0614054
    %v5328 = vmul.f32 %v5323, 1.0614054
    %v5329 = vmul.f32 %v5325, 1.0614054
    %v5330 = vadd.f32 %v5326, -1.4531521
    %v5331 = vadd.f32 %v5327, -1.4531521
    %v5332 = vadd.f32 %v5328, -1.4531521
    %v5333 = vadd.f32 %v5329, -1.4531521
    %v5334 = vmul.f32 %v5330, %v5319
    %v5335 = vmul.f32 %v5331, %v5321
    %v5336 = vmul.f32 %v5332, %v5323
    %v5337 = vmul.f32 %v5333, %v5325
    %v5338 = vadd.f32 %v5334, 1.4214138
    %v5339 = vadd.f32 %v5335, 1.4214138
    %v5340 = vadd.f32 %v5336, 1.4214138
    %v5341 = vadd.f32 %v5337, 1.4214138
    %v5342 = vmul.f32 %v5338, %v5319
    %v5343 = vmul.f32 %v5339, %v5321
    %v5344 = vmul.f32 %v5340, %v5323
    %v5345 = vmul.f32 %v5341, %v5325
    %v5346 = vadd.f32 %v5342, -0.28449672
    %v5347 = vadd.f32 %v5343, -0.28449672
    %v5348 = vadd.f32 %v5344, -0.28449672
    %v5349 = vadd.f32 %v5345, -0.28449672
    %v5350 = vmul.f32 %v5346, %v5319
    %v5351 = vmul.f32 %v5347, %v5321
    %v5352 = vmul.f32 %v5348, %v5323
    %v5353 = vmul.f32 %v5349, %v5325
    %v5354 = vadd.f32 %v5350, 0.2548296
    %v5355 = vadd.f32 %v5351, 0.2548296
    %v5356 = vadd.f32 %v5352, 0.2548296
    %v5357 = vadd.f32 %v5353, 0.2548296
    %v5358 = vmul.f32 %v5354, %v5319
    %v5359 = vmul.f32 %v5355, %v5321
    %v5360 = vmul.f32 %v5356, %v5323
    %v5361 = vmul.f32 %v5357, %v5325
    %v5362 = vsub.f32 0.0, %v5306
    %v5363 = vsub.f32 0.0, %v5307
    %v5364 = vsub.f32 0.0, %v5308
    %v5365 = vsub.f32 0.0, %v5309
    %v5366 = vmul.f32 %v5362, %v5306
    %v5367 = vmul.f32 %v5363, %v5307
    %v5368 = vmul.f32 %v5364, %v5308
    %v5369 = vmul.f32 %v5365, %v5309
    %v5370 = vmul.f32 %v5366, 1.442695
    %v5371 = vpow.pop %v5370
    %v5372 = vmul.f32 %v5367, 1.442695
    %v5373 = vpow.pop %v5372
    %v5374 = vmul.f32 %v5368, 1.442695
    %v5375 = vpow.pop %v5374
    %v5376 = vmul.f32 %v5369, 1.442695
    %v5377 = vpow.pop %v5376
    %v5378 = vmul.f32 %v5358, %v5371
    %v5379 = vmul.f32 %v5359, %v5373
    %v5380 = vmul.f32 %v5360, %v5375
    %v5381 = vmul.f32 %v5361, %v5377
    %v5382 = vsub.f32 1.0, %v5378
    %v5383 = vsub.f32 1.0, %v5379
    %v5384 = vsub.f32 1.0, %v5380
    %v5385 = vsub.f32 1.0, %v5381
    %v5386 = vmul.f32 %v5302, %v5382
    %v5387 = vmul.f32 %v5303, %v5383
    %v5388 = vmul.f32 %v5304, %v5384
    %v5389 = vmul.f32 %v5305, %v5385
    %v5390 = vadd.f32 %v5386, 1.0
    %v5391 = vadd.f32 %v5387, 1.0
    %v5392 = vadd.f32 %v5388, 1.0
    %v5393 = vadd.f32 %v5389, 1.0
    %v5394 = vmul.f32 %v5290, %v5390
    %v5395 = vmul.f32 %v5291, %v5391
    %v5396 = vmul.f32 %v5292, %v5392
    %v5397 = vmul.f32 %v5293, %v5393
    %v5398 = vpack.c.bf16 %v5394, %v5394
    %v5399 = vpack.c.bf16 %v5395, %v5395
    %v5400 = vpack.c.bf16 %v5396, %v5396
    %v5401 = vpack.c.bf16 %v5397, %v5397
    %v5402 = vld [vmem:[%s4] sm:$0xff]
    %v5403 = vld [vmem:[%s4 + $0x8] sm:$0xff]
    %v5404 = vld [vmem:[%s4 + $0x10] sm:$0xff]
    %v5405 = vld [vmem:[%s4 + $0x18] sm:$0xff]
    %v5406 = vld [vmem:[%s4 + $0x20] sm:$0xff]
    %v5407 = vld [vmem:[%s4 + $0x28] sm:$0xff]
    %v5408 = vld [vmem:[%s4 + $0x30] sm:$0xff]
    %v5409 = vld [vmem:[%s4 + $0x38] sm:$0xff]
    %v5410 = vld [vmem:[%s4 + $0x40] sm:$0xff]
    %v5411 = vld [vmem:[%s4 + $0x48] sm:$0xff]
    %v5412 = vld [vmem:[%s4 + $0x50] sm:$0xff]
    %v5413 = vld [vmem:[%s4 + $0x58] sm:$0xff]
    %v5414 = vld [vmem:[%s4 + $0x60] sm:$0xff]
    %v5415 = vld [vmem:[%s4 + $0x68] sm:$0xff]
    %v5416 = vld [vmem:[%s4 + $0x70] sm:$0xff]
    %v5417 = vld [vmem:[%s4 + $0x78] sm:$0xff]
    %v5418 = vld [vmem:[%s4 + $0x80] sm:$0xff]
    %v5419 = vld [vmem:[%s4 + $0x88] sm:$0xff]
    %v5420 = vld [vmem:[%s4 + $0x90] sm:$0xff]
    %v5421 = vld [vmem:[%s4 + $0x98] sm:$0xff]
    %v5422 = vld [vmem:[%s4 + $0xa0] sm:$0xff]
    %v5423 = vld [vmem:[%s4 + $0xa8] sm:$0xff]
    %v5424 = vld [vmem:[%s4 + $0xb0] sm:$0xff]
    %v5425 = vld [vmem:[%s4 + $0xb8] sm:$0xff]
    %v5426 = vld [vmem:[%s4 + $0xc0] sm:$0xff]
    %v5427 = vld [vmem:[%s4 + $0xc8] sm:$0xff]
    %v5428 = vld [vmem:[%s4 + $0xd0] sm:$0xff]
    %v5429 = vld [vmem:[%s4 + $0xd8] sm:$0xff]
    %v5430 = vld [vmem:[%s4 + $0xe0] sm:$0xff]
    %v5431 = vld [vmem:[%s4 + $0xe8] sm:$0xff]
    %v5432 = vld [vmem:[%s4 + $0xf0] sm:$0xff]
    %v5433 = vld [vmem:[%s4 + $0xf8] sm:$0xff]
    %v5434 = vld [vmem:[%s4 + $0x100] sm:$0xff]
    %v5435 = vld [vmem:[%s4 + $0x108] sm:$0xff]
    %v5436 = vld [vmem:[%s4 + $0x110] sm:$0xff]
    %v5437 = vld [vmem:[%s4 + $0x118] sm:$0xff]
    %v5438 = vld [vmem:[%s4 + $0x120] sm:$0xff]
    %v5439 = vld [vmem:[%s4 + $0x128] sm:$0xff]
    %v5440 = vld [vmem:[%s4 + $0x130] sm:$0xff]
    %v5441 = vld [vmem:[%s4 + $0x138] sm:$0xff]
    %v5442 = vld [vmem:[%s4 + $0x140] sm:$0xff]
    %v5443 = vld [vmem:[%s4 + $0x148] sm:$0xff]
    %v5444 = vld [vmem:[%s4 + $0x150] sm:$0xff]
    %v5445 = vld [vmem:[%s4 + $0x158] sm:$0xff]
    %v5446 = vld [vmem:[%s4 + $0x160] sm:$0xff]
    %v5447 = vld [vmem:[%s4 + $0x168] sm:$0xff]
    %v5448 = vld [vmem:[%s4 + $0x170] sm:$0xff]
    %v5449 = vld [vmem:[%s4 + $0x178] sm:$0xff]
    %v5450 = vld [vmem:[%s4 + $0x180] sm:$0xff]
    %v5451 = vld [vmem:[%s4 + $0x188] sm:$0xff]
    %v5452 = vld [vmem:[%s4 + $0x190] sm:$0xff]
    %v5453 = vld [vmem:[%s4 + $0x198] sm:$0xff]
    %v5454 = vld [vmem:[%s4 + $0x1a0] sm:$0xff]
    %v5455 = vld [vmem:[%s4 + $0x1a8] sm:$0xff]
    %v5456 = vld [vmem:[%s4 + $0x1b0] sm:$0xff]
    %v5457 = vld [vmem:[%s4 + $0x1b8] sm:$0xff]
    %v5458 = vld [vmem:[%s4 + $0x1c0] sm:$0xff]
    %v5459 = vld [vmem:[%s4 + $0x1c8] sm:$0xff]
    %v5460 = vld [vmem:[%s4 + $0x1d0] sm:$0xff]
    %v5461 = vld [vmem:[%s4 + $0x1d8] sm:$0xff]
    %v5462 = vld [vmem:[%s4 + $0x1e0] sm:$0xff]
    %v5463 = vld [vmem:[%s4 + $0x1e8] sm:$0xff]
    %v5464 = vld [vmem:[%s4 + $0x1f0] sm:$0xff]
    %v5465 = vld [vmem:[%s4 + $0x1f8] sm:$0xff]
    %v5466 = vld [vmem:[%s4 + $0x200] sm:$0xff]
    %v5467 = vld [vmem:[%s4 + $0x208] sm:$0xff]
    %v5468 = vld [vmem:[%s4 + $0x210] sm:$0xff]
    %v5469 = vld [vmem:[%s4 + $0x218] sm:$0xff]
    %v5470 = vld [vmem:[%s4 + $0x220] sm:$0xff]
    %v5471 = vld [vmem:[%s4 + $0x228] sm:$0xff]
    %v5472 = vld [vmem:[%s4 + $0x230] sm:$0xff]
    %v5473 = vld [vmem:[%s4 + $0x238] sm:$0xff]
    %v5474 = vld [vmem:[%s4 + $0x240] sm:$0xff]
    %v5475 = vld [vmem:[%s4 + $0x248] sm:$0xff]
    %v5476 = vld [vmem:[%s4 + $0x250] sm:$0xff]
    %v5477 = vld [vmem:[%s4 + $0x258] sm:$0xff]
    %v5478 = vld [vmem:[%s4 + $0x260] sm:$0xff]
    %v5479 = vld [vmem:[%s4 + $0x268] sm:$0xff]
    %v5480 = vld [vmem:[%s4 + $0x270] sm:$0xff]
    %v5481 = vld [vmem:[%s4 + $0x278] sm:$0xff]
    %v5482 = vld [vmem:[%s4 + $0x280] sm:$0xff]
    %v5483 = vld [vmem:[%s4 + $0x288] sm:$0xff]
    %v5484 = vld [vmem:[%s4 + $0x290] sm:$0xff]
    %v5485 = vld [vmem:[%s4 + $0x298] sm:$0xff]
    %v5486 = vld [vmem:[%s4 + $0x2a0] sm:$0xff]
    %v5487 = vld [vmem:[%s4 + $0x2a8] sm:$0xff]
    %v5488 = vld [vmem:[%s4 + $0x2b0] sm:$0xff]
    %v5489 = vld [vmem:[%s4 + $0x2b8] sm:$0xff]
    %v5490 = vld [vmem:[%s4 + $0x2c0] sm:$0xff]
    %v5491 = vld [vmem:[%s4 + $0x2c8] sm:$0xff]
    %v5492 = vld [vmem:[%s4 + $0x2d0] sm:$0xff]
    %v5493 = vld [vmem:[%s4 + $0x2d8] sm:$0xff]
    %v5494 = vld [vmem:[%s4 + $0x2e0] sm:$0xff]
    %v5495 = vld [vmem:[%s4 + $0x2e8] sm:$0xff]
    %v5496 = vld [vmem:[%s4 + $0x2f0] sm:$0xff]
    %v5497 = vld [vmem:[%s4 + $0x2f8] sm:$0xff]
    %v5498 = vld [vmem:[%s4 + $0x300] sm:$0xff]
    %v5499 = vld [vmem:[%s4 + $0x308] sm:$0xff]
    %v5500 = vld [vmem:[%s4 + $0x310] sm:$0xff]
    %v5501 = vld [vmem:[%s4 + $0x318] sm:$0xff]
    %v5502 = vld [vmem:[%s4 + $0x320] sm:$0xff]
    %v5503 = vld [vmem:[%s4 + $0x328] sm:$0xff]
    %v5504 = vld [vmem:[%s4 + $0x330] sm:$0xff]
    %v5505 = vld [vmem:[%s4 + $0x338] sm:$0xff]
    %v5506 = vld [vmem:[%s4 + $0x340] sm:$0xff]
    %v5507 = vld [vmem:[%s4 + $0x348] sm:$0xff]
    %v5508 = vld [vmem:[%s4 + $0x350] sm:$0xff]
    %v5509 = vld [vmem:[%s4 + $0x358] sm:$0xff]
    %v5510 = vld [vmem:[%s4 + $0x360] sm:$0xff]
    %v5511 = vld [vmem:[%s4 + $0x368] sm:$0xff]
    %v5512 = vld [vmem:[%s4 + $0x370] sm:$0xff]
    %v5513 = vld [vmem:[%s4 + $0x378] sm:$0xff]
    %v5514 = vld [vmem:[%s4 + $0x380] sm:$0xff]
    %v5515 = vld [vmem:[%s4 + $0x388] sm:$0xff]
    %v5516 = vld [vmem:[%s4 + $0x390] sm:$0xff]
    %v5517 = vld [vmem:[%s4 + $0x398] sm:$0xff]
    %v5518 = vld [vmem:[%s4 + $0x3a0] sm:$0xff]
    %v5519 = vld [vmem:[%s4 + $0x3a8] sm:$0xff]
    %v5520 = vld [vmem:[%s4 + $0x3b0] sm:$0xff]
    %v5521 = vld [vmem:[%s4 + $0x3b8] sm:$0xff]
    %v5522 = vld [vmem:[%s4 + $0x3c0] sm:$0xff]
    %v5523 = vld [vmem:[%s4 + $0x3c8] sm:$0xff]
    %v5524 = vld [vmem:[%s4 + $0x3d0] sm:$0xff]
    %v5525 = vld [vmem:[%s4 + $0x3d8] sm:$0xff]
    %v5526 = vld [vmem:[%s4 + $0x3e0] sm:$0xff]
    %v5527 = vld [vmem:[%s4 + $0x3e8] sm:$0xff]
    %v5528 = vld [vmem:[%s4 + $0x3f0] sm:$0xff]
    %v5529 = vld [vmem:[%s4 + $0x3f8] sm:$0xff]
    %v5530 = vld [vmem:[%s4 + $0x400] sm:$0xff]
    %v5531 = vld [vmem:[%s4 + $0x408] sm:$0xff]
    %v5532 = vld [vmem:[%s4 + $0x410] sm:$0xff]
    %v5533 = vld [vmem:[%s4 + $0x418] sm:$0xff]
    %v5534 = vld [vmem:[%s4 + $0x420] sm:$0xff]
    %v5535 = vld [vmem:[%s4 + $0x428] sm:$0xff]
    %v5536 = vld [vmem:[%s4 + $0x430] sm:$0xff]
    %v5537 = vld [vmem:[%s4 + $0x438] sm:$0xff]
    %v5538 = vld [vmem:[%s4 + $0x440] sm:$0xff]
    %v5539 = vld [vmem:[%s4 + $0x448] sm:$0xff]
    %v5540 = vld [vmem:[%s4 + $0x450] sm:$0xff]
    %v5541 = vld [vmem:[%s4 + $0x458] sm:$0xff]
    %v5542 = vld [vmem:[%s4 + $0x460] sm:$0xff]
    %v5543 = vld [vmem:[%s4 + $0x468] sm:$0xff]
    %v5544 = vld [vmem:[%s4 + $0x470] sm:$0xff]
    %v5545 = vld [vmem:[%s4 + $0x478] sm:$0xff]
    %v5546 = vld [vmem:[%s4 + $0x480] sm:$0xff]
    %v5547 = vld [vmem:[%s4 + $0x488] sm:$0xff]
    %v5548 = vld [vmem:[%s4 + $0x490] sm:$0xff]
    %v5549 = vld [vmem:[%s4 + $0x498] sm:$0xff]
    %v5550 = vld [vmem:[%s4 + $0x4a0] sm:$0xff]
    %v5551 = vld [vmem:[%s4 + $0x4a8] sm:$0xff]
    %v5552 = vld [vmem:[%s4 + $0x4b0] sm:$0xff]
    %v5553 = vld [vmem:[%s4 + $0x4b8] sm:$0xff]
    %v5554 = vld [vmem:[%s4 + $0x4c0] sm:$0xff]
    %v5555 = vld [vmem:[%s4 + $0x4c8] sm:$0xff]
    %v5556 = vld [vmem:[%s4 + $0x4d0] sm:$0xff]
    %v5557 = vld [vmem:[%s4 + $0x4d8] sm:$0xff]
    %v5558 = vld [vmem:[%s4 + $0x4e0] sm:$0xff]
    %v5559 = vld [vmem:[%s4 + $0x4e8] sm:$0xff]
    %v5560 = vld [vmem:[%s4 + $0x4f0] sm:$0xff]
    %v5561 = vld [vmem:[%s4 + $0x4f8] sm:$0xff]
    %v5562 = vld [vmem:[%s4 + $0x500] sm:$0xff]
    %v5563 = vld [vmem:[%s4 + $0x508] sm:$0xff]
    %v5564 = vld [vmem:[%s4 + $0x510] sm:$0xff]
    %v5565 = vld [vmem:[%s4 + $0x518] sm:$0xff]
    %v5566 = vld [vmem:[%s4 + $0x520] sm:$0xff]
    %v5567 = vld [vmem:[%s4 + $0x528] sm:$0xff]
    %v5568 = vld [vmem:[%s4 + $0x530] sm:$0xff]
    %v5569 = vld [vmem:[%s4 + $0x538] sm:$0xff]
    %v5570 = vld [vmem:[%s4 + $0x540] sm:$0xff]
    %v5571 = vld [vmem:[%s4 + $0x548] sm:$0xff]
    %v5572 = vld [vmem:[%s4 + $0x550] sm:$0xff]
    %v5573 = vld [vmem:[%s4 + $0x558] sm:$0xff]
    %v5574 = vld [vmem:[%s4 + $0x560] sm:$0xff]
    %v5575 = vld [vmem:[%s4 + $0x568] sm:$0xff]
    %v5576 = vld [vmem:[%s4 + $0x570] sm:$0xff]
    %v5577 = vld [vmem:[%s4 + $0x578] sm:$0xff]
    %v5578 = vld [vmem:[%s4 + $0x580] sm:$0xff]
    %v5579 = vld [vmem:[%s4 + $0x588] sm:$0xff]
    %v5580 = vld [vmem:[%s4 + $0x590] sm:$0xff]
    %v5581 = vld [vmem:[%s4 + $0x598] sm:$0xff]
    %v5582 = vld [vmem:[%s4 + $0x5a0] sm:$0xff]
    %v5583 = vld [vmem:[%s4 + $0x5a8] sm:$0xff]
    %v5584 = vld [vmem:[%s4 + $0x5b0] sm:$0xff]
    %v5585 = vld [vmem:[%s4 + $0x5b8] sm:$0xff]
    %v5586 = vld [vmem:[%s4 + $0x5c0] sm:$0xff]
    %v5587 = vld [vmem:[%s4 + $0x5c8] sm:$0xff]
    %v5588 = vld [vmem:[%s4 + $0x5d0] sm:$0xff]
    %v5589 = vld [vmem:[%s4 + $0x5d8] sm:$0xff]
    %v5590 = vld [vmem:[%s4 + $0x5e0] sm:$0xff]
    %v5591 = vld [vmem:[%s4 + $0x5e8] sm:$0xff]
    %v5592 = vld [vmem:[%s4 + $0x5f0] sm:$0xff]
    %v5593 = vld [vmem:[%s4 + $0x5f8] sm:$0xff]
    %v5594 = vld [vmem:[%s4 + $0x600] sm:$0xff]
    %v5595 = vld [vmem:[%s4 + $0x608] sm:$0xff]
    %v5596 = vld [vmem:[%s4 + $0x610] sm:$0xff]
    %v5597 = vld [vmem:[%s4 + $0x618] sm:$0xff]
    %v5598 = vld [vmem:[%s4 + $0x620] sm:$0xff]
    %v5599 = vld [vmem:[%s4 + $0x628] sm:$0xff]
    %v5600 = vld [vmem:[%s4 + $0x630] sm:$0xff]
    %v5601 = vld [vmem:[%s4 + $0x638] sm:$0xff]
    %v5602 = vld [vmem:[%s4 + $0x640] sm:$0xff]
    %v5603 = vld [vmem:[%s4 + $0x648] sm:$0xff]
    %v5604 = vld [vmem:[%s4 + $0x650] sm:$0xff]
    %v5605 = vld [vmem:[%s4 + $0x658] sm:$0xff]
    %v5606 = vld [vmem:[%s4 + $0x660] sm:$0xff]
    %v5607 = vld [vmem:[%s4 + $0x668] sm:$0xff]
    %v5608 = vld [vmem:[%s4 + $0x670] sm:$0xff]
    %v5609 = vld [vmem:[%s4 + $0x678] sm:$0xff]
    %v5610 = vld [vmem:[%s4 + $0x680] sm:$0xff]
    %v5611 = vld [vmem:[%s4 + $0x688] sm:$0xff]
    %v5612 = vld [vmem:[%s4 + $0x690] sm:$0xff]
    %v5613 = vld [vmem:[%s4 + $0x698] sm:$0xff]
    %v5614 = vld [vmem:[%s4 + $0x6a0] sm:$0xff]
    %v5615 = vld [vmem:[%s4 + $0x6a8] sm:$0xff]
    %v5616 = vld [vmem:[%s4 + $0x6b0] sm:$0xff]
    %v5617 = vld [vmem:[%s4 + $0x6b8] sm:$0xff]
    %v5618 = vld [vmem:[%s4 + $0x6c0] sm:$0xff]
    %v5619 = vld [vmem:[%s4 + $0x6c8] sm:$0xff]
    %v5620 = vld [vmem:[%s4 + $0x6d0] sm:$0xff]
    %v5621 = vld [vmem:[%s4 + $0x6d8] sm:$0xff]
    %v5622 = vld [vmem:[%s4 + $0x6e0] sm:$0xff]
    %v5623 = vld [vmem:[%s4 + $0x6e8] sm:$0xff]
    %v5624 = vld [vmem:[%s4 + $0x6f0] sm:$0xff]
    %v5625 = vld [vmem:[%s4 + $0x6f8] sm:$0xff]
    %v5626 = vld [vmem:[%s4 + $0x700] sm:$0xff]
    %v5627 = vld [vmem:[%s4 + $0x708] sm:$0xff]
    %v5628 = vld [vmem:[%s4 + $0x710] sm:$0xff]
    %v5629 = vld [vmem:[%s4 + $0x718] sm:$0xff]
    %v5630 = vld [vmem:[%s4 + $0x720] sm:$0xff]
    %v5631 = vld [vmem:[%s4 + $0x728] sm:$0xff]
    %v5632 = vld [vmem:[%s4 + $0x730] sm:$0xff]
    %v5633 = vld [vmem:[%s4 + $0x738] sm:$0xff]
    %v5634 = vld [vmem:[%s4 + $0x740] sm:$0xff]
    %v5635 = vld [vmem:[%s4 + $0x748] sm:$0xff]
    %v5636 = vld [vmem:[%s4 + $0x750] sm:$0xff]
    %v5637 = vld [vmem:[%s4 + $0x758] sm:$0xff]
    %v5638 = vld [vmem:[%s4 + $0x760] sm:$0xff]
    %v5639 = vld [vmem:[%s4 + $0x768] sm:$0xff]
    %v5640 = vld [vmem:[%s4 + $0x770] sm:$0xff]
    %v5641 = vld [vmem:[%s4 + $0x778] sm:$0xff]
    %v5642 = vld [vmem:[%s4 + $0x780] sm:$0xff]
    %v5643 = vld [vmem:[%s4 + $0x788] sm:$0xff]
    %v5644 = vld [vmem:[%s4 + $0x790] sm:$0xff]
    %v5645 = vld [vmem:[%s4 + $0x798] sm:$0xff]
    %v5646 = vld [vmem:[%s4 + $0x7a0] sm:$0xff]
    %v5647 = vld [vmem:[%s4 + $0x7a8] sm:$0xff]
    %v5648 = vld [vmem:[%s4 + $0x7b0] sm:$0xff]
    %v5649 = vld [vmem:[%s4 + $0x7b8] sm:$0xff]
    %v5650 = vld [vmem:[%s4 + $0x7c0] sm:$0xff]
    %v5651 = vld [vmem:[%s4 + $0x7c8] sm:$0xff]
    %v5652 = vld [vmem:[%s4 + $0x7d0] sm:$0xff]
    %v5653 = vld [vmem:[%s4 + $0x7d8] sm:$0xff]
    %v5654 = vld [vmem:[%s4 + $0x7e0] sm:$0xff]
    %v5655 = vld [vmem:[%s4 + $0x7e8] sm:$0xff]
    %v5656 = vld [vmem:[%s4 + $0x7f0] sm:$0xff]
    %v5657 = vld [vmem:[%s4 + $0x7f8] sm:$0xff]
    %v5658 = vld [vmem:[%s4 + $0x800] sm:$0xff]
    %v5659 = vld [vmem:[%s4 + $0x808] sm:$0xff]
    %v5660 = vld [vmem:[%s4 + $0x810] sm:$0xff]
    %v5661 = vld [vmem:[%s4 + $0x818] sm:$0xff]
    %v5662 = vld [vmem:[%s4 + $0x820] sm:$0xff]
    %v5663 = vld [vmem:[%s4 + $0x828] sm:$0xff]
    %v5664 = vld [vmem:[%s4 + $0x830] sm:$0xff]
    %v5665 = vld [vmem:[%s4 + $0x838] sm:$0xff]
    %v5666 = vld [vmem:[%s4 + $0x840] sm:$0xff]
    %v5667 = vld [vmem:[%s4 + $0x848] sm:$0xff]
    %v5668 = vld [vmem:[%s4 + $0x850] sm:$0xff]
    %v5669 = vld [vmem:[%s4 + $0x858] sm:$0xff]
    %v5670 = vld [vmem:[%s4 + $0x860] sm:$0xff]
    %v5671 = vld [vmem:[%s4 + $0x868] sm:$0xff]
    %v5672 = vld [vmem:[%s4 + $0x870] sm:$0xff]
    %v5673 = vld [vmem:[%s4 + $0x878] sm:$0xff]
    %v5674 = vld [vmem:[%s4 + $0x880] sm:$0xff]
    %v5675 = vld [vmem:[%s4 + $0x888] sm:$0xff]
    %v5676 = vld [vmem:[%s4 + $0x890] sm:$0xff]
    %v5677 = vld [vmem:[%s4 + $0x898] sm:$0xff]
    %v5678 = vld [vmem:[%s4 + $0x8a0] sm:$0xff]
    %v5679 = vld [vmem:[%s4 + $0x8a8] sm:$0xff]
    %v5680 = vld [vmem:[%s4 + $0x8b0] sm:$0xff]
    %v5681 = vld [vmem:[%s4 + $0x8b8] sm:$0xff]
    %v5682 = vld [vmem:[%s4 + $0x8c0] sm:$0xff]
    %v5683 = vld [vmem:[%s4 + $0x8c8] sm:$0xff]
    %v5684 = vld [vmem:[%s4 + $0x8d0] sm:$0xff]
    %v5685 = vld [vmem:[%s4 + $0x8d8] sm:$0xff]
    %v5686 = vld [vmem:[%s4 + $0x8e0] sm:$0xff]
    %v5687 = vld [vmem:[%s4 + $0x8e8] sm:$0xff]
    %v5688 = vld [vmem:[%s4 + $0x8f0] sm:$0xff]
    %v5689 = vld [vmem:[%s4 + $0x8f8] sm:$0xff]
    %v5690 = vld [vmem:[%s4 + $0x900] sm:$0xff]
    %v5691 = vld [vmem:[%s4 + $0x908] sm:$0xff]
    %v5692 = vld [vmem:[%s4 + $0x910] sm:$0xff]
    %v5693 = vld [vmem:[%s4 + $0x918] sm:$0xff]
    %v5694 = vld [vmem:[%s4 + $0x920] sm:$0xff]
    %v5695 = vld [vmem:[%s4 + $0x928] sm:$0xff]
    %v5696 = vld [vmem:[%s4 + $0x930] sm:$0xff]
    %v5697 = vld [vmem:[%s4 + $0x938] sm:$0xff]
    %v5698 = vld [vmem:[%s4 + $0x940] sm:$0xff]
    %v5699 = vld [vmem:[%s4 + $0x948] sm:$0xff]
    %v5700 = vld [vmem:[%s4 + $0x950] sm:$0xff]
    %v5701 = vld [vmem:[%s4 + $0x958] sm:$0xff]
    %v5702 = vld [vmem:[%s4 + $0x960] sm:$0xff]
    %v5703 = vld [vmem:[%s4 + $0x968] sm:$0xff]
    %v5704 = vld [vmem:[%s4 + $0x970] sm:$0xff]
    %v5705 = vld [vmem:[%s4 + $0x978] sm:$0xff]
    %v5706 = vld [vmem:[%s4 + $0x980] sm:$0xff]
    %v5707 = vld [vmem:[%s4 + $0x988] sm:$0xff]
    %v5708 = vld [vmem:[%s4 + $0x990] sm:$0xff]
    %v5709 = vld [vmem:[%s4 + $0x998] sm:$0xff]
    %v5710 = vld [vmem:[%s4 + $0x9a0] sm:$0xff]
    %v5711 = vld [vmem:[%s4 + $0x9a8] sm:$0xff]
    %v5712 = vld [vmem:[%s4 + $0x9b0] sm:$0xff]
    %v5713 = vld [vmem:[%s4 + $0x9b8] sm:$0xff]
    %v5714 = vld [vmem:[%s4 + $0x9c0] sm:$0xff]
    %v5715 = vld [vmem:[%s4 + $0x9c8] sm:$0xff]
    %v5716 = vld [vmem:[%s4 + $0x9d0] sm:$0xff]
    %v5717 = vld [vmem:[%s4 + $0x9d8] sm:$0xff]
    %v5718 = vld [vmem:[%s4 + $0x9e0] sm:$0xff]
    %v5719 = vld [vmem:[%s4 + $0x9e8] sm:$0xff]
    %v5720 = vld [vmem:[%s4 + $0x9f0] sm:$0xff]
    %v5721 = vld [vmem:[%s4 + $0x9f8] sm:$0xff]
    %v5722 = vld [vmem:[%s4 + $0xa00] sm:$0xff]
    %v5723 = vld [vmem:[%s4 + $0xa08] sm:$0xff]
    %v5724 = vld [vmem:[%s4 + $0xa10] sm:$0xff]
    %v5725 = vld [vmem:[%s4 + $0xa18] sm:$0xff]
    %v5726 = vld [vmem:[%s4 + $0xa20] sm:$0xff]
    %v5727 = vld [vmem:[%s4 + $0xa28] sm:$0xff]
    %v5728 = vld [vmem:[%s4 + $0xa30] sm:$0xff]
    %v5729 = vld [vmem:[%s4 + $0xa38] sm:$0xff]
    %v5730 = vld [vmem:[%s4 + $0xa40] sm:$0xff]
    %v5731 = vld [vmem:[%s4 + $0xa48] sm:$0xff]
    %v5732 = vld [vmem:[%s4 + $0xa50] sm:$0xff]
    %v5733 = vld [vmem:[%s4 + $0xa58] sm:$0xff]
    %v5734 = vld [vmem:[%s4 + $0xa60] sm:$0xff]
    %v5735 = vld [vmem:[%s4 + $0xa68] sm:$0xff]
    %v5736 = vld [vmem:[%s4 + $0xa70] sm:$0xff]
    %v5737 = vld [vmem:[%s4 + $0xa78] sm:$0xff]
    %v5738 = vld [vmem:[%s4 + $0xa80] sm:$0xff]
    %v5739 = vld [vmem:[%s4 + $0xa88] sm:$0xff]
    %v5740 = vld [vmem:[%s4 + $0xa90] sm:$0xff]
    %v5741 = vld [vmem:[%s4 + $0xa98] sm:$0xff]
    %v5742 = vld [vmem:[%s4 + $0xaa0] sm:$0xff]
    %v5743 = vld [vmem:[%s4 + $0xaa8] sm:$0xff]
    %v5744 = vld [vmem:[%s4 + $0xab0] sm:$0xff]
    %v5745 = vld [vmem:[%s4 + $0xab8] sm:$0xff]
    %v5746 = vld [vmem:[%s4 + $0xac0] sm:$0xff]
    %v5747 = vld [vmem:[%s4 + $0xac8] sm:$0xff]
    %v5748 = vld [vmem:[%s4 + $0xad0] sm:$0xff]
    %v5749 = vld [vmem:[%s4 + $0xad8] sm:$0xff]
    %v5750 = vld [vmem:[%s4 + $0xae0] sm:$0xff]
    %v5751 = vld [vmem:[%s4 + $0xae8] sm:$0xff]
    %v5752 = vld [vmem:[%s4 + $0xaf0] sm:$0xff]
    %v5753 = vld [vmem:[%s4 + $0xaf8] sm:$0xff]
    %v5754 = vld [vmem:[%s4 + $0xb00] sm:$0xff]
    %v5755 = vld [vmem:[%s4 + $0xb08] sm:$0xff]
    %v5756 = vld [vmem:[%s4 + $0xb10] sm:$0xff]
    %v5757 = vld [vmem:[%s4 + $0xb18] sm:$0xff]
    %v5758 = vld [vmem:[%s4 + $0xb20] sm:$0xff]
    %v5759 = vld [vmem:[%s4 + $0xb28] sm:$0xff]
    %v5760 = vld [vmem:[%s4 + $0xb30] sm:$0xff]
    %v5761 = vld [vmem:[%s4 + $0xb38] sm:$0xff]
    %v5762 = vld [vmem:[%s4 + $0xb40] sm:$0xff]
    %v5763 = vld [vmem:[%s4 + $0xb48] sm:$0xff]
    %v5764 = vld [vmem:[%s4 + $0xb50] sm:$0xff]
    %v5765 = vld [vmem:[%s4 + $0xb58] sm:$0xff]
    %v5766 = vld [vmem:[%s4 + $0xb60] sm:$0xff]
    %v5767 = vld [vmem:[%s4 + $0xb68] sm:$0xff]
    %v5768 = vld [vmem:[%s4 + $0xb70] sm:$0xff]
    %v5769 = vld [vmem:[%s4 + $0xb78] sm:$0xff]
    %v5770 = vld [vmem:[%s4 + $0xb80] sm:$0xff]
    %v5771 = vld [vmem:[%s4 + $0xb88] sm:$0xff]
    %v5772 = vld [vmem:[%s4 + $0xb90] sm:$0xff]
    %v5773 = vld [vmem:[%s4 + $0xb98] sm:$0xff]
    %v5774 = vld [vmem:[%s4 + $0xba0] sm:$0xff]
    %v5775 = vld [vmem:[%s4 + $0xba8] sm:$0xff]
    %v5776 = vld [vmem:[%s4 + $0xbb0] sm:$0xff]
    %v5777 = vld [vmem:[%s4 + $0xbb8] sm:$0xff]
    %v5778 = vld [vmem:[%s4 + $0xbc0] sm:$0xff]
    %v5779 = vld [vmem:[%s4 + $0xbc8] sm:$0xff]
    %v5780 = vld [vmem:[%s4 + $0xbd0] sm:$0xff]
    %v5781 = vld [vmem:[%s4 + $0xbd8] sm:$0xff]
    %v5782 = vld [vmem:[%s4 + $0xbe0] sm:$0xff]
    %v5783 = vld [vmem:[%s4 + $0xbe8] sm:$0xff]
    %v5784 = vld [vmem:[%s4 + $0xbf0] sm:$0xff]
    %v5785 = vld [vmem:[%s4 + $0xbf8] sm:$0xff]
    %v6170 = vunpack.c.l.b16 %v5402
    %v6171 = vunpack.c.h.b16 %v5402
    %v6172 = vunpack.c.l.b16 %v5403
    %v6173 = vunpack.c.h.b16 %v5403
    %v6174 = vunpack.c.l.b16 %v5404
    %v6175 = vunpack.c.h.b16 %v5404
    %v6176 = vunpack.c.l.b16 %v5405
    %v6177 = vunpack.c.h.b16 %v5405
    %v6178 = vunpack.c.l.b16 %v5406
    %v6179 = vunpack.c.h.b16 %v5406
    %v6180 = vunpack.c.l.b16 %v5407
    %v6181 = vunpack.c.h.b16 %v5407
    %v6182 = vunpack.c.l.b16 %v5408
    %v6183 = vunpack.c.h.b16 %v5408
    %v6184 = vunpack.c.l.b16 %v5409
    %v6185 = vunpack.c.h.b16 %v5409
    %v6186 = vunpack.c.l.b16 %v5410
    %v6187 = vunpack.c.h.b16 %v5410
    %v6188 = vunpack.c.l.b16 %v5411
    %v6189 = vunpack.c.h.b16 %v5411
    %v6190 = vunpack.c.l.b16 %v5412
    %v6191 = vunpack.c.h.b16 %v5412
    %v6192 = vunpack.c.l.b16 %v5413
    %v6193 = vunpack.c.h.b16 %v5413
    %v6194 = vunpack.c.l.b16 %v5414
    %v6195 = vunpack.c.h.b16 %v5414
    %v6196 = vunpack.c.l.b16 %v5415
    %v6197 = vunpack.c.h.b16 %v5415
    %v6198 = vunpack.c.l.b16 %v5416
    %v6199 = vunpack.c.h.b16 %v5416
    %v6200 = vunpack.c.l.b16 %v5417
    %v6201 = vunpack.c.h.b16 %v5417
    %v6202 = vunpack.c.l.b16 %v5418
    %v6203 = vunpack.c.h.b16 %v5418
    %v6204 = vunpack.c.l.b16 %v5419
    %v6205 = vunpack.c.h.b16 %v5419
    %v6206 = vunpack.c.l.b16 %v5420
    %v6207 = vunpack.c.h.b16 %v5420
    %v6208 = vunpack.c.l.b16 %v5421
    %v6209 = vunpack.c.h.b16 %v5421
    %v6210 = vunpack.c.l.b16 %v5422
    %v6211 = vunpack.c.h.b16 %v5422
    %v6212 = vunpack.c.l.b16 %v5423
    %v6213 = vunpack.c.h.b16 %v5423
    %v6214 = vunpack.c.l.b16 %v5424
    %v6215 = vunpack.c.h.b16 %v5424
    %v6216 = vunpack.c.l.b16 %v5425
    %v6217 = vunpack.c.h.b16 %v5425
    %v6218 = vunpack.c.l.b16 %v5426
    %v6219 = vunpack.c.h.b16 %v5426
    %v6220 = vunpack.c.l.b16 %v5427
    %v6221 = vunpack.c.h.b16 %v5427
    %v6222 = vunpack.c.l.b16 %v5428
    %v6223 = vunpack.c.h.b16 %v5428
    %v6224 = vunpack.c.l.b16 %v5429
    %v6225 = vunpack.c.h.b16 %v5429
    %v6226 = vunpack.c.l.b16 %v5430
    %v6227 = vunpack.c.h.b16 %v5430
    %v6228 = vunpack.c.l.b16 %v5431
    %v6229 = vunpack.c.h.b16 %v5431
    %v6230 = vunpack.c.l.b16 %v5432
    %v6231 = vunpack.c.h.b16 %v5432
    %v6232 = vunpack.c.l.b16 %v5433
    %v6233 = vunpack.c.h.b16 %v5433
    %v6234 = vunpack.c.l.b16 %v5434
    %v6235 = vunpack.c.h.b16 %v5434
    %v6236 = vunpack.c.l.b16 %v5435
    %v6237 = vunpack.c.h.b16 %v5435
    %v6238 = vunpack.c.l.b16 %v5436
    %v6239 = vunpack.c.h.b16 %v5436
    %v6240 = vunpack.c.l.b16 %v5437
    %v6241 = vunpack.c.h.b16 %v5437
    %v6242 = vunpack.c.l.b16 %v5438
    %v6243 = vunpack.c.h.b16 %v5438
    %v6244 = vunpack.c.l.b16 %v5439
    %v6245 = vunpack.c.h.b16 %v5439
    %v6246 = vunpack.c.l.b16 %v5440
    %v6247 = vunpack.c.h.b16 %v5440
    %v6248 = vunpack.c.l.b16 %v5441
    %v6249 = vunpack.c.h.b16 %v5441
    %v6250 = vunpack.c.l.b16 %v5442
    %v6251 = vunpack.c.h.b16 %v5442
    %v6252 = vunpack.c.l.b16 %v5443
    %v6253 = vunpack.c.h.b16 %v5443
    %v6254 = vunpack.c.l.b16 %v5444
    %v6255 = vunpack.c.h.b16 %v5444
    %v6256 = vunpack.c.l.b16 %v5445
    %v6257 = vunpack.c.h.b16 %v5445
    %v6258 = vunpack.c.l.b16 %v5446
    %v6259 = vunpack.c.h.b16 %v5446
    %v6260 = vunpack.c.l.b16 %v5447
    %v6261 = vunpack.c.h.b16 %v5447
    %v6262 = vunpack.c.l.b16 %v5448
    %v6263 = vunpack.c.h.b16 %v5448
    %v6264 = vunpack.c.l.b16 %v5449
    %v6265 = vunpack.c.h.b16 %v5449
    %v6266 = vunpack.c.l.b16 %v5450
    %v6267 = vunpack.c.h.b16 %v5450
    %v6268 = vunpack.c.l.b16 %v5451
    %v6269 = vunpack.c.h.b16 %v5451
    %v6270 = vunpack.c.l.b16 %v5452
    %v6271 = vunpack.c.h.b16 %v5452
    %v6272 = vunpack.c.l.b16 %v5453
    %v6273 = vunpack.c.h.b16 %v5453
    %v6274 = vunpack.c.l.b16 %v5454
    %v6275 = vunpack.c.h.b16 %v5454
    %v6276 = vunpack.c.l.b16 %v5455
    %v6277 = vunpack.c.h.b16 %v5455
    %v6278 = vunpack.c.l.b16 %v5456
    %v6279 = vunpack.c.h.b16 %v5456
    %v6280 = vunpack.c.l.b16 %v5457
    %v6281 = vunpack.c.h.b16 %v5457
    %v6282 = vunpack.c.l.b16 %v5458
    %v6283 = vunpack.c.h.b16 %v5458
    %v6284 = vunpack.c.l.b16 %v5459
    %v6285 = vunpack.c.h.b16 %v5459
    %v6286 = vunpack.c.l.b16 %v5460
    %v6287 = vunpack.c.h.b16 %v5460
    %v6288 = vunpack.c.l.b16 %v5461
    %v6289 = vunpack.c.h.b16 %v5461
    %v6290 = vunpack.c.l.b16 %v5462
    %v6291 = vunpack.c.h.b16 %v5462
    %v6292 = vunpack.c.l.b16 %v5463
    %v6293 = vunpack.c.h.b16 %v5463
    %v6294 = vunpack.c.l.b16 %v5464
    %v6295 = vunpack.c.h.b16 %v5464
    %v6296 = vunpack.c.l.b16 %v5465
    %v6297 = vunpack.c.h.b16 %v5465
    %v6298 = vunpack.c.l.b16 %v5466
    %v6299 = vunpack.c.h.b16 %v5466
    %v6300 = vunpack.c.l.b16 %v5467
    %v6301 = vunpack.c.h.b16 %v5467
    %v6302 = vunpack.c.l.b16 %v5468
    %v6303 = vunpack.c.h.b16 %v5468
    %v6304 = vunpack.c.l.b16 %v5469
    %v6305 = vunpack.c.h.b16 %v5469
    %v6306 = vunpack.c.l.b16 %v5470
    %v6307 = vunpack.c.h.b16 %v5470
    %v6308 = vunpack.c.l.b16 %v5471
    %v6309 = vunpack.c.h.b16 %v5471
    %v6310 = vunpack.c.l.b16 %v5472
    %v6311 = vunpack.c.h.b16 %v5472
    %v6312 = vunpack.c.l.b16 %v5473
    %v6313 = vunpack.c.h.b16 %v5473
    %v6314 = vunpack.c.l.b16 %v5474
    %v6315 = vunpack.c.h.b16 %v5474
    %v6316 = vunpack.c.l.b16 %v5475
    %v6317 = vunpack.c.h.b16 %v5475
    %v6318 = vunpack.c.l.b16 %v5476
    %v6319 = vunpack.c.h.b16 %v5476
    %v6320 = vunpack.c.l.b16 %v5477
    %v6321 = vunpack.c.h.b16 %v5477
    %v6322 = vunpack.c.l.b16 %v5478
    %v6323 = vunpack.c.h.b16 %v5478
    %v6324 = vunpack.c.l.b16 %v5479
    %v6325 = vunpack.c.h.b16 %v5479
    %v6326 = vunpack.c.l.b16 %v5480
    %v6327 = vunpack.c.h.b16 %v5480
    %v6328 = vunpack.c.l.b16 %v5481
    %v6329 = vunpack.c.h.b16 %v5481
    %v6330 = vunpack.c.l.b16 %v5482
    %v6331 = vunpack.c.h.b16 %v5482
    %v6332 = vunpack.c.l.b16 %v5483
    %v6333 = vunpack.c.h.b16 %v5483
    %v6334 = vunpack.c.l.b16 %v5484
    %v6335 = vunpack.c.h.b16 %v5484
    %v6336 = vunpack.c.l.b16 %v5485
    %v6337 = vunpack.c.h.b16 %v5485
    %v6338 = vunpack.c.l.b16 %v5486
    %v6339 = vunpack.c.h.b16 %v5486
    %v6340 = vunpack.c.l.b16 %v5487
    %v6341 = vunpack.c.h.b16 %v5487
    %v6342 = vunpack.c.l.b16 %v5488
    %v6343 = vunpack.c.h.b16 %v5488
    %v6344 = vunpack.c.l.b16 %v5489
    %v6345 = vunpack.c.h.b16 %v5489
    %v6346 = vunpack.c.l.b16 %v5490
    %v6347 = vunpack.c.h.b16 %v5490
    %v6348 = vunpack.c.l.b16 %v5491
    %v6349 = vunpack.c.h.b16 %v5491
    %v6350 = vunpack.c.l.b16 %v5492
    %v6351 = vunpack.c.h.b16 %v5492
    %v6352 = vunpack.c.l.b16 %v5493
    %v6353 = vunpack.c.h.b16 %v5493
    %v6354 = vunpack.c.l.b16 %v5494
    %v6355 = vunpack.c.h.b16 %v5494
    %v6356 = vunpack.c.l.b16 %v5495
    %v6357 = vunpack.c.h.b16 %v5495
    %v6358 = vunpack.c.l.b16 %v5496
    %v6359 = vunpack.c.h.b16 %v5496
    %v6360 = vunpack.c.l.b16 %v5497
    %v6361 = vunpack.c.h.b16 %v5497
    %v6362 = vunpack.c.l.b16 %v5498
    %v6363 = vunpack.c.h.b16 %v5498
    %v6364 = vunpack.c.l.b16 %v5499
    %v6365 = vunpack.c.h.b16 %v5499
    %v6366 = vunpack.c.l.b16 %v5500
    %v6367 = vunpack.c.h.b16 %v5500
    %v6368 = vunpack.c.l.b16 %v5501
    %v6369 = vunpack.c.h.b16 %v5501
    %v6370 = vunpack.c.l.b16 %v5502
    %v6371 = vunpack.c.h.b16 %v5502
    %v6372 = vunpack.c.l.b16 %v5503
    %v6373 = vunpack.c.h.b16 %v5503
    %v6374 = vunpack.c.l.b16 %v5504
    %v6375 = vunpack.c.h.b16 %v5504
    %v6376 = vunpack.c.l.b16 %v5505
    %v6377 = vunpack.c.h.b16 %v5505
    %v6378 = vunpack.c.l.b16 %v5506
    %v6379 = vunpack.c.h.b16 %v5506
    %v6380 = vunpack.c.l.b16 %v5507
    %v6381 = vunpack.c.h.b16 %v5507
    %v6382 = vunpack.c.l.b16 %v5508
    %v6383 = vunpack.c.h.b16 %v5508
    %v6384 = vunpack.c.l.b16 %v5509
    %v6385 = vunpack.c.h.b16 %v5509
    %v6386 = vunpack.c.l.b16 %v5510
    %v6387 = vunpack.c.h.b16 %v5510
    %v6388 = vunpack.c.l.b16 %v5511
    %v6389 = vunpack.c.h.b16 %v5511
    %v6390 = vunpack.c.l.b16 %v5512
    %v6391 = vunpack.c.h.b16 %v5512
    %v6392 = vunpack.c.l.b16 %v5513
    %v6393 = vunpack.c.h.b16 %v5513
    %v6394 = vunpack.c.l.b16 %v5514
    %v6395 = vunpack.c.h.b16 %v5514
    %v6396 = vunpack.c.l.b16 %v5515
    %v6397 = vunpack.c.h.b16 %v5515
    %v6398 = vunpack.c.l.b16 %v5516
    %v6399 = vunpack.c.h.b16 %v5516
    %v6400 = vunpack.c.l.b16 %v5517
    %v6401 = vunpack.c.h.b16 %v5517
    %v6402 = vunpack.c.l.b16 %v5518
    %v6403 = vunpack.c.h.b16 %v5518
    %v6404 = vunpack.c.l.b16 %v5519
    %v6405 = vunpack.c.h.b16 %v5519
    %v6406 = vunpack.c.l.b16 %v5520
    %v6407 = vunpack.c.h.b16 %v5520
    %v6408 = vunpack.c.l.b16 %v5521
    %v6409 = vunpack.c.h.b16 %v5521
    %v6410 = vunpack.c.l.b16 %v5522
    %v6411 = vunpack.c.h.b16 %v5522
    %v6412 = vunpack.c.l.b16 %v5523
    %v6413 = vunpack.c.h.b16 %v5523
    %v6414 = vunpack.c.l.b16 %v5524
    %v6415 = vunpack.c.h.b16 %v5524
    %v6416 = vunpack.c.l.b16 %v5525
    %v6417 = vunpack.c.h.b16 %v5525
    %v6418 = vunpack.c.l.b16 %v5526
    %v6419 = vunpack.c.h.b16 %v5526
    %v6420 = vunpack.c.l.b16 %v5527
    %v6421 = vunpack.c.h.b16 %v5527
    %v6422 = vunpack.c.l.b16 %v5528
    %v6423 = vunpack.c.h.b16 %v5528
    %v6424 = vunpack.c.l.b16 %v5529
    %v6425 = vunpack.c.h.b16 %v5529
    %v6426 = vunpack.c.l.b16 %v5530
    %v6427 = vunpack.c.h.b16 %v5530
    %v6428 = vunpack.c.l.b16 %v5531
    %v6429 = vunpack.c.h.b16 %v5531
    %v6430 = vunpack.c.l.b16 %v5532
    %v6431 = vunpack.c.h.b16 %v5532
    %v6432 = vunpack.c.l.b16 %v5533
    %v6433 = vunpack.c.h.b16 %v5533
    %v6434 = vunpack.c.l.b16 %v5534
    %v6435 = vunpack.c.h.b16 %v5534
    %v6436 = vunpack.c.l.b16 %v5535
    %v6437 = vunpack.c.h.b16 %v5535
    %v6438 = vunpack.c.l.b16 %v5536
    %v6439 = vunpack.c.h.b16 %v5536
    %v6440 = vunpack.c.l.b16 %v5537
    %v6441 = vunpack.c.h.b16 %v5537
    %v6442 = vunpack.c.l.b16 %v5538
    %v6443 = vunpack.c.h.b16 %v5538
    %v6444 = vunpack.c.l.b16 %v5539
    %v6445 = vunpack.c.h.b16 %v5539
    %v6446 = vunpack.c.l.b16 %v5540
    %v6447 = vunpack.c.h.b16 %v5540
    %v6448 = vunpack.c.l.b16 %v5541
    %v6449 = vunpack.c.h.b16 %v5541
    %v6450 = vunpack.c.l.b16 %v5542
    %v6451 = vunpack.c.h.b16 %v5542
    %v6452 = vunpack.c.l.b16 %v5543
    %v6453 = vunpack.c.h.b16 %v5543
    %v6454 = vunpack.c.l.b16 %v5544
    %v6455 = vunpack.c.h.b16 %v5544
    %v6456 = vunpack.c.l.b16 %v5545
    %v6457 = vunpack.c.h.b16 %v5545
    %v6458 = vunpack.c.l.b16 %v5546
    %v6459 = vunpack.c.h.b16 %v5546
    %v6460 = vunpack.c.l.b16 %v5547
    %v6461 = vunpack.c.h.b16 %v5547
    %v6462 = vunpack.c.l.b16 %v5548
    %v6463 = vunpack.c.h.b16 %v5548
    %v6464 = vunpack.c.l.b16 %v5549
    %v6465 = vunpack.c.h.b16 %v5549
    %v6466 = vunpack.c.l.b16 %v5550
    %v6467 = vunpack.c.h.b16 %v5550
    %v6468 = vunpack.c.l.b16 %v5551
    %v6469 = vunpack.c.h.b16 %v5551
    %v6470 = vunpack.c.l.b16 %v5552
    %v6471 = vunpack.c.h.b16 %v5552
    %v6472 = vunpack.c.l.b16 %v5553
    %v6473 = vunpack.c.h.b16 %v5553
    %v6474 = vunpack.c.l.b16 %v5554
    %v6475 = vunpack.c.h.b16 %v5554
    %v6476 = vunpack.c.l.b16 %v5555
    %v6477 = vunpack.c.h.b16 %v5555
    %v6478 = vunpack.c.l.b16 %v5556
    %v6479 = vunpack.c.h.b16 %v5556
    %v6480 = vunpack.c.l.b16 %v5557
    %v6481 = vunpack.c.h.b16 %v5557
    %v6482 = vunpack.c.l.b16 %v5558
    %v6483 = vunpack.c.h.b16 %v5558
    %v6484 = vunpack.c.l.b16 %v5559
    %v6485 = vunpack.c.h.b16 %v5559
    %v6486 = vunpack.c.l.b16 %v5560
    %v6487 = vunpack.c.h.b16 %v5560
    %v6488 = vunpack.c.l.b16 %v5561
    %v6489 = vunpack.c.h.b16 %v5561
    %v6490 = vunpack.c.l.b16 %v5562
    %v6491 = vunpack.c.h.b16 %v5562
    %v6492 = vunpack.c.l.b16 %v5563
    %v6493 = vunpack.c.h.b16 %v5563
    %v6494 = vunpack.c.l.b16 %v5564
    %v6495 = vunpack.c.h.b16 %v5564
    %v6496 = vunpack.c.l.b16 %v5565
    %v6497 = vunpack.c.h.b16 %v5565
    %v6498 = vunpack.c.l.b16 %v5566
    %v6499 = vunpack.c.h.b16 %v5566
    %v6500 = vunpack.c.l.b16 %v5567
    %v6501 = vunpack.c.h.b16 %v5567
    %v6502 = vunpack.c.l.b16 %v5568
    %v6503 = vunpack.c.h.b16 %v5568
    %v6504 = vunpack.c.l.b16 %v5569
    %v6505 = vunpack.c.h.b16 %v5569
    %v6506 = vunpack.c.l.b16 %v5570
    %v6507 = vunpack.c.h.b16 %v5570
    %v6508 = vunpack.c.l.b16 %v5571
    %v6509 = vunpack.c.h.b16 %v5571
    %v6510 = vunpack.c.l.b16 %v5572
    %v6511 = vunpack.c.h.b16 %v5572
    %v6512 = vunpack.c.l.b16 %v5573
    %v6513 = vunpack.c.h.b16 %v5573
    %v6514 = vunpack.c.l.b16 %v5574
    %v6515 = vunpack.c.h.b16 %v5574
    %v6516 = vunpack.c.l.b16 %v5575
    %v6517 = vunpack.c.h.b16 %v5575
    %v6518 = vunpack.c.l.b16 %v5576
    %v6519 = vunpack.c.h.b16 %v5576
    %v6520 = vunpack.c.l.b16 %v5577
    %v6521 = vunpack.c.h.b16 %v5577
    %v6522 = vunpack.c.l.b16 %v5578
    %v6523 = vunpack.c.h.b16 %v5578
    %v6524 = vunpack.c.l.b16 %v5579
    %v6525 = vunpack.c.h.b16 %v5579
    %v6526 = vunpack.c.l.b16 %v5580
    %v6527 = vunpack.c.h.b16 %v5580
    %v6528 = vunpack.c.l.b16 %v5581
    %v6529 = vunpack.c.h.b16 %v5581
    %v6530 = vunpack.c.l.b16 %v5582
    %v6531 = vunpack.c.h.b16 %v5582
    %v6532 = vunpack.c.l.b16 %v5583
    %v6533 = vunpack.c.h.b16 %v5583
    %v6534 = vunpack.c.l.b16 %v5584
    %v6535 = vunpack.c.h.b16 %v5584
    %v6536 = vunpack.c.l.b16 %v5585
    %v6537 = vunpack.c.h.b16 %v5585
    %v6538 = vunpack.c.l.b16 %v5586
    %v6539 = vunpack.c.h.b16 %v5586
    %v6540 = vunpack.c.l.b16 %v5587
    %v6541 = vunpack.c.h.b16 %v5587
    %v6542 = vunpack.c.l.b16 %v5588
    %v6543 = vunpack.c.h.b16 %v5588
    %v6544 = vunpack.c.l.b16 %v5589
    %v6545 = vunpack.c.h.b16 %v5589
    %v6546 = vunpack.c.l.b16 %v5590
    %v6547 = vunpack.c.h.b16 %v5590
    %v6548 = vunpack.c.l.b16 %v5591
    %v6549 = vunpack.c.h.b16 %v5591
    %v6550 = vunpack.c.l.b16 %v5592
    %v6551 = vunpack.c.h.b16 %v5592
    %v6552 = vunpack.c.l.b16 %v5593
    %v6553 = vunpack.c.h.b16 %v5593
    %v6554 = vunpack.c.l.b16 %v5594
    %v6555 = vunpack.c.h.b16 %v5594
    %v6556 = vunpack.c.l.b16 %v5595
    %v6557 = vunpack.c.h.b16 %v5595
    %v6558 = vunpack.c.l.b16 %v5596
    %v6559 = vunpack.c.h.b16 %v5596
    %v6560 = vunpack.c.l.b16 %v5597
    %v6561 = vunpack.c.h.b16 %v5597
    %v6562 = vunpack.c.l.b16 %v5598
    %v6563 = vunpack.c.h.b16 %v5598
    %v6564 = vunpack.c.l.b16 %v5599
    %v6565 = vunpack.c.h.b16 %v5599
    %v6566 = vunpack.c.l.b16 %v5600
    %v6567 = vunpack.c.h.b16 %v5600
    %v6568 = vunpack.c.l.b16 %v5601
    %v6569 = vunpack.c.h.b16 %v5601
    %v6570 = vunpack.c.l.b16 %v5602
    %v6571 = vunpack.c.h.b16 %v5602
    %v6572 = vunpack.c.l.b16 %v5603
    %v6573 = vunpack.c.h.b16 %v5603
    %v6574 = vunpack.c.l.b16 %v5604
    %v6575 = vunpack.c.h.b16 %v5604
    %v6576 = vunpack.c.l.b16 %v5605
    %v6577 = vunpack.c.h.b16 %v5605
    %v6578 = vunpack.c.l.b16 %v5606
    %v6579 = vunpack.c.h.b16 %v5606
    %v6580 = vunpack.c.l.b16 %v5607
    %v6581 = vunpack.c.h.b16 %v5607
    %v6582 = vunpack.c.l.b16 %v5608
    %v6583 = vunpack.c.h.b16 %v5608
    %v6584 = vunpack.c.l.b16 %v5609
    %v6585 = vunpack.c.h.b16 %v5609
    %v6586 = vunpack.c.l.b16 %v5610
    %v6587 = vunpack.c.h.b16 %v5610
    %v6588 = vunpack.c.l.b16 %v5611
    %v6589 = vunpack.c.h.b16 %v5611
    %v6590 = vunpack.c.l.b16 %v5612
    %v6591 = vunpack.c.h.b16 %v5612
    %v6592 = vunpack.c.l.b16 %v5613
    %v6593 = vunpack.c.h.b16 %v5613
    %v6594 = vunpack.c.l.b16 %v5614
    %v6595 = vunpack.c.h.b16 %v5614
    %v6596 = vunpack.c.l.b16 %v5615
    %v6597 = vunpack.c.h.b16 %v5615
    %v6598 = vunpack.c.l.b16 %v5616
    %v6599 = vunpack.c.h.b16 %v5616
    %v6600 = vunpack.c.l.b16 %v5617
    %v6601 = vunpack.c.h.b16 %v5617
    %v6602 = vunpack.c.l.b16 %v5618
    %v6603 = vunpack.c.h.b16 %v5618
    %v6604 = vunpack.c.l.b16 %v5619
    %v6605 = vunpack.c.h.b16 %v5619
    %v6606 = vunpack.c.l.b16 %v5620
    %v6607 = vunpack.c.h.b16 %v5620
    %v6608 = vunpack.c.l.b16 %v5621
    %v6609 = vunpack.c.h.b16 %v5621
    %v6610 = vunpack.c.l.b16 %v5622
    %v6611 = vunpack.c.h.b16 %v5622
    %v6612 = vunpack.c.l.b16 %v5623
    %v6613 = vunpack.c.h.b16 %v5623
    %v6614 = vunpack.c.l.b16 %v5624
    %v6615 = vunpack.c.h.b16 %v5624
    %v6616 = vunpack.c.l.b16 %v5625
    %v6617 = vunpack.c.h.b16 %v5625
    %v6618 = vunpack.c.l.b16 %v5626
    %v6619 = vunpack.c.h.b16 %v5626
    %v6620 = vunpack.c.l.b16 %v5627
    %v6621 = vunpack.c.h.b16 %v5627
    %v6622 = vunpack.c.l.b16 %v5628
    %v6623 = vunpack.c.h.b16 %v5628
    %v6624 = vunpack.c.l.b16 %v5629
    %v6625 = vunpack.c.h.b16 %v5629
    %v6626 = vunpack.c.l.b16 %v5630
    %v6627 = vunpack.c.h.b16 %v5630
    %v6628 = vunpack.c.l.b16 %v5631
    %v6629 = vunpack.c.h.b16 %v5631
    %v6630 = vunpack.c.l.b16 %v5632
    %v6631 = vunpack.c.h.b16 %v5632
    %v6632 = vunpack.c.l.b16 %v5633
    %v6633 = vunpack.c.h.b16 %v5633
    %v6634 = vunpack.c.l.b16 %v5634
    %v6635 = vunpack.c.h.b16 %v5634
    %v6636 = vunpack.c.l.b16 %v5635
    %v6637 = vunpack.c.h.b16 %v5635
    %v6638 = vunpack.c.l.b16 %v5636
    %v6639 = vunpack.c.h.b16 %v5636
    %v6640 = vunpack.c.l.b16 %v5637
    %v6641 = vunpack.c.h.b16 %v5637
    %v6642 = vunpack.c.l.b16 %v5638
    %v6643 = vunpack.c.h.b16 %v5638
    %v6644 = vunpack.c.l.b16 %v5639
    %v6645 = vunpack.c.h.b16 %v5639
    %v6646 = vunpack.c.l.b16 %v5640
    %v6647 = vunpack.c.h.b16 %v5640
    %v6648 = vunpack.c.l.b16 %v5641
    %v6649 = vunpack.c.h.b16 %v5641
    %v6650 = vunpack.c.l.b16 %v5642
    %v6651 = vunpack.c.h.b16 %v5642
    %v6652 = vunpack.c.l.b16 %v5643
    %v6653 = vunpack.c.h.b16 %v5643
    %v6654 = vunpack.c.l.b16 %v5644
    %v6655 = vunpack.c.h.b16 %v5644
    %v6656 = vunpack.c.l.b16 %v5645
    %v6657 = vunpack.c.h.b16 %v5645
    %v6658 = vunpack.c.l.b16 %v5646
    %v6659 = vunpack.c.h.b16 %v5646
    %v6660 = vunpack.c.l.b16 %v5647
    %v6661 = vunpack.c.h.b16 %v5647
    %v6662 = vunpack.c.l.b16 %v5648
    %v6663 = vunpack.c.h.b16 %v5648
    %v6664 = vunpack.c.l.b16 %v5649
    %v6665 = vunpack.c.h.b16 %v5649
    %v6666 = vunpack.c.l.b16 %v5650
    %v6667 = vunpack.c.h.b16 %v5650
    %v6668 = vunpack.c.l.b16 %v5651
    %v6669 = vunpack.c.h.b16 %v5651
    %v6670 = vunpack.c.l.b16 %v5652
    %v6671 = vunpack.c.h.b16 %v5652
    %v6672 = vunpack.c.l.b16 %v5653
    %v6673 = vunpack.c.h.b16 %v5653
    %v6674 = vunpack.c.l.b16 %v5654
    %v6675 = vunpack.c.h.b16 %v5654
    %v6676 = vunpack.c.l.b16 %v5655
    %v6677 = vunpack.c.h.b16 %v5655
    %v6678 = vunpack.c.l.b16 %v5656
    %v6679 = vunpack.c.h.b16 %v5656
    %v6680 = vunpack.c.l.b16 %v5657
    %v6681 = vunpack.c.h.b16 %v5657
    %v6682 = vunpack.c.l.b16 %v5658
    %v6683 = vunpack.c.h.b16 %v5658
    %v6684 = vunpack.c.l.b16 %v5659
    %v6685 = vunpack.c.h.b16 %v5659
    %v6686 = vunpack.c.l.b16 %v5660
    %v6687 = vunpack.c.h.b16 %v5660
    %v6688 = vunpack.c.l.b16 %v5661
    %v6689 = vunpack.c.h.b16 %v5661
    %v6690 = vunpack.c.l.b16 %v5662
    %v6691 = vunpack.c.h.b16 %v5662
    %v6692 = vunpack.c.l.b16 %v5663
    %v6693 = vunpack.c.h.b16 %v5663
    %v6694 = vunpack.c.l.b16 %v5664
    %v6695 = vunpack.c.h.b16 %v5664
    %v6696 = vunpack.c.l.b16 %v5665
    %v6697 = vunpack.c.h.b16 %v5665
    %v6698 = vunpack.c.l.b16 %v5666
    %v6699 = vunpack.c.h.b16 %v5666
    %v6700 = vunpack.c.l.b16 %v5667
    %v6701 = vunpack.c.h.b16 %v5667
    %v6702 = vunpack.c.l.b16 %v5668
    %v6703 = vunpack.c.h.b16 %v5668
    %v6704 = vunpack.c.l.b16 %v5669
    %v6705 = vunpack.c.h.b16 %v5669
    %v6706 = vunpack.c.l.b16 %v5670
    %v6707 = vunpack.c.h.b16 %v5670
    %v6708 = vunpack.c.l.b16 %v5671
    %v6709 = vunpack.c.h.b16 %v5671
    %v6710 = vunpack.c.l.b16 %v5672
    %v6711 = vunpack.c.h.b16 %v5672
    %v6712 = vunpack.c.l.b16 %v5673
    %v6713 = vunpack.c.h.b16 %v5673
    %v6714 = vunpack.c.l.b16 %v5674
    %v6715 = vunpack.c.h.b16 %v5674
    %v6716 = vunpack.c.l.b16 %v5675
    %v6717 = vunpack.c.h.b16 %v5675
    %v6718 = vunpack.c.l.b16 %v5676
    %v6719 = vunpack.c.h.b16 %v5676
    %v6720 = vunpack.c.l.b16 %v5677
    %v6721 = vunpack.c.h.b16 %v5677
    %v6722 = vunpack.c.l.b16 %v5678
    %v6723 = vunpack.c.h.b16 %v5678
    %v6724 = vunpack.c.l.b16 %v5679
    %v6725 = vunpack.c.h.b16 %v5679
    %v6726 = vunpack.c.l.b16 %v5680
    %v6727 = vunpack.c.h.b16 %v5680
    %v6728 = vunpack.c.l.b16 %v5681
    %v6729 = vunpack.c.h.b16 %v5681
    %v6730 = vunpack.c.l.b16 %v5682
    %v6731 = vunpack.c.h.b16 %v5682
    %v6732 = vunpack.c.l.b16 %v5683
    %v6733 = vunpack.c.h.b16 %v5683
    %v6734 = vunpack.c.l.b16 %v5684
    %v6735 = vunpack.c.h.b16 %v5684
    %v6736 = vunpack.c.l.b16 %v5685
    %v6737 = vunpack.c.h.b16 %v5685
    %v6738 = vunpack.c.l.b16 %v5686
    %v6739 = vunpack.c.h.b16 %v5686
    %v6740 = vunpack.c.l.b16 %v5687
    %v6741 = vunpack.c.h.b16 %v5687
    %v6742 = vunpack.c.l.b16 %v5688
    %v6743 = vunpack.c.h.b16 %v5688
    %v6744 = vunpack.c.l.b16 %v5689
    %v6745 = vunpack.c.h.b16 %v5689
    %v6746 = vunpack.c.l.b16 %v5690
    %v6747 = vunpack.c.h.b16 %v5690
    %v6748 = vunpack.c.l.b16 %v5691
    %v6749 = vunpack.c.h.b16 %v5691
    %v6750 = vunpack.c.l.b16 %v5692
    %v6751 = vunpack.c.h.b16 %v5692
    %v6752 = vunpack.c.l.b16 %v5693
    %v6753 = vunpack.c.h.b16 %v5693
    %v6754 = vunpack.c.l.b16 %v5694
    %v6755 = vunpack.c.h.b16 %v5694
    %v6756 = vunpack.c.l.b16 %v5695
    %v6757 = vunpack.c.h.b16 %v5695
    %v6758 = vunpack.c.l.b16 %v5696
    %v6759 = vunpack.c.h.b16 %v5696
    %v6760 = vunpack.c.l.b16 %v5697
    %v6761 = vunpack.c.h.b16 %v5697
    %v6762 = vunpack.c.l.b16 %v5698
    %v6763 = vunpack.c.h.b16 %v5698
    %v6764 = vunpack.c.l.b16 %v5699
    %v6765 = vunpack.c.h.b16 %v5699
    %v6766 = vunpack.c.l.b16 %v5700
    %v6767 = vunpack.c.h.b16 %v5700
    %v6768 = vunpack.c.l.b16 %v5701
    %v6769 = vunpack.c.h.b16 %v5701
    %v6770 = vunpack.c.l.b16 %v5702
    %v6771 = vunpack.c.h.b16 %v5702
    %v6772 = vunpack.c.l.b16 %v5703
    %v6773 = vunpack.c.h.b16 %v5703
    %v6774 = vunpack.c.l.b16 %v5704
    %v6775 = vunpack.c.h.b16 %v5704
    %v6776 = vunpack.c.l.b16 %v5705
    %v6777 = vunpack.c.h.b16 %v5705
    %v6778 = vunpack.c.l.b16 %v5706
    %v6779 = vunpack.c.h.b16 %v5706
    %v6780 = vunpack.c.l.b16 %v5707
    %v6781 = vunpack.c.h.b16 %v5707
    %v6782 = vunpack.c.l.b16 %v5708
    %v6783 = vunpack.c.h.b16 %v5708
    %v6784 = vunpack.c.l.b16 %v5709
    %v6785 = vunpack.c.h.b16 %v5709
    %v6786 = vunpack.c.l.b16 %v5710
    %v6787 = vunpack.c.h.b16 %v5710
    %v6788 = vunpack.c.l.b16 %v5711
    %v6789 = vunpack.c.h.b16 %v5711
    %v6790 = vunpack.c.l.b16 %v5712
    %v6791 = vunpack.c.h.b16 %v5712
    %v6792 = vunpack.c.l.b16 %v5713
    %v6793 = vunpack.c.h.b16 %v5713
    %v6794 = vunpack.c.l.b16 %v5714
    %v6795 = vunpack.c.h.b16 %v5714
    %v6796 = vunpack.c.l.b16 %v5715
    %v6797 = vunpack.c.h.b16 %v5715
    %v6798 = vunpack.c.l.b16 %v5716
    %v6799 = vunpack.c.h.b16 %v5716
    %v6800 = vunpack.c.l.b16 %v5717
    %v6801 = vunpack.c.h.b16 %v5717
    %v6802 = vunpack.c.l.b16 %v5718
    %v6803 = vunpack.c.h.b16 %v5718
    %v6804 = vunpack.c.l.b16 %v5719
    %v6805 = vunpack.c.h.b16 %v5719
    %v6806 = vunpack.c.l.b16 %v5720
    %v6807 = vunpack.c.h.b16 %v5720
    %v6808 = vunpack.c.l.b16 %v5721
    %v6809 = vunpack.c.h.b16 %v5721
    %v6810 = vunpack.c.l.b16 %v5722
    %v6811 = vunpack.c.h.b16 %v5722
    %v6812 = vunpack.c.l.b16 %v5723
    %v6813 = vunpack.c.h.b16 %v5723
    %v6814 = vunpack.c.l.b16 %v5724
    %v6815 = vunpack.c.h.b16 %v5724
    %v6816 = vunpack.c.l.b16 %v5725
    %v6817 = vunpack.c.h.b16 %v5725
    %v6818 = vunpack.c.l.b16 %v5726
    %v6819 = vunpack.c.h.b16 %v5726
    %v6820 = vunpack.c.l.b16 %v5727
    %v6821 = vunpack.c.h.b16 %v5727
    %v6822 = vunpack.c.l.b16 %v5728
    %v6823 = vunpack.c.h.b16 %v5728
    %v6824 = vunpack.c.l.b16 %v5729
    %v6825 = vunpack.c.h.b16 %v5729
    %v6826 = vunpack.c.l.b16 %v5730
    %v6827 = vunpack.c.h.b16 %v5730
    %v6828 = vunpack.c.l.b16 %v5731
    %v6829 = vunpack.c.h.b16 %v5731
    %v6830 = vunpack.c.l.b16 %v5732
    %v6831 = vunpack.c.h.b16 %v5732
    %v6832 = vunpack.c.l.b16 %v5733
    %v6833 = vunpack.c.h.b16 %v5733
    %v6834 = vunpack.c.l.b16 %v5734
    %v6835 = vunpack.c.h.b16 %v5734
    %v6836 = vunpack.c.l.b16 %v5735
    %v6837 = vunpack.c.h.b16 %v5735
    %v6838 = vunpack.c.l.b16 %v5736
    %v6839 = vunpack.c.h.b16 %v5736
    %v6840 = vunpack.c.l.b16 %v5737
    %v6841 = vunpack.c.h.b16 %v5737
    %v6842 = vunpack.c.l.b16 %v5738
    %v6843 = vunpack.c.h.b16 %v5738
    %v6844 = vunpack.c.l.b16 %v5739
    %v6845 = vunpack.c.h.b16 %v5739
    %v6846 = vunpack.c.l.b16 %v5740
    %v6847 = vunpack.c.h.b16 %v5740
    %v6848 = vunpack.c.l.b16 %v5741
    %v6849 = vunpack.c.h.b16 %v5741
    %v6850 = vunpack.c.l.b16 %v5742
    %v6851 = vunpack.c.h.b16 %v5742
    %v6852 = vunpack.c.l.b16 %v5743
    %v6853 = vunpack.c.h.b16 %v5743
    %v6854 = vunpack.c.l.b16 %v5744
    %v6855 = vunpack.c.h.b16 %v5744
    %v6856 = vunpack.c.l.b16 %v5745
    %v6857 = vunpack.c.h.b16 %v5745
    %v6858 = vunpack.c.l.b16 %v5746
    %v6859 = vunpack.c.h.b16 %v5746
    %v6860 = vunpack.c.l.b16 %v5747
    %v6861 = vunpack.c.h.b16 %v5747
    %v6862 = vunpack.c.l.b16 %v5748
    %v6863 = vunpack.c.h.b16 %v5748
    %v6864 = vunpack.c.l.b16 %v5749
    %v6865 = vunpack.c.h.b16 %v5749
    %v6866 = vunpack.c.l.b16 %v5750
    %v6867 = vunpack.c.h.b16 %v5750
    %v6868 = vunpack.c.l.b16 %v5751
    %v6869 = vunpack.c.h.b16 %v5751
    %v6870 = vunpack.c.l.b16 %v5752
    %v6871 = vunpack.c.h.b16 %v5752
    %v6872 = vunpack.c.l.b16 %v5753
    %v6873 = vunpack.c.h.b16 %v5753
    %v6874 = vunpack.c.l.b16 %v5754
    %v6875 = vunpack.c.h.b16 %v5754
    %v6876 = vunpack.c.l.b16 %v5755
    %v6877 = vunpack.c.h.b16 %v5755
    %v6878 = vunpack.c.l.b16 %v5756
    %v6879 = vunpack.c.h.b16 %v5756
    %v6880 = vunpack.c.l.b16 %v5757
    %v6881 = vunpack.c.h.b16 %v5757
    %v6882 = vunpack.c.l.b16 %v5758
    %v6883 = vunpack.c.h.b16 %v5758
    %v6884 = vunpack.c.l.b16 %v5759
    %v6885 = vunpack.c.h.b16 %v5759
    %v6886 = vunpack.c.l.b16 %v5760
    %v6887 = vunpack.c.h.b16 %v5760
    %v6888 = vunpack.c.l.b16 %v5761
    %v6889 = vunpack.c.h.b16 %v5761
    %v6890 = vunpack.c.l.b16 %v5762
    %v6891 = vunpack.c.h.b16 %v5762
    %v6892 = vunpack.c.l.b16 %v5763
    %v6893 = vunpack.c.h.b16 %v5763
    %v6894 = vunpack.c.l.b16 %v5764
    %v6895 = vunpack.c.h.b16 %v5764
    %v6896 = vunpack.c.l.b16 %v5765
    %v6897 = vunpack.c.h.b16 %v5765
    %v6898 = vunpack.c.l.b16 %v5766
    %v6899 = vunpack.c.h.b16 %v5766
    %v6900 = vunpack.c.l.b16 %v5767
    %v6901 = vunpack.c.h.b16 %v5767
    %v6902 = vunpack.c.l.b16 %v5768
    %v6903 = vunpack.c.h.b16 %v5768
    %v6904 = vunpack.c.l.b16 %v5769
    %v6905 = vunpack.c.h.b16 %v5769
    %v6906 = vunpack.c.l.b16 %v5770
    %v6907 = vunpack.c.h.b16 %v5770
    %v6908 = vunpack.c.l.b16 %v5771
    %v6909 = vunpack.c.h.b16 %v5771
    %v6910 = vunpack.c.l.b16 %v5772
    %v6911 = vunpack.c.h.b16 %v5772
    %v6912 = vunpack.c.l.b16 %v5773
    %v6913 = vunpack.c.h.b16 %v5773
    %v6914 = vunpack.c.l.b16 %v5774
    %v6915 = vunpack.c.h.b16 %v5774
    %v6916 = vunpack.c.l.b16 %v5775
    %v6917 = vunpack.c.h.b16 %v5775
    %v6918 = vunpack.c.l.b16 %v5776
    %v6919 = vunpack.c.h.b16 %v5776
    %v6920 = vunpack.c.l.b16 %v5777
    %v6921 = vunpack.c.h.b16 %v5777
    %v6922 = vunpack.c.l.b16 %v5778
    %v6923 = vunpack.c.h.b16 %v5778
    %v6924 = vunpack.c.l.b16 %v5779
    %v6925 = vunpack.c.h.b16 %v5779
    %v6926 = vunpack.c.l.b16 %v5780
    %v6927 = vunpack.c.h.b16 %v5780
    %v6928 = vunpack.c.l.b16 %v5781
    %v6929 = vunpack.c.h.b16 %v5781
    %v6930 = vunpack.c.l.b16 %v5782
    %v6931 = vunpack.c.h.b16 %v5782
    %v6932 = vunpack.c.l.b16 %v5783
    %v6933 = vunpack.c.h.b16 %v5783
    %v6934 = vunpack.c.l.b16 %v5784
    %v6935 = vunpack.c.h.b16 %v5784
    %v6936 = vunpack.c.l.b16 %v5785
    %v6937 = vunpack.c.h.b16 %v5785
    %v6938 = vpack.c.b16 %v6182, %v6170
    %v6939 = vpack.c.b16 %v6183, %v6171
    %v6940 = vpack.c.b16 %v6184, %v6172
    %v6941 = vpack.c.b16 %v6185, %v6173
    %v6942 = vpack.c.b16 %v6186, %v6174
    %v6943 = vpack.c.b16 %v6187, %v6175
    %v6944 = vpack.c.b16 %v6188, %v6176
    %v6945 = vpack.c.b16 %v6189, %v6177
    %v6946 = vpack.c.b16 %v6190, %v6178
    %v6947 = vpack.c.b16 %v6191, %v6179
    %v6948 = vpack.c.b16 %v6192, %v6180
    %v6949 = vpack.c.b16 %v6193, %v6181
    %v6950 = vpack.c.b16 %v6206, %v6194
    %v6951 = vpack.c.b16 %v6207, %v6195
    %v6952 = vpack.c.b16 %v6208, %v6196
    %v6953 = vpack.c.b16 %v6209, %v6197
    %v6954 = vpack.c.b16 %v6210, %v6198
    %v6955 = vpack.c.b16 %v6211, %v6199
    %v6956 = vpack.c.b16 %v6212, %v6200
    %v6957 = vpack.c.b16 %v6213, %v6201
    %v6958 = vpack.c.b16 %v6214, %v6202
    %v6959 = vpack.c.b16 %v6215, %v6203
    %v6960 = vpack.c.b16 %v6216, %v6204
    %v6961 = vpack.c.b16 %v6217, %v6205
    %v6962 = vpack.c.b16 %v6230, %v6218
    %v6963 = vpack.c.b16 %v6231, %v6219
    %v6964 = vpack.c.b16 %v6232, %v6220
    %v6965 = vpack.c.b16 %v6233, %v6221
    %v6966 = vpack.c.b16 %v6234, %v6222
    %v6967 = vpack.c.b16 %v6235, %v6223
    %v6968 = vpack.c.b16 %v6236, %v6224
    %v6969 = vpack.c.b16 %v6237, %v6225
    %v6970 = vpack.c.b16 %v6238, %v6226
    %v6971 = vpack.c.b16 %v6239, %v6227
    %v6972 = vpack.c.b16 %v6240, %v6228
    %v6973 = vpack.c.b16 %v6241, %v6229
    %v6974 = vpack.c.b16 %v6254, %v6242
    %v6975 = vpack.c.b16 %v6255, %v6243
    %v6976 = vpack.c.b16 %v6256, %v6244
    %v6977 = vpack.c.b16 %v6257, %v6245
    %v6978 = vpack.c.b16 %v6258, %v6246
    %v6979 = vpack.c.b16 %v6259, %v6247
    %v6980 = vpack.c.b16 %v6260, %v6248
    %v6981 = vpack.c.b16 %v6261, %v6249
    %v6982 = vpack.c.b16 %v6262, %v6250
    %v6983 = vpack.c.b16 %v6263, %v6251
    %v6984 = vpack.c.b16 %v6264, %v6252
    %v6985 = vpack.c.b16 %v6265, %v6253
    %v6986 = vpack.c.b16 %v6278, %v6266
    %v6987 = vpack.c.b16 %v6279, %v6267
    %v6988 = vpack.c.b16 %v6280, %v6268
    %v6989 = vpack.c.b16 %v6281, %v6269
    %v6990 = vpack.c.b16 %v6282, %v6270
    %v6991 = vpack.c.b16 %v6283, %v6271
    %v6992 = vpack.c.b16 %v6284, %v6272
    %v6993 = vpack.c.b16 %v6285, %v6273
    %v6994 = vpack.c.b16 %v6286, %v6274
    %v6995 = vpack.c.b16 %v6287, %v6275
    %v6996 = vpack.c.b16 %v6288, %v6276
    %v6997 = vpack.c.b16 %v6289, %v6277
    %v6998 = vpack.c.b16 %v6302, %v6290
    %v6999 = vpack.c.b16 %v6303, %v6291
    %v7000 = vpack.c.b16 %v6304, %v6292
    %v7001 = vpack.c.b16 %v6305, %v6293
    %v7002 = vpack.c.b16 %v6306, %v6294
    %v7003 = vpack.c.b16 %v6307, %v6295
    %v7004 = vpack.c.b16 %v6308, %v6296
    %v7005 = vpack.c.b16 %v6309, %v6297
    %v7006 = vpack.c.b16 %v6310, %v6298
    %v7007 = vpack.c.b16 %v6311, %v6299
    %v7008 = vpack.c.b16 %v6312, %v6300
    %v7009 = vpack.c.b16 %v6313, %v6301
    %v7010 = vpack.c.b16 %v6326, %v6314
    %v7011 = vpack.c.b16 %v6327, %v6315
    %v7012 = vpack.c.b16 %v6328, %v6316
    %v7013 = vpack.c.b16 %v6329, %v6317
    %v7014 = vpack.c.b16 %v6330, %v6318
    %v7015 = vpack.c.b16 %v6331, %v6319
    %v7016 = vpack.c.b16 %v6332, %v6320
    %v7017 = vpack.c.b16 %v6333, %v6321
    %v7018 = vpack.c.b16 %v6334, %v6322
    %v7019 = vpack.c.b16 %v6335, %v6323
    %v7020 = vpack.c.b16 %v6336, %v6324
    %v7021 = vpack.c.b16 %v6337, %v6325
    %v7022 = vpack.c.b16 %v6350, %v6338
    %v7023 = vpack.c.b16 %v6351, %v6339
    %v7024 = vpack.c.b16 %v6352, %v6340
    %v7025 = vpack.c.b16 %v6353, %v6341
    %v7026 = vpack.c.b16 %v6354, %v6342
    %v7027 = vpack.c.b16 %v6355, %v6343
    %v7028 = vpack.c.b16 %v6356, %v6344
    %v7029 = vpack.c.b16 %v6357, %v6345
    %v7030 = vpack.c.b16 %v6358, %v6346
    %v7031 = vpack.c.b16 %v6359, %v6347
    %v7032 = vpack.c.b16 %v6360, %v6348
    %v7033 = vpack.c.b16 %v6361, %v6349
    %v7034 = vpack.c.b16 %v6374, %v6362
    %v7035 = vpack.c.b16 %v6375, %v6363
    %v7036 = vpack.c.b16 %v6376, %v6364
    %v7037 = vpack.c.b16 %v6377, %v6365
    %v7038 = vpack.c.b16 %v6378, %v6366
    %v7039 = vpack.c.b16 %v6379, %v6367
    %v7040 = vpack.c.b16 %v6380, %v6368
    %v7041 = vpack.c.b16 %v6381, %v6369
    %v7042 = vpack.c.b16 %v6382, %v6370
    %v7043 = vpack.c.b16 %v6383, %v6371
    %v7044 = vpack.c.b16 %v6384, %v6372
    %v7045 = vpack.c.b16 %v6385, %v6373
    %v7046 = vpack.c.b16 %v6398, %v6386
    %v7047 = vpack.c.b16 %v6399, %v6387
    %v7048 = vpack.c.b16 %v6400, %v6388
    %v7049 = vpack.c.b16 %v6401, %v6389
    %v7050 = vpack.c.b16 %v6402, %v6390
    %v7051 = vpack.c.b16 %v6403, %v6391
    %v7052 = vpack.c.b16 %v6404, %v6392
    %v7053 = vpack.c.b16 %v6405, %v6393
    %v7054 = vpack.c.b16 %v6406, %v6394
    %v7055 = vpack.c.b16 %v6407, %v6395
    %v7056 = vpack.c.b16 %v6408, %v6396
    %v7057 = vpack.c.b16 %v6409, %v6397
    %v7058 = vpack.c.b16 %v6422, %v6410
    %v7059 = vpack.c.b16 %v6423, %v6411
    %v7060 = vpack.c.b16 %v6424, %v6412
    %v7061 = vpack.c.b16 %v6425, %v6413
    %v7062 = vpack.c.b16 %v6426, %v6414
    %v7063 = vpack.c.b16 %v6427, %v6415
    %v7064 = vpack.c.b16 %v6428, %v6416
    %v7065 = vpack.c.b16 %v6429, %v6417
    %v7066 = vpack.c.b16 %v6430, %v6418
    %v7067 = vpack.c.b16 %v6431, %v6419
    %v7068 = vpack.c.b16 %v6432, %v6420
    %v7069 = vpack.c.b16 %v6433, %v6421
    %v7070 = vpack.c.b16 %v6446, %v6434
    %v7071 = vpack.c.b16 %v6447, %v6435
    %v7072 = vpack.c.b16 %v6448, %v6436
    %v7073 = vpack.c.b16 %v6449, %v6437
    %v7074 = vpack.c.b16 %v6450, %v6438
    %v7075 = vpack.c.b16 %v6451, %v6439
    %v7076 = vpack.c.b16 %v6452, %v6440
    %v7077 = vpack.c.b16 %v6453, %v6441
    %v7078 = vpack.c.b16 %v6454, %v6442
    %v7079 = vpack.c.b16 %v6455, %v6443
    %v7080 = vpack.c.b16 %v6456, %v6444
    %v7081 = vpack.c.b16 %v6457, %v6445
    %v7082 = vpack.c.b16 %v6470, %v6458
    %v7083 = vpack.c.b16 %v6471, %v6459
    %v7084 = vpack.c.b16 %v6472, %v6460
    %v7085 = vpack.c.b16 %v6473, %v6461
    %v7086 = vpack.c.b16 %v6474, %v6462
    %v7087 = vpack.c.b16 %v6475, %v6463
    %v7088 = vpack.c.b16 %v6476, %v6464
    %v7089 = vpack.c.b16 %v6477, %v6465
    %v7090 = vpack.c.b16 %v6478, %v6466
    %v7091 = vpack.c.b16 %v6479, %v6467
    %v7092 = vpack.c.b16 %v6480, %v6468
    %v7093 = vpack.c.b16 %v6481, %v6469
    %v7094 = vpack.c.b16 %v6494, %v6482
    %v7095 = vpack.c.b16 %v6495, %v6483
    %v7096 = vpack.c.b16 %v6496, %v6484
    %v7097 = vpack.c.b16 %v6497, %v6485
    %v7098 = vpack.c.b16 %v6498, %v6486
    %v7099 = vpack.c.b16 %v6499, %v6487
    %v7100 = vpack.c.b16 %v6500, %v6488
    %v7101 = vpack.c.b16 %v6501, %v6489
    %v7102 = vpack.c.b16 %v6502, %v6490
    %v7103 = vpack.c.b16 %v6503, %v6491
    %v7104 = vpack.c.b16 %v6504, %v6492
    %v7105 = vpack.c.b16 %v6505, %v6493
    %v7106 = vpack.c.b16 %v6518, %v6506
    %v7107 = vpack.c.b16 %v6519, %v6507
    %v7108 = vpack.c.b16 %v6520, %v6508
    %v7109 = vpack.c.b16 %v6521, %v6509
    %v7110 = vpack.c.b16 %v6522, %v6510
    %v7111 = vpack.c.b16 %v6523, %v6511
    %v7112 = vpack.c.b16 %v6524, %v6512
    %v7113 = vpack.c.b16 %v6525, %v6513
    %v7114 = vpack.c.b16 %v6526, %v6514
    %v7115 = vpack.c.b16 %v6527, %v6515
    %v7116 = vpack.c.b16 %v6528, %v6516
    %v7117 = vpack.c.b16 %v6529, %v6517
    %v7118 = vpack.c.b16 %v6542, %v6530
    %v7119 = vpack.c.b16 %v6543, %v6531
    %v7120 = vpack.c.b16 %v6544, %v6532
    %v7121 = vpack.c.b16 %v6545, %v6533
    %v7122 = vpack.c.b16 %v6546, %v6534
    %v7123 = vpack.c.b16 %v6547, %v6535
    %v7124 = vpack.c.b16 %v6548, %v6536
    %v7125 = vpack.c.b16 %v6549, %v6537
    %v7126 = vpack.c.b16 %v6550, %v6538
    %v7127 = vpack.c.b16 %v6551, %v6539
    %v7128 = vpack.c.b16 %v6552, %v6540
    %v7129 = vpack.c.b16 %v6553, %v6541
    %v7130 = vpack.c.b16 %v6566, %v6554
    %v7131 = vpack.c.b16 %v6567, %v6555
    %v7132 = vpack.c.b16 %v6568, %v6556
    %v7133 = vpack.c.b16 %v6569, %v6557
    %v7134 = vpack.c.b16 %v6570, %v6558
    %v7135 = vpack.c.b16 %v6571, %v6559
    %v7136 = vpack.c.b16 %v6572, %v6560
    %v7137 = vpack.c.b16 %v6573, %v6561
    %v7138 = vpack.c.b16 %v6574, %v6562
    %v7139 = vpack.c.b16 %v6575, %v6563
    %v7140 = vpack.c.b16 %v6576, %v6564
    %v7141 = vpack.c.b16 %v6577, %v6565
    %v7142 = vpack.c.b16 %v6590, %v6578
    %v7143 = vpack.c.b16 %v6591, %v6579
    %v7144 = vpack.c.b16 %v6592, %v6580
    %v7145 = vpack.c.b16 %v6593, %v6581
    %v7146 = vpack.c.b16 %v6594, %v6582
    %v7147 = vpack.c.b16 %v6595, %v6583
    %v7148 = vpack.c.b16 %v6596, %v6584
    %v7149 = vpack.c.b16 %v6597, %v6585
    %v7150 = vpack.c.b16 %v6598, %v6586
    %v7151 = vpack.c.b16 %v6599, %v6587
    %v7152 = vpack.c.b16 %v6600, %v6588
    %v7153 = vpack.c.b16 %v6601, %v6589
    %v7154 = vpack.c.b16 %v6614, %v6602
    %v7155 = vpack.c.b16 %v6615, %v6603
    %v7156 = vpack.c.b16 %v6616, %v6604
    %v7157 = vpack.c.b16 %v6617, %v6605
    %v7158 = vpack.c.b16 %v6618, %v6606
    %v7159 = vpack.c.b16 %v6619, %v6607
    %v7160 = vpack.c.b16 %v6620, %v6608
    %v7161 = vpack.c.b16 %v6621, %v6609
    %v7162 = vpack.c.b16 %v6622, %v6610
    %v7163 = vpack.c.b16 %v6623, %v6611
    %v7164 = vpack.c.b16 %v6624, %v6612
    %v7165 = vpack.c.b16 %v6625, %v6613
    %v7166 = vpack.c.b16 %v6638, %v6626
    %v7167 = vpack.c.b16 %v6639, %v6627
    %v7168 = vpack.c.b16 %v6640, %v6628
    %v7169 = vpack.c.b16 %v6641, %v6629
    %v7170 = vpack.c.b16 %v6642, %v6630
    %v7171 = vpack.c.b16 %v6643, %v6631
    %v7172 = vpack.c.b16 %v6644, %v6632
    %v7173 = vpack.c.b16 %v6645, %v6633
    %v7174 = vpack.c.b16 %v6646, %v6634
    %v7175 = vpack.c.b16 %v6647, %v6635
    %v7176 = vpack.c.b16 %v6648, %v6636
    %v7177 = vpack.c.b16 %v6649, %v6637
    %v7178 = vpack.c.b16 %v6662, %v6650
    %v7179 = vpack.c.b16 %v6663, %v6651
    %v7180 = vpack.c.b16 %v6664, %v6652
    %v7181 = vpack.c.b16 %v6665, %v6653
    %v7182 = vpack.c.b16 %v6666, %v6654
    %v7183 = vpack.c.b16 %v6667, %v6655
    %v7184 = vpack.c.b16 %v6668, %v6656
    %v7185 = vpack.c.b16 %v6669, %v6657
    %v7186 = vpack.c.b16 %v6670, %v6658
    %v7187 = vpack.c.b16 %v6671, %v6659
    %v7188 = vpack.c.b16 %v6672, %v6660
    %v7189 = vpack.c.b16 %v6673, %v6661
    %v7190 = vpack.c.b16 %v6686, %v6674
    %v7191 = vpack.c.b16 %v6687, %v6675
    %v7192 = vpack.c.b16 %v6688, %v6676
    %v7193 = vpack.c.b16 %v6689, %v6677
    %v7194 = vpack.c.b16 %v6690, %v6678
    %v7195 = vpack.c.b16 %v6691, %v6679
    %v7196 = vpack.c.b16 %v6692, %v6680
    %v7197 = vpack.c.b16 %v6693, %v6681
    %v7198 = vpack.c.b16 %v6694, %v6682
    %v7199 = vpack.c.b16 %v6695, %v6683
    %v7200 = vpack.c.b16 %v6696, %v6684
    %v7201 = vpack.c.b16 %v6697, %v6685
    %v7202 = vpack.c.b16 %v6710, %v6698
    %v7203 = vpack.c.b16 %v6711, %v6699
    %v7204 = vpack.c.b16 %v6712, %v6700
    %v7205 = vpack.c.b16 %v6713, %v6701
    %v7206 = vpack.c.b16 %v6714, %v6702
    %v7207 = vpack.c.b16 %v6715, %v6703
    %v7208 = vpack.c.b16 %v6716, %v6704
    %v7209 = vpack.c.b16 %v6717, %v6705
    %v7210 = vpack.c.b16 %v6718, %v6706
    %v7211 = vpack.c.b16 %v6719, %v6707
    %v7212 = vpack.c.b16 %v6720, %v6708
    %v7213 = vpack.c.b16 %v6721, %v6709
    %v7214 = vpack.c.b16 %v6734, %v6722
    %v7215 = vpack.c.b16 %v6735, %v6723
    %v7216 = vpack.c.b16 %v6736, %v6724
    %v7217 = vpack.c.b16 %v6737, %v6725
    %v7218 = vpack.c.b16 %v6738, %v6726
    %v7219 = vpack.c.b16 %v6739, %v6727
    %v7220 = vpack.c.b16 %v6740, %v6728
    %v7221 = vpack.c.b16 %v6741, %v6729
    %v7222 = vpack.c.b16 %v6742, %v6730
    %v7223 = vpack.c.b16 %v6743, %v6731
    %v7224 = vpack.c.b16 %v6744, %v6732
    %v7225 = vpack.c.b16 %v6745, %v6733
    %v7226 = vpack.c.b16 %v6758, %v6746
    %v7227 = vpack.c.b16 %v6759, %v6747
    %v7228 = vpack.c.b16 %v6760, %v6748
    %v7229 = vpack.c.b16 %v6761, %v6749
    %v7230 = vpack.c.b16 %v6762, %v6750
    %v7231 = vpack.c.b16 %v6763, %v6751
    %v7232 = vpack.c.b16 %v6764, %v6752
    %v7233 = vpack.c.b16 %v6765, %v6753
    %v7234 = vpack.c.b16 %v6766, %v6754
    %v7235 = vpack.c.b16 %v6767, %v6755
    %v7236 = vpack.c.b16 %v6768, %v6756
    %v7237 = vpack.c.b16 %v6769, %v6757
    %v7238 = vpack.c.b16 %v6782, %v6770
    %v7239 = vpack.c.b16 %v6783, %v6771
    %v7240 = vpack.c.b16 %v6784, %v6772
    %v7241 = vpack.c.b16 %v6785, %v6773
    %v7242 = vpack.c.b16 %v6786, %v6774
    %v7243 = vpack.c.b16 %v6787, %v6775
    %v7244 = vpack.c.b16 %v6788, %v6776
    %v7245 = vpack.c.b16 %v6789, %v6777
    %v7246 = vpack.c.b16 %v6790, %v6778
    %v7247 = vpack.c.b16 %v6791, %v6779
    %v7248 = vpack.c.b16 %v6792, %v6780
    %v7249 = vpack.c.b16 %v6793, %v6781
    %v7250 = vpack.c.b16 %v6806, %v6794
    %v7251 = vpack.c.b16 %v6807, %v6795
    %v7252 = vpack.c.b16 %v6808, %v6796
    %v7253 = vpack.c.b16 %v6809, %v6797
    %v7254 = vpack.c.b16 %v6810, %v6798
    %v7255 = vpack.c.b16 %v6811, %v6799
    %v7256 = vpack.c.b16 %v6812, %v6800
    %v7257 = vpack.c.b16 %v6813, %v6801
    %v7258 = vpack.c.b16 %v6814, %v6802
    %v7259 = vpack.c.b16 %v6815, %v6803
    %v7260 = vpack.c.b16 %v6816, %v6804
    %v7261 = vpack.c.b16 %v6817, %v6805
    %v7262 = vpack.c.b16 %v6830, %v6818
    %v7263 = vpack.c.b16 %v6831, %v6819
    %v7264 = vpack.c.b16 %v6832, %v6820
    %v7265 = vpack.c.b16 %v6833, %v6821
    %v7266 = vpack.c.b16 %v6834, %v6822
    %v7267 = vpack.c.b16 %v6835, %v6823
    %v7268 = vpack.c.b16 %v6836, %v6824
    %v7269 = vpack.c.b16 %v6837, %v6825
    %v7270 = vpack.c.b16 %v6838, %v6826
    %v7271 = vpack.c.b16 %v6839, %v6827
    %v7272 = vpack.c.b16 %v6840, %v6828
    %v7273 = vpack.c.b16 %v6841, %v6829
    %v7274 = vpack.c.b16 %v6854, %v6842
    %v7275 = vpack.c.b16 %v6855, %v6843
    %v7276 = vpack.c.b16 %v6856, %v6844
    %v7277 = vpack.c.b16 %v6857, %v6845
    %v7278 = vpack.c.b16 %v6858, %v6846
    %v7279 = vpack.c.b16 %v6859, %v6847
    %v7280 = vpack.c.b16 %v6860, %v6848
    %v7281 = vpack.c.b16 %v6861, %v6849
    %v7282 = vpack.c.b16 %v6862, %v6850
    %v7283 = vpack.c.b16 %v6863, %v6851
    %v7284 = vpack.c.b16 %v6864, %v6852
    %v7285 = vpack.c.b16 %v6865, %v6853
    %v7286 = vpack.c.b16 %v6878, %v6866
    %v7287 = vpack.c.b16 %v6879, %v6867
    %v7288 = vpack.c.b16 %v6880, %v6868
    %v7289 = vpack.c.b16 %v6881, %v6869
    %v7290 = vpack.c.b16 %v6882, %v6870
    %v7291 = vpack.c.b16 %v6883, %v6871
    %v7292 = vpack.c.b16 %v6884, %v6872
    %v7293 = vpack.c.b16 %v6885, %v6873
    %v7294 = vpack.c.b16 %v6886, %v6874
    %v7295 = vpack.c.b16 %v6887, %v6875
    %v7296 = vpack.c.b16 %v6888, %v6876
    %v7297 = vpack.c.b16 %v6889, %v6877
    %v7298 = vpack.c.b16 %v6902, %v6890
    %v7299 = vpack.c.b16 %v6903, %v6891
    %v7300 = vpack.c.b16 %v6904, %v6892
    %v7301 = vpack.c.b16 %v6905, %v6893
    %v7302 = vpack.c.b16 %v6906, %v6894
    %v7303 = vpack.c.b16 %v6907, %v6895
    %v7304 = vpack.c.b16 %v6908, %v6896
    %v7305 = vpack.c.b16 %v6909, %v6897
    %v7306 = vpack.c.b16 %v6910, %v6898
    %v7307 = vpack.c.b16 %v6911, %v6899
    %v7308 = vpack.c.b16 %v6912, %v6900
    %v7309 = vpack.c.b16 %v6913, %v6901
    %v7310 = vpack.c.b16 %v6926, %v6914
    %v7311 = vpack.c.b16 %v6927, %v6915
    %v7312 = vpack.c.b16 %v6928, %v6916
    %v7313 = vpack.c.b16 %v6929, %v6917
    %v7314 = vpack.c.b16 %v6930, %v6918
    %v7315 = vpack.c.b16 %v6931, %v6919
    %v7316 = vpack.c.b16 %v6932, %v6920
    %v7317 = vpack.c.b16 %v6933, %v6921
    %v7318 = vpack.c.b16 %v6934, %v6922
    %v7319 = vpack.c.b16 %v6935, %v6923
    %v7320 = vpack.c.b16 %v6936, %v6924
    %v7321 = vpack.c.b16 %v6937, %v6925
    %7706 = vmatprep.subr.bf16.mxu0 %v6939
    %7707 = vmatpush1.bf16.msra.mxu0 %v6938
    %7708 = vmatprep.subr.bf16.mxu0 %v6951
    %7709 = vmatpush1.bf16.msra.mxu0 %v6950
    %7710 = vmatprep.subr.bf16.mxu0 %v6963
    %7711 = vmatpush1.bf16.msra.mxu0 %v6962
    %7712 = vmatprep.subr.bf16.mxu0 %v6975
    %7713 = vmatpush1.bf16.msra.mxu0 %v6974
    %7714 = vmatprep.subr.bf16.mxu0 %v6987
    %7715 = vmatpush1.bf16.msra.mxu0 %v6986
    %7716 = vmatprep.subr.bf16.mxu0 %v6999
    %7717 = vmatpush1.bf16.msra.mxu0 %v6998
    %7718 = vmatprep.subr.bf16.mxu0 %v7011
    %7719 = vmatpush1.bf16.msra.mxu0 %v7010
    %7720 = vmatprep.subr.bf16.mxu0 %v7023
    %7721 = vmatpush1.bf16.msra.mxu0 %v7022
    %7722 = vmatprep.subr.bf16.mxu0 %v7035
    %7723 = vmatpush1.bf16.msra.mxu0 %v7034
    %7724 = vmatprep.subr.bf16.mxu0 %v7047
    %7725 = vmatpush1.bf16.msra.mxu0 %v7046
    %7726 = vmatprep.subr.bf16.mxu0 %v7059
    %7727 = vmatpush1.bf16.msra.mxu0 %v7058
    %7728 = vmatprep.subr.bf16.mxu0 %v7071
    %7729 = vmatpush1.bf16.msra.mxu0 %v7070
    %7730 = vmatprep.subr.bf16.mxu0 %v7083
    %7731 = vmatpush1.bf16.msra.mxu0 %v7082
    %7732 = vmatprep.subr.bf16.mxu0 %v7095
    %7733 = vmatpush1.bf16.msra.mxu0 %v7094
    %7734 = vmatprep.subr.bf16.mxu0 %v7107
    %7735 = vmatpush1.bf16.msra.mxu0 %v7106
    %7736 = vmatprep.subr.bf16.mxu0 %v7119
    %7737 = vmatpush1.bf16.msra.mxu0 %v7118
    %7738 = vmatprep.mubr.bf16.mxu0 %v5399
    %7739 = vmatmul.mubr.bf16.gmra.mrb[0].mxu0 %v5398
    %v7740 = vpop.f32.mrb[0].mxu0
    %v7741 = vadd.f32 0.0, %v7740
    %v7742 = vpop.f32.mrb[0].mxu0
    %v7743 = vadd.f32 0.0, %v7742
    %v7744 = vpop.f32.mrb[0].mxu0
    %v7745 = vpop.f32.mrb[0].mxu0
    %7746 = vdwg.mxu0
    %7747 = vmatprep.subr.bf16.mxu0 %v7131
    %7748 = vmatpush1.bf16.msra.mxu0 %v7130
    %7749 = vmatprep.subr.bf16.mxu0 %v7143
    %7750 = vmatpush1.bf16.msra.mxu0 %v7142
    %7751 = vmatprep.subr.bf16.mxu0 %v7155
    %7752 = vmatpush1.bf16.msra.mxu0 %v7154
    %7753 = vmatprep.subr.bf16.mxu0 %v7167
    %7754 = vmatpush1.bf16.msra.mxu0 %v7166
    %7755 = vmatprep.subr.bf16.mxu0 %v7179
    %7756 = vmatpush1.bf16.msra.mxu0 %v7178
    %7757 = vmatprep.subr.bf16.mxu0 %v7191
    %7758 = vmatpush1.bf16.msra.mxu0 %v7190
    %7759 = vmatprep.subr.bf16.mxu0 %v7203
    %7760 = vmatpush1.bf16.msra.mxu0 %v7202
    %7761 = vmatprep.subr.bf16.mxu0 %v7215
    %7762 = vmatpush1.bf16.msra.mxu0 %v7214
    %7763 = vmatprep.subr.bf16.mxu0 %v7227
    %7764 = vmatpush1.bf16.msra.mxu0 %v7226
    %7765 = vmatprep.subr.bf16.mxu0 %v7239
    %7766 = vmatpush1.bf16.msra.mxu0 %v7238
    %7767 = vmatprep.subr.bf16.mxu0 %v7251
    %7768 = vmatpush1.bf16.msra.mxu0 %v7250
    %7769 = vmatprep.subr.bf16.mxu0 %v7263
    %7770 = vmatpush1.bf16.msra.mxu0 %v7262
    %7771 = vmatprep.subr.bf16.mxu0 %v7275
    %7772 = vmatpush1.bf16.msra.mxu0 %v7274
    %7773 = vmatprep.subr.bf16.mxu0 %v7287
    %7774 = vmatpush1.bf16.msra.mxu0 %v7286
    %7775 = vmatprep.subr.bf16.mxu0 %v7299
    %7776 = vmatpush1.bf16.msra.mxu0 %v7298
    %7777 = vmatprep.subr.bf16.mxu0 %v7311
    %7778 = vmatpush1.bf16.msra.mxu0 %v7310
    %7779 = vmatprep.mubr.bf16.mxu0 %v5401
    %7780 = vmatmul.mubr.bf16.gmra.mrb[0].mxu0 %v5400
    %v7781 = vpop.f32.mrb[0].mxu0
    %v7782 = vadd.f32 %v7741, %v7781
    %v7783 = vpop.f32.mrb[0].mxu0
    %v7784 = vadd.f32 %v7743, %v7783
    %v7785 = vpop.f32.mrb[0].mxu0
    %v7786 = vpop.f32.mrb[0].mxu0
    %7787 = vdwg.mxu0
    %7788 = vmatprep.subr.bf16.mxu0 %v6941
    %7789 = vmatpush1.bf16.msra.mxu0 %v6940
    %7790 = vmatprep.subr.bf16.mxu0 %v6953
    %7791 = vmatpush1.bf16.msra.mxu0 %v6952
    %7792 = vmatprep.subr.bf16.mxu0 %v6965
    %7793 = vmatpush1.bf16.msra.mxu0 %v6964
    %7794 = vmatprep.subr.bf16.mxu0 %v6977
    %7795 = vmatpush1.bf16.msra.mxu0 %v6976
    %7796 = vmatprep.subr.bf16.mxu0 %v6989
    %7797 = vmatpush1.bf16.msra.mxu0 %v6988
    %7798 = vmatprep.subr.bf16.mxu0 %v7001
    %7799 = vmatpush1.bf16.msra.mxu0 %v7000
    %7800 = vmatprep.subr.bf16.mxu0 %v7013
    %7801 = vmatpush1.bf16.msra.mxu0 %v7012
    %7802 = vmatprep.subr.bf16.mxu0 %v7025
    %7803 = vmatpush1.bf16.msra.mxu0 %v7024
    %7804 = vmatprep.subr.bf16.mxu0 %v7037
    %7805 = vmatpush1.bf16.msra.mxu0 %v7036
    %7806 = vmatprep.subr.bf16.mxu0 %v7049
    %7807 = vmatpush1.bf16.msra.mxu0 %v7048
    %7808 = vmatprep.subr.bf16.mxu0 %v7061
    %7809 = vmatpush1.bf16.msra.mxu0 %v7060
    %7810 = vmatprep.subr.bf16.mxu0 %v7073
    %7811 = vmatpush1.bf16.msra.mxu0 %v7072
    %7812 = vmatprep.subr.bf16.mxu0 %v7085
    %7813 = vmatpush1.bf16.msra.mxu0 %v7084
    %7814 = vmatprep.subr.bf16.mxu0 %v7097
    %7815 = vmatpush1.bf16.msra.mxu0 %v7096
    %7816 = vmatprep.subr.bf16.mxu0 %v7109
    %7817 = vmatpush1.bf16.msra.mxu0 %v7108
    %7818 = vmatprep.subr.bf16.mxu0 %v7121
    %7819 = vmatpush1.bf16.msra.mxu0 %v7120
    %7820 = vmatprep.mubr.bf16.mxu0 %v5399
    %7821 = vmatmul.mubr.bf16.gmra.mrb[0].mxu0 %v5398
    %v7822 = vpop.f32.mrb[0].mxu0
    %v7823 = vadd.f32 0.0, %v7822
    %v7824 = vpop.f32.mrb[0].mxu0
    %v7825 = vadd.f32 0.0, %v7824
    %v7826 = vpop.f32.mrb[0].mxu0
    %v7827 = vpop.f32.mrb[0].mxu0
    %7828 = vdwg.mxu0
    %7829 = vmatprep.subr.bf16.mxu0 %v7133
    %7830 = vmatpush1.bf16.msra.mxu0 %v7132
    %7831 = vmatprep.subr.bf16.mxu0 %v7145
    %7832 = vmatpush1.bf16.msra.mxu0 %v7144
    %7833 = vmatprep.subr.bf16.mxu0 %v7157
    %7834 = vmatpush1.bf16.msra.mxu0 %v7156
    %7835 = vmatprep.subr.bf16.mxu0 %v7169
    %7836 = vmatpush1.bf16.msra.mxu0 %v7168
    %7837 = vmatprep.subr.bf16.mxu0 %v7181
    %7838 = vmatpush1.bf16.msra.mxu0 %v7180
    %7839 = vmatprep.subr.bf16.mxu0 %v7193
    %7840 = vmatpush1.bf16.msra.mxu0 %v7192
    %7841 = vmatprep.subr.bf16.mxu0 %v7205
    %7842 = vmatpush1.bf16.msra.mxu0 %v7204
    %7843 = vmatprep.subr.bf16.mxu0 %v7217
    %7844 = vmatpush1.bf16.msra.mxu0 %v7216
    %7845 = vmatprep.subr.bf16.mxu0 %v7229
    %7846 = vmatpush1.bf16.msra.mxu0 %v7228
    %7847 = vmatprep.subr.bf16.mxu0 %v7241
    %7848 = vmatpush1.bf16.msra.mxu0 %v7240
    %7849 = vmatprep.subr.bf16.mxu0 %v7253
    %7850 = vmatpush1.bf16.msra.mxu0 %v7252
    %7851 = vmatprep.subr.bf16.mxu0 %v7265
    %7852 = vmatpush1.bf16.msra.mxu0 %v7264
    %7853 = vmatprep.subr.bf16.mxu0 %v7277
    %7854 = vmatpush1.bf16.msra.mxu0 %v7276
    %7855 = vmatprep.subr.bf16.mxu0 %v7289
    %7856 = vmatpush1.bf16.msra.mxu0 %v7288
    %7857 = vmatprep.subr.bf16.mxu0 %v7301
    %7858 = vmatpush1.bf16.msra.mxu0 %v7300
    %7859 = vmatprep.subr.bf16.mxu0 %v7313
    %7860 = vmatpush1.bf16.msra.mxu0 %v7312
    %7861 = vmatprep.mubr.bf16.mxu0 %v5401
    %7862 = vmatmul.mubr.bf16.gmra.mrb[0].mxu0 %v5400
    %v7863 = vpop.f32.mrb[0].mxu0
    %v7864 = vadd.f32 %v7823, %v7863
    %v7865 = vpop.f32.mrb[0].mxu0
    %v7866 = vadd.f32 %v7825, %v7865
    %v7867 = vpop.f32.mrb[0].mxu0
    %v7868 = vpop.f32.mrb[0].mxu0
    %7869 = vdwg.mxu0
    %7870 = vmatprep.subr.bf16.mxu0 %v6943
    %7871 = vmatpush1.bf16.msra.mxu0 %v6942
    %7872 = vmatprep.subr.bf16.mxu0 %v6955
    %7873 = vmatpush1.bf16.msra.mxu0 %v6954
    %7874 = vmatprep.subr.bf16.mxu0 %v6967
    %7875 = vmatpush1.bf16.msra.mxu0 %v6966
    %7876 = vmatprep.subr.bf16.mxu0 %v6979
    %7877 = vmatpush1.bf16.msra.mxu0 %v6978
    %7878 = vmatprep.subr.bf16.mxu0 %v6991
    %7879 = vmatpush1.bf16.msra.mxu0 %v6990
    %7880 = vmatprep.subr.bf16.mxu0 %v7003
    %7881 = vmatpush1.bf16.msra.mxu0 %v7002
    %7882 = vmatprep.subr.bf16.mxu0 %v7015
    %7883 = vmatpush1.bf16.msra.mxu0 %v7014
    %7884 = vmatprep.subr.bf16.mxu0 %v7027
    %7885 = vmatpush1.bf16.msra.mxu0 %v7026
    %7886 = vmatprep.subr.bf16.mxu0 %v7039
    %7887 = vmatpush1.bf16.msra.mxu0 %v7038
    %7888 = vmatprep.subr.bf16.mxu0 %v7051
    %7889 = vmatpush1.bf16.msra.mxu0 %v7050
    %7890 = vmatprep.subr.bf16.mxu0 %v7063
    %7891 = vmatpush1.bf16.msra.mxu0 %v7062
    %7892 = vmatprep.subr.bf16.mxu0 %v7075
    %7893 = vmatpush1.bf16.msra.mxu0 %v7074
    %7894 = vmatprep.subr.bf16.mxu0 %v7087
    %7895 = vmatpush1.bf16.msra.mxu0 %v7086
    %7896 = vmatprep.subr.bf16.mxu0 %v7099
    %7897 = vmatpush1.bf16.msra.mxu0 %v7098
    %7898 = vmatprep.subr.bf16.mxu0 %v7111
    %7899 = vmatpush1.bf16.msra.mxu0 %v7110
    %7900 = vmatprep.subr.bf16.mxu0 %v7123
    %7901 = vmatpush1.bf16.msra.mxu0 %v7122
    %7902 = vmatprep.mubr.bf16.mxu0 %v5399
    %7903 = vmatmul.mubr.bf16.gmra.mrb[0].mxu0 %v5398
    %v7904 = vpop.f32.mrb[0].mxu0
    %v7905 = vadd.f32 0.0, %v7904
    %v7906 = vpop.f32.mrb[0].mxu0
    %v7907 = vadd.f32 0.0, %v7906
    %v7908 = vpop.f32.mrb[0].mxu0
    %v7909 = vpop.f32.mrb[0].mxu0
    %7910 = vdwg.mxu0
    %7911 = vmatprep.subr.bf16.mxu0 %v7135
    %7912 = vmatpush1.bf16.msra.mxu0 %v7134
    %7913 = vmatprep.subr.bf16.mxu0 %v7147
    %7914 = vmatpush1.bf16.msra.mxu0 %v7146
    %7915 = vmatprep.subr.bf16.mxu0 %v7159
    %7916 = vmatpush1.bf16.msra.mxu0 %v7158
    %7917 = vmatprep.subr.bf16.mxu0 %v7171
    %7918 = vmatpush1.bf16.msra.mxu0 %v7170
    %7919 = vmatprep.subr.bf16.mxu0 %v7183
    %7920 = vmatpush1.bf16.msra.mxu0 %v7182
    %7921 = vmatprep.subr.bf16.mxu0 %v7195
    %7922 = vmatpush1.bf16.msra.mxu0 %v7194
    %7923 = vmatprep.subr.bf16.mxu0 %v7207
    %7924 = vmatpush1.bf16.msra.mxu0 %v7206
    %7925 = vmatprep.subr.bf16.mxu0 %v7219
    %7926 = vmatpush1.bf16.msra.mxu0 %v7218
    %7927 = vmatprep.subr.bf16.mxu0 %v7231
    %7928 = vmatpush1.bf16.msra.mxu0 %v7230
    %7929 = vmatprep.subr.bf16.mxu0 %v7243
    %7930 = vmatpush1.bf16.msra.mxu0 %v7242
    %7931 = vmatprep.subr.bf16.mxu0 %v7255
    %7932 = vmatpush1.bf16.msra.mxu0 %v7254
    %7933 = vmatprep.subr.bf16.mxu0 %v7267
    %7934 = vmatpush1.bf16.msra.mxu0 %v7266
    %7935 = vmatprep.subr.bf16.mxu0 %v7279
    %7936 = vmatpush1.bf16.msra.mxu0 %v7278
    %7937 = vmatprep.subr.bf16.mxu0 %v7291
    %7938 = vmatpush1.bf16.msra.mxu0 %v7290
    %7939 = vmatprep.subr.bf16.mxu0 %v7303
    %7940 = vmatpush1.bf16.msra.mxu0 %v7302
    %7941 = vmatprep.subr.bf16.mxu0 %v7315
    %7942 = vmatpush1.bf16.msra.mxu0 %v7314
    %7943 = vmatprep.mubr.bf16.mxu0 %v5401
    %7944 = vmatmul.mubr.bf16.gmra.mrb[0].mxu0 %v5400
    %v7945 = vpop.f32.mrb[0].mxu0
    %v7946 = vadd.f32 %v7905, %v7945
    %v7947 = vpop.f32.mrb[0].mxu0
    %v7948 = vadd.f32 %v7907, %v7947
    %v7949 = vpop.f32.mrb[0].mxu0
    %v7950 = vpop.f32.mrb[0].mxu0
    %7951 = vdwg.mxu0
    %7952 = vmatprep.subr.bf16.mxu0 %v6945
    %7953 = vmatpush1.bf16.msra.mxu0 %v6944
    %7954 = vmatprep.subr.bf16.mxu0 %v6957
    %7955 = vmatpush1.bf16.msra.mxu0 %v6956
    %7956 = vmatprep.subr.bf16.mxu0 %v6969
    %7957 = vmatpush1.bf16.msra.mxu0 %v6968
    %7958 = vmatprep.subr.bf16.mxu0 %v6981
    %7959 = vmatpush1.bf16.msra.mxu0 %v6980
    %7960 = vmatprep.subr.bf16.mxu0 %v6993
    %7961 = vmatpush1.bf16.msra.mxu0 %v6992
    %7962 = vmatprep.subr.bf16.mxu0 %v7005
    %7963 = vmatpush1.bf16.msra.mxu0 %v7004
    %7964 = vmatprep.subr.bf16.mxu0 %v7017
    %7965 = vmatpush1.bf16.msra.mxu0 %v7016
    %7966 = vmatprep.subr.bf16.mxu0 %v7029
    %7967 = vmatpush1.bf16.msra.mxu0 %v7028
    %7968 = vmatprep.subr.bf16.mxu0 %v7041
    %7969 = vmatpush1.bf16.msra.mxu0 %v7040
    %7970 = vmatprep.subr.bf16.mxu0 %v7053
    %7971 = vmatpush1.bf16.msra.mxu0 %v7052
    %7972 = vmatprep.subr.bf16.mxu0 %v7065
    %7973 = vmatpush1.bf16.msra.mxu0 %v7064
    %7974 = vmatprep.subr.bf16.mxu0 %v7077
    %7975 = vmatpush1.bf16.msra.mxu0 %v7076
    %7976 = vmatprep.subr.bf16.mxu0 %v7089
    %7977 = vmatpush1.bf16.msra.mxu0 %v7088
    %7978 = vmatprep.subr.bf16.mxu0 %v7101
    %7979 = vmatpush1.bf16.msra.mxu0 %v7100
    %7980 = vmatprep.subr.bf16.mxu0 %v7113
    %7981 = vmatpush1.bf16.msra.mxu0 %v7112
    %7982 = vmatprep.subr.bf16.mxu0 %v7125
    %7983 = vmatpush1.bf16.msra.mxu0 %v7124
    %7984 = vmatprep.mubr.bf16.mxu0 %v5399
    %7985 = vmatmul.mubr.bf16.gmra.mrb[0].mxu0 %v5398
    %v7986 = vpop.f32.mrb[0].mxu0
    %v7987 = vadd.f32 0.0, %v7986
    %v7988 = vpop.f32.mrb[0].mxu0
    %v7989 = vadd.f32 0.0, %v7988
    %v7990 = vpop.f32.mrb[0].mxu0
    %v7991 = vpop.f32.mrb[0].mxu0
    %7992 = vdwg.mxu0
    %7993 = vmatprep.subr.bf16.mxu0 %v7137
    %7994 = vmatpush1.bf16.msra.mxu0 %v7136
    %7995 = vmatprep.subr.bf16.mxu0 %v7149
    %7996 = vmatpush1.bf16.msra.mxu0 %v7148
    %7997 = vmatprep.subr.bf16.mxu0 %v7161
    %7998 = vmatpush1.bf16.msra.mxu0 %v7160
    %7999 = vmatprep.subr.bf16.mxu0 %v7173
    %8000 = vmatpush1.bf16.msra.mxu0 %v7172
    %8001 = vmatprep.subr.bf16.mxu0 %v7185
    %8002 = vmatpush1.bf16.msra.mxu0 %v7184
    %8003 = vmatprep.subr.bf16.mxu0 %v7197
    %8004 = vmatpush1.bf16.msra.mxu0 %v7196
    %8005 = vmatprep.subr.bf16.mxu0 %v7209
    %8006 = vmatpush1.bf16.msra.mxu0 %v7208
    %8007 = vmatprep.subr.bf16.mxu0 %v7221
    %8008 = vmatpush1.bf16.msra.mxu0 %v7220
    %8009 = vmatprep.subr.bf16.mxu0 %v7233
    %8010 = vmatpush1.bf16.msra.mxu0 %v7232
    %8011 = vmatprep.subr.bf16.mxu0 %v7245
    %8012 = vmatpush1.bf16.msra.mxu0 %v7244
    %8013 = vmatprep.subr.bf16.mxu0 %v7257
    %8014 = vmatpush1.bf16.msra.mxu0 %v7256
    %8015 = vmatprep.subr.bf16.mxu0 %v7269
    %8016 = vmatpush1.bf16.msra.mxu0 %v7268
    %8017 = vmatprep.subr.bf16.mxu0 %v7281
    %8018 = vmatpush1.bf16.msra.mxu0 %v7280
    %8019 = vmatprep.subr.bf16.mxu0 %v7293
    %8020 = vmatpush1.bf16.msra.mxu0 %v7292
    %8021 = vmatprep.subr.bf16.mxu0 %v7305
    %8022 = vmatpush1.bf16.msra.mxu0 %v7304
    %8023 = vmatprep.subr.bf16.mxu0 %v7317
    %8024 = vmatpush1.bf16.msra.mxu0 %v7316
    %8025 = vmatprep.mubr.bf16.mxu0 %v5401
    %8026 = vmatmul.mubr.bf16.gmra.mrb[0].mxu0 %v5400
    %v8027 = vpop.f32.mrb[0].mxu0
    %v8028 = vadd.f32 %v7987, %v8027
    %v8029 = vpop.f32.mrb[0].mxu0
    %v8030 = vadd.f32 %v7989, %v8029
    %v8031 = vpop.f32.mrb[0].mxu0
    %v8032 = vpop.f32.mrb[0].mxu0
    %8033 = vdwg.mxu0
    %8034 = vmatprep.subr.bf16.mxu0 %v6947
    %8035 = vmatpush1.bf16.msra.mxu0 %v6946
    %8036 = vmatprep.subr.bf16.mxu0 %v6959
    %8037 = vmatpush1.bf16.msra.mxu0 %v6958
    %8038 = vmatprep.subr.bf16.mxu0 %v6971
    %8039 = vmatpush1.bf16.msra.mxu0 %v6970
    %8040 = vmatprep.subr.bf16.mxu0 %v6983
    %8041 = vmatpush1.bf16.msra.mxu0 %v6982
    %8042 = vmatprep.subr.bf16.mxu0 %v6995
    %8043 = vmatpush1.bf16.msra.mxu0 %v6994
    %8044 = vmatprep.subr.bf16.mxu0 %v7007
    %8045 = vmatpush1.bf16.msra.mxu0 %v7006
    %8046 = vmatprep.subr.bf16.mxu0 %v7019
    %8047 = vmatpush1.bf16.msra.mxu0 %v7018
    %8048 = vmatprep.subr.bf16.mxu0 %v7031
    %8049 = vmatpush1.bf16.msra.mxu0 %v7030
    %8050 = vmatprep.subr.bf16.mxu0 %v7043
    %8051 = vmatpush1.bf16.msra.mxu0 %v7042
    %8052 = vmatprep.subr.bf16.mxu0 %v7055
    %8053 = vmatpush1.bf16.msra.mxu0 %v7054
    %8054 = vmatprep.subr.bf16.mxu0 %v7067
    %8055 = vmatpush1.bf16.msra.mxu0 %v7066
    %8056 = vmatprep.subr.bf16.mxu0 %v7079
    %8057 = vmatpush1.bf16.msra.mxu0 %v7078
    %8058 = vmatprep.subr.bf16.mxu0 %v7091
    %8059 = vmatpush1.bf16.msra.mxu0 %v7090
    %8060 = vmatprep.subr.bf16.mxu0 %v7103
    %8061 = vmatpush1.bf16.msra.mxu0 %v7102
    %8062 = vmatprep.subr.bf16.mxu0 %v7115
    %8063 = vmatpush1.bf16.msra.mxu0 %v7114
    %8064 = vmatprep.subr.bf16.mxu0 %v7127
    %8065 = vmatpush1.bf16.msra.mxu0 %v7126
    %8066 = vmatprep.mubr.bf16.mxu0 %v5399
    %8067 = vmatmul.mubr.bf16.gmra.mrb[0].mxu0 %v5398
    %v8068 = vpop.f32.mrb[0].mxu0
    %v8069 = vadd.f32 0.0, %v8068
    %v8070 = vpop.f32.mrb[0].mxu0
    %v8071 = vadd.f32 0.0, %v8070
    %v8072 = vpop.f32.mrb[0].mxu0
    %v8073 = vpop.f32.mrb[0].mxu0
    %8074 = vdwg.mxu0
    %8075 = vmatprep.subr.bf16.mxu0 %v7139
    %8076 = vmatpush1.bf16.msra.mxu0 %v7138
    %8077 = vmatprep.subr.bf16.mxu0 %v7151
    %8078 = vmatpush1.bf16.msra.mxu0 %v7150
    %8079 = vmatprep.subr.bf16.mxu0 %v7163
    %8080 = vmatpush1.bf16.msra.mxu0 %v7162
    %8081 = vmatprep.subr.bf16.mxu0 %v7175
    %8082 = vmatpush1.bf16.msra.mxu0 %v7174
    %8083 = vmatprep.subr.bf16.mxu0 %v7187
    %8084 = vmatpush1.bf16.msra.mxu0 %v7186
    %8085 = vmatprep.subr.bf16.mxu0 %v7199
    %8086 = vmatpush1.bf16.msra.mxu0 %v7198
    %8087 = vmatprep.subr.bf16.mxu0 %v7211
    %8088 = vmatpush1.bf16.msra.mxu0 %v7210
    %8089 = vmatprep.subr.bf16.mxu0 %v7223
    %8090 = vmatpush1.bf16.msra.mxu0 %v7222
    %8091 = vmatprep.subr.bf16.mxu0 %v7235
    %8092 = vmatpush1.bf16.msra.mxu0 %v7234
    %8093 = vmatprep.subr.bf16.mxu0 %v7247
    %8094 = vmatpush1.bf16.msra.mxu0 %v7246
    %8095 = vmatprep.subr.bf16.mxu0 %v7259
    %8096 = vmatpush1.bf16.msra.mxu0 %v7258
    %8097 = vmatprep.subr.bf16.mxu0 %v7271
    %8098 = vmatpush1.bf16.msra.mxu0 %v7270
    %8099 = vmatprep.subr.bf16.mxu0 %v7283
    %8100 = vmatpush1.bf16.msra.mxu0 %v7282
    %8101 = vmatprep.subr.bf16.mxu0 %v7295
    %8102 = vmatpush1.bf16.msra.mxu0 %v7294
    %8103 = vmatprep.subr.bf16.mxu0 %v7307
    %8104 = vmatpush1.bf16.msra.mxu0 %v7306
    %8105 = vmatprep.subr.bf16.mxu0 %v7319
    %8106 = vmatpush1.bf16.msra.mxu0 %v7318
    %8107 = vmatprep.mubr.bf16.mxu0 %v5401
    %8108 = vmatmul.mubr.bf16.gmra.mrb[0].mxu0 %v5400
    %v8109 = vpop.f32.mrb[0].mxu0
    %v8110 = vadd.f32 %v8069, %v8109
    %v8111 = vpop.f32.mrb[0].mxu0
    %v8112 = vadd.f32 %v8071, %v8111
    %v8113 = vpop.f32.mrb[0].mxu0
    %v8114 = vpop.f32.mrb[0].mxu0
    %8115 = vdwg.mxu0
    %8116 = vmatprep.subr.bf16.mxu0 %v6949
    %8117 = vmatpush1.bf16.msra.mxu0 %v6948
    %8118 = vmatprep.subr.bf16.mxu0 %v6961
    %8119 = vmatpush1.bf16.msra.mxu0 %v6960
    %8120 = vmatprep.subr.bf16.mxu0 %v6973
    %8121 = vmatpush1.bf16.msra.mxu0 %v6972
    %8122 = vmatprep.subr.bf16.mxu0 %v6985
    %8123 = vmatpush1.bf16.msra.mxu0 %v6984
    %8124 = vmatprep.subr.bf16.mxu0 %v6997
    %8125 = vmatpush1.bf16.msra.mxu0 %v6996
    %8126 = vmatprep.subr.bf16.mxu0 %v7009
    %8127 = vmatpush1.bf16.msra.mxu0 %v7008
    %8128 = vmatprep.subr.bf16.mxu0 %v7021
    %8129 = vmatpush1.bf16.msra.mxu0 %v7020
    %8130 = vmatprep.subr.bf16.mxu0 %v7033
    %8131 = vmatpush1.bf16.msra.mxu0 %v7032
    %8132 = vmatprep.subr.bf16.mxu0 %v7045
    %8133 = vmatpush1.bf16.msra.mxu0 %v7044
    %8134 = vmatprep.subr.bf16.mxu0 %v7057
    %8135 = vmatpush1.bf16.msra.mxu0 %v7056
    %8136 = vmatprep.subr.bf16.mxu0 %v7069
    %8137 = vmatpush1.bf16.msra.mxu0 %v7068
    %8138 = vmatprep.subr.bf16.mxu0 %v7081
    %8139 = vmatpush1.bf16.msra.mxu0 %v7080
    %8140 = vmatprep.subr.bf16.mxu0 %v7093
    %8141 = vmatpush1.bf16.msra.mxu0 %v7092
    %8142 = vmatprep.subr.bf16.mxu0 %v7105
    %8143 = vmatpush1.bf16.msra.mxu0 %v7104
    %8144 = vmatprep.subr.bf16.mxu0 %v7117
    %8145 = vmatpush1.bf16.msra.mxu0 %v7116
    %8146 = vmatprep.subr.bf16.mxu0 %v7129
    %8147 = vmatpush1.bf16.msra.mxu0 %v7128
    %8148 = vmatprep.mubr.bf16.mxu0 %v5399
    %8149 = vmatmul.mubr.bf16.gmra.mrb[0].mxu0 %v5398
    %v8150 = vpop.f32.mrb[0].mxu0
    %v8151 = vadd.f32 0.0, %v8150
    %v8152 = vpop.f32.mrb[0].mxu0
    %v8153 = vadd.f32 0.0, %v8152
    %v8154 = vpop.f32.mrb[0].mxu0
    %v8155 = vpop.f32.mrb[0].mxu0
    %8156 = vdwg.mxu0
    %8157 = vmatprep.subr.bf16.mxu0 %v7141
    %8158 = vmatpush1.bf16.msra.mxu0 %v7140
    %8159 = vmatprep.subr.bf16.mxu0 %v7153
    %8160 = vmatpush1.bf16.msra.mxu0 %v7152
    %8161 = vmatprep.subr.bf16.mxu0 %v7165
    %8162 = vmatpush1.bf16.msra.mxu0 %v7164
    %8163 = vmatprep.subr.bf16.mxu0 %v7177
    %8164 = vmatpush1.bf16.msra.mxu0 %v7176
    %8165 = vmatprep.subr.bf16.mxu0 %v7189
    %8166 = vmatpush1.bf16.msra.mxu0 %v7188
    %8167 = vmatprep.subr.bf16.mxu0 %v7201
    %8168 = vmatpush1.bf16.msra.mxu0 %v7200
    %8169 = vmatprep.subr.bf16.mxu0 %v7213
    %8170 = vmatpush1.bf16.msra.mxu0 %v7212
    %8171 = vmatprep.subr.bf16.mxu0 %v7225
    %8172 = vmatpush1.bf16.msra.mxu0 %v7224
    %8173 = vmatprep.subr.bf16.mxu0 %v7237
    %8174 = vmatpush1.bf16.msra.mxu0 %v7236
    %8175 = vmatprep.subr.bf16.mxu0 %v7249
    %8176 = vmatpush1.bf16.msra.mxu0 %v7248
    %8177 = vmatprep.subr.bf16.mxu0 %v7261
    %8178 = vmatpush1.bf16.msra.mxu0 %v7260
    %8179 = vmatprep.subr.bf16.mxu0 %v7273
    %8180 = vmatpush1.bf16.msra.mxu0 %v7272
    %8181 = vmatprep.subr.bf16.mxu0 %v7285
    %8182 = vmatpush1.bf16.msra.mxu0 %v7284
    %8183 = vmatprep.subr.bf16.mxu0 %v7297
    %8184 = vmatpush1.bf16.msra.mxu0 %v7296
    %8185 = vmatprep.subr.bf16.mxu0 %v7309
    %8186 = vmatpush1.bf16.msra.mxu0 %v7308
    %8187 = vmatprep.subr.bf16.mxu0 %v7321
    %8188 = vmatpush1.bf16.msra.mxu0 %v7320
    %8189 = vmatprep.mubr.bf16.mxu0 %v5401
    %8190 = vmatmul.mubr.bf16.gmra.mrb[0].mxu0 %v5400
    %v8191 = vpop.f32.mrb[0].mxu0
    %v8192 = vadd.f32 %v8151, %v8191
    %v8193 = vpop.f32.mrb[0].mxu0
    %v8194 = vadd.f32 %v8153, %v8193
    %v8195 = vpop.f32.mrb[0].mxu0
    %v8196 = vpop.f32.mrb[0].mxu0
    %8197 = vdwg.mxu0
    %v8198 = vmax.f32 %v7782, %v7946
    %v8199 = vmax.f32 %v7784, %v7948
    %v8200 = vmax.f32 %v7864, %v8028
    %v8201 = vmax.f32 %v7866, %v8030
    %v8202 = vmax.f32 %v8198, %v8110
    %v8203 = vmax.f32 %v8199, %v8112
    %v8204 = vmax.f32 %v8200, %v8192
    %v8205 = vmax.f32 %v8201, %v8194
    %v8206 = vsub.f32 %v7782, %v8202
    %v8207 = vsub.f32 %v7784, %v8203
    %v8208 = vsub.f32 %v7864, %v8204
    %v8209 = vsub.f32 %v7866, %v8205
    %v8210 = vmul.f32 %v8206, 1.442695
    %v8211 = vpow.pop %v8210
    %v8212 = vmul.f32 %v8207, 1.442695
    %v8213 = vpow.pop %v8212
    %v8214 = vmul.f32 %v8208, 1.442695
    %v8215 = vpow.pop %v8214
    %v8216 = vmul.f32 %v8209, 1.442695
    %v8217 = vpow.pop %v8216
    %v8218 = vsub.f32 %v7946, %v8202
    %v8219 = vsub.f32 %v7948, %v8203
    %v8220 = vsub.f32 %v8028, %v8204
    %v8221 = vsub.f32 %v8030, %v8205
    %v8222 = vmul.f32 %v8218, 1.442695
    %v8223 = vpow.pop %v8222
    %v8224 = vmul.f32 %v8219, 1.442695
    %v8225 = vpow.pop %v8224
    %v8226 = vmul.f32 %v8220, 1.442695
    %v8227 = vpow.pop %v8226
    %v8228 = vmul.f32 %v8221, 1.442695
    %v8229 = vpow.pop %v8228
    %v8230 = vsub.f32 %v8110, %v8202
    %v8231 = vsub.f32 %v8112, %v8203
    %v8232 = vsub.f32 %v8192, %v8204
    %v8233 = vsub.f32 %v8194, %v8205
    %v8234 = vmul.f32 %v8230, 1.442695
    %v8235 = vpow.pop %v8234
    %v8236 = vmul.f32 %v8231, 1.442695
    %v8237 = vpow.pop %v8236
    %v8238 = vmul.f32 %v8232, 1.442695
    %v8239 = vpow.pop %v8238
    %v8240 = vmul.f32 %v8233, 1.442695
    %v8241 = vpow.pop %v8240
    %v8242 = vadd.f32 %v8211, %v8223
    %v8243 = vadd.f32 %v8213, %v8225
    %v8244 = vadd.f32 %v8215, %v8227
    %v8245 = vadd.f32 %v8217, %v8229
    %v8246 = vadd.f32 %v8242, %v8235
    %v8247 = vadd.f32 %v8243, %v8237
    %v8248 = vadd.f32 %v8244, %v8239
    %v8249 = vadd.f32 %v8245, %v8241
    %v8250 = vrcp.pop %v8246
    %v8251 = vmul.f32 1.0, %v8250
    %v8252 = vrcp.pop %v8247
    %v8253 = vmul.f32 1.0, %v8252
    %v8254 = vrcp.pop %v8248
    %v8255 = vmul.f32 1.0, %v8254
    %v8256 = vrcp.pop %v8249
    %v8257 = vmul.f32 1.0, %v8256
    %v8258 = vmul.f32 %v8211, %v8251
    %v8259 = vmul.f32 %v8213, %v8253
    %v8260 = vmul.f32 %v8215, %v8255
    %v8261 = vmul.f32 %v8217, %v8257
    %v8266 = vcombine.low %v8258, %v8259
    %v8267 = vcombine.low %v8260, %v8261
    %v8269 = vunpack.c.l.s4 1966171168
    %v8270 = vunpack.c.0.s8 %v8269
    %v8271 = vlaneseq
    %v8272 = vshrl.u32 %v8271, 7
    %v8273 = vsub.s32 %v8270, %v8272
    %v8274 = vrot.slane %v8266, %v8273
    %v8276 = vunpack.c.l.s4 1966171168
    %v8277 = vunpack.c.0.s8 %v8276
    %v8278 = vlaneseq
    %v8279 = vshrl.u32 %v8278, 7
    %v8280 = vsub.s32 %v8277, %v8279
    %v8281 = vrot.slane %v8267, %v8280
    %v8282 = vcombine.low %v8274, %v8281
    %v8283 = vcombine.high %v8274, %v8281
    %v8285 = vunpack.c.l.s4 1966171168
    %v8286 = vunpack.c.0.s8 %v8285
    %v8287 = vlaneseq
    %v8288 = vshrl.u32 %v8287, 7
    %v8289 = vsub.s32 %v8286, %v8288
    %v8290 = vrot.slane %v8282, %v8289
    %v8292 = vunpack.c.l.s4 1966171168
    %v8293 = vunpack.c.0.s8 %v8292
    %v8294 = vlaneseq
    %v8295 = vshrl.u32 %v8294, 7
    %v8296 = vsub.s32 %v8293, %v8295
    %v8297 = vrot.slane %v8283, %v8296
    %v8298 = vmul.f32 %v8223, %v8251
    %v8299 = vmul.f32 %v8225, %v8253
    %v8300 = vmul.f32 %v8227, %v8255
    %v8301 = vmul.f32 %v8229, %v8257
    %v8306 = vcombine.low %v8298, %v8299
    %v8307 = vcombine.low %v8300, %v8301
    %v8309 = vunpack.c.l.s4 1966171168
    %v8310 = vunpack.c.0.s8 %v8309
    %v8311 = vlaneseq
    %v8312 = vshrl.u32 %v8311, 7
    %v8313 = vsub.s32 %v8310, %v8312
    %v8314 = vrot.slane %v8306, %v8313
    %v8316 = vunpack.c.l.s4 1966171168
    %v8317 = vunpack.c.0.s8 %v8316
    %v8318 = vlaneseq
    %v8319 = vshrl.u32 %v8318, 7
    %v8320 = vsub.s32 %v8317, %v8319
    %v8321 = vrot.slane %v8307, %v8320
    %v8322 = vcombine.low %v8314, %v8321
    %v8323 = vcombine.high %v8314, %v8321
    %v8325 = vunpack.c.l.s4 1966171168
    %v8326 = vunpack.c.0.s8 %v8325
    %v8327 = vlaneseq
    %v8328 = vshrl.u32 %v8327, 7
    %v8329 = vsub.s32 %v8326, %v8328
    %v8330 = vrot.slane %v8322, %v8329
    %v8332 = vunpack.c.l.s4 1966171168
    %v8333 = vunpack.c.0.s8 %v8332
    %v8334 = vlaneseq
    %v8335 = vshrl.u32 %v8334, 7
    %v8336 = vsub.s32 %v8333, %v8335
    %v8337 = vrot.slane %v8323, %v8336
    %v8338 = vmul.f32 %v8235, %v8251
    %v8339 = vmul.f32 %v8237, %v8253
    %v8340 = vmul.f32 %v8239, %v8255
    %v8341 = vmul.f32 %v8241, %v8257
    %v8346 = vcombine.low %v8338, %v8339
    %v8347 = vcombine.low %v8340, %v8341
    %v8349 = vunpack.c.l.s4 1966171168
    %v8350 = vunpack.c.0.s8 %v8349
    %v8351 = vlaneseq
    %v8352 = vshrl.u32 %v8351, 7
    %v8353 = vsub.s32 %v8350, %v8352
    %v8354 = vrot.slane %v8346, %v8353
    %v8356 = vunpack.c.l.s4 1966171168
    %v8357 = vunpack.c.0.s8 %v8356
    %v8358 = vlaneseq
    %v8359 = vshrl.u32 %v8358, 7
    %v8360 = vsub.s32 %v8357, %v8359
    %v8361 = vrot.slane %v8347, %v8360
    %v8362 = vcombine.low %v8354, %v8361
    %v8363 = vcombine.high %v8354, %v8361
    %v8365 = vunpack.c.l.s4 1966171168
    %v8366 = vunpack.c.0.s8 %v8365
    %v8367 = vlaneseq
    %v8368 = vshrl.u32 %v8367, 7
    %v8369 = vsub.s32 %v8366, %v8368
    %v8370 = vrot.slane %v8362, %v8369
    %v8372 = vunpack.c.l.s4 1966171168
    %v8373 = vunpack.c.0.s8 %v8372
    %v8374 = vlaneseq
    %v8375 = vshrl.u32 %v8374, 7
    %v8376 = vsub.s32 %v8373, %v8375
    %v8377 = vrot.slane %v8363, %v8376
    %v8378 = vlaneseq
    %v8379 = vshrl.u32 %v8378, 7
    %v8380 = vsub.s32 0, %v8379
    %v8381 = vrot.slane %v8290, %v8380
    %v8382 = vlaneseq
    %v8383 = vshrl.u32 %v8382, 7
    %v8384 = vsub.s32 1, %v8383
    %v8385 = vrot.slane %v8290, %v8384
    %v8386 = vlaneseq
    %v8387 = vshrl.u32 %v8386, 7
    %v8388 = vsub.s32 2, %v8387
    %v8389 = vrot.slane %v8290, %v8388
    %v8390 = vlaneseq
    %v8391 = vshrl.u32 %v8390, 7
    %v8392 = vsub.s32 3, %v8391
    %v8393 = vrot.slane %v8290, %v8392
    %v8394 = vlaneseq
    %v8395 = vshrl.u32 %v8394, 7
    %v8396 = vsub.s32 0, %v8395
    %v8397 = vrot.slane %v8297, %v8396
    %v8398 = vlaneseq
    %v8399 = vshrl.u32 %v8398, 7
    %v8400 = vsub.s32 1, %v8399
    %v8401 = vrot.slane %v8297, %v8400
    %v8402 = vlaneseq
    %v8403 = vshrl.u32 %v8402, 7
    %v8404 = vsub.s32 2, %v8403
    %v8405 = vrot.slane %v8297, %v8404
    %v8406 = vlaneseq
    %v8407 = vshrl.u32 %v8406, 7
    %v8408 = vsub.s32 3, %v8407
    %v8409 = vrot.slane %v8297, %v8408
    %v8418 = vmul.f32 %v8381, %v2635
    %v8419 = vmul.f32 %v8385, %v2640
    %v8420 = vmul.f32 %v8389, %v3880
    %v8421 = vmul.f32 %v8393, %v3945
    %v8422 = vmul.f32 %v8385, %v2646
    %v8423 = vmul.f32 %v8389, %v3881
    %v8424 = vmul.f32 %v8393, %v3946
    %v8425 = vmul.f32 %v8381, %v2638
    %v8426 = vmul.f32 %v8385, %v2650
    %v8427 = vmul.f32 %v8389, %v3882
    %v8428 = vmul.f32 %v8393, %v3947
    %v8429 = vmul.f32 %v8381, %v2644
    %v8430 = vmul.f32 %v8385, %v2656
    %v8431 = vmul.f32 %v8389, %v3883
    %v8432 = vmul.f32 %v8393, %v3948
    %v8433 = vmul.f32 %v8381, %v2648
    %v8434 = vmul.f32 %v8385, %v2660
    %v8435 = vmul.f32 %v8389, %v3884
    %v8436 = vmul.f32 %v8393, %v3949
    %v8437 = vmul.f32 %v8381, %v2654
    %v8438 = vmul.f32 %v8385, %v2666
    %v8439 = vmul.f32 %v8389, %v3885
    %v8440 = vmul.f32 %v8393, %v3950
    %v8441 = vmul.f32 %v8381, %v2658
    %v8442 = vmul.f32 %v8385, %v2669
    %v8443 = vmul.f32 %v8389, %v3886
    %v8444 = vmul.f32 %v8393, %v3951
    %v8445 = vmul.f32 %v8381, %v2664
    %v8446 = vmul.f32 %v8389, %v3887
    %v8447 = vmul.f32 %v8393, %v3952
    %v8448 = vmul.f32 %v8397, %v2673
    %v8449 = vmul.f32 %v8401, %v2678
    %v8450 = vmul.f32 %v8405, %v3888
    %v8451 = vmul.f32 %v8409, %v3953
    %v8452 = vmul.f32 %v8401, %v2684
    %v8453 = vmul.f32 %v8405, %v3889
    %v8454 = vmul.f32 %v8409, %v3954
    %v8455 = vmul.f32 %v8397, %v2676
    %v8456 = vmul.f32 %v8401, %v2688
    %v8457 = vmul.f32 %v8405, %v3890
    %v8458 = vmul.f32 %v8409, %v3955
    %v8459 = vmul.f32 %v8397, %v2682
    %v8460 = vmul.f32 %v8401, %v2694
    %v8461 = vmul.f32 %v8405, %v3891
    %v8462 = vmul.f32 %v8409, %v3956
    %v8463 = vmul.f32 %v8397, %v2686
    %v8464 = vmul.f32 %v8401, %v2698
    %v8465 = vmul.f32 %v8405, %v3892
    %v8466 = vmul.f32 %v8409, %v3957
    %v8467 = vmul.f32 %v8397, %v2692
    %v8468 = vmul.f32 %v8401, %v2704
    %v8469 = vmul.f32 %v8405, %v3893
    %v8470 = vmul.f32 %v8409, %v3958
    %v8471 = vmul.f32 %v8397, %v2696
    %v8472 = vmul.f32 %v8401, %v2707
    %v8473 = vmul.f32 %v8405, %v3894
    %v8474 = vmul.f32 %v8409, %v3959
    %v8475 = vmul.f32 %v8397, %v2702
    %v8476 = vmul.f32 %v8405, %v3895
    %v8477 = vmul.f32 %v8409, %v3960
    %v8478 = vlaneseq
    %v8479 = vshrl.u32 %v8478, 7
    %v8480 = vsub.s32 0, %v8479
    %v8481 = vrot.slane %v8330, %v8480
    %v8482 = vlaneseq
    %v8483 = vshrl.u32 %v8482, 7
    %v8484 = vsub.s32 1, %v8483
    %v8485 = vrot.slane %v8330, %v8484
    %v8486 = vlaneseq
    %v8487 = vshrl.u32 %v8486, 7
    %v8488 = vsub.s32 2, %v8487
    %v8489 = vrot.slane %v8330, %v8488
    %v8490 = vlaneseq
    %v8491 = vshrl.u32 %v8490, 7
    %v8492 = vsub.s32 3, %v8491
    %v8493 = vrot.slane %v8330, %v8492
    %v8494 = vlaneseq
    %v8495 = vshrl.u32 %v8494, 7
    %v8496 = vsub.s32 0, %v8495
    %v8497 = vrot.slane %v8337, %v8496
    %v8498 = vlaneseq
    %v8499 = vshrl.u32 %v8498, 7
    %v8500 = vsub.s32 1, %v8499
    %v8501 = vrot.slane %v8337, %v8500
    %v8502 = vlaneseq
    %v8503 = vshrl.u32 %v8502, 7
    %v8504 = vsub.s32 2, %v8503
    %v8505 = vrot.slane %v8337, %v8504
    %v8506 = vlaneseq
    %v8507 = vshrl.u32 %v8506, 7
    %v8508 = vsub.s32 3, %v8507
    %v8509 = vrot.slane %v8337, %v8508
    %v8518 = vmul.f32 %v8481, %v4009
    %v8519 = vmul.f32 %v8485, %v4073
    %v8520 = vmul.f32 %v8489, %v3305
    %v8521 = vmul.f32 %v8493, %v3310
    %v8522 = vmul.f32 %v8481, %v4010
    %v8523 = vmul.f32 %v8485, %v4074
    %v8524 = vmul.f32 %v8493, %v3316
    %v8525 = vmul.f32 %v8481, %v4011
    %v8526 = vmul.f32 %v8485, %v4075
    %v8527 = vmul.f32 %v8489, %v3308
    %v8528 = vmul.f32 %v8493, %v3320
    %v8529 = vmul.f32 %v8481, %v4012
    %v8530 = vmul.f32 %v8485, %v4076
    %v8531 = vmul.f32 %v8489, %v3314
    %v8532 = vmul.f32 %v8493, %v3326
    %v8533 = vmul.f32 %v8481, %v4013
    %v8534 = vmul.f32 %v8485, %v4077
    %v8535 = vmul.f32 %v8489, %v3318
    %v8536 = vmul.f32 %v8493, %v3330
    %v8537 = vmul.f32 %v8481, %v4014
    %v8538 = vmul.f32 %v8485, %v4078
    %v8539 = vmul.f32 %v8489, %v3324
    %v8540 = vmul.f32 %v8493, %v3336
    %v8541 = vmul.f32 %v8481, %v4015
    %v8542 = vmul.f32 %v8485, %v4079
    %v8543 = vmul.f32 %v8489, %v3328
    %v8544 = vmul.f32 %v8493, %v3339
    %v8545 = vmul.f32 %v8481, %v4016
    %v8546 = vmul.f32 %v8485, %v4080
    %v8547 = vmul.f32 %v8489, %v3334
    %v8548 = vmul.f32 %v8497, %v4017
    %v8549 = vmul.f32 %v8501, %v4081
    %v8550 = vmul.f32 %v8505, %v3343
    %v8551 = vmul.f32 %v8509, %v3348
    %v8552 = vmul.f32 %v8497, %v4018
    %v8553 = vmul.f32 %v8501, %v4082
    %v8554 = vmul.f32 %v8509, %v3354
    %v8555 = vmul.f32 %v8497, %v4019
    %v8556 = vmul.f32 %v8501, %v4083
    %v8557 = vmul.f32 %v8505, %v3346
    %v8558 = vmul.f32 %v8509, %v3358
    %v8559 = vmul.f32 %v8497, %v4020
    %v8560 = vmul.f32 %v8501, %v4084
    %v8561 = vmul.f32 %v8505, %v3352
    %v8562 = vmul.f32 %v8509, %v3364
    %v8563 = vmul.f32 %v8497, %v4021
    %v8564 = vmul.f32 %v8501, %v4085
    %v8565 = vmul.f32 %v8505, %v3356
    %v8566 = vmul.f32 %v8509, %v3368
    %v8567 = vmul.f32 %v8497, %v4022
    %v8568 = vmul.f32 %v8501, %v4086
    %v8569 = vmul.f32 %v8505, %v3362
    %v8570 = vmul.f32 %v8509, %v3374
    %v8571 = vmul.f32 %v8497, %v4023
    %v8572 = vmul.f32 %v8501, %v4087
    %v8573 = vmul.f32 %v8505, %v3366
    %v8574 = vmul.f32 %v8509, %v3377
    %v8575 = vmul.f32 %v8497, %v4024
    %v8576 = vmul.f32 %v8501, %v4088
    %v8577 = vmul.f32 %v8505, %v3372
    %v8578 = vadd.f32 %v8418, %v8518
    %v8579 = vadd.f32 %v8419, %v8519
    %v8580 = vadd.f32 %v8420, %v8520
    %v8581 = vadd.f32 %v8421, %v8521
    %v8582 = vadd.f32 %v8418, %v8522
    %v8583 = vadd.f32 %v8422, %v8523
    %v8584 = vadd.f32 %v8423, %v8520
    %v8585 = vadd.f32 %v8424, %v8524
    %v8586 = vadd.f32 %v8425, %v8525
    %v8587 = vadd.f32 %v8426, %v8526
    %v8588 = vadd.f32 %v8427, %v8527
    %v8589 = vadd.f32 %v8428, %v8528
    %v8590 = vadd.f32 %v8429, %v8529
    %v8591 = vadd.f32 %v8430, %v8530
    %v8592 = vadd.f32 %v8431, %v8531
    %v8593 = vadd.f32 %v8432, %v8532
    %v8594 = vadd.f32 %v8433, %v8533
    %v8595 = vadd.f32 %v8434, %v8534
    %v8596 = vadd.f32 %v8435, %v8535
    %v8597 = vadd.f32 %v8436, %v8536
    %v8598 = vadd.f32 %v8437, %v8537
    %v8599 = vadd.f32 %v8438, %v8538
    %v8600 = vadd.f32 %v8439, %v8539
    %v8601 = vadd.f32 %v8440, %v8540
    %v8602 = vadd.f32 %v8441, %v8541
    %v8603 = vadd.f32 %v8442, %v8542
    %v8604 = vadd.f32 %v8443, %v8543
    %v8605 = vadd.f32 %v8444, %v8544
    %v8606 = vadd.f32 %v8445, %v8545
    %v8607 = vadd.f32 %v8442, %v8546
    %v8608 = vadd.f32 %v8446, %v8547
    %v8609 = vadd.f32 %v8447, %v8544
    %v8610 = vadd.f32 %v8448, %v8548
    %v8611 = vadd.f32 %v8449, %v8549
    %v8612 = vadd.f32 %v8450, %v8550
    %v8613 = vadd.f32 %v8451, %v8551
    %v8614 = vadd.f32 %v8448, %v8552
    %v8615 = vadd.f32 %v8452, %v8553
    %v8616 = vadd.f32 %v8453, %v8550
    %v8617 = vadd.f32 %v8454, %v8554
    %v8618 = vadd.f32 %v8455, %v8555
    %v8619 = vadd.f32 %v8456, %v8556
    %v8620 = vadd.f32 %v8457, %v8557
    %v8621 = vadd.f32 %v8458, %v8558
    %v8622 = vadd.f32 %v8459, %v8559
    %v8623 = vadd.f32 %v8460, %v8560
    %v8624 = vadd.f32 %v8461, %v8561
    %v8625 = vadd.f32 %v8462, %v8562
    %v8626 = vadd.f32 %v8463, %v8563
    %v8627 = vadd.f32 %v8464, %v8564
    %v8628 = vadd.f32 %v8465, %v8565
    %v8629 = vadd.f32 %v8466, %v8566
    %v8630 = vadd.f32 %v8467, %v8567
    %v8631 = vadd.f32 %v8468, %v8568
    %v8632 = vadd.f32 %v8469, %v8569
    %v8633 = vadd.f32 %v8470, %v8570
    %v8634 = vadd.f32 %v8471, %v8571
    %v8635 = vadd.f32 %v8472, %v8572
    %v8636 = vadd.f32 %v8473, %v8573
    %v8637 = vadd.f32 %v8474, %v8574
    %v8638 = vadd.f32 %v8475, %v8575
    %v8639 = vadd.f32 %v8472, %v8576
    %v8640 = vadd.f32 %v8476, %v8577
    %v8641 = vadd.f32 %v8477, %v8574
    %v8642 = vlaneseq
    %v8643 = vshrl.u32 %v8642, 7
    %v8644 = vsub.s32 0, %v8643
    %v8645 = vrot.slane %v8370, %v8644
    %v8646 = vlaneseq
    %v8647 = vshrl.u32 %v8646, 7
    %v8648 = vsub.s32 1, %v8647
    %v8649 = vrot.slane %v8370, %v8648
    %v8650 = vlaneseq
    %v8651 = vshrl.u32 %v8650, 7
    %v8652 = vsub.s32 2, %v8651
    %v8653 = vrot.slane %v8370, %v8652
    %v8654 = vlaneseq
    %v8655 = vshrl.u32 %v8654, 7
    %v8656 = vsub.s32 3, %v8655
    %v8657 = vrot.slane %v8370, %v8656
    %v8658 = vlaneseq
    %v8659 = vshrl.u32 %v8658, 7
    %v8660 = vsub.s32 0, %v8659
    %v8661 = vrot.slane %v8377, %v8660
    %v8662 = vlaneseq
    %v8663 = vshrl.u32 %v8662, 7
    %v8664 = vsub.s32 1, %v8663
    %v8665 = vrot.slane %v8377, %v8664
    %v8666 = vlaneseq
    %v8667 = vshrl.u32 %v8666, 7
    %v8668 = vsub.s32 2, %v8667
    %v8669 = vrot.slane %v8377, %v8668
    %v8670 = vlaneseq
    %v8671 = vshrl.u32 %v8670, 7
    %v8672 = vsub.s32 3, %v8671
    %v8673 = vrot.slane %v8377, %v8672
    %v8682 = vmul.f32 %v8645, %v3527
    %v8683 = vmul.f32 %v8649, %v3529
    %v8684 = vmul.f32 %v8653, %v3753
    %v8685 = vmul.f32 %v8657, %v3755
    %v8686 = vmul.f32 %v8645, %v3531
    %v8687 = vmul.f32 %v8649, %v3533
    %v8688 = vmul.f32 %v8653, %v3757
    %v8689 = vmul.f32 %v8657, %v3759
    %v8690 = vmul.f32 %v8645, %v3537
    %v8691 = vmul.f32 %v8649, %v3539
    %v8692 = vmul.f32 %v8653, %v3763
    %v8693 = vmul.f32 %v8657, %v3765
    %v8694 = vmul.f32 %v8645, %v3541
    %v8695 = vmul.f32 %v8649, %v3543
    %v8696 = vmul.f32 %v8653, %v3767
    %v8697 = vmul.f32 %v8657, %v3769
    %v8698 = vmul.f32 %v8645, %v3547
    %v8699 = vmul.f32 %v8649, %v3549
    %v8700 = vmul.f32 %v8653, %v3773
    %v8701 = vmul.f32 %v8657, %v3775
    %v8702 = vmul.f32 %v8645, %v3551
    %v8703 = vmul.f32 %v8649, %v3553
    %v8704 = vmul.f32 %v8653, %v3777
    %v8705 = vmul.f32 %v8657, %v3779
    %v8706 = vmul.f32 %v8645, %v3557
    %v8707 = vmul.f32 %v8649, %v3559
    %v8708 = vmul.f32 %v8653, %v3783
    %v8709 = vmul.f32 %v8657, %v3785
    %v8710 = vmul.f32 %v8645, %v3561
    %v8711 = vmul.f32 %v8649, %v3563
    %v8712 = vmul.f32 %v8653, %v3787
    %v8713 = vmul.f32 %v8657, %v3789
    %v8714 = vmul.f32 %v8661, %v3567
    %v8715 = vmul.f32 %v8665, %v3569
    %v8716 = vmul.f32 %v8669, %v3793
    %v8717 = vmul.f32 %v8673, %v3795
    %v8718 = vmul.f32 %v8661, %v3571
    %v8719 = vmul.f32 %v8665, %v3573
    %v8720 = vmul.f32 %v8669, %v3797
    %v8721 = vmul.f32 %v8673, %v3799
    %v8722 = vmul.f32 %v8661, %v3577
    %v8723 = vmul.f32 %v8665, %v3579
    %v8724 = vmul.f32 %v8669, %v3803
    %v8725 = vmul.f32 %v8673, %v3805
    %v8726 = vmul.f32 %v8661, %v3581
    %v8727 = vmul.f32 %v8665, %v3583
    %v8728 = vmul.f32 %v8669, %v3807
    %v8729 = vmul.f32 %v8673, %v3809
    %v8730 = vmul.f32 %v8661, %v3587
    %v8731 = vmul.f32 %v8665, %v3589
    %v8732 = vmul.f32 %v8669, %v3813
    %v8733 = vmul.f32 %v8673, %v3815
    %v8734 = vmul.f32 %v8661, %v3591
    %v8735 = vmul.f32 %v8665, %v3593
    %v8736 = vmul.f32 %v8669, %v3817
    %v8737 = vmul.f32 %v8673, %v3819
    %v8738 = vmul.f32 %v8661, %v3597
    %v8739 = vmul.f32 %v8665, %v3599
    %v8740 = vmul.f32 %v8669, %v3823
    %v8741 = vmul.f32 %v8673, %v3825
    %v8742 = vmul.f32 %v8661, %v3601
    %v8743 = vmul.f32 %v8665, %v3603
    %v8744 = vmul.f32 %v8669, %v3827
    %v8745 = vmul.f32 %v8673, %v3829
    %v8746 = vadd.f32 %v8578, %v8682
    %v8747 = vadd.f32 %v8579, %v8683
    %v8748 = vadd.f32 %v8580, %v8684
    %v8749 = vadd.f32 %v8581, %v8685
    %v8750 = vadd.f32 %v8582, %v8686
    %v8751 = vadd.f32 %v8583, %v8687
    %v8752 = vadd.f32 %v8584, %v8688
    %v8753 = vadd.f32 %v8585, %v8689
    %v8754 = vadd.f32 %v8586, %v8690
    %v8755 = vadd.f32 %v8587, %v8691
    %v8756 = vadd.f32 %v8588, %v8692
    %v8757 = vadd.f32 %v8589, %v8693
    %v8758 = vadd.f32 %v8590, %v8694
    %v8759 = vadd.f32 %v8591, %v8695
    %v8760 = vadd.f32 %v8592, %v8696
    %v8761 = vadd.f32 %v8593, %v8697
    %v8762 = vadd.f32 %v8594, %v8698
    %v8763 = vadd.f32 %v8595, %v8699
    %v8764 = vadd.f32 %v8596, %v8700
    %v8765 = vadd.f32 %v8597, %v8701
    %v8766 = vadd.f32 %v8598, %v8702
    %v8767 = vadd.f32 %v8599, %v8703
    %v8768 = vadd.f32 %v8600, %v8704
    %v8769 = vadd.f32 %v8601, %v8705
    %v8770 = vadd.f32 %v8602, %v8706
    %v8771 = vadd.f32 %v8603, %v8707
    %v8772 = vadd.f32 %v8604, %v8708
    %v8773 = vadd.f32 %v8605, %v8709
    %v8774 = vadd.f32 %v8606, %v8710
    %v8775 = vadd.f32 %v8607, %v8711
    %v8776 = vadd.f32 %v8608, %v8712
    %v8777 = vadd.f32 %v8609, %v8713
    %v8778 = vadd.f32 %v8610, %v8714
    %v8779 = vadd.f32 %v8611, %v8715
    %v8780 = vadd.f32 %v8612, %v8716
    %v8781 = vadd.f32 %v8613, %v8717
    %v8782 = vadd.f32 %v8614, %v8718
    %v8783 = vadd.f32 %v8615, %v8719
    %v8784 = vadd.f32 %v8616, %v8720
    %v8785 = vadd.f32 %v8617, %v8721
    %v8786 = vadd.f32 %v8618, %v8722
    %v8787 = vadd.f32 %v8619, %v8723
    %v8788 = vadd.f32 %v8620, %v8724
    %v8789 = vadd.f32 %v8621, %v8725
    %v8790 = vadd.f32 %v8622, %v8726
    %v8791 = vadd.f32 %v8623, %v8727
    %v8792 = vadd.f32 %v8624, %v8728
    %v8793 = vadd.f32 %v8625, %v8729
    %v8794 = vadd.f32 %v8626, %v8730
    %v8795 = vadd.f32 %v8627, %v8731
    %v8796 = vadd.f32 %v8628, %v8732
    %v8797 = vadd.f32 %v8629, %v8733
    %v8798 = vadd.f32 %v8630, %v8734
    %v8799 = vadd.f32 %v8631, %v8735
    %v8800 = vadd.f32 %v8632, %v8736
    %v8801 = vadd.f32 %v8633, %v8737
    %v8802 = vadd.f32 %v8634, %v8738
    %v8803 = vadd.f32 %v8635, %v8739
    %v8804 = vadd.f32 %v8636, %v8740
    %v8805 = vadd.f32 %v8637, %v8741
    %v8806 = vadd.f32 %v8638, %v8742
    %v8807 = vadd.f32 %v8639, %v8743
    %v8808 = vadd.f32 %v8640, %v8744
    %v8809 = vadd.f32 %v8641, %v8745
    %v8810 = vpack.c.bf16 %v8750, %v8746
    %v8811 = vpack.c.bf16 %v8751, %v8747
    %v8812 = vpack.c.bf16 %v8752, %v8748
    %v8813 = vpack.c.bf16 %v8753, %v8749
    %v8814 = vpack.c.bf16 %v8758, %v8754
    %v8815 = vpack.c.bf16 %v8759, %v8755
    %v8816 = vpack.c.bf16 %v8760, %v8756
    %v8817 = vpack.c.bf16 %v8761, %v8757
    %v8818 = vpack.c.bf16 %v8766, %v8762
    %v8819 = vpack.c.bf16 %v8767, %v8763
    %v8820 = vpack.c.bf16 %v8768, %v8764
    %v8821 = vpack.c.bf16 %v8769, %v8765
    %v8822 = vpack.c.bf16 %v8774, %v8770
    %v8823 = vpack.c.bf16 %v8775, %v8771
    %v8824 = vpack.c.bf16 %v8776, %v8772
    %v8825 = vpack.c.bf16 %v8777, %v8773
    %v8826 = vpack.c.bf16 %v8782, %v8778
    %v8827 = vpack.c.bf16 %v8783, %v8779
    %v8828 = vpack.c.bf16 %v8784, %v8780
    %v8829 = vpack.c.bf16 %v8785, %v8781
    %v8830 = vpack.c.bf16 %v8790, %v8786
    %v8831 = vpack.c.bf16 %v8791, %v8787
    %v8832 = vpack.c.bf16 %v8792, %v8788
    %v8833 = vpack.c.bf16 %v8793, %v8789
    %v8834 = vpack.c.bf16 %v8798, %v8794
    %v8835 = vpack.c.bf16 %v8799, %v8795
    %v8836 = vpack.c.bf16 %v8800, %v8796
    %v8837 = vpack.c.bf16 %v8801, %v8797
    %v8838 = vpack.c.bf16 %v8806, %v8802
    %v8839 = vpack.c.bf16 %v8807, %v8803
    %v8840 = vpack.c.bf16 %v8808, %v8804
    %v8841 = vpack.c.bf16 %v8809, %v8805
    %v8842 = vld [vmem:[%s5] sm:$0xff]
    %v8843 = vld [vmem:[%s5 + $0x8] sm:$0xff]
    %v8844 = vld [vmem:[%s5 + $0x10] sm:$0xff]
    %v8845 = vld [vmem:[%s5 + $0x18] sm:$0xff]
    %v8846 = vld [vmem:[%s5 + $0x20] sm:$0xff]
    %v8847 = vld [vmem:[%s5 + $0x28] sm:$0xff]
    %v8848 = vld [vmem:[%s5 + $0x30] sm:$0xff]
    %v8849 = vld [vmem:[%s5 + $0x38] sm:$0xff]
    %v8850 = vld [vmem:[%s5 + $0x40] sm:$0xff]
    %v8851 = vld [vmem:[%s5 + $0x48] sm:$0xff]
    %v8852 = vld [vmem:[%s5 + $0x50] sm:$0xff]
    %v8853 = vld [vmem:[%s5 + $0x58] sm:$0xff]
    %v8854 = vld [vmem:[%s5 + $0x60] sm:$0xff]
    %v8855 = vld [vmem:[%s5 + $0x68] sm:$0xff]
    %v8856 = vld [vmem:[%s5 + $0x70] sm:$0xff]
    %v8857 = vld [vmem:[%s5 + $0x78] sm:$0xff]
    %v8858 = vld [vmem:[%s5 + $0x80] sm:$0xff]
    %v8859 = vld [vmem:[%s5 + $0x88] sm:$0xff]
    %v8860 = vld [vmem:[%s5 + $0x90] sm:$0xff]
    %v8861 = vld [vmem:[%s5 + $0x98] sm:$0xff]
    %v8862 = vld [vmem:[%s5 + $0xa0] sm:$0xff]
    %v8863 = vld [vmem:[%s5 + $0xa8] sm:$0xff]
    %v8864 = vld [vmem:[%s5 + $0xb0] sm:$0xff]
    %v8865 = vld [vmem:[%s5 + $0xb8] sm:$0xff]
    %v8866 = vld [vmem:[%s5 + $0xc0] sm:$0xff]
    %v8867 = vld [vmem:[%s5 + $0xc8] sm:$0xff]
    %v8868 = vld [vmem:[%s5 + $0xd0] sm:$0xff]
    %v8869 = vld [vmem:[%s5 + $0xd8] sm:$0xff]
    %v8870 = vld [vmem:[%s5 + $0xe0] sm:$0xff]
    %v8871 = vld [vmem:[%s5 + $0xe8] sm:$0xff]
    %v8872 = vld [vmem:[%s5 + $0xf0] sm:$0xff]
    %v8873 = vld [vmem:[%s5 + $0xf8] sm:$0xff]
    %v8874 = vld [vmem:[%s5 + $0x100] sm:$0xff]
    %v8875 = vld [vmem:[%s5 + $0x108] sm:$0xff]
    %v8876 = vld [vmem:[%s5 + $0x110] sm:$0xff]
    %v8877 = vld [vmem:[%s5 + $0x118] sm:$0xff]
    %v8878 = vld [vmem:[%s5 + $0x120] sm:$0xff]
    %v8879 = vld [vmem:[%s5 + $0x128] sm:$0xff]
    %v8880 = vld [vmem:[%s5 + $0x130] sm:$0xff]
    %v8881 = vld [vmem:[%s5 + $0x138] sm:$0xff]
    %v8882 = vld [vmem:[%s5 + $0x140] sm:$0xff]
    %v8883 = vld [vmem:[%s5 + $0x148] sm:$0xff]
    %v8884 = vld [vmem:[%s5 + $0x150] sm:$0xff]
    %v8885 = vld [vmem:[%s5 + $0x158] sm:$0xff]
    %v8886 = vld [vmem:[%s5 + $0x160] sm:$0xff]
    %v8887 = vld [vmem:[%s5 + $0x168] sm:$0xff]
    %v8888 = vld [vmem:[%s5 + $0x170] sm:$0xff]
    %v8889 = vld [vmem:[%s5 + $0x178] sm:$0xff]
    %v8890 = vld [vmem:[%s5 + $0x180] sm:$0xff]
    %v8891 = vld [vmem:[%s5 + $0x188] sm:$0xff]
    %v8892 = vld [vmem:[%s5 + $0x190] sm:$0xff]
    %v8893 = vld [vmem:[%s5 + $0x198] sm:$0xff]
    %v8894 = vld [vmem:[%s5 + $0x1a0] sm:$0xff]
    %v8895 = vld [vmem:[%s5 + $0x1a8] sm:$0xff]
    %v8896 = vld [vmem:[%s5 + $0x1b0] sm:$0xff]
    %v8897 = vld [vmem:[%s5 + $0x1b8] sm:$0xff]
    %v8898 = vld [vmem:[%s5 + $0x1c0] sm:$0xff]
    %v8899 = vld [vmem:[%s5 + $0x1c8] sm:$0xff]
    %v8900 = vld [vmem:[%s5 + $0x1d0] sm:$0xff]
    %v8901 = vld [vmem:[%s5 + $0x1d8] sm:$0xff]
    %v8902 = vld [vmem:[%s5 + $0x1e0] sm:$0xff]
    %v8903 = vld [vmem:[%s5 + $0x1e8] sm:$0xff]
    %v8904 = vld [vmem:[%s5 + $0x1f0] sm:$0xff]
    %v8905 = vld [vmem:[%s5 + $0x1f8] sm:$0xff]
    %v8906 = vld [vmem:[%s5 + $0x200] sm:$0xff]
    %v8907 = vld [vmem:[%s5 + $0x208] sm:$0xff]
    %v8908 = vld [vmem:[%s5 + $0x210] sm:$0xff]
    %v8909 = vld [vmem:[%s5 + $0x218] sm:$0xff]
    %v8910 = vld [vmem:[%s5 + $0x220] sm:$0xff]
    %v8911 = vld [vmem:[%s5 + $0x228] sm:$0xff]
    %v8912 = vld [vmem:[%s5 + $0x230] sm:$0xff]
    %v8913 = vld [vmem:[%s5 + $0x238] sm:$0xff]
    %v8914 = vld [vmem:[%s5 + $0x240] sm:$0xff]
    %v8915 = vld [vmem:[%s5 + $0x248] sm:$0xff]
    %v8916 = vld [vmem:[%s5 + $0x250] sm:$0xff]
    %v8917 = vld [vmem:[%s5 + $0x258] sm:$0xff]
    %v8918 = vld [vmem:[%s5 + $0x260] sm:$0xff]
    %v8919 = vld [vmem:[%s5 + $0x268] sm:$0xff]
    %v8920 = vld [vmem:[%s5 + $0x270] sm:$0xff]
    %v8921 = vld [vmem:[%s5 + $0x278] sm:$0xff]
    %v8922 = vld [vmem:[%s5 + $0x280] sm:$0xff]
    %v8923 = vld [vmem:[%s5 + $0x288] sm:$0xff]
    %v8924 = vld [vmem:[%s5 + $0x290] sm:$0xff]
    %v8925 = vld [vmem:[%s5 + $0x298] sm:$0xff]
    %v8926 = vld [vmem:[%s5 + $0x2a0] sm:$0xff]
    %v8927 = vld [vmem:[%s5 + $0x2a8] sm:$0xff]
    %v8928 = vld [vmem:[%s5 + $0x2b0] sm:$0xff]
    %v8929 = vld [vmem:[%s5 + $0x2b8] sm:$0xff]
    %v8930 = vld [vmem:[%s5 + $0x2c0] sm:$0xff]
    %v8931 = vld [vmem:[%s5 + $0x2c8] sm:$0xff]
    %v8932 = vld [vmem:[%s5 + $0x2d0] sm:$0xff]
    %v8933 = vld [vmem:[%s5 + $0x2d8] sm:$0xff]
    %v8934 = vld [vmem:[%s5 + $0x2e0] sm:$0xff]
    %v8935 = vld [vmem:[%s5 + $0x2e8] sm:$0xff]
    %v8936 = vld [vmem:[%s5 + $0x2f0] sm:$0xff]
    %v8937 = vld [vmem:[%s5 + $0x2f8] sm:$0xff]
    %v8938 = vld [vmem:[%s5 + $0x300] sm:$0xff]
    %v8939 = vld [vmem:[%s5 + $0x308] sm:$0xff]
    %v8940 = vld [vmem:[%s5 + $0x310] sm:$0xff]
    %v8941 = vld [vmem:[%s5 + $0x318] sm:$0xff]
    %v8942 = vld [vmem:[%s5 + $0x320] sm:$0xff]
    %v8943 = vld [vmem:[%s5 + $0x328] sm:$0xff]
    %v8944 = vld [vmem:[%s5 + $0x330] sm:$0xff]
    %v8945 = vld [vmem:[%s5 + $0x338] sm:$0xff]
    %v8946 = vld [vmem:[%s5 + $0x340] sm:$0xff]
    %v8947 = vld [vmem:[%s5 + $0x348] sm:$0xff]
    %v8948 = vld [vmem:[%s5 + $0x350] sm:$0xff]
    %v8949 = vld [vmem:[%s5 + $0x358] sm:$0xff]
    %v8950 = vld [vmem:[%s5 + $0x360] sm:$0xff]
    %v8951 = vld [vmem:[%s5 + $0x368] sm:$0xff]
    %v8952 = vld [vmem:[%s5 + $0x370] sm:$0xff]
    %v8953 = vld [vmem:[%s5 + $0x378] sm:$0xff]
    %v8954 = vld [vmem:[%s5 + $0x380] sm:$0xff]
    %v8955 = vld [vmem:[%s5 + $0x388] sm:$0xff]
    %v8956 = vld [vmem:[%s5 + $0x390] sm:$0xff]
    %v8957 = vld [vmem:[%s5 + $0x398] sm:$0xff]
    %v8958 = vld [vmem:[%s5 + $0x3a0] sm:$0xff]
    %v8959 = vld [vmem:[%s5 + $0x3a8] sm:$0xff]
    %v8960 = vld [vmem:[%s5 + $0x3b0] sm:$0xff]
    %v8961 = vld [vmem:[%s5 + $0x3b8] sm:$0xff]
    %v8962 = vld [vmem:[%s5 + $0x3c0] sm:$0xff]
    %v8963 = vld [vmem:[%s5 + $0x3c8] sm:$0xff]
    %v8964 = vld [vmem:[%s5 + $0x3d0] sm:$0xff]
    %v8965 = vld [vmem:[%s5 + $0x3d8] sm:$0xff]
    %v8966 = vld [vmem:[%s5 + $0x3e0] sm:$0xff]
    %v8967 = vld [vmem:[%s5 + $0x3e8] sm:$0xff]
    %v8968 = vld [vmem:[%s5 + $0x3f0] sm:$0xff]
    %v8969 = vld [vmem:[%s5 + $0x3f8] sm:$0xff]
    %v8970 = vld [vmem:[%s6] sm:$0xf]
    %v8972 = vlaneseq
    %v8973 = vshrl.u32 %v8972, 7
    %v8974 = vsub.s32 0, %v8973
    %v8975 = vrot.slane %v8970, %v8974
    %v8976 = vlaneseq
    %v8977 = vshrl.u32 %v8976, 7
    %v8978 = vsub.s32 1, %v8977
    %v8979 = vrot.slane %v8970, %v8978
    %v8980 = vlaneseq
    %v8981 = vshrl.u32 %v8980, 7
    %v8982 = vsub.s32 2, %v8981
    %v8983 = vrot.slane %v8970, %v8982
    %v8984 = vlaneseq
    %v8985 = vshrl.u32 %v8984, 7
    %v8986 = vsub.s32 3, %v8985
    %v8987 = vrot.slane %v8970, %v8986
    %v9120 = vunpack.c.l.b16 %v8842
    %v9121 = vunpack.c.h.b16 %v8842
    %v9122 = vunpack.c.l.b16 %v8843
    %v9123 = vunpack.c.h.b16 %v8843
    %v9124 = vunpack.c.l.b16 %v8844
    %v9125 = vunpack.c.h.b16 %v8844
    %v9126 = vunpack.c.l.b16 %v8845
    %v9127 = vunpack.c.h.b16 %v8845
    %v9128 = vunpack.c.l.b16 %v8846
    %v9129 = vunpack.c.h.b16 %v8846
    %v9130 = vunpack.c.l.b16 %v8847
    %v9131 = vunpack.c.h.b16 %v8847
    %v9132 = vunpack.c.l.b16 %v8848
    %v9133 = vunpack.c.h.b16 %v8848
    %v9134 = vunpack.c.l.b16 %v8849
    %v9135 = vunpack.c.h.b16 %v8849
    %v9136 = vunpack.c.l.b16 %v8850
    %v9137 = vunpack.c.h.b16 %v8850
    %v9138 = vunpack.c.l.b16 %v8851
    %v9139 = vunpack.c.h.b16 %v8851
    %v9140 = vunpack.c.l.b16 %v8852
    %v9141 = vunpack.c.h.b16 %v8852
    %v9142 = vunpack.c.l.b16 %v8853
    %v9143 = vunpack.c.h.b16 %v8853
    %v9144 = vunpack.c.l.b16 %v8854
    %v9145 = vunpack.c.h.b16 %v8854
    %v9146 = vunpack.c.l.b16 %v8855
    %v9147 = vunpack.c.h.b16 %v8855
    %v9148 = vunpack.c.l.b16 %v8856
    %v9149 = vunpack.c.h.b16 %v8856
    %v9150 = vunpack.c.l.b16 %v8857
    %v9151 = vunpack.c.h.b16 %v8857
    %v9152 = vunpack.c.l.b16 %v8858
    %v9153 = vunpack.c.h.b16 %v8858
    %v9154 = vunpack.c.l.b16 %v8859
    %v9155 = vunpack.c.h.b16 %v8859
    %v9156 = vunpack.c.l.b16 %v8860
    %v9157 = vunpack.c.h.b16 %v8860
    %v9158 = vunpack.c.l.b16 %v8861
    %v9159 = vunpack.c.h.b16 %v8861
    %v9160 = vunpack.c.l.b16 %v8862
    %v9161 = vunpack.c.h.b16 %v8862
    %v9162 = vunpack.c.l.b16 %v8863
    %v9163 = vunpack.c.h.b16 %v8863
    %v9164 = vunpack.c.l.b16 %v8864
    %v9165 = vunpack.c.h.b16 %v8864
    %v9166 = vunpack.c.l.b16 %v8865
    %v9167 = vunpack.c.h.b16 %v8865
    %v9168 = vunpack.c.l.b16 %v8866
    %v9169 = vunpack.c.h.b16 %v8866
    %v9170 = vunpack.c.l.b16 %v8867
    %v9171 = vunpack.c.h.b16 %v8867
    %v9172 = vunpack.c.l.b16 %v8868
    %v9173 = vunpack.c.h.b16 %v8868
    %v9174 = vunpack.c.l.b16 %v8869
    %v9175 = vunpack.c.h.b16 %v8869
    %v9176 = vunpack.c.l.b16 %v8870
    %v9177 = vunpack.c.h.b16 %v8870
    %v9178 = vunpack.c.l.b16 %v8871
    %v9179 = vunpack.c.h.b16 %v8871
    %v9180 = vunpack.c.l.b16 %v8872
    %v9181 = vunpack.c.h.b16 %v8872
    %v9182 = vunpack.c.l.b16 %v8873
    %v9183 = vunpack.c.h.b16 %v8873
    %v9184 = vunpack.c.l.b16 %v8874
    %v9185 = vunpack.c.h.b16 %v8874
    %v9186 = vunpack.c.l.b16 %v8875
    %v9187 = vunpack.c.h.b16 %v8875
    %v9188 = vunpack.c.l.b16 %v8876
    %v9189 = vunpack.c.h.b16 %v8876
    %v9190 = vunpack.c.l.b16 %v8877
    %v9191 = vunpack.c.h.b16 %v8877
    %v9192 = vunpack.c.l.b16 %v8878
    %v9193 = vunpack.c.h.b16 %v8878
    %v9194 = vunpack.c.l.b16 %v8879
    %v9195 = vunpack.c.h.b16 %v8879
    %v9196 = vunpack.c.l.b16 %v8880
    %v9197 = vunpack.c.h.b16 %v8880
    %v9198 = vunpack.c.l.b16 %v8881
    %v9199 = vunpack.c.h.b16 %v8881
    %v9200 = vunpack.c.l.b16 %v8882
    %v9201 = vunpack.c.h.b16 %v8882
    %v9202 = vunpack.c.l.b16 %v8883
    %v9203 = vunpack.c.h.b16 %v8883
    %v9204 = vunpack.c.l.b16 %v8884
    %v9205 = vunpack.c.h.b16 %v8884
    %v9206 = vunpack.c.l.b16 %v8885
    %v9207 = vunpack.c.h.b16 %v8885
    %v9208 = vunpack.c.l.b16 %v8886
    %v9209 = vunpack.c.h.b16 %v8886
    %v9210 = vunpack.c.l.b16 %v8887
    %v9211 = vunpack.c.h.b16 %v8887
    %v9212 = vunpack.c.l.b16 %v8888
    %v9213 = vunpack.c.h.b16 %v8888
    %v9214 = vunpack.c.l.b16 %v8889
    %v9215 = vunpack.c.h.b16 %v8889
    %v9216 = vunpack.c.l.b16 %v8890
    %v9217 = vunpack.c.h.b16 %v8890
    %v9218 = vunpack.c.l.b16 %v8891
    %v9219 = vunpack.c.h.b16 %v8891
    %v9220 = vunpack.c.l.b16 %v8892
    %v9221 = vunpack.c.h.b16 %v8892
    %v9222 = vunpack.c.l.b16 %v8893
    %v9223 = vunpack.c.h.b16 %v8893
    %v9224 = vunpack.c.l.b16 %v8894
    %v9225 = vunpack.c.h.b16 %v8894
    %v9226 = vunpack.c.l.b16 %v8895
    %v9227 = vunpack.c.h.b16 %v8895
    %v9228 = vunpack.c.l.b16 %v8896
    %v9229 = vunpack.c.h.b16 %v8896
    %v9230 = vunpack.c.l.b16 %v8897
    %v9231 = vunpack.c.h.b16 %v8897
    %v9232 = vunpack.c.l.b16 %v8898
    %v9233 = vunpack.c.h.b16 %v8898
    %v9234 = vunpack.c.l.b16 %v8899
    %v9235 = vunpack.c.h.b16 %v8899
    %v9236 = vunpack.c.l.b16 %v8900
    %v9237 = vunpack.c.h.b16 %v8900
    %v9238 = vunpack.c.l.b16 %v8901
    %v9239 = vunpack.c.h.b16 %v8901
    %v9240 = vunpack.c.l.b16 %v8902
    %v9241 = vunpack.c.h.b16 %v8902
    %v9242 = vunpack.c.l.b16 %v8903
    %v9243 = vunpack.c.h.b16 %v8903
    %v9244 = vunpack.c.l.b16 %v8904
    %v9245 = vunpack.c.h.b16 %v8904
    %v9246 = vunpack.c.l.b16 %v8905
    %v9247 = vunpack.c.h.b16 %v8905
    %v9248 = vunpack.c.l.b16 %v8906
    %v9249 = vunpack.c.h.b16 %v8906
    %v9250 = vunpack.c.l.b16 %v8907
    %v9251 = vunpack.c.h.b16 %v8907
    %v9252 = vunpack.c.l.b16 %v8908
    %v9253 = vunpack.c.h.b16 %v8908
    %v9254 = vunpack.c.l.b16 %v8909
    %v9255 = vunpack.c.h.b16 %v8909
    %v9256 = vunpack.c.l.b16 %v8910
    %v9257 = vunpack.c.h.b16 %v8910
    %v9258 = vunpack.c.l.b16 %v8911
    %v9259 = vunpack.c.h.b16 %v8911
    %v9260 = vunpack.c.l.b16 %v8912
    %v9261 = vunpack.c.h.b16 %v8912
    %v9262 = vunpack.c.l.b16 %v8913
    %v9263 = vunpack.c.h.b16 %v8913
    %v9264 = vunpack.c.l.b16 %v8914
    %v9265 = vunpack.c.h.b16 %v8914
    %v9266 = vunpack.c.l.b16 %v8915
    %v9267 = vunpack.c.h.b16 %v8915
    %v9268 = vunpack.c.l.b16 %v8916
    %v9269 = vunpack.c.h.b16 %v8916
    %v9270 = vunpack.c.l.b16 %v8917
    %v9271 = vunpack.c.h.b16 %v8917
    %v9272 = vunpack.c.l.b16 %v8918
    %v9273 = vunpack.c.h.b16 %v8918
    %v9274 = vunpack.c.l.b16 %v8919
    %v9275 = vunpack.c.h.b16 %v8919
    %v9276 = vunpack.c.l.b16 %v8920
    %v9277 = vunpack.c.h.b16 %v8920
    %v9278 = vunpack.c.l.b16 %v8921
    %v9279 = vunpack.c.h.b16 %v8921
    %v9280 = vunpack.c.l.b16 %v8922
    %v9281 = vunpack.c.h.b16 %v8922
    %v9282 = vunpack.c.l.b16 %v8923
    %v9283 = vunpack.c.h.b16 %v8923
    %v9284 = vunpack.c.l.b16 %v8924
    %v9285 = vunpack.c.h.b16 %v8924
    %v9286 = vunpack.c.l.b16 %v8925
    %v9287 = vunpack.c.h.b16 %v8925
    %v9288 = vunpack.c.l.b16 %v8926
    %v9289 = vunpack.c.h.b16 %v8926
    %v9290 = vunpack.c.l.b16 %v8927
    %v9291 = vunpack.c.h.b16 %v8927
    %v9292 = vunpack.c.l.b16 %v8928
    %v9293 = vunpack.c.h.b16 %v8928
    %v9294 = vunpack.c.l.b16 %v8929
    %v9295 = vunpack.c.h.b16 %v8929
    %v9296 = vunpack.c.l.b16 %v8930
    %v9297 = vunpack.c.h.b16 %v8930
    %v9298 = vunpack.c.l.b16 %v8931
    %v9299 = vunpack.c.h.b16 %v8931
    %v9300 = vunpack.c.l.b16 %v8932
    %v9301 = vunpack.c.h.b16 %v8932
    %v9302 = vunpack.c.l.b16 %v8933
    %v9303 = vunpack.c.h.b16 %v8933
    %v9304 = vunpack.c.l.b16 %v8934
    %v9305 = vunpack.c.h.b16 %v8934
    %v9306 = vunpack.c.l.b16 %v8935
    %v9307 = vunpack.c.h.b16 %v8935
    %v9308 = vunpack.c.l.b16 %v8936
    %v9309 = vunpack.c.h.b16 %v8936
    %v9310 = vunpack.c.l.b16 %v8937
    %v9311 = vunpack.c.h.b16 %v8937
    %v9312 = vunpack.c.l.b16 %v8938
    %v9313 = vunpack.c.h.b16 %v8938
    %v9314 = vunpack.c.l.b16 %v8939
    %v9315 = vunpack.c.h.b16 %v8939
    %v9316 = vunpack.c.l.b16 %v8940
    %v9317 = vunpack.c.h.b16 %v8940
    %v9318 = vunpack.c.l.b16 %v8941
    %v9319 = vunpack.c.h.b16 %v8941
    %v9320 = vunpack.c.l.b16 %v8942
    %v9321 = vunpack.c.h.b16 %v8942
    %v9322 = vunpack.c.l.b16 %v8943
    %v9323 = vunpack.c.h.b16 %v8943
    %v9324 = vunpack.c.l.b16 %v8944
    %v9325 = vunpack.c.h.b16 %v8944
    %v9326 = vunpack.c.l.b16 %v8945
    %v9327 = vunpack.c.h.b16 %v8945
    %v9328 = vunpack.c.l.b16 %v8946
    %v9329 = vunpack.c.h.b16 %v8946
    %v9330 = vunpack.c.l.b16 %v8947
    %v9331 = vunpack.c.h.b16 %v8947
    %v9332 = vunpack.c.l.b16 %v8948
    %v9333 = vunpack.c.h.b16 %v8948
    %v9334 = vunpack.c.l.b16 %v8949
    %v9335 = vunpack.c.h.b16 %v8949
    %v9336 = vunpack.c.l.b16 %v8950
    %v9337 = vunpack.c.h.b16 %v8950
    %v9338 = vunpack.c.l.b16 %v8951
    %v9339 = vunpack.c.h.b16 %v8951
    %v9340 = vunpack.c.l.b16 %v8952
    %v9341 = vunpack.c.h.b16 %v8952
    %v9342 = vunpack.c.l.b16 %v8953
    %v9343 = vunpack.c.h.b16 %v8953
    %v9344 = vunpack.c.l.b16 %v8954
    %v9345 = vunpack.c.h.b16 %v8954
    %v9346 = vunpack.c.l.b16 %v8955
    %v9347 = vunpack.c.h.b16 %v8955
    %v9348 = vunpack.c.l.b16 %v8956
    %v9349 = vunpack.c.h.b16 %v8956
    %v9350 = vunpack.c.l.b16 %v8957
    %v9351 = vunpack.c.h.b16 %v8957
    %v9352 = vunpack.c.l.b16 %v8958
    %v9353 = vunpack.c.h.b16 %v8958
    %v9354 = vunpack.c.l.b16 %v8959
    %v9355 = vunpack.c.h.b16 %v8959
    %v9356 = vunpack.c.l.b16 %v8960
    %v9357 = vunpack.c.h.b16 %v8960
    %v9358 = vunpack.c.l.b16 %v8961
    %v9359 = vunpack.c.h.b16 %v8961
    %v9360 = vunpack.c.l.b16 %v8962
    %v9361 = vunpack.c.h.b16 %v8962
    %v9362 = vunpack.c.l.b16 %v8963
    %v9363 = vunpack.c.h.b16 %v8963
    %v9364 = vunpack.c.l.b16 %v8964
    %v9365 = vunpack.c.h.b16 %v8964
    %v9366 = vunpack.c.l.b16 %v8965
    %v9367 = vunpack.c.h.b16 %v8965
    %v9368 = vunpack.c.l.b16 %v8966
    %v9369 = vunpack.c.h.b16 %v8966
    %v9370 = vunpack.c.l.b16 %v8967
    %v9371 = vunpack.c.h.b16 %v8967
    %v9372 = vunpack.c.l.b16 %v8968
    %v9373 = vunpack.c.h.b16 %v8968
    %v9374 = vunpack.c.l.b16 %v8969
    %v9375 = vunpack.c.h.b16 %v8969
    %v9376 = vpack.c.b16 %v9124, %v9120
    %v9377 = vpack.c.b16 %v9125, %v9121
    %v9378 = vpack.c.b16 %v9126, %v9122
    %v9379 = vpack.c.b16 %v9127, %v9123
    %v9380 = vpack.c.b16 %v9132, %v9128
    %v9381 = vpack.c.b16 %v9133, %v9129
    %v9382 = vpack.c.b16 %v9134, %v9130
    %v9383 = vpack.c.b16 %v9135, %v9131
    %v9384 = vpack.c.b16 %v9140, %v9136
    %v9385 = vpack.c.b16 %v9141, %v9137
    %v9386 = vpack.c.b16 %v9142, %v9138
    %v9387 = vpack.c.b16 %v9143, %v9139
    %v9388 = vpack.c.b16 %v9148, %v9144
    %v9389 = vpack.c.b16 %v9149, %v9145
    %v9390 = vpack.c.b16 %v9150, %v9146
    %v9391 = vpack.c.b16 %v9151, %v9147
    %v9392 = vpack.c.b16 %v9156, %v9152
    %v9393 = vpack.c.b16 %v9157, %v9153
    %v9394 = vpack.c.b16 %v9158, %v9154
    %v9395 = vpack.c.b16 %v9159, %v9155
    %v9396 = vpack.c.b16 %v9164, %v9160
    %v9397 = vpack.c.b16 %v9165, %v9161
    %v9398 = vpack.c.b16 %v9166, %v9162
    %v9399 = vpack.c.b16 %v9167, %v9163
    %v9400 = vpack.c.b16 %v9172, %v9168
    %v9401 = vpack.c.b16 %v9173, %v9169
    %v9402 = vpack.c.b16 %v9174, %v9170
    %v9403 = vpack.c.b16 %v9175, %v9171
    %v9404 = vpack.c.b16 %v9180, %v9176
    %v9405 = vpack.c.b16 %v9181, %v9177
    %v9406 = vpack.c.b16 %v9182, %v9178
    %v9407 = vpack.c.b16 %v9183, %v9179
    %v9408 = vpack.c.b16 %v9188, %v9184
    %v9409 = vpack.c.b16 %v9189, %v9185
    %v9410 = vpack.c.b16 %v9190, %v9186
    %v9411 = vpack.c.b16 %v9191, %v9187
    %v9412 = vpack.c.b16 %v9196, %v9192
    %v9413 = vpack.c.b16 %v9197, %v9193
    %v9414 = vpack.c.b16 %v9198, %v9194
    %v9415 = vpack.c.b16 %v9199, %v9195
    %v9416 = vpack.c.b16 %v9204, %v9200
    %v9417 = vpack.c.b16 %v9205, %v9201
    %v9418 = vpack.c.b16 %v9206, %v9202
    %v9419 = vpack.c.b16 %v9207, %v9203
    %v9420 = vpack.c.b16 %v9212, %v9208
    %v9421 = vpack.c.b16 %v9213, %v9209
    %v9422 = vpack.c.b16 %v9214, %v9210
    %v9423 = vpack.c.b16 %v9215, %v9211
    %v9424 = vpack.c.b16 %v9220, %v9216
    %v9425 = vpack.c.b16 %v9221, %v9217
    %v9426 = vpack.c.b16 %v9222, %v9218
    %v9427 = vpack.c.b16 %v9223, %v9219
    %v9428 = vpack.c.b16 %v9228, %v9224
    %v9429 = vpack.c.b16 %v9229, %v9225
    %v9430 = vpack.c.b16 %v9230, %v9226
    %v9431 = vpack.c.b16 %v9231, %v9227
    %v9432 = vpack.c.b16 %v9236, %v9232
    %v9433 = vpack.c.b16 %v9237, %v9233
    %v9434 = vpack.c.b16 %v9238, %v9234
    %v9435 = vpack.c.b16 %v9239, %v9235
    %v9436 = vpack.c.b16 %v9244, %v9240
    %v9437 = vpack.c.b16 %v9245, %v9241
    %v9438 = vpack.c.b16 %v9246, %v9242
    %v9439 = vpack.c.b16 %v9247, %v9243
    %v9440 = vpack.c.b16 %v9252, %v9248
    %v9441 = vpack.c.b16 %v9253, %v9249
    %v9442 = vpack.c.b16 %v9254, %v9250
    %v9443 = vpack.c.b16 %v9255, %v9251
    %v9444 = vpack.c.b16 %v9260, %v9256
    %v9445 = vpack.c.b16 %v9261, %v9257
    %v9446 = vpack.c.b16 %v9262, %v9258
    %v9447 = vpack.c.b16 %v9263, %v9259
    %v9448 = vpack.c.b16 %v9268, %v9264
    %v9449 = vpack.c.b16 %v9269, %v9265
    %v9450 = vpack.c.b16 %v9270, %v9266
    %v9451 = vpack.c.b16 %v9271, %v9267
    %v9452 = vpack.c.b16 %v9276, %v9272
    %v9453 = vpack.c.b16 %v9277, %v9273
    %v9454 = vpack.c.b16 %v9278, %v9274
    %v9455 = vpack.c.b16 %v9279, %v9275
    %v9456 = vpack.c.b16 %v9284, %v9280
    %v9457 = vpack.c.b16 %v9285, %v9281
    %v9458 = vpack.c.b16 %v9286, %v9282
    %v9459 = vpack.c.b16 %v9287, %v9283
    %v9460 = vpack.c.b16 %v9292, %v9288
    %v9461 = vpack.c.b16 %v9293, %v9289
    %v9462 = vpack.c.b16 %v9294, %v9290
    %v9463 = vpack.c.b16 %v9295, %v9291
    %v9464 = vpack.c.b16 %v9300, %v9296
    %v9465 = vpack.c.b16 %v9301, %v9297
    %v9466 = vpack.c.b16 %v9302, %v9298
    %v9467 = vpack.c.b16 %v9303, %v9299
    %v9468 = vpack.c.b16 %v9308, %v9304
    %v9469 = vpack.c.b16 %v9309, %v9305
    %v9470 = vpack.c.b16 %v9310, %v9306
    %v9471 = vpack.c.b16 %v9311, %v9307
    %v9472 = vpack.c.b16 %v9316, %v9312
    %v9473 = vpack.c.b16 %v9317, %v9313
    %v9474 = vpack.c.b16 %v9318, %v9314
    %v9475 = vpack.c.b16 %v9319, %v9315
    %v9476 = vpack.c.b16 %v9324, %v9320
    %v9477 = vpack.c.b16 %v9325, %v9321
    %v9478 = vpack.c.b16 %v9326, %v9322
    %v9479 = vpack.c.b16 %v9327, %v9323
    %v9480 = vpack.c.b16 %v9332, %v9328
    %v9481 = vpack.c.b16 %v9333, %v9329
    %v9482 = vpack.c.b16 %v9334, %v9330
    %v9483 = vpack.c.b16 %v9335, %v9331
    %v9484 = vpack.c.b16 %v9340, %v9336
    %v9485 = vpack.c.b16 %v9341, %v9337
    %v9486 = vpack.c.b16 %v9342, %v9338
    %v9487 = vpack.c.b16 %v9343, %v9339
    %v9488 = vpack.c.b16 %v9348, %v9344
    %v9489 = vpack.c.b16 %v9349, %v9345
    %v9490 = vpack.c.b16 %v9350, %v9346
    %v9491 = vpack.c.b16 %v9351, %v9347
    %v9492 = vpack.c.b16 %v9356, %v9352
    %v9493 = vpack.c.b16 %v9357, %v9353
    %v9494 = vpack.c.b16 %v9358, %v9354
    %v9495 = vpack.c.b16 %v9359, %v9355
    %v9496 = vpack.c.b16 %v9364, %v9360
    %v9497 = vpack.c.b16 %v9365, %v9361
    %v9498 = vpack.c.b16 %v9366, %v9362
    %v9499 = vpack.c.b16 %v9367, %v9363
    %v9500 = vpack.c.b16 %v9372, %v9368
    %v9501 = vpack.c.b16 %v9373, %v9369
    %v9502 = vpack.c.b16 %v9374, %v9370
    %v9503 = vpack.c.b16 %v9375, %v9371
    %9632 = vmatprep.subr.bf16.mxu0 %v9377
    %9633 = vmatpush1.bf16.msra.mxu0 %v9376
    %9634 = vmatprep.subr.bf16.mxu0 %v9381
    %9635 = vmatpush1.bf16.msra.mxu0 %v9380
    %9636 = vmatprep.subr.bf16.mxu0 %v9385
    %9637 = vmatpush1.bf16.msra.mxu0 %v9384
    %9638 = vmatprep.subr.bf16.mxu0 %v9389
    %9639 = vmatpush1.bf16.msra.mxu0 %v9388
    %9640 = vmatprep.subr.bf16.mxu0 %v9393
    %9641 = vmatpush1.bf16.msra.mxu0 %v9392
    %9642 = vmatprep.subr.bf16.mxu0 %v9397
    %9643 = vmatpush1.bf16.msra.mxu0 %v9396
    %9644 = vmatprep.subr.bf16.mxu0 %v9401
    %9645 = vmatpush1.bf16.msra.mxu0 %v9400
    %9646 = vmatprep.subr.bf16.mxu0 %v9405
    %9647 = vmatpush1.bf16.msra.mxu0 %v9404
    %9648 = vmatprep.subr.bf16.mxu0 %v9409
    %9649 = vmatpush1.bf16.msra.mxu0 %v9408
    %9650 = vmatprep.subr.bf16.mxu0 %v9413
    %9651 = vmatpush1.bf16.msra.mxu0 %v9412
    %9652 = vmatprep.subr.bf16.mxu0 %v9417
    %9653 = vmatpush1.bf16.msra.mxu0 %v9416
    %9654 = vmatprep.subr.bf16.mxu0 %v9421
    %9655 = vmatpush1.bf16.msra.mxu0 %v9420
    %9656 = vmatprep.subr.bf16.mxu0 %v9425
    %9657 = vmatpush1.bf16.msra.mxu0 %v9424
    %9658 = vmatprep.subr.bf16.mxu0 %v9429
    %9659 = vmatpush1.bf16.msra.mxu0 %v9428
    %9660 = vmatprep.subr.bf16.mxu0 %v9433
    %9661 = vmatpush1.bf16.msra.mxu0 %v9432
    %9662 = vmatprep.subr.bf16.mxu0 %v9437
    %9663 = vmatpush1.bf16.msra.mxu0 %v9436
    %9664 = vmatprep.mubr.bf16.mxu0 %v8811
    %9665 = vmatmul.mubr.bf16.gmra.mrb[0].mxu0 %v8810
    %v9666 = vpop.f32.mrb[0].mxu0
    %v9667 = vadd.f32 %v8975, %v9666
    %v9668 = vpop.f32.mrb[0].mxu0
    %v9669 = vadd.f32 %v8979, %v9668
    %v9670 = vpop.f32.mrb[0].mxu0
    %v9671 = vadd.f32 %v8975, %v9670
    %v9672 = vpop.f32.mrb[0].mxu0
    %v9673 = vadd.f32 %v8979, %v9672
    %9674 = vmatprep.mubr.bf16.mxu0 %v8815
    %9675 = vmatmul.mubr.bf16.gmra.mrb[0].mxu0 %v8814
    %v9676 = vpop.f32.mrb[0].mxu0
    %v9677 = vadd.f32 %v8975, %v9676
    %v9678 = vpop.f32.mrb[0].mxu0
    %v9679 = vadd.f32 %v8979, %v9678
    %v9680 = vpop.f32.mrb[0].mxu0
    %v9681 = vadd.f32 %v8975, %v9680
    %v9682 = vpop.f32.mrb[0].mxu0
    %v9683 = vadd.f32 %v8979, %v9682
    %9684 = vmatprep.mubr.bf16.mxu0 %v8819
    %9685 = vmatmul.mubr.bf16.gmra.mrb[0].mxu0 %v8818
    %v9686 = vpop.f32.mrb[0].mxu0
    %v9687 = vadd.f32 %v8975, %v9686
    %v9688 = vpop.f32.mrb[0].mxu0
    %v9689 = vadd.f32 %v8979, %v9688
    %v9690 = vpop.f32.mrb[0].mxu0
    %v9691 = vadd.f32 %v8975, %v9690
    %v9692 = vpop.f32.mrb[0].mxu0
    %v9693 = vadd.f32 %v8979, %v9692
    %9694 = vmatprep.mubr.bf16.mxu0 %v8823
    %9695 = vmatmul.mubr.bf16.gmra.mrb[0].mxu0 %v8822
    %v9696 = vpop.f32.mrb[0].mxu0
    %v9697 = vadd.f32 %v8975, %v9696
    %v9698 = vpop.f32.mrb[0].mxu0
    %v9699 = vadd.f32 %v8979, %v9698
    %v9700 = vpop.f32.mrb[0].mxu0
    %v9701 = vadd.f32 %v8975, %v9700
    %v9702 = vpop.f32.mrb[0].mxu0
    %v9703 = vadd.f32 %v8979, %v9702
    %9704 = vmatprep.mubr.bf16.mxu0 %v8827
    %9705 = vmatmul.mubr.bf16.gmra.mrb[0].mxu0 %v8826
    %v9706 = vpop.f32.mrb[0].mxu0
    %v9707 = vadd.f32 %v8975, %v9706
    %v9708 = vpop.f32.mrb[0].mxu0
    %v9709 = vadd.f32 %v8979, %v9708
    %v9710 = vpop.f32.mrb[0].mxu0
    %v9711 = vadd.f32 %v8975, %v9710
    %v9712 = vpop.f32.mrb[0].mxu0
    %v9713 = vadd.f32 %v8979, %v9712
    %9714 = vmatprep.mubr.bf16.mxu0 %v8831
    %9715 = vmatmul.mubr.bf16.gmra.mrb[0].mxu0 %v8830
    %v9716 = vpop.f32.mrb[0].mxu0
    %v9717 = vadd.f32 %v8975, %v9716
    %v9718 = vpop.f32.mrb[0].mxu0
    %v9719 = vadd.f32 %v8979, %v9718
    %v9720 = vpop.f32.mrb[0].mxu0
    %v9721 = vadd.f32 %v8975, %v9720
    %v9722 = vpop.f32.mrb[0].mxu0
    %v9723 = vadd.f32 %v8979, %v9722
    %9724 = vmatprep.mubr.bf16.mxu0 %v8835
    %9725 = vmatmul.mubr.bf16.gmra.mrb[0].mxu0 %v8834
    %v9726 = vpop.f32.mrb[0].mxu0
    %v9727 = vadd.f32 %v8975, %v9726
    %v9728 = vpop.f32.mrb[0].mxu0
    %v9729 = vadd.f32 %v8979, %v9728
    %v9730 = vpop.f32.mrb[0].mxu0
    %v9731 = vadd.f32 %v8975, %v9730
    %v9732 = vpop.f32.mrb[0].mxu0
    %v9733 = vadd.f32 %v8979, %v9732
    %9734 = vmatprep.mubr.bf16.mxu0 %v8839
    %9735 = vmatmul.mubr.bf16.gmra.mrb[0].mxu0 %v8838
    %v9736 = vpop.f32.mrb[0].mxu0
    %v9737 = vadd.f32 %v8975, %v9736
    %v9738 = vpop.f32.mrb[0].mxu0
    %v9739 = vadd.f32 %v8979, %v9738
    %v9740 = vpop.f32.mrb[0].mxu0
    %v9741 = vadd.f32 %v8975, %v9740
    %v9742 = vpop.f32.mrb[0].mxu0
    %v9743 = vadd.f32 %v8979, %v9742
    %9744 = vdwg.mxu0
    %9745 = vmatprep.subr.bf16.mxu0 %v9441
    %9746 = vmatpush1.bf16.msra.mxu0 %v9440
    %9747 = vmatprep.subr.bf16.mxu0 %v9445
    %9748 = vmatpush1.bf16.msra.mxu0 %v9444
    %9749 = vmatprep.subr.bf16.mxu0 %v9449
    %9750 = vmatpush1.bf16.msra.mxu0 %v9448
    %9751 = vmatprep.subr.bf16.mxu0 %v9453
    %9752 = vmatpush1.bf16.msra.mxu0 %v9452
    %9753 = vmatprep.subr.bf16.mxu0 %v9457
    %9754 = vmatpush1.bf16.msra.mxu0 %v9456
    %9755 = vmatprep.subr.bf16.mxu0 %v9461
    %9756 = vmatpush1.bf16.msra.mxu0 %v9460
    %9757 = vmatprep.subr.bf16.mxu0 %v9465
    %9758 = vmatpush1.bf16.msra.mxu0 %v9464
    %9759 = vmatprep.subr.bf16.mxu0 %v9469
    %9760 = vmatpush1.bf16.msra.mxu0 %v9468
    %9761 = vmatprep.subr.bf16.mxu0 %v9473
    %9762 = vmatpush1.bf16.msra.mxu0 %v9472
    %9763 = vmatprep.subr.bf16.mxu0 %v9477
    %9764 = vmatpush1.bf16.msra.mxu0 %v9476
    %9765 = vmatprep.subr.bf16.mxu0 %v9481
    %9766 = vmatpush1.bf16.msra.mxu0 %v9480
    %9767 = vmatprep.subr.bf16.mxu0 %v9485
    %9768 = vmatpush1.bf16.msra.mxu0 %v9484
    %9769 = vmatprep.subr.bf16.mxu0 %v9489
    %9770 = vmatpush1.bf16.msra.mxu0 %v9488
    %9771 = vmatprep.subr.bf16.mxu0 %v9493
    %9772 = vmatpush1.bf16.msra.mxu0 %v9492
    %9773 = vmatprep.subr.bf16.mxu0 %v9497
    %9774 = vmatpush1.bf16.msra.mxu0 %v9496
    %9775 = vmatprep.subr.bf16.mxu0 %v9501
    %9776 = vmatpush1.bf16.msra.mxu0 %v9500
    %9777 = vmatprep.mubr.bf16.mxu0 %v8813
    %9778 = vmatmul.mubr.bf16.gmra.mrb[0].mxu0 %v8812
    %v9779 = vpop.f32.mrb[0].mxu0
    %v9780 = vadd.f32 %v9667, %v9779
    %v9781 = vpop.f32.mrb[0].mxu0
    %v9782 = vadd.f32 %v9669, %v9781
    %v9783 = vpop.f32.mrb[0].mxu0
    %v9784 = vadd.f32 %v9671, %v9783
    %v9785 = vpop.f32.mrb[0].mxu0
    %v9786 = vadd.f32 %v9673, %v9785
    %9787 = vmatprep.mubr.bf16.mxu0 %v8817
    %9788 = vmatmul.mubr.bf16.gmra.mrb[0].mxu0 %v8816
    %v9789 = vpop.f32.mrb[0].mxu0
    %v9790 = vadd.f32 %v9677, %v9789
    %v9791 = vpop.f32.mrb[0].mxu0
    %v9792 = vadd.f32 %v9679, %v9791
    %v9793 = vpop.f32.mrb[0].mxu0
    %v9794 = vadd.f32 %v9681, %v9793
    %v9795 = vpop.f32.mrb[0].mxu0
    %v9796 = vadd.f32 %v9683, %v9795
    %9797 = vmatprep.mubr.bf16.mxu0 %v8821
    %9798 = vmatmul.mubr.bf16.gmra.mrb[0].mxu0 %v8820
    %v9799 = vpop.f32.mrb[0].mxu0
    %v9800 = vadd.f32 %v9687, %v9799
    %v9801 = vpop.f32.mrb[0].mxu0
    %v9802 = vadd.f32 %v9689, %v9801
    %v9803 = vpop.f32.mrb[0].mxu0
    %v9804 = vadd.f32 %v9691, %v9803
    %v9805 = vpop.f32.mrb[0].mxu0
    %v9806 = vadd.f32 %v9693, %v9805
    %9807 = vmatprep.mubr.bf16.mxu0 %v8825
    %9808 = vmatmul.mubr.bf16.gmra.mrb[0].mxu0 %v8824
    %v9809 = vpop.f32.mrb[0].mxu0
    %v9810 = vadd.f32 %v9697, %v9809
    %v9811 = vpop.f32.mrb[0].mxu0
    %v9812 = vadd.f32 %v9699, %v9811
    %v9813 = vpop.f32.mrb[0].mxu0
    %v9814 = vadd.f32 %v9701, %v9813
    %v9815 = vpop.f32.mrb[0].mxu0
    %v9816 = vadd.f32 %v9703, %v9815
    %9817 = vmatprep.mubr.bf16.mxu0 %v8829
    %9818 = vmatmul.mubr.bf16.gmra.mrb[0].mxu0 %v8828
    %v9819 = vpop.f32.mrb[0].mxu0
    %v9820 = vadd.f32 %v9707, %v9819
    %v9821 = vpop.f32.mrb[0].mxu0
    %v9822 = vadd.f32 %v9709, %v9821
    %v9823 = vpop.f32.mrb[0].mxu0
    %v9824 = vadd.f32 %v9711, %v9823
    %v9825 = vpop.f32.mrb[0].mxu0
    %v9826 = vadd.f32 %v9713, %v9825
    %9827 = vmatprep.mubr.bf16.mxu0 %v8833
    %9828 = vmatmul.mubr.bf16.gmra.mrb[0].mxu0 %v8832
    %v9829 = vpop.f32.mrb[0].mxu0
    %v9830 = vadd.f32 %v9717, %v9829
    %v9831 = vpop.f32.mrb[0].mxu0
    %v9832 = vadd.f32 %v9719, %v9831
    %v9833 = vpop.f32.mrb[0].mxu0
    %v9834 = vadd.f32 %v9721, %v9833
    %v9835 = vpop.f32.mrb[0].mxu0
    %v9836 = vadd.f32 %v9723, %v9835
    %9837 = vmatprep.mubr.bf16.mxu0 %v8837
    %9838 = vmatmul.mubr.bf16.gmra.mrb[0].mxu0 %v8836
    %v9839 = vpop.f32.mrb[0].mxu0
    %v9840 = vadd.f32 %v9727, %v9839
    %v9841 = vpop.f32.mrb[0].mxu0
    %v9842 = vadd.f32 %v9729, %v9841
    %v9843 = vpop.f32.mrb[0].mxu0
    %v9844 = vadd.f32 %v9731, %v9843
    %v9845 = vpop.f32.mrb[0].mxu0
    %v9846 = vadd.f32 %v9733, %v9845
    %9847 = vmatprep.mubr.bf16.mxu0 %v8841
    %9848 = vmatmul.mubr.bf16.gmra.mrb[0].mxu0 %v8840
    %v9849 = vpop.f32.mrb[0].mxu0
    %v9850 = vadd.f32 %v9737, %v9849
    %v9851 = vpop.f32.mrb[0].mxu0
    %v9852 = vadd.f32 %v9739, %v9851
    %v9853 = vpop.f32.mrb[0].mxu0
    %v9854 = vadd.f32 %v9741, %v9853
    %v9855 = vpop.f32.mrb[0].mxu0
    %v9856 = vadd.f32 %v9743, %v9855
    %9857 = vdwg.mxu0
    %9858 = vmatprep.subr.bf16.mxu0 %v9379
    %9859 = vmatpush1.bf16.msra.mxu0 %v9378
    %9860 = vmatprep.subr.bf16.mxu0 %v9383
    %9861 = vmatpush1.bf16.msra.mxu0 %v9382
    %9862 = vmatprep.subr.bf16.mxu0 %v9387
    %9863 = vmatpush1.bf16.msra.mxu0 %v9386
    %9864 = vmatprep.subr.bf16.mxu0 %v9391
    %9865 = vmatpush1.bf16.msra.mxu0 %v9390
    %9866 = vmatprep.subr.bf16.mxu0 %v9395
    %9867 = vmatpush1.bf16.msra.mxu0 %v9394
    %9868 = vmatprep.subr.bf16.mxu0 %v9399
    %9869 = vmatpush1.bf16.msra.mxu0 %v9398
    %9870 = vmatprep.subr.bf16.mxu0 %v9403
    %9871 = vmatpush1.bf16.msra.mxu0 %v9402
    %9872 = vmatprep.subr.bf16.mxu0 %v9407
    %9873 = vmatpush1.bf16.msra.mxu0 %v9406
    %9874 = vmatprep.subr.bf16.mxu0 %v9411
    %9875 = vmatpush1.bf16.msra.mxu0 %v9410
    %9876 = vmatprep.subr.bf16.mxu0 %v9415
    %9877 = vmatpush1.bf16.msra.mxu0 %v9414
    %9878 = vmatprep.subr.bf16.mxu0 %v9419
    %9879 = vmatpush1.bf16.msra.mxu0 %v9418
    %9880 = vmatprep.subr.bf16.mxu0 %v9423
    %9881 = vmatpush1.bf16.msra.mxu0 %v9422
    %9882 = vmatprep.subr.bf16.mxu0 %v9427
    %9883 = vmatpush1.bf16.msra.mxu0 %v9426
    %9884 = vmatprep.subr.bf16.mxu0 %v9431
    %9885 = vmatpush1.bf16.msra.mxu0 %v9430
    %9886 = vmatprep.subr.bf16.mxu0 %v9435
    %9887 = vmatpush1.bf16.msra.mxu0 %v9434
    %9888 = vmatprep.subr.bf16.mxu0 %v9439
    %9889 = vmatpush1.bf16.msra.mxu0 %v9438
    %9890 = vmatprep.mubr.bf16.mxu0 %v8811
    %9891 = vmatmul.mubr.bf16.gmra.mrb[0].mxu0 %v8810
    %v9892 = vpop.f32.mrb[0].mxu0
    %v9893 = vadd.f32 %v8983, %v9892
    %v9894 = vpop.f32.mrb[0].mxu0
    %v9895 = vadd.f32 %v8987, %v9894
    %v9896 = vpop.f32.mrb[0].mxu0
    %v9897 = vadd.f32 %v8983, %v9896
    %v9898 = vpop.f32.mrb[0].mxu0
    %v9899 = vadd.f32 %v8987, %v9898
    %9900 = vmatprep.mubr.bf16.mxu0 %v8815
    %9901 = vmatmul.mubr.bf16.gmra.mrb[0].mxu0 %v8814
    %v9902 = vpop.f32.mrb[0].mxu0
    %v9903 = vadd.f32 %v8983, %v9902
    %v9904 = vpop.f32.mrb[0].mxu0
    %v9905 = vadd.f32 %v8987, %v9904
    %v9906 = vpop.f32.mrb[0].mxu0
    %v9907 = vadd.f32 %v8983, %v9906
    %v9908 = vpop.f32.mrb[0].mxu0
    %v9909 = vadd.f32 %v8987, %v9908
    %9910 = vmatprep.mubr.bf16.mxu0 %v8819
    %9911 = vmatmul.mubr.bf16.gmra.mrb[0].mxu0 %v8818
    %v9912 = vpop.f32.mrb[0].mxu0
    %v9913 = vadd.f32 %v8983, %v9912
    %v9914 = vpop.f32.mrb[0].mxu0
    %v9915 = vadd.f32 %v8987, %v9914
    %v9916 = vpop.f32.mrb[0].mxu0
    %v9917 = vadd.f32 %v8983, %v9916
    %v9918 = vpop.f32.mrb[0].mxu0
    %v9919 = vadd.f32 %v8987, %v9918
    %9920 = vmatprep.mubr.bf16.mxu0 %v8823
    %9921 = vmatmul.mubr.bf16.gmra.mrb[0].mxu0 %v8822
    %v9922 = vpop.f32.mrb[0].mxu0
    %v9923 = vadd.f32 %v8983, %v9922
    %v9924 = vpop.f32.mrb[0].mxu0
    %v9925 = vadd.f32 %v8987, %v9924
    %v9926 = vpop.f32.mrb[0].mxu0
    %v9927 = vadd.f32 %v8983, %v9926
    %v9928 = vpop.f32.mrb[0].mxu0
    %v9929 = vadd.f32 %v8987, %v9928
    %9930 = vmatprep.mubr.bf16.mxu0 %v8827
    %9931 = vmatmul.mubr.bf16.gmra.mrb[0].mxu0 %v8826
    %v9932 = vpop.f32.mrb[0].mxu0
    %v9933 = vadd.f32 %v8983, %v9932
    %v9934 = vpop.f32.mrb[0].mxu0
    %v9935 = vadd.f32 %v8987, %v9934
    %v9936 = vpop.f32.mrb[0].mxu0
    %v9937 = vadd.f32 %v8983, %v9936
    %v9938 = vpop.f32.mrb[0].mxu0
    %v9939 = vadd.f32 %v8987, %v9938
    %9940 = vmatprep.mubr.bf16.mxu0 %v8831
    %9941 = vmatmul.mubr.bf16.gmra.mrb[0].mxu0 %v8830
    %v9942 = vpop.f32.mrb[0].mxu0
    %v9943 = vadd.f32 %v8983, %v9942
    %v9944 = vpop.f32.mrb[0].mxu0
    %v9945 = vadd.f32 %v8987, %v9944
    %v9946 = vpop.f32.mrb[0].mxu0
    %v9947 = vadd.f32 %v8983, %v9946
    %v9948 = vpop.f32.mrb[0].mxu0
    %v9949 = vadd.f32 %v8987, %v9948
    %9950 = vmatprep.mubr.bf16.mxu0 %v8835
    %9951 = vmatmul.mubr.bf16.gmra.mrb[0].mxu0 %v8834
    %v9952 = vpop.f32.mrb[0].mxu0
    %v9953 = vadd.f32 %v8983, %v9952
    %v9954 = vpop.f32.mrb[0].mxu0
    %v9955 = vadd.f32 %v8987, %v9954
    %v9956 = vpop.f32.mrb[0].mxu0
    %v9957 = vadd.f32 %v8983, %v9956
    %v9958 = vpop.f32.mrb[0].mxu0
    %v9959 = vadd.f32 %v8987, %v9958
    %9960 = vmatprep.mubr.bf16.mxu0 %v8839
    %9961 = vmatmul.mubr.bf16.gmra.mrb[0].mxu0 %v8838
    %v9962 = vpop.f32.mrb[0].mxu0
    %v9963 = vadd.f32 %v8983, %v9962
    %v9964 = vpop.f32.mrb[0].mxu0
    %v9965 = vadd.f32 %v8987, %v9964
    %v9966 = vpop.f32.mrb[0].mxu0
    %v9967 = vadd.f32 %v8983, %v9966
    %v9968 = vpop.f32.mrb[0].mxu0
    %v9969 = vadd.f32 %v8987, %v9968
    %9970 = vdwg.mxu0
    %9971 = vmatprep.subr.bf16.mxu0 %v9443
    %9972 = vmatpush1.bf16.msra.mxu0 %v9442
    %9973 = vmatprep.subr.bf16.mxu0 %v9447
    %9974 = vmatpush1.bf16.msra.mxu0 %v9446
    %9975 = vmatprep.subr.bf16.mxu0 %v9451
    %9976 = vmatpush1.bf16.msra.mxu0 %v9450
    %9977 = vmatprep.subr.bf16.mxu0 %v9455
    %9978 = vmatpush1.bf16.msra.mxu0 %v9454
    %9979 = vmatprep.subr.bf16.mxu0 %v9459
    %9980 = vmatpush1.bf16.msra.mxu0 %v9458
    %9981 = vmatprep.subr.bf16.mxu0 %v9463
    %9982 = vmatpush1.bf16.msra.mxu0 %v9462
    %9983 = vmatprep.subr.bf16.mxu0 %v9467
    %9984 = vmatpush1.bf16.msra.mxu0 %v9466
    %9985 = vmatprep.subr.bf16.mxu0 %v9471
    %9986 = vmatpush1.bf16.msra.mxu0 %v9470
    %9987 = vmatprep.subr.bf16.mxu0 %v9475
    %9988 = vmatpush1.bf16.msra.mxu0 %v9474
    %9989 = vmatprep.subr.bf16.mxu0 %v9479
    %9990 = vmatpush1.bf16.msra.mxu0 %v9478
    %9991 = vmatprep.subr.bf16.mxu0 %v9483
    %9992 = vmatpush1.bf16.msra.mxu0 %v9482
    %9993 = vmatprep.subr.bf16.mxu0 %v9487
    %9994 = vmatpush1.bf16.msra.mxu0 %v9486
    %9995 = vmatprep.subr.bf16.mxu0 %v9491
    %9996 = vmatpush1.bf16.msra.mxu0 %v9490
    %9997 = vmatprep.subr.bf16.mxu0 %v9495
    %9998 = vmatpush1.bf16.msra.mxu0 %v9494
    %9999 = vmatprep.subr.bf16.mxu0 %v9499
    %10000 = vmatpush1.bf16.msra.mxu0 %v9498
    %10001 = vmatprep.subr.bf16.mxu0 %v9503
    %10002 = vmatpush1.bf16.msra.mxu0 %v9502
    %10003 = vmatprep.mubr.bf16.mxu0 %v8813
    %10004 = vmatmul.mubr.bf16.gmra.mrb[0].mxu0 %v8812
    %v10005 = vpop.f32.mrb[0].mxu0
    %v10006 = vadd.f32 %v9893, %v10005
    %v10007 = vpop.f32.mrb[0].mxu0
    %v10008 = vadd.f32 %v9895, %v10007
    %v10009 = vpop.f32.mrb[0].mxu0
    %v10010 = vadd.f32 %v9897, %v10009
    %v10011 = vpop.f32.mrb[0].mxu0
    %v10012 = vadd.f32 %v9899, %v10011
    %10013 = vmatprep.mubr.bf16.mxu0 %v8817
    %10014 = vmatmul.mubr.bf16.gmra.mrb[0].mxu0 %v8816
    %v10015 = vpop.f32.mrb[0].mxu0
    %v10016 = vadd.f32 %v9903, %v10015
    %v10017 = vpop.f32.mrb[0].mxu0
    %v10018 = vadd.f32 %v9905, %v10017
    %v10019 = vpop.f32.mrb[0].mxu0
    %v10020 = vadd.f32 %v9907, %v10019
    %v10021 = vpop.f32.mrb[0].mxu0
    %v10022 = vadd.f32 %v9909, %v10021
    %10023 = vmatprep.mubr.bf16.mxu0 %v8821
    %10024 = vmatmul.mubr.bf16.gmra.mrb[0].mxu0 %v8820
    %v10025 = vpop.f32.mrb[0].mxu0
    %v10026 = vadd.f32 %v9913, %v10025
    %v10027 = vpop.f32.mrb[0].mxu0
    %v10028 = vadd.f32 %v9915, %v10027
    %v10029 = vpop.f32.mrb[0].mxu0
    %v10030 = vadd.f32 %v9917, %v10029
    %v10031 = vpop.f32.mrb[0].mxu0
    %v10032 = vadd.f32 %v9919, %v10031
    %10033 = vmatprep.mubr.bf16.mxu0 %v8825
    %10034 = vmatmul.mubr.bf16.gmra.mrb[0].mxu0 %v8824
    %v10035 = vpop.f32.mrb[0].mxu0
    %v10036 = vadd.f32 %v9923, %v10035
    %v10037 = vpop.f32.mrb[0].mxu0
    %v10038 = vadd.f32 %v9925, %v10037
    %v10039 = vpop.f32.mrb[0].mxu0
    %v10040 = vadd.f32 %v9927, %v10039
    %v10041 = vpop.f32.mrb[0].mxu0
    %v10042 = vadd.f32 %v9929, %v10041
    %10043 = vmatprep.mubr.bf16.mxu0 %v8829
    %10044 = vmatmul.mubr.bf16.gmra.mrb[0].mxu0 %v8828
    %v10045 = vpop.f32.mrb[0].mxu0
    %v10046 = vadd.f32 %v9933, %v10045
    %v10047 = vpop.f32.mrb[0].mxu0
    %v10048 = vadd.f32 %v9935, %v10047
    %v10049 = vpop.f32.mrb[0].mxu0
    %v10050 = vadd.f32 %v9937, %v10049
    %v10051 = vpop.f32.mrb[0].mxu0
    %v10052 = vadd.f32 %v9939, %v10051
    %10053 = vmatprep.mubr.bf16.mxu0 %v8833
    %10054 = vmatmul.mubr.bf16.gmra.mrb[0].mxu0 %v8832
    %v10055 = vpop.f32.mrb[0].mxu0
    %v10056 = vadd.f32 %v9943, %v10055
    %v10057 = vpop.f32.mrb[0].mxu0
    %v10058 = vadd.f32 %v9945, %v10057
    %v10059 = vpop.f32.mrb[0].mxu0
    %v10060 = vadd.f32 %v9947, %v10059
    %v10061 = vpop.f32.mrb[0].mxu0
    %v10062 = vadd.f32 %v9949, %v10061
    %10063 = vmatprep.mubr.bf16.mxu0 %v8837
    %10064 = vmatmul.mubr.bf16.gmra.mrb[0].mxu0 %v8836
    %v10065 = vpop.f32.mrb[0].mxu0
    %v10066 = vadd.f32 %v9953, %v10065
    %v10067 = vpop.f32.mrb[0].mxu0
    %v10068 = vadd.f32 %v9955, %v10067
    %v10069 = vpop.f32.mrb[0].mxu0
    %v10070 = vadd.f32 %v9957, %v10069
    %v10071 = vpop.f32.mrb[0].mxu0
    %v10072 = vadd.f32 %v9959, %v10071
    %10073 = vmatprep.mubr.bf16.mxu0 %v8841
    %10074 = vmatmul.mubr.bf16.gmra.mrb[0].mxu0 %v8840
    %v10075 = vpop.f32.mrb[0].mxu0
    %v10076 = vadd.f32 %v9963, %v10075
    %v10077 = vpop.f32.mrb[0].mxu0
    %v10078 = vadd.f32 %v9965, %v10077
    %v10079 = vpop.f32.mrb[0].mxu0
    %v10080 = vadd.f32 %v9967, %v10079
    %v10081 = vpop.f32.mrb[0].mxu0
    %v10082 = vadd.f32 %v9969, %v10081
    %10083 = vdwg.mxu0
    %10084 = vst [vmem:[#allocation2] sm:$0xff] %v9780
    %10085 = vst [vmem:[#allocation2 + $0x8] sm:$0xff] %v9782
    %10086 = vst [vmem:[#allocation2 + $0x10] sm:$0xff] %v10006
    %10087 = vst [vmem:[#allocation2 + $0x18] sm:$0xff] %v10008
    %10088 = vst [vmem:[#allocation2 + $0x20] sm:$0xff] %v9784
    %10089 = vst [vmem:[#allocation2 + $0x28] sm:$0xff] %v9786
    %10090 = vst [vmem:[#allocation2 + $0x30] sm:$0xff] %v10010
    %10091 = vst [vmem:[#allocation2 + $0x38] sm:$0xff] %v10012
    %10092 = vst [vmem:[#allocation2 + $0x40] sm:$0xff] %v9790
    %10093 = vst [vmem:[#allocation2 + $0x48] sm:$0xff] %v9792
    %10094 = vst [vmem:[#allocation2 + $0x50] sm:$0xff] %v10016
    %10095 = vst [vmem:[#allocation2 + $0x58] sm:$0xff] %v10018
    %10096 = vst [vmem:[#allocation2 + $0x60] sm:$0xff] %v9794
    %10097 = vst [vmem:[#allocation2 + $0x68] sm:$0xff] %v9796
    %10098 = vst [vmem:[#allocation2 + $0x70] sm:$0xff] %v10020
    %10099 = vst [vmem:[#allocation2 + $0x78] sm:$0xff] %v10022
    %10100 = vst [vmem:[#allocation2 + $0x80] sm:$0xff] %v9800
    %10101 = vst [vmem:[#allocation2 + $0x88] sm:$0xff] %v9802
    %10102 = vst [vmem:[#allocation2 + $0x90] sm:$0xff] %v10026
    %10103 = vst [vmem:[#allocation2 + $0x98] sm:$0xff] %v10028
    %10104 = vst [vmem:[#allocation2 + $0xa0] sm:$0xff] %v9804
    %10105 = vst [vmem:[#allocation2 + $0xa8] sm:$0xff] %v9806
    %10106 = vst [vmem:[#allocation2 + $0xb0] sm:$0xff] %v10030
    %10107 = vst [vmem:[#allocation2 + $0xb8] sm:$0xff] %v10032
    %10108 = vst [vmem:[#allocation2 + $0xc0] sm:$0xff] %v9810
    %10109 = vst [vmem:[#allocation2 + $0xc8] sm:$0xff] %v9812
    %10110 = vst [vmem:[#allocation2 + $0xd0] sm:$0xff] %v10036
    %10111 = vst [vmem:[#allocation2 + $0xd8] sm:$0xff] %v10038
    %10112 = vst [vmem:[#allocation2 + $0xe0] sm:$0xff] %v9814
    %10113 = vst [vmem:[#allocation2 + $0xe8] sm:$0xff] %v9816
    %10114 = vst [vmem:[#allocation2 + $0xf0] sm:$0xff] %v10040
    %10115 = vst [vmem:[#allocation2 + $0xf8] sm:$0xff] %v10042
    %10116 = vst [vmem:[#allocation2 + $0x100] sm:$0xff] %v9820
    %10117 = vst [vmem:[#allocation2 + $0x108] sm:$0xff] %v9822
    %10118 = vst [vmem:[#allocation2 + $0x110] sm:$0xff] %v10046
    %10119 = vst [vmem:[#allocation2 + $0x118] sm:$0xff] %v10048
    %10120 = vst [vmem:[#allocation2 + $0x120] sm:$0xff] %v9824
    %10121 = vst [vmem:[#allocation2 + $0x128] sm:$0xff] %v9826
    %10122 = vst [vmem:[#allocation2 + $0x130] sm:$0xff] %v10050
    %10123 = vst [vmem:[#allocation2 + $0x138] sm:$0xff] %v10052
    %10124 = vst [vmem:[#allocation2 + $0x140] sm:$0xff] %v9830
    %10125 = vst [vmem:[#allocation2 + $0x148] sm:$0xff] %v9832
    %10126 = vst [vmem:[#allocation2 + $0x150] sm:$0xff] %v10056
    %10127 = vst [vmem:[#allocation2 + $0x158] sm:$0xff] %v10058
    %10128 = vst [vmem:[#allocation2 + $0x160] sm:$0xff] %v9834
    %10129 = vst [vmem:[#allocation2 + $0x168] sm:$0xff] %v9836
    %10130 = vst [vmem:[#allocation2 + $0x170] sm:$0xff] %v10060
    %10131 = vst [vmem:[#allocation2 + $0x178] sm:$0xff] %v10062
    %10132 = vst [vmem:[#allocation2 + $0x180] sm:$0xff] %v9840
    %10133 = vst [vmem:[#allocation2 + $0x188] sm:$0xff] %v9842
    %10134 = vst [vmem:[#allocation2 + $0x190] sm:$0xff] %v10066
    %10135 = vst [vmem:[#allocation2 + $0x198] sm:$0xff] %v10068
    %10136 = vst [vmem:[#allocation2 + $0x1a0] sm:$0xff] %v9844
    %10137 = vst [vmem:[#allocation2 + $0x1a8] sm:$0xff] %v9846
    %10138 = vst [vmem:[#allocation2 + $0x1b0] sm:$0xff] %v10070
    %10139 = vst [vmem:[#allocation2 + $0x1b8] sm:$0xff] %v10072
    %10140 = vst [vmem:[#allocation2 + $0x1c0] sm:$0xff] %v9850
    %10141 = vst [vmem:[#allocation2 + $0x1c8] sm:$0xff] %v9852
    %10142 = vst [vmem:[#allocation2 + $0x1d0] sm:$0xff] %v10076
    %10143 = vst [vmem:[#allocation2 + $0x1d8] sm:$0xff] %v10078
    %10144 = vst [vmem:[#allocation2 + $0x1e0] sm:$0xff] %v9854
    %10145 = vst [vmem:[#allocation2 + $0x1e8] sm:$0xff] %v9856
    %10146 = vst [vmem:[#allocation2 + $0x1f0] sm:$0xff] %v10080
    %10147 = vst [vmem:[#allocation2 + $0x1f8] sm:$0xff] %v10082
    // Predicated region
    $region30: #{s2_attention.1} parent=1 // pred_check
      _
    $region31: #{s2_attention.1} parent=1 // pred_check_branch
      %10149 = sbr.rel (0) target = $region33
    $region32: #{s2_attention.1} parent=1 // pred_region
      %s10151 = ssub.s32 8192, 8192
      %10152 = vsyncadd [#allocation3], %s10151
      %s10153 = sshll.u32 [#allocation2], 4
      %s10154 = int_to_ptr.vmem [resolvable:$true] %s10153
      %10159 = dma.vmem_to_hbm [thread:$0]  %s10154, 8192, %s7, [#allocation3], 512, 512, 32
    $region33: #{s2_attention.1} parent=1 // pred_fallthru
      _
    // Predicated region
    $region34: #{s2_attention.1} parent=1 // pred_check
      _
    $region35: #{s2_attention.1} parent=1 // pred_check_branch
      %10161 = sbr.rel (0) target = $region37
    $region36: #{s2_attention.1} parent=1 // pred_region
      %10162 = dma.done [#allocation3], 8192
    $region37: #{s2_attention.1} parent=1 // pred_fallthru
      _
    %10163 = vsyncpa [#allocation3], 1

</llo_original>
